<compile_context>
chip_gen: v7x
topology: tpu7x:2x2x1
jax: 0.10.0
libtpu: 0.0.40
codegen_flags: <defaults>
</compile_context>

<pallas_src>
import math

import numpy as np

import jax
import jax.numpy as jnp
from jax.experimental import pallas as pl
from jax.experimental.pallas import tpu as pltpu

F32 = jnp.float32
BF16 = jnp.bfloat16
_TAPS = tuple((i, j) for i in range(3) for j in range(3))

# Operand order shared by the wrapper (input list) and the kernel (ref unpack).
_KERNEL_OPERANDS = (
    "x", "z",
    "zw1", "zb1", "zw2", "zb2",            # z-encoder: (Linear, ReLU) x 2
    "k_d0", "kz_d0",                       # down0 (LeakyReLU, no BN)
    "k_d1", "kz_d1", "g_d1", "b_d1",       # down1 (+BatchNorm)
    "k_d2", "kz_d2",                       # down2 (LeakyReLU, no BN)
    "k_u2", "g_u2", "b_u2",                # up2   (+BatchNorm, ReLU)
    "k_u1a", "k_u1b", "g_u1", "b_u1",      # up1   (prev + skip d1)
    "k_u0a", "k_u0b", "g_u0", "b_u0",      # up0   (prev + skip d0)
    "k_f",                                 # final conv (+tanh), NCHW column order
    "p9", "pt9", "p36", "pt36", "p121", "pt121",   # BN channel select / broadcast matrices
)


# --------------------------- fused Pallas kernel -----------------------------

def _mxu(act, k_ref):
    # bf16 MXU inputs, f32 accumulation; all epilogue math stays f32 (v5e-safe).
    return jnp.dot(act.astype(BF16), k_ref[...], preferred_element_type=F32)


def _f32dot(a, b):
    return jnp.dot(a, b, preferred_element_type=F32)


def _lrelu(x):
    return jnp.where(x >= 0, x, 0.2 * x)


def _batchnorm(pre, p_ref, pt_ref, g_ref, b_ref, eps=1e-10):
    """Train-mode BatchNorm2d on (B, Mb*C) activations (pixel-major, channel-minor columns).

    Per-channel statistics over batch x pixels via tiny 0/1 select (P) / broadcast (P^T)
    matmuls; two-pass (centered) variance, everything f32.  eps=1e-10 as in the module.
    TODO(synk): eval-mode BatchNorm (running_mean / running_var) would need those buffers
    passed in; a freshly-constructed reference module uses train-mode batch stats.
    """
    P = p_ref[...]                                   # (Mb*C, C)
    PT = pt_ref[...]                                 # (C, Mb*C)
    inv_n = 1.0 / (pre.shape[0] * (P.shape[0] // P.shape[1]))     # 1 / (B * Mb)
    mean = jnp.sum(_f32dot(pre, P), axis=0, keepdims=True) * inv_n           # (1, C)
    cent = pre - _f32dot(mean, PT)
    var = jnp.sum(_f32dot(cent * cent, P), axis=0, keepdims=True) * inv_n    # (1, C)
    scale = g_ref[...] * jax.lax.rsqrt(var + eps)                            # (1, C)
    return cent * _f32dot(scale, PT) + _f32dot(b_ref[...], PT)


def _generator_kernel(*refs):
    r = dict(zip(_KERNEL_OPERANDS, refs[:-1]))
    o_ref = refs[-1]

    # ---- z encoder: Linear -> ReLU -> Linear -> ReLU (tiny, f32) ----
    z = r["z"][...]
    h = jnp.maximum(_f32dot(z, r["zw1"][...]) + r["zb1"][...], 0.0)
    z_enc = jnp.maximum(_f32dot(h, r["zw2"][...]) + r["zb2"][...], 0.0)

    x = r["x"][...]                                  # (B, Cin*H*W)  NCHW rows

    # ---- encoder: conv(cat(x, tile(z))) == x @ K + z_enc @ Kz  (taps folded host-side) ----
    d0 = _lrelu(_mxu(x, r["k_d0"]) + _f32dot(z_enc, r["kz_d0"][...]))
    d1 = _lrelu(_batchnorm(_mxu(d0, r["k_d1"]) + _f32dot(z_enc, r["kz_d1"][...]),
                           r["p9"], r["pt9"], r["g_d1"], r["b_d1"]))
    d2 = _lrelu(_mxu(d1, r["k_d2"]) + _f32dot(z_enc, r["kz_d2"][...]))

    # ---- decoder: convT(cat(prev, skip)) == prev @ Ka + skip @ Kb ----
    # (ConvTranspose bias omitted: exactly cancelled by the train-mode BN mean subtraction.)
    u2 = jnp.maximum(_batchnorm(_mxu(d2, r["k_u2"]),
                                r["p9"], r["pt9"], r["g_u2"], r["b_u2"]), 0.0)
    u1 = jnp.maximum(_batchnorm(_mxu(u2, r["k_u1a"]) + _mxu(d1, r["k_u1b"]),
                                r["p36"], r["pt36"], r["g_u1"], r["b_u1"]), 0.0)
    u0 = jnp.maximum(_batchnorm(_mxu(u1, r["k_u0a"]) + _mxu(d0, r["k_u0b"]),
                                r["p121"], r["pt121"], r["g_u0"], r["b_u0"]), 0.0)

    # ---- final conv + tanh; columns already in per-batch NCHW (channel-major) order ----
    o_ref[...] = jnp.tanh(_mxu(u0, r["k_f"]))


# --------------------- host-side geometry (built once, numpy) ----------------

def _conv_select(hin, win, stride):
    """Per-batch 0/1 gather for Conv2d(k=3, padding=1, stride): (9, Ho*Wo, Hin*Win)."""
    ho = (hin + 2 - 3) // stride + 1
    wo = (win + 2 - 3) // stride + 1
    S = np.zeros((9, ho * wo, hin * win), np.float32)
    for t, (ki, kj) in enumerate(_TAPS):
        for oh in range(ho):
            ih = oh * stride + ki - 1
            if not 0 <= ih < hin:
                continue
            for ow in range(wo):
                iw = ow * stride + kj - 1
                if 0 <= iw < win:
                    S[t, oh * wo + ow, ih * win + iw] = 1.0
    return S, ho, wo


def _convT_select(hin, win, out_pad):
    """Per-batch 0/1 gather for ConvTranspose2d(k=3, stride=2, padding=1, output_padding)."""
    ho = (hin - 1) * 2 - 2 + 3 + out_pad
    wo = (win - 1) * 2 - 2 + 3 + out_pad
    S = np.zeros((9, ho * wo, hin * win), np.float32)
    for t, (ki, kj) in enumerate(_TAPS):
        for oh in range(ho):
            nh = oh + 1 - ki
            if nh % 2 or not 0 <= nh // 2 < hin:
                continue
            ih = nh // 2
            for ow in range(wo):
                nw = ow + 1 - kj
                if nw % 2 or not 0 <= nw // 2 < win:
                    continue
                S[t, oh * wo + ow, ih * win + (nw // 2)] = 1.0
    return S, ho, wo


# --------------------- weight folding (done once in prepare) -----------------

def _conv_w_taps(w):
    """torch Conv2d weight (Cout, Cin, 3, 3) -> (9, Cin, Cout), tap-major."""
    w = np.asarray(w, np.float32)
    return np.stack([w[:, :, i, j].T for (i, j) in _TAPS], axis=0)


def _convT_w_taps(w):
    """torch ConvTranspose2d weight (Cin, Cout, 3, 3) -> (9, Cin, Cout), tap-major."""
    w = np.asarray(w, np.float32)
    return np.stack([w[:, :, i, j] for (i, j) in _TAPS], axis=0)


def _fold(S, w_taps, *, in_ch_major=False, out_ch_major=False):
    """Fold the 9 gather matrices and tap weights into one dense operator K.

    S: (9, Mb, Nb) per-batch 0/1 gather; w_taps: (9, Cin, Cout).
    Input  column order: p*Cin+ci  (or ci*Nb+p  if in_ch_major, i.e. NCHW-flat input).
    Output column order: m*Cout+co (or co*Mb+m if out_ch_major, i.e. NCHW-flat output).
    Satisfies  flatten(sum_t S_t @ X @ W_t) == x_row @ K   per batch.  Any (m, p) pair is
    reached by at most one tap, so each K entry is a single weight value (bf16-safe).
    """
    K = np.einsum('tmp,tcf->pcmf', S, w_taps)        # (Nb, Cin, Mb, Cout)
    if in_ch_major:
        K = K.transpose(1, 0, 2, 3)
    if out_ch_major:
        K = K.transpose(0, 1, 3, 2)
    a, b, c, d = K.shape
    return np.ascontiguousarray(K).reshape(a * b, c * d)


def _fold_z(S, wz_taps):
    """z contribution of a down conv: every pixel sees the same z -> Kz (zc, Mb*Cout)."""
    Kz = np.einsum('tmp,tzf->zmf', S, wz_taps)
    return Kz.reshape(Kz.shape[0], -1)


def _chan_mats(mb, c):
    """Channel select (Mb*C, C) and broadcast (C, Mb*C) 0/1 matrices for BatchNorm."""
    P = np.tile(np.eye(c, dtype=np.float32), (mb, 1))
    return P, np.ascontiguousarray(P.T)


# --------------------------- model builder -----------------------------------

def make_attack_generator(B, H, W, *, base=8, in_ch=3, zc=4, last_dim=3):
    # Static geometry (deeper_layer=False): 3 downs (stride 2), 3 ups (output_padding 0/1/0),
    # final stride-1 conv.  Per-batch gathers (batches are independent and identical).
    S0, h0, w0 = _conv_select(H, W, 2)
    S1, h1, w1 = _conv_select(h0, w0, 2)
    S2, h2, w2 = _conv_select(h1, w1, 2)
    SU2, hu2, wu2 = _convT_select(h2, w2, 0)
    SU1, hu1, wu1 = _convT_select(hu2, wu2, 1)
    SU0, hu0, wu0 = _convT_select(hu1, wu1, 0)
    SF, hf, wf = _conv_select(hu0, wu0, 1)
    assert (hu2, wu2) == (h1, w1) and (hu1, wu1) == (h0, w0), \
        "spatial size incompatible with UNet skip connections (use e.g. H=W=12)"

    # BN channel select/broadcast matrices, shared across layers of equal spatial size.
    p9_np, pt9_np = _chan_mats(h1 * w1, base)          # d1 / u2 outputs
    p36_np, pt36_np = _chan_mats(hu1 * wu1, base)      # u1 output
    p121_np, pt121_np = _chan_mats(hu0 * wu0, base)    # u0 output

    def prepare(params):
        """One-time repack: fold tap gathers + weights into per-layer dense operators."""
        p = params

        def r2(v):
            return jnp.asarray(v, F32).reshape(1, -1)

        def bf(k):
            return jnp.asarray(k, BF16)

        w_d0 = _conv_w_taps(p["down0"]["conv_w"])       # (9, in_ch+zc, base)
        w_d1 = _conv_w_taps(p["down1"]["conv_w"])       # (9, base+zc,  base)
        w_d2 = _conv_w_taps(p["down2"]["conv_w"])       # (9, base+zc,  2*base)
        w_u2 = _convT_w_taps(p["up2"]["w"])             # (9, 2*base,   base)
        w_u1 = _convT_w_taps(p["up1"]["w"])             # (9, 2*base,   base)
        w_u0 = _convT_w_taps(p["up0"]["w"])             # (9, 2*base,   base)
        w_f = _conv_w_taps(p["final_w"])                # (9, base,     last_dim)

        ops = dict(
            zw1=jnp.asarray(p["zenc"]["w1"], F32).T, zb1=r2(p["zenc"]["b1"]),
            zw2=jnp.asarray(p["zenc"]["w2"], F32).T, zb2=r2(p["zenc"]["b2"]),
            # down convs: x channels first, z channels last (torch.cat((x, tile(z)), 1) order).
            # down0 consumes the raw NCHW-flat input -> channel-major input columns baked in.
            k_d0=bf(_fold(S0, w_d0[:, :in_ch], in_ch_major=True)),
            kz_d0=jnp.asarray(_fold_z(S0, w_d0[:, in_ch:]), F32),
            k_d1=bf(_fold(S1, w_d1[:, :base])),
            kz_d1=jnp.asarray(_fold_z(S1, w_d1[:, base:]), F32),
            g_d1=r2(p["down1"]["bn_g"]), b_d1=r2(p["down1"]["bn_b"]),
            k_d2=bf(_fold(S2, w_d2[:, :base])),
            kz_d2=jnp.asarray(_fold_z(S2, w_d2[:, base:]), F32),
            # up convs: upconv-output channels first, skip channels last (torch.cat(out, skip)).
            # ConvTranspose biases dropped: cancelled exactly by the train-mode BN that follows.
            k_u2=bf(_fold(SU2, w_u2)),
            g_u2=r2(p["up2"]["bn_g"]), b_u2=r2(p["up2"]["bn_b"]),
            k_u1a=bf(_fold(SU1, w_u1[:, :base])), k_u1b=bf(_fold(SU1, w_u1[:, base:])),
            g_u1=r2(p["up1"]["bn_g"]), b_u1=r2(p["up1"]["bn_b"]),
            k_u0a=bf(_fold(SU0, w_u0[:, :base])), k_u0b=bf(_fold(SU0, w_u0[:, base:])),
            g_u0=r2(p["up0"]["bn_g"]), b_u0=r2(p["up0"]["bn_b"]),
            # final conv: output columns in per-batch NCHW (channel-major) order.
            k_f=bf(_fold(SF, w_f, out_ch_major=True)),
            p9=jnp.asarray(p9_np, F32), pt9=jnp.asarray(pt9_np, F32),
            p36=jnp.asarray(p36_np, F32), pt36=jnp.asarray(pt36_np, F32),
            p121=jnp.asarray(p121_np, F32), pt121=jnp.asarray(pt121_np, F32),
        )
        return ops

    def _full_block(a):
        nd = a.ndim
        shape = tuple(a.shape)

        def idx(i):
            return (0,) * nd

        return pl.BlockSpec(shape, idx)

    out_cols = last_dim * hf * wf

    @jax.jit
    def forward(ops, x_nchw, z):
        # NCHW -> (B, Cin*H*W) rows: a free, layout-preserving reshape (no transpose dispatch).
        x_rows = x_nchw.astype(F32).reshape(B, in_ch * H * W)
        operands = {"x": x_rows, "z": z.astype(F32), **ops}
        inputs = [operands[k] for k in _KERNEL_OPERANDS]

        # Single fused call; a lone tiny forward is latency-bound so it stays on one TensorCore.
        # If many independent (x, z) samples are run per step, batch them here and add a leading
        # "parallel" grid axis to use both v7x TensorCores.
        out2d = pl.pallas_call(
            _generator_kernel,
            out_shape=jax.ShapeDtypeStruct((B, out_cols), F32),
            grid=(1,),
            in_specs=[_full_block(a) for a in inputs],
            out_specs=pl.BlockSpec((B, out_cols), lambda i: (0, 0)),
            compiler_params=pltpu.CompilerParams(
                dimension_semantics=("arbitrary",),
                vmem_limit_bytes=32 * 1024 * 1024,
            ),
        )(*inputs)

        # Columns are already (channel, oh, ow) per batch -> free reshape to NCHW.
        return out2d.reshape(B, last_dim, hf, wf)

    return forward, prepare


# --------------------------- deterministic params -----------------------------

def init_params(key, base=8, in_ch=3, zc=4, last_dim=3):
    keys = iter(jax.random.split(key, 32))

    def u(shape, fan_in):
        bnd = 1.0 / math.sqrt(fan_in)
        return jax.random.uniform(next(keys), shape, jnp.float32, -bnd, bnd)

    p = {}
    p["down0"] = {"conv_w": u((base, in_ch + zc, 3, 3), (in_ch + zc) * 9)}
    p["down1"] = {"conv_w": u((base, base + zc, 3, 3), (base + zc) * 9),
                  "bn_g": jnp.ones((base,), jnp.float32),
                  "bn_b": jnp.zeros((base,), jnp.float32)}
    p["down2"] = {"conv_w": u((2 * base, base + zc, 3, 3), (base + zc) * 9)}
    for name, cin in (("up2", 2 * base), ("up1", 2 * base), ("up0", 2 * base)):
        p[name] = {"w": u((cin, base, 3, 3), cin * 9),
                   "b": u((base,), cin * 9),   # present in the module; no-op under train-mode BN
                   "bn_g": jnp.ones((base,), jnp.float32),
                   "bn_b": jnp.zeros((base,), jnp.float32)}
    p["final_w"] = u((last_dim, base, 3, 3), base * 9)
    p["zenc"] = {"w1": u((zc, zc), zc), "b1": u((zc,), zc),
                 "w2": u((zc, zc), zc), "b2": u((zc,), zc)}
    return p


# --------------------------- main ---------------------------------------------

if __name__ == "__main__":
    key = jax.random.PRNGKey(0)
    kx, kz, kp = jax.random.split(key, 3)

    B, C_IN, H, W = 2, 3, 12, 12          # 12 -> 6 -> 3 -> 2 keeps the UNet skip shapes consistent
    Z_CH, BASE, LAST = 4, 8, 3

    x = jax.random.normal(kx, (B, C_IN, H, W), jnp.float32)   # NCHW like PyTorch
    z = jax.random.normal(kz, (B, Z_CH), jnp.float32)
    params = init_params(kp, base=BASE, in_ch=C_IN, zc=Z_CH, last_dim=LAST)

    forward, prepare = make_attack_generator(B, H, W, base=BASE, in_ch=C_IN,
                                             zc=Z_CH, last_dim=LAST)
    ops = prepare(params)                  # one-time weight/geometry fold

    out = forward(ops, x, z)
    out = jax.block_until_ready(out)

    assert out.shape == (B, LAST, 11, 11), out.shape
    assert bool(jnp.all(jnp.isfinite(out)))
    print("KERNEL_OK")
</pallas_src>

<mosaic_0001>
module attributes {stable_mosaic.version = 11 : i64} {
  func.func @_generator_kernel(%arg0: i32, %arg1: memref<2x432xf32, #tpu.memory_space<vmem>>, %arg2: memref<2x4xf32, #tpu.memory_space<vmem>>, %arg3: memref<4x4xf32, #tpu.memory_space<vmem>>, %arg4: memref<1x4xf32, #tpu.memory_space<vmem>>, %arg5: memref<4x4xf32, #tpu.memory_space<vmem>>, %arg6: memref<1x4xf32, #tpu.memory_space<vmem>>, %arg7: memref<432x288xbf16, #tpu.memory_space<vmem>>, %arg8: memref<4x288xf32, #tpu.memory_space<vmem>>, %arg9: memref<288x72xbf16, #tpu.memory_space<vmem>>, %arg10: memref<4x72xf32, #tpu.memory_space<vmem>>, %arg11: memref<1x8xf32, #tpu.memory_space<vmem>>, %arg12: memref<1x8xf32, #tpu.memory_space<vmem>>, %arg13: memref<72x64xbf16, #tpu.memory_space<vmem>>, %arg14: memref<4x64xf32, #tpu.memory_space<vmem>>, %arg15: memref<64x72xbf16, #tpu.memory_space<vmem>>, %arg16: memref<1x8xf32, #tpu.memory_space<vmem>>, %arg17: memref<1x8xf32, #tpu.memory_space<vmem>>, %arg18: memref<72x288xbf16, #tpu.memory_space<vmem>>, %arg19: memref<72x288xbf16, #tpu.memory_space<vmem>>, %arg20: memref<1x8xf32, #tpu.memory_space<vmem>>, %arg21: memref<1x8xf32, #tpu.memory_space<vmem>>, %arg22: memref<288x968xbf16, #tpu.memory_space<vmem>>, %arg23: memref<288x968xbf16, #tpu.memory_space<vmem>>, %arg24: memref<1x8xf32, #tpu.memory_space<vmem>>, %arg25: memref<1x8xf32, #tpu.memory_space<vmem>>, %arg26: memref<968x363xbf16, #tpu.memory_space<vmem>>, %arg27: memref<72x8xf32, #tpu.memory_space<vmem>>, %arg28: memref<8x72xf32, #tpu.memory_space<vmem>>, %arg29: memref<288x8xf32, #tpu.memory_space<vmem>>, %arg30: memref<8x288xf32, #tpu.memory_space<vmem>>, %arg31: memref<968x8xf32, #tpu.memory_space<vmem>>, %arg32: memref<8x968xf32, #tpu.memory_space<vmem>>, %arg33: memref<2x363xf32, #tpu.memory_space<vmem>>) attributes {dimension_semantics = [#tpu.dimension_semantics<arbitrary>], iteration_bounds = array<i64: 1>, scalar_prefetch = 0 : i64, scratch_operands = 0 : i64, tpu.core_type = #tpu.core_type<tc>, window_params = [{pipeline_mode = #tpu.pipeline_mode<synchronous>, transform_indices = @transform_0, window_bounds = array<i64: 2, 432>}, {pipeline_mode = #tpu.pipeline_mode<synchronous>, transform_indices = @transform_1, window_bounds = array<i64: 2, 4>}, {pipeline_mode = #tpu.pipeline_mode<synchronous>, transform_indices = @transform_2, window_bounds = array<i64: 4, 4>}, {pipeline_mode = #tpu.pipeline_mode<synchronous>, transform_indices = @transform_3, window_bounds = array<i64: 1, 4>}, {pipeline_mode = #tpu.pipeline_mode<synchronous>, transform_indices = @transform_4, window_bounds = array<i64: 4, 4>}, {pipeline_mode = #tpu.pipeline_mode<synchronous>, transform_indices = @transform_5, window_bounds = array<i64: 1, 4>}, {pipeline_mode = #tpu.pipeline_mode<synchronous>, transform_indices = @transform_6, window_bounds = array<i64: 432, 288>}, {pipeline_mode = #tpu.pipeline_mode<synchronous>, transform_indices = @transform_7, window_bounds = array<i64: 4, 288>}, {pipeline_mode = #tpu.pipeline_mode<synchronous>, transform_indices = @transform_8, window_bounds = array<i64: 288, 72>}, {pipeline_mode = #tpu.pipeline_mode<synchronous>, transform_indices = @transform_9, window_bounds = array<i64: 4, 72>}, {pipeline_mode = #tpu.pipeline_mode<synchronous>, transform_indices = @transform_10, window_bounds = array<i64: 1, 8>}, {pipeline_mode = #tpu.pipeline_mode<synchronous>, transform_indices = @transform_11, window_bounds = array<i64: 1, 8>}, {pipeline_mode = #tpu.pipeline_mode<synchronous>, transform_indices = @transform_12, window_bounds = array<i64: 72, 64>}, {pipeline_mode = #tpu.pipeline_mode<synchronous>, transform_indices = @transform_13, window_bounds = array<i64: 4, 64>}, {pipeline_mode = #tpu.pipeline_mode<synchronous>, transform_indices = @transform_14, window_bounds = array<i64: 64, 72>}, {pipeline_mode = #tpu.pipeline_mode<synchronous>, transform_indices = @transform_15, window_bounds = array<i64: 1, 8>}, {pipeline_mode = #tpu.pipeline_mode<synchronous>, transform_indices = @transform_16, window_bounds = array<i64: 1, 8>}, {pipeline_mode = #tpu.pipeline_mode<synchronous>, transform_indices = @transform_17, window_bounds = array<i64: 72, 288>}, {pipeline_mode = #tpu.pipeline_mode<synchronous>, transform_indices = @transform_18, window_bounds = array<i64: 72, 288>}, {pipeline_mode = #tpu.pipeline_mode<synchronous>, transform_indices = @transform_19, window_bounds = array<i64: 1, 8>}, {pipeline_mode = #tpu.pipeline_mode<synchronous>, transform_indices = @transform_20, window_bounds = array<i64: 1, 8>}, {pipeline_mode = #tpu.pipeline_mode<synchronous>, transform_indices = @transform_21, window_bounds = array<i64: 288, 968>}, {pipeline_mode = #tpu.pipeline_mode<synchronous>, transform_indices = @transform_22, window_bounds = array<i64: 288, 968>}, {pipeline_mode = #tpu.pipeline_mode<synchronous>, transform_indices = @transform_23, window_bounds = array<i64: 1, 8>}, {pipeline_mode = #tpu.pipeline_mode<synchronous>, transform_indices = @transform_24, window_bounds = array<i64: 1, 8>}, {pipeline_mode = #tpu.pipeline_mode<synchronous>, transform_indices = @transform_25, window_bounds = array<i64: 968, 363>}, {pipeline_mode = #tpu.pipeline_mode<synchronous>, transform_indices = @transform_26, window_bounds = array<i64: 72, 8>}, {pipeline_mode = #tpu.pipeline_mode<synchronous>, transform_indices = @transform_27, window_bounds = array<i64: 8, 72>}, {pipeline_mode = #tpu.pipeline_mode<synchronous>, transform_indices = @transform_28, window_bounds = array<i64: 288, 8>}, {pipeline_mode = #tpu.pipeline_mode<synchronous>, transform_indices = @transform_29, window_bounds = array<i64: 8, 288>}, {pipeline_mode = #tpu.pipeline_mode<synchronous>, transform_indices = @transform_30, window_bounds = array<i64: 968, 8>}, {pipeline_mode = #tpu.pipeline_mode<synchronous>, transform_indices = @transform_31, window_bounds = array<i64: 8, 968>}, {pipeline_mode = #tpu.pipeline_mode<synchronous>, transform_indices = @transform_32, window_bounds = array<i64: 2, 363>}]} {
    %c0 = arith.constant 0 : index
    %c0_0 = arith.constant 0 : index
    %0 = vector.load %arg2[%c0, %c0_0] : memref<2x4xf32, #tpu.memory_space<vmem>>, vector<2x4xf32>
    %c0_1 = arith.constant 0 : index
    %c0_2 = arith.constant 0 : index
    %1 = vector.load %arg3[%c0_1, %c0_2] : memref<4x4xf32, #tpu.memory_space<vmem>>, vector<4x4xf32>
    %cst = arith.constant dense<0.000000e+00> : vector<2x4xf32>
    %2 = tpu.matmul %0, %1, %cst {dimension_numbers = #tpu.dot_dimension_numbers<[1], [0], [0], [1], [0, 0, 1, 1], [], []>} : vector<2x4xf32>, vector<4x4xf32>, vector<2x4xf32> -> vector<2x4xf32>
    %c0_3 = arith.constant 0 : index
    %c0_4 = arith.constant 0 : index
    %3 = vector.load %arg4[%c0_3, %c0_4] : memref<1x4xf32, #tpu.memory_space<vmem>>, vector<1x4xf32>
    %4 = vector.broadcast %3 : vector<1x4xf32> to vector<2x4xf32>
    %5 = arith.addf %2, %4 : vector<2x4xf32>
    %cst_5 = arith.constant 0.000000e+00 : f32
    %6 = vector.broadcast %cst_5 : f32 to vector<2x4xf32>
    %7 = arith.maximumf %5, %6 : vector<2x4xf32>
    %c0_6 = arith.constant 0 : index
    %c0_7 = arith.constant 0 : index
    %8 = vector.load %arg5[%c0_6, %c0_7] : memref<4x4xf32, #tpu.memory_space<vmem>>, vector<4x4xf32>
    %cst_8 = arith.constant dense<0.000000e+00> : vector<2x4xf32>
    %9 = tpu.matmul %7, %8, %cst_8 {dimension_numbers = #tpu.dot_dimension_numbers<[1], [0], [0], [1], [0, 0, 1, 1], [], []>} : vector<2x4xf32>, vector<4x4xf32>, vector<2x4xf32> -> vector<2x4xf32>
    %c0_9 = arith.constant 0 : index
    %c0_10 = arith.constant 0 : index
    %10 = vector.load %arg6[%c0_9, %c0_10] : memref<1x4xf32, #tpu.memory_space<vmem>>, vector<1x4xf32>
    %11 = vector.broadcast %10 : vector<1x4xf32> to vector<2x4xf32>
    %12 = arith.addf %9, %11 : vector<2x4xf32>
    %cst_11 = arith.constant 0.000000e+00 : f32
    %13 = vector.broadcast %cst_11 : f32 to vector<2x4xf32>
    %14 = arith.maximumf %12, %13 : vector<2x4xf32>
    %c0_12 = arith.constant 0 : index
    %c0_13 = arith.constant 0 : index
    %15 = vector.load %arg1[%c0_12, %c0_13] : memref<2x432xf32, #tpu.memory_space<vmem>>, vector<2x432xf32>
    %16 = arith.truncf %15 : vector<2x432xf32> to vector<2x432xbf16>
    %c0_14 = arith.constant 0 : index
    %c0_15 = arith.constant 0 : index
    %17 = vector.load %arg7[%c0_14, %c0_15] : memref<432x288xbf16, #tpu.memory_space<vmem>>, vector<432x288xbf16>
    %cst_16 = arith.constant dense<0.000000e+00> : vector<2x288xf32>
    %18 = tpu.matmul %16, %17, %cst_16 {dimension_numbers = #tpu.dot_dimension_numbers<[1], [0], [0], [1], [0, 0, 1, 1], [], []>} : vector<2x432xbf16>, vector<432x288xbf16>, vector<2x288xf32> -> vector<2x288xf32>
    %c0_17 = arith.constant 0 : index
    %c0_18 = arith.constant 0 : index
    %19 = vector.load %arg8[%c0_17, %c0_18] : memref<4x288xf32, #tpu.memory_space<vmem>>, vector<4x288xf32>
    %cst_19 = arith.constant dense<0.000000e+00> : vector<2x288xf32>
    %20 = tpu.matmul %14, %19, %cst_19 {dimension_numbers = #tpu.dot_dimension_numbers<[1], [0], [0], [1], [0, 0, 1, 1], [], []>} : vector<2x4xf32>, vector<4x288xf32>, vector<2x288xf32> -> vector<2x288xf32>
    %21 = arith.addf %18, %20 : vector<2x288xf32>
    %cst_20 = arith.constant 0.000000e+00 : f32
    %22 = vector.broadcast %cst_20 : f32 to vector<2x288xf32>
    %23 = arith.cmpf oge, %21, %22 : vector<2x288xf32>
    %cst_21 = arith.constant 2.000000e-01 : f32
    %24 = vector.broadcast %cst_21 : f32 to vector<2x288xf32>
    %25 = arith.mulf %24, %21 : vector<2x288xf32>
    %26 = arith.select %23, %21, %25 : vector<2x288xi1>, vector<2x288xf32>
    %27 = arith.truncf %26 : vector<2x288xf32> to vector<2x288xbf16>
    %c0_22 = arith.constant 0 : index
    %c0_23 = arith.constant 0 : index
    %28 = vector.load %arg9[%c0_22, %c0_23] : memref<288x72xbf16, #tpu.memory_space<vmem>>, vector<288x72xbf16>
    %cst_24 = arith.constant dense<0.000000e+00> : vector<2x72xf32>
    %29 = tpu.matmul %27, %28, %cst_24 {dimension_numbers = #tpu.dot_dimension_numbers<[1], [0], [0], [1], [0, 0, 1, 1], [], []>} : vector<2x288xbf16>, vector<288x72xbf16>, vector<2x72xf32> -> vector<2x72xf32>
    %c0_25 = arith.constant 0 : index
    %c0_26 = arith.constant 0 : index
    %30 = vector.load %arg10[%c0_25, %c0_26] : memref<4x72xf32, #tpu.memory_space<vmem>>, vector<4x72xf32>
    %cst_27 = arith.constant dense<0.000000e+00> : vector<2x72xf32>
    %31 = tpu.matmul %14, %30, %cst_27 {dimension_numbers = #tpu.dot_dimension_numbers<[1], [0], [0], [1], [0, 0, 1, 1], [], []>} : vector<2x4xf32>, vector<4x72xf32>, vector<2x72xf32> -> vector<2x72xf32>
    %32 = arith.addf %29, %31 : vector<2x72xf32>
    %c0_28 = arith.constant 0 : index
    %c0_29 = arith.constant 0 : index
    %33 = vector.load %arg27[%c0_28, %c0_29] : memref<72x8xf32, #tpu.memory_space<vmem>>, vector<72x8xf32>
    %c0_30 = arith.constant 0 : index
    %c0_31 = arith.constant 0 : index
    %34 = vector.load %arg28[%c0_30, %c0_31] : memref<8x72xf32, #tpu.memory_space<vmem>>, vector<8x72xf32>
    %cst_32 = arith.constant dense<0.000000e+00> : vector<2x8xf32>
    %35 = tpu.matmul %32, %33, %cst_32 {dimension_numbers = #tpu.dot_dimension_numbers<[1], [0], [0], [1], [0, 0, 1, 1], [], []>} : vector<2x72xf32>, vector<72x8xf32>, vector<2x8xf32> -> vector<2x8xf32>
    %cst_33 = arith.constant dense<0.000000e+00> : vector<8xf32>
    %36 = vector.multi_reduction <add>, %35, %cst_33 [0] : vector<2x8xf32> to vector<8xf32>
    %37 = vector.shape_cast %36 : vector<8xf32> to vector<1x8xf32>
    %cst_34 = arith.constant 0.055555556 : f32
    %38 = vector.broadcast %cst_34 : f32 to vector<1x8xf32>
    %39 = arith.mulf %37, %38 : vector<1x8xf32>
    %cst_35 = arith.constant dense<0.000000e+00> : vector<1x72xf32>
    %40 = tpu.matmul %39, %34, %cst_35 {dimension_numbers = #tpu.dot_dimension_numbers<[1], [0], [0], [1], [0, 0, 1, 1], [], []>} : vector<1x8xf32>, vector<8x72xf32>, vector<1x72xf32> -> vector<1x72xf32>
    %41 = vector.broadcast %40 : vector<1x72xf32> to vector<2x72xf32>
    %42 = arith.subf %32, %41 : vector<2x72xf32>
    %43 = arith.mulf %42, %42 : vector<2x72xf32>
    %cst_36 = arith.constant dense<0.000000e+00> : vector<2x8xf32>
    %44 = tpu.matmul %43, %33, %cst_36 {dimension_numbers = #tpu.dot_dimension_numbers<[1], [0], [0], [1], [0, 0, 1, 1], [], []>} : vector<2x72xf32>, vector<72x8xf32>, vector<2x8xf32> -> vector<2x8xf32>
    %cst_37 = arith.constant dense<0.000000e+00> : vector<8xf32>
    %45 = vector.multi_reduction <add>, %44, %cst_37 [0] : vector<2x8xf32> to vector<8xf32>
    %46 = vector.shape_cast %45 : vector<8xf32> to vector<1x8xf32>
    %cst_38 = arith.constant 0.055555556 : f32
    %47 = vector.broadcast %cst_38 : f32 to vector<1x8xf32>
    %48 = arith.mulf %46, %47 : vector<1x8xf32>
    %c0_39 = arith.constant 0 : index
    %c0_40 = arith.constant 0 : index
    %49 = vector.load %arg11[%c0_39, %c0_40] : memref<1x8xf32, #tpu.memory_space<vmem>>, vector<1x8xf32>
    %cst_41 = arith.constant 1.000000e-10 : f32
    %50 = vector.broadcast %cst_41 : f32 to vector<1x8xf32>
    %51 = arith.addf %48, %50 : vector<1x8xf32>
    %52 = math.rsqrt %51 : vector<1x8xf32>
    %53 = arith.mulf %49, %52 : vector<1x8xf32>
    %cst_42 = arith.constant dense<0.000000e+00> : vector<1x72xf32>
    %54 = tpu.matmul %53, %34, %cst_42 {dimension_numbers = #tpu.dot_dimension_numbers<[1], [0], [0], [1], [0, 0, 1, 1], [], []>} : vector<1x8xf32>, vector<8x72xf32>, vector<1x72xf32> -> vector<1x72xf32>
    %55 = vector.broadcast %54 : vector<1x72xf32> to vector<2x72xf32>
    %56 = arith.mulf %42, %55 : vector<2x72xf32>
    %c0_43 = arith.constant 0 : index
    %c0_44 = arith.constant 0 : index
    %57 = vector.load %arg12[%c0_43, %c0_44] : memref<1x8xf32, #tpu.memory_space<vmem>>, vector<1x8xf32>
    %cst_45 = arith.constant dense<0.000000e+00> : vector<1x72xf32>
    %58 = tpu.matmul %57, %34, %cst_45 {dimension_numbers = #tpu.dot_dimension_numbers<[1], [0], [0], [1], [0, 0, 1, 1], [], []>} : vector<1x8xf32>, vector<8x72xf32>, vector<1x72xf32> -> vector<1x72xf32>
    %59 = vector.broadcast %58 : vector<1x72xf32> to vector<2x72xf32>
    %60 = arith.addf %56, %59 : vector<2x72xf32>
    %cst_46 = arith.constant 0.000000e+00 : f32
    %61 = vector.broadcast %cst_46 : f32 to vector<2x72xf32>
    %62 = arith.cmpf oge, %60, %61 : vector<2x72xf32>
    %cst_47 = arith.constant 2.000000e-01 : f32
    %63 = vector.broadcast %cst_47 : f32 to vector<2x72xf32>
    %64 = arith.mulf %63, %60 : vector<2x72xf32>
    %65 = arith.select %62, %60, %64 : vector<2x72xi1>, vector<2x72xf32>
    %66 = arith.truncf %65 : vector<2x72xf32> to vector<2x72xbf16>
    %c0_48 = arith.constant 0 : index
    %c0_49 = arith.constant 0 : index
    %67 = vector.load %arg13[%c0_48, %c0_49] : memref<72x64xbf16, #tpu.memory_space<vmem>>, vector<72x64xbf16>
    %cst_50 = arith.constant dense<0.000000e+00> : vector<2x64xf32>
    %68 = tpu.matmul %66, %67, %cst_50 {dimension_numbers = #tpu.dot_dimension_numbers<[1], [0], [0], [1], [0, 0, 1, 1], [], []>} : vector<2x72xbf16>, vector<72x64xbf16>, vector<2x64xf32> -> vector<2x64xf32>
    %c0_51 = arith.constant 0 : index
    %c0_52 = arith.constant 0 : index
    %69 = vector.load %arg14[%c0_51, %c0_52] : memref<4x64xf32, #tpu.memory_space<vmem>>, vector<4x64xf32>
    %cst_53 = arith.constant dense<0.000000e+00> : vector<2x64xf32>
    %70 = tpu.matmul %14, %69, %cst_53 {dimension_numbers = #tpu.dot_dimension_numbers<[1], [0], [0], [1], [0, 0, 1, 1], [], []>} : vector<2x4xf32>, vector<4x64xf32>, vector<2x64xf32> -> vector<2x64xf32>
    %71 = arith.addf %68, %70 : vector<2x64xf32>
    %cst_54 = arith.constant 0.000000e+00 : f32
    %72 = vector.broadcast %cst_54 : f32 to vector<2x64xf32>
    %73 = arith.cmpf oge, %71, %72 : vector<2x64xf32>
    %cst_55 = arith.constant 2.000000e-01 : f32
    %74 = vector.broadcast %cst_55 : f32 to vector<2x64xf32>
    %75 = arith.mulf %74, %71 : vector<2x64xf32>
    %76 = arith.select %73, %71, %75 : vector<2x64xi1>, vector<2x64xf32>
    %77 = arith.truncf %76 : vector<2x64xf32> to vector<2x64xbf16>
    %c0_56 = arith.constant 0 : index
    %c0_57 = arith.constant 0 : index
    %78 = vector.load %arg15[%c0_56, %c0_57] : memref<64x72xbf16, #tpu.memory_space<vmem>>, vector<64x72xbf16>
    %cst_58 = arith.constant dense<0.000000e+00> : vector<2x72xf32>
    %79 = tpu.matmul %77, %78, %cst_58 {dimension_numbers = #tpu.dot_dimension_numbers<[1], [0], [0], [1], [0, 0, 1, 1], [], []>} : vector<2x64xbf16>, vector<64x72xbf16>, vector<2x72xf32> -> vector<2x72xf32>
    %c0_59 = arith.constant 0 : index
    %c0_60 = arith.constant 0 : index
    %80 = vector.load %arg27[%c0_59, %c0_60] : memref<72x8xf32, #tpu.memory_space<vmem>>, vector<72x8xf32>
    %c0_61 = arith.constant 0 : index
    %c0_62 = arith.constant 0 : index
    %81 = vector.load %arg28[%c0_61, %c0_62] : memref<8x72xf32, #tpu.memory_space<vmem>>, vector<8x72xf32>
    %cst_63 = arith.constant dense<0.000000e+00> : vector<2x8xf32>
    %82 = tpu.matmul %79, %80, %cst_63 {dimension_numbers = #tpu.dot_dimension_numbers<[1], [0], [0], [1], [0, 0, 1, 1], [], []>} : vector<2x72xf32>, vector<72x8xf32>, vector<2x8xf32> -> vector<2x8xf32>
    %cst_64 = arith.constant dense<0.000000e+00> : vector<8xf32>
    %83 = vector.multi_reduction <add>, %82, %cst_64 [0] : vector<2x8xf32> to vector<8xf32>
    %84 = vector.shape_cast %83 : vector<8xf32> to vector<1x8xf32>
    %cst_65 = arith.constant 0.055555556 : f32
    %85 = vector.broadcast %cst_65 : f32 to vector<1x8xf32>
    %86 = arith.mulf %84, %85 : vector<1x8xf32>
    %cst_66 = arith.constant dense<0.000000e+00> : vector<1x72xf32>
    %87 = tpu.matmul %86, %81, %cst_66 {dimension_numbers = #tpu.dot_dimension_numbers<[1], [0], [0], [1], [0, 0, 1, 1], [], []>} : vector<1x8xf32>, vector<8x72xf32>, vector<1x72xf32> -> vector<1x72xf32>
    %88 = vector.broadcast %87 : vector<1x72xf32> to vector<2x72xf32>
    %89 = arith.subf %79, %88 : vector<2x72xf32>
    %90 = arith.mulf %89, %89 : vector<2x72xf32>
    %cst_67 = arith.constant dense<0.000000e+00> : vector<2x8xf32>
    %91 = tpu.matmul %90, %80, %cst_67 {dimension_numbers = #tpu.dot_dimension_numbers<[1], [0], [0], [1], [0, 0, 1, 1], [], []>} : vector<2x72xf32>, vector<72x8xf32>, vector<2x8xf32> -> vector<2x8xf32>
    %cst_68 = arith.constant dense<0.000000e+00> : vector<8xf32>
    %92 = vector.multi_reduction <add>, %91, %cst_68 [0] : vector<2x8xf32> to vector<8xf32>
    %93 = vector.shape_cast %92 : vector<8xf32> to vector<1x8xf32>
    %cst_69 = arith.constant 0.055555556 : f32
    %94 = vector.broadcast %cst_69 : f32 to vector<1x8xf32>
    %95 = arith.mulf %93, %94 : vector<1x8xf32>
    %c0_70 = arith.constant 0 : index
    %c0_71 = arith.constant 0 : index
    %96 = vector.load %arg16[%c0_70, %c0_71] : memref<1x8xf32, #tpu.memory_space<vmem>>, vector<1x8xf32>
    %cst_72 = arith.constant 1.000000e-10 : f32
    %97 = vector.broadcast %cst_72 : f32 to vector<1x8xf32>
    %98 = arith.addf %95, %97 : vector<1x8xf32>
    %99 = math.rsqrt %98 : vector<1x8xf32>
    %100 = arith.mulf %96, %99 : vector<1x8xf32>
    %cst_73 = arith.constant dense<0.000000e+00> : vector<1x72xf32>
    %101 = tpu.matmul %100, %81, %cst_73 {dimension_numbers = #tpu.dot_dimension_numbers<[1], [0], [0], [1], [0, 0, 1, 1], [], []>} : vector<1x8xf32>, vector<8x72xf32>, vector<1x72xf32> -> vector<1x72xf32>
    %102 = vector.broadcast %101 : vector<1x72xf32> to vector<2x72xf32>
    %103 = arith.mulf %89, %102 : vector<2x72xf32>
    %c0_74 = arith.constant 0 : index
    %c0_75 = arith.constant 0 : index
    %104 = vector.load %arg17[%c0_74, %c0_75] : memref<1x8xf32, #tpu.memory_space<vmem>>, vector<1x8xf32>
    %cst_76 = arith.constant dense<0.000000e+00> : vector<1x72xf32>
    %105 = tpu.matmul %104, %81, %cst_76 {dimension_numbers = #tpu.dot_dimension_numbers<[1], [0], [0], [1], [0, 0, 1, 1], [], []>} : vector<1x8xf32>, vector<8x72xf32>, vector<1x72xf32> -> vector<1x72xf32>
    %106 = vector.broadcast %105 : vector<1x72xf32> to vector<2x72xf32>
    %107 = arith.addf %103, %106 : vector<2x72xf32>
    %cst_77 = arith.constant 0.000000e+00 : f32
    %108 = vector.broadcast %cst_77 : f32 to vector<2x72xf32>
    %109 = arith.maximumf %107, %108 : vector<2x72xf32>
    %110 = arith.truncf %109 : vector<2x72xf32> to vector<2x72xbf16>
    %c0_78 = arith.constant 0 : index
    %c0_79 = arith.constant 0 : index
    %111 = vector.load %arg18[%c0_78, %c0_79] : memref<72x288xbf16, #tpu.memory_space<vmem>>, vector<72x288xbf16>
    %cst_80 = arith.constant dense<0.000000e+00> : vector<2x288xf32>
    %112 = tpu.matmul %110, %111, %cst_80 {dimension_numbers = #tpu.dot_dimension_numbers<[1], [0], [0], [1], [0, 0, 1, 1], [], []>} : vector<2x72xbf16>, vector<72x288xbf16>, vector<2x288xf32> -> vector<2x288xf32>
    %113 = arith.truncf %65 : vector<2x72xf32> to vector<2x72xbf16>
    %c0_81 = arith.constant 0 : index
    %c0_82 = arith.constant 0 : index
    %114 = vector.load %arg19[%c0_81, %c0_82] : memref<72x288xbf16, #tpu.memory_space<vmem>>, vector<72x288xbf16>
    %cst_83 = arith.constant dense<0.000000e+00> : vector<2x288xf32>
    %115 = tpu.matmul %113, %114, %cst_83 {dimension_numbers = #tpu.dot_dimension_numbers<[1], [0], [0], [1], [0, 0, 1, 1], [], []>} : vector<2x72xbf16>, vector<72x288xbf16>, vector<2x288xf32> -> vector<2x288xf32>
    %116 = arith.addf %112, %115 : vector<2x288xf32>
    %c0_84 = arith.constant 0 : index
    %c0_85 = arith.constant 0 : index
    %117 = vector.load %arg29[%c0_84, %c0_85] : memref<288x8xf32, #tpu.memory_space<vmem>>, vector<288x8xf32>
    %c0_86 = arith.constant 0 : index
    %c0_87 = arith.constant 0 : index
    %118 = vector.load %arg30[%c0_86, %c0_87] : memref<8x288xf32, #tpu.memory_space<vmem>>, vector<8x288xf32>
    %cst_88 = arith.constant dense<0.000000e+00> : vector<2x8xf32>
    %119 = tpu.matmul %116, %117, %cst_88 {dimension_numbers = #tpu.dot_dimension_numbers<[1], [0], [0], [1], [0, 0, 1, 1], [], []>} : vector<2x288xf32>, vector<288x8xf32>, vector<2x8xf32> -> vector<2x8xf32>
    %cst_89 = arith.constant dense<0.000000e+00> : vector<8xf32>
    %120 = vector.multi_reduction <add>, %119, %cst_89 [0] : vector<2x8xf32> to vector<8xf32>
    %121 = vector.shape_cast %120 : vector<8xf32> to vector<1x8xf32>
    %cst_90 = arith.constant 0.013888889 : f32
    %122 = vector.broadcast %cst_90 : f32 to vector<1x8xf32>
    %123 = arith.mulf %121, %122 : vector<1x8xf32>
    %cst_91 = arith.constant dense<0.000000e+00> : vector<1x288xf32>
    %124 = tpu.matmul %123, %118, %cst_91 {dimension_numbers = #tpu.dot_dimension_numbers<[1], [0], [0], [1], [0, 0, 1, 1], [], []>} : vector<1x8xf32>, vector<8x288xf32>, vector<1x288xf32> -> vector<1x288xf32>
    %125 = vector.broadcast %124 : vector<1x288xf32> to vector<2x288xf32>
    %126 = arith.subf %116, %125 : vector<2x288xf32>
    %127 = arith.mulf %126, %126 : vector<2x288xf32>
    %cst_92 = arith.constant dense<0.000000e+00> : vector<2x8xf32>
    %128 = tpu.matmul %127, %117, %cst_92 {dimension_numbers = #tpu.dot_dimension_numbers<[1], [0], [0], [1], [0, 0, 1, 1], [], []>} : vector<2x288xf32>, vector<288x8xf32>, vector<2x8xf32> -> vector<2x8xf32>
    %cst_93 = arith.constant dense<0.000000e+00> : vector<8xf32>
    %129 = vector.multi_reduction <add>, %128, %cst_93 [0] : vector<2x8xf32> to vector<8xf32>
    %130 = vector.shape_cast %129 : vector<8xf32> to vector<1x8xf32>
    %cst_94 = arith.constant 0.013888889 : f32
    %131 = vector.broadcast %cst_94 : f32 to vector<1x8xf32>
    %132 = arith.mulf %130, %131 : vector<1x8xf32>
    %c0_95 = arith.constant 0 : index
    %c0_96 = arith.constant 0 : index
    %133 = vector.load %arg20[%c0_95, %c0_96] : memref<1x8xf32, #tpu.memory_space<vmem>>, vector<1x8xf32>
    %cst_97 = arith.constant 1.000000e-10 : f32
    %134 = vector.broadcast %cst_97 : f32 to vector<1x8xf32>
    %135 = arith.addf %132, %134 : vector<1x8xf32>
    %136 = math.rsqrt %135 : vector<1x8xf32>
    %137 = arith.mulf %133, %136 : vector<1x8xf32>
    %cst_98 = arith.constant dense<0.000000e+00> : vector<1x288xf32>
    %138 = tpu.matmul %137, %118, %cst_98 {dimension_numbers = #tpu.dot_dimension_numbers<[1], [0], [0], [1], [0, 0, 1, 1], [], []>} : vector<1x8xf32>, vector<8x288xf32>, vector<1x288xf32> -> vector<1x288xf32>
    %139 = vector.broadcast %138 : vector<1x288xf32> to vector<2x288xf32>
    %140 = arith.mulf %126, %139 : vector<2x288xf32>
    %c0_99 = arith.constant 0 : index
    %c0_100 = arith.constant 0 : index
    %141 = vector.load %arg21[%c0_99, %c0_100] : memref<1x8xf32, #tpu.memory_space<vmem>>, vector<1x8xf32>
    %cst_101 = arith.constant dense<0.000000e+00> : vector<1x288xf32>
    %142 = tpu.matmul %141, %118, %cst_101 {dimension_numbers = #tpu.dot_dimension_numbers<[1], [0], [0], [1], [0, 0, 1, 1], [], []>} : vector<1x8xf32>, vector<8x288xf32>, vector<1x288xf32> -> vector<1x288xf32>
    %143 = vector.broadcast %142 : vector<1x288xf32> to vector<2x288xf32>
    %144 = arith.addf %140, %143 : vector<2x288xf32>
    %cst_102 = arith.constant 0.000000e+00 : f32
    %145 = vector.broadcast %cst_102 : f32 to vector<2x288xf32>
    %146 = arith.maximumf %144, %145 : vector<2x288xf32>
    %147 = arith.truncf %146 : vector<2x288xf32> to vector<2x288xbf16>
    %c0_103 = arith.constant 0 : index
    %c0_104 = arith.constant 0 : index
    %148 = vector.load %arg22[%c0_103, %c0_104] : memref<288x968xbf16, #tpu.memory_space<vmem>>, vector<288x968xbf16>
    %cst_105 = arith.constant dense<0.000000e+00> : vector<2x968xf32>
    %149 = tpu.matmul %147, %148, %cst_105 {dimension_numbers = #tpu.dot_dimension_numbers<[1], [0], [0], [1], [0, 0, 1, 1], [], []>} : vector<2x288xbf16>, vector<288x968xbf16>, vector<2x968xf32> -> vector<2x968xf32>
    %150 = arith.truncf %26 : vector<2x288xf32> to vector<2x288xbf16>
    %c0_106 = arith.constant 0 : index
    %c0_107 = arith.constant 0 : index
    %151 = vector.load %arg23[%c0_106, %c0_107] : memref<288x968xbf16, #tpu.memory_space<vmem>>, vector<288x968xbf16>
    %cst_108 = arith.constant dense<0.000000e+00> : vector<2x968xf32>
    %152 = tpu.matmul %150, %151, %cst_108 {dimension_numbers = #tpu.dot_dimension_numbers<[1], [0], [0], [1], [0, 0, 1, 1], [], []>} : vector<2x288xbf16>, vector<288x968xbf16>, vector<2x968xf32> -> vector<2x968xf32>
    %153 = arith.addf %149, %152 : vector<2x968xf32>
    %c0_109 = arith.constant 0 : index
    %c0_110 = arith.constant 0 : index
    %154 = vector.load %arg31[%c0_109, %c0_110] : memref<968x8xf32, #tpu.memory_space<vmem>>, vector<968x8xf32>
    %c0_111 = arith.constant 0 : index
    %c0_112 = arith.constant 0 : index
    %155 = vector.load %arg32[%c0_111, %c0_112] : memref<8x968xf32, #tpu.memory_space<vmem>>, vector<8x968xf32>
    %cst_113 = arith.constant dense<0.000000e+00> : vector<2x8xf32>
    %156 = tpu.matmul %153, %154, %cst_113 {dimension_numbers = #tpu.dot_dimension_numbers<[1], [0], [0], [1], [0, 0, 1, 1], [], []>} : vector<2x968xf32>, vector<968x8xf32>, vector<2x8xf32> -> vector<2x8xf32>
    %cst_114 = arith.constant dense<0.000000e+00> : vector<8xf32>
    %157 = vector.multi_reduction <add>, %156, %cst_114 [0] : vector<2x8xf32> to vector<8xf32>
    %158 = vector.shape_cast %157 : vector<8xf32> to vector<1x8xf32>
    %cst_115 = arith.constant 0.00413223123 : f32
    %159 = vector.broadcast %cst_115 : f32 to vector<1x8xf32>
    %160 = arith.mulf %158, %159 : vector<1x8xf32>
    %cst_116 = arith.constant dense<0.000000e+00> : vector<1x968xf32>
    %161 = tpu.matmul %160, %155, %cst_116 {dimension_numbers = #tpu.dot_dimension_numbers<[1], [0], [0], [1], [0, 0, 1, 1], [], []>} : vector<1x8xf32>, vector<8x968xf32>, vector<1x968xf32> -> vector<1x968xf32>
    %162 = vector.broadcast %161 : vector<1x968xf32> to vector<2x968xf32>
    %163 = arith.subf %153, %162 : vector<2x968xf32>
    %164 = arith.mulf %163, %163 : vector<2x968xf32>
    %cst_117 = arith.constant dense<0.000000e+00> : vector<2x8xf32>
    %165 = tpu.matmul %164, %154, %cst_117 {dimension_numbers = #tpu.dot_dimension_numbers<[1], [0], [0], [1], [0, 0, 1, 1], [], []>} : vector<2x968xf32>, vector<968x8xf32>, vector<2x8xf32> -> vector<2x8xf32>
    %cst_118 = arith.constant dense<0.000000e+00> : vector<8xf32>
    %166 = vector.multi_reduction <add>, %165, %cst_118 [0] : vector<2x8xf32> to vector<8xf32>
    %167 = vector.shape_cast %166 : vector<8xf32> to vector<1x8xf32>
    %cst_119 = arith.constant 0.00413223123 : f32
    %168 = vector.broadcast %cst_119 : f32 to vector<1x8xf32>
    %169 = arith.mulf %167, %168 : vector<1x8xf32>
    %c0_120 = arith.constant 0 : index
    %c0_121 = arith.constant 0 : index
    %170 = vector.load %arg24[%c0_120, %c0_121] : memref<1x8xf32, #tpu.memory_space<vmem>>, vector<1x8xf32>
    %cst_122 = arith.constant 1.000000e-10 : f32
    %171 = vector.broadcast %cst_122 : f32 to vector<1x8xf32>
    %172 = arith.addf %169, %171 : vector<1x8xf32>
    %173 = math.rsqrt %172 : vector<1x8xf32>
    %174 = arith.mulf %170, %173 : vector<1x8xf32>
    %cst_123 = arith.constant dense<0.000000e+00> : vector<1x968xf32>
    %175 = tpu.matmul %174, %155, %cst_123 {dimension_numbers = #tpu.dot_dimension_numbers<[1], [0], [0], [1], [0, 0, 1, 1], [], []>} : vector<1x8xf32>, vector<8x968xf32>, vector<1x968xf32> -> vector<1x968xf32>
    %176 = vector.broadcast %175 : vector<1x968xf32> to vector<2x968xf32>
    %177 = arith.mulf %163, %176 : vector<2x968xf32>
    %c0_124 = arith.constant 0 : index
    %c0_125 = arith.constant 0 : index
    %178 = vector.load %arg25[%c0_124, %c0_125] : memref<1x8xf32, #tpu.memory_space<vmem>>, vector<1x8xf32>
    %cst_126 = arith.constant dense<0.000000e+00> : vector<1x968xf32>
    %179 = tpu.matmul %178, %155, %cst_126 {dimension_numbers = #tpu.dot_dimension_numbers<[1], [0], [0], [1], [0, 0, 1, 1], [], []>} : vector<1x8xf32>, vector<8x968xf32>, vector<1x968xf32> -> vector<1x968xf32>
    %180 = vector.broadcast %179 : vector<1x968xf32> to vector<2x968xf32>
    %181 = arith.addf %177, %180 : vector<2x968xf32>
    %cst_127 = arith.constant 0.000000e+00 : f32
    %182 = vector.broadcast %cst_127 : f32 to vector<2x968xf32>
    %183 = arith.maximumf %181, %182 : vector<2x968xf32>
    %184 = arith.truncf %183 : vector<2x968xf32> to vector<2x968xbf16>
    %c0_128 = arith.constant 0 : index
    %c0_129 = arith.constant 0 : index
    %185 = vector.load %arg26[%c0_128, %c0_129] : memref<968x363xbf16, #tpu.memory_space<vmem>>, vector<968x363xbf16>
    %cst_130 = arith.constant dense<0.000000e+00> : vector<2x363xf32>
    %186 = tpu.matmul %184, %185, %cst_130 {dimension_numbers = #tpu.dot_dimension_numbers<[1], [0], [0], [1], [0, 0, 1, 1], [], []>} : vector<2x968xbf16>, vector<968x363xbf16>, vector<2x363xf32> -> vector<2x363xf32>
    %187 = math.tanh %186 : vector<2x363xf32>
    %c0_131 = arith.constant 0 : index
    %c0_132 = arith.constant 0 : index
    %188 = vector.load %arg33[%c0_131, %c0_132] : memref<2x363xf32, #tpu.memory_space<vmem>>, vector<2x363xf32>
    tpu.vector_store %arg33[%c0_131, %c0_132], %187 {strides = array<i32>} : memref<2x363xf32, #tpu.memory_space<vmem>>, vector<2x363xf32>,
    return
  }
  func.func @transform_0(%arg0: i32) -> (i32, i32) {
    %c0_i32 = arith.constant 0 : i32
    %c0_i32_0 = arith.constant 0 : i32
    %c0_i32_1 = arith.constant 0 : i32
    return %c0_i32, %c0_i32_0 : i32, i32
  }
  func.func @transform_1(%arg0: i32) -> (i32, i32) {
    %c0_i32 = arith.constant 0 : i32
    %c0_i32_0 = arith.constant 0 : i32
    %c0_i32_1 = arith.constant 0 : i32
    return %c0_i32, %c0_i32_0 : i32, i32
  }
  func.func @transform_2(%arg0: i32) -> (i32, i32) {
    %c0_i32 = arith.constant 0 : i32
    %c0_i32_0 = arith.constant 0 : i32
    %c0_i32_1 = arith.constant 0 : i32
    return %c0_i32, %c0_i32_0 : i32, i32
  }
  func.func @transform_3(%arg0: i32) -> (i32, i32) {
    %c0_i32 = arith.constant 0 : i32
    %c0_i32_0 = arith.constant 0 : i32
    %c0_i32_1 = arith.constant 0 : i32
    return %c0_i32, %c0_i32_0 : i32, i32
  }
  func.func @transform_4(%arg0: i32) -> (i32, i32) {
    %c0_i32 = arith.constant 0 : i32
    %c0_i32_0 = arith.constant 0 : i32
    %c0_i32_1 = arith.constant 0 : i32
    return %c0_i32, %c0_i32_0 : i32, i32
  }
  func.func @transform_5(%arg0: i32) -> (i32, i32) {
    %c0_i32 = arith.constant 0 : i32
    %c0_i32_0 = arith.constant 0 : i32
    %c0_i32_1 = arith.constant 0 : i32
    return %c0_i32, %c0_i32_0 : i32, i32
  }
  func.func @transform_6(%arg0: i32) -> (i32, i32) {
    %c0_i32 = arith.constant 0 : i32
    %c0_i32_0 = arith.constant 0 : i32
    %c0_i32_1 = arith.constant 0 : i32
    return %c0_i32, %c0_i32_0 : i32, i32
  }
  func.func @transform_7(%arg0: i32) -> (i32, i32) {
    %c0_i32 = arith.constant 0 : i32
    %c0_i32_0 = arith.constant 0 : i32
    %c0_i32_1 = arith.constant 0 : i32
    return %c0_i32, %c0_i32_0 : i32, i32
  }
  func.func @transform_8(%arg0: i32) -> (i32, i32) {
    %c0_i32 = arith.constant 0 : i32
    %c0_i32_0 = arith.constant 0 : i32
    %c0_i32_1 = arith.constant 0 : i32
    return %c0_i32, %c0_i32_0 : i32, i32
  }
  func.func @transform_9(%arg0: i32) -> (i32, i32) {
    %c0_i32 = arith.constant 0 : i32
    %c0_i32_0 = arith.constant 0 : i32
    %c0_i32_1 = arith.constant 0 : i32
    return %c0_i32, %c0_i32_0 : i32, i32
  }
  func.func @transform_10(%arg0: i32) -> (i32, i32) {
    %c0_i32 = arith.constant 0 : i32
    %c0_i32_0 = arith.constant 0 : i32
    %c0_i32_1 = arith.constant 0 : i32
    return %c0_i32, %c0_i32_0 : i32, i32
  }
  func.func @transform_11(%arg0: i32) -> (i32, i32) {
    %c0_i32 = arith.constant 0 : i32
    %c0_i32_0 = arith.constant 0 : i32
    %c0_i32_1 = arith.constant 0 : i32
    return %c0_i32, %c0_i32_0 : i32, i32
  }
  func.func @transform_12(%arg0: i32) -> (i32, i32) {
    %c0_i32 = arith.constant 0 : i32
    %c0_i32_0 = arith.constant 0 : i32
    %c0_i32_1 = arith.constant 0 : i32
    return %c0_i32, %c0_i32_0 : i32, i32
  }
  func.func @transform_13(%arg0: i32) -> (i32, i32) {
    %c0_i32 = arith.constant 0 : i32
    %c0_i32_0 = arith.constant 0 : i32
    %c0_i32_1 = arith.constant 0 : i32
    return %c0_i32, %c0_i32_0 : i32, i32
  }
  func.func @transform_14(%arg0: i32) -> (i32, i32) {
    %c0_i32 = arith.constant 0 : i32
    %c0_i32_0 = arith.constant 0 : i32
    %c0_i32_1 = arith.constant 0 : i32
    return %c0_i32, %c0_i32_0 : i32, i32
  }
  func.func @transform_15(%arg0: i32) -> (i32, i32) {
    %c0_i32 = arith.constant 0 : i32
    %c0_i32_0 = arith.constant 0 : i32
    %c0_i32_1 = arith.constant 0 : i32
    return %c0_i32, %c0_i32_0 : i32, i32
  }
  func.func @transform_16(%arg0: i32) -> (i32, i32) {
    %c0_i32 = arith.constant 0 : i32
    %c0_i32_0 = arith.constant 0 : i32
    %c0_i32_1 = arith.constant 0 : i32
    return %c0_i32, %c0_i32_0 : i32, i32
  }
  func.func @transform_17(%arg0: i32) -> (i32, i32) {
    %c0_i32 = arith.constant 0 : i32
    %c0_i32_0 = arith.constant 0 : i32
    %c0_i32_1 = arith.constant 0 : i32
    return %c0_i32, %c0_i32_0 : i32, i32
  }
  func.func @transform_18(%arg0: i32) -> (i32, i32) {
    %c0_i32 = arith.constant 0 : i32
    %c0_i32_0 = arith.constant 0 : i32
    %c0_i32_1 = arith.constant 0 : i32
    return %c0_i32, %c0_i32_0 : i32, i32
  }
  func.func @transform_19(%arg0: i32) -> (i32, i32) {
    %c0_i32 = arith.constant 0 : i32
    %c0_i32_0 = arith.constant 0 : i32
    %c0_i32_1 = arith.constant 0 : i32
    return %c0_i32, %c0_i32_0 : i32, i32
  }
  func.func @transform_20(%arg0: i32) -> (i32, i32) {
    %c0_i32 = arith.constant 0 : i32
    %c0_i32_0 = arith.constant 0 : i32
    %c0_i32_1 = arith.constant 0 : i32
    return %c0_i32, %c0_i32_0 : i32, i32
  }
  func.func @transform_21(%arg0: i32) -> (i32, i32) {
    %c0_i32 = arith.constant 0 : i32
    %c0_i32_0 = arith.constant 0 : i32
    %c0_i32_1 = arith.constant 0 : i32
    return %c0_i32, %c0_i32_0 : i32, i32
  }
  func.func @transform_22(%arg0: i32) -> (i32, i32) {
    %c0_i32 = arith.constant 0 : i32
    %c0_i32_0 = arith.constant 0 : i32
    %c0_i32_1 = arith.constant 0 : i32
    return %c0_i32, %c0_i32_0 : i32, i32
  }
  func.func @transform_23(%arg0: i32) -> (i32, i32) {
    %c0_i32 = arith.constant 0 : i32
    %c0_i32_0 = arith.constant 0 : i32
    %c0_i32_1 = arith.constant 0 : i32
    return %c0_i32, %c0_i32_0 : i32, i32
  }
  func.func @transform_24(%arg0: i32) -> (i32, i32) {
    %c0_i32 = arith.constant 0 : i32
    %c0_i32_0 = arith.constant 0 : i32
    %c0_i32_1 = arith.constant 0 : i32
    return %c0_i32, %c0_i32_0 : i32, i32
  }
  func.func @transform_25(%arg0: i32) -> (i32, i32) {
    %c0_i32 = arith.constant 0 : i32
    %c0_i32_0 = arith.constant 0 : i32
    %c0_i32_1 = arith.constant 0 : i32
    return %c0_i32, %c0_i32_0 : i32, i32
  }
  func.func @transform_26(%arg0: i32) -> (i32, i32) {
    %c0_i32 = arith.constant 0 : i32
    %c0_i32_0 = arith.constant 0 : i32
    %c0_i32_1 = arith.constant 0 : i32
    return %c0_i32, %c0_i32_0 : i32, i32
  }
  func.func @transform_27(%arg0: i32) -> (i32, i32) {
    %c0_i32 = arith.constant 0 : i32
    %c0_i32_0 = arith.constant 0 : i32
    %c0_i32_1 = arith.constant 0 : i32
    return %c0_i32, %c0_i32_0 : i32, i32
  }
  func.func @transform_28(%arg0: i32) -> (i32, i32) {
    %c0_i32 = arith.constant 0 : i32
    %c0_i32_0 = arith.constant 0 : i32
    %c0_i32_1 = arith.constant 0 : i32
    return %c0_i32, %c0_i32_0 : i32, i32
  }
  func.func @transform_29(%arg0: i32) -> (i32, i32) {
    %c0_i32 = arith.constant 0 : i32
    %c0_i32_0 = arith.constant 0 : i32
    %c0_i32_1 = arith.constant 0 : i32
    return %c0_i32, %c0_i32_0 : i32, i32
  }
  func.func @transform_30(%arg0: i32) -> (i32, i32) {
    %c0_i32 = arith.constant 0 : i32
    %c0_i32_0 = arith.constant 0 : i32
    %c0_i32_1 = arith.constant 0 : i32
    return %c0_i32, %c0_i32_0 : i32, i32
  }
  func.func @transform_31(%arg0: i32) -> (i32, i32) {
    %c0_i32 = arith.constant 0 : i32
    %c0_i32_0 = arith.constant 0 : i32
    %c0_i32_1 = arith.constant 0 : i32
    return %c0_i32, %c0_i32_0 : i32, i32
  }
  func.func @transform_32(%arg0: i32) -> (i32, i32) {
    %c0_i32 = arith.constant 0 : i32
    %c0_i32_0 = arith.constant 0 : i32
    %c0_i32_1 = arith.constant 0 : i32
    return %c0_i32, %c0_i32_0 : i32, i32
  }
}

</mosaic_0001>

<llo_original>
// kernel: forward.1
$region0: #{forward.1}
  #allocation0 [shape = 'u32[]', space=smem, size = 0x4, offset = 0x4, fixed_abs, tag = 'smem constant byte address 0x4 - core index']
  #allocation1 [shape = 'u32[144,128]{1,0:T(1,128)}', space=vmem, size = 0x12000, scoped, tag = 'internal scratch']
  %s0 = inlined_call_operand.smem [shape: u32[33], index: -1, kind: input, shape index: {}]
  %s1 = sld [smem:[%s0]]
  %s2 = scalar_lea.smem %s0, 1
  %s3 = sld [smem:[%s2]]
  %s4 = scalar_lea.smem %s0, 2
  %s5 = sld [smem:[%s4]]
  %s6 = scalar_lea.smem %s0, 3
  %s7 = sld [smem:[%s6]]
  %s8 = scalar_lea.smem %s0, 4
  %s9 = sld [smem:[%s8]]
  %s10 = scalar_lea.smem %s0, 5
  %s11 = sld [smem:[%s10]]
  %s12 = scalar_lea.smem %s0, 6
  %s13 = sld [smem:[%s12]]
  %s14 = scalar_lea.smem %s0, 7
  %s15 = sld [smem:[%s14]]
  %s16 = scalar_lea.smem %s0, 8
  %s17 = sld [smem:[%s16]]
  %s18 = scalar_lea.smem %s0, 9
  %s19 = sld [smem:[%s18]]
  %s20 = scalar_lea.smem %s0, 10
  %s21 = sld [smem:[%s20]]
  %s22 = scalar_lea.smem %s0, 11
  %s23 = sld [smem:[%s22]]
  %s24 = scalar_lea.smem %s0, 12
  %s25 = sld [smem:[%s24]]
  %s26 = scalar_lea.smem %s0, 13
  %s27 = sld [smem:[%s26]]
  %s28 = scalar_lea.smem %s0, 14
  %s29 = sld [smem:[%s28]]
  %s30 = scalar_lea.smem %s0, 15
  %s31 = sld [smem:[%s30]]
  %s32 = scalar_lea.smem %s0, 16
  %s33 = sld [smem:[%s32]]
  %s34 = scalar_lea.smem %s0, 17
  %s35 = sld [smem:[%s34]]
  %s36 = scalar_lea.smem %s0, 18
  %s37 = sld [smem:[%s36]]
  %s38 = scalar_lea.smem %s0, 19
  %s39 = sld [smem:[%s38]]
  %s40 = scalar_lea.smem %s0, 20
  %s41 = sld [smem:[%s40]]
  %s42 = scalar_lea.smem %s0, 21
  %s43 = sld [smem:[%s42]]
  %s44 = scalar_lea.smem %s0, 22
  %s45 = sld [smem:[%s44]]
  %s46 = scalar_lea.smem %s0, 23
  %s47 = sld [smem:[%s46]]
  %s48 = scalar_lea.smem %s0, 24
  %s49 = sld [smem:[%s48]]
  %s50 = scalar_lea.smem %s0, 25
  %s51 = sld [smem:[%s50]]
  %s52 = scalar_lea.smem %s0, 26
  %s53 = sld [smem:[%s52]]
  %s54 = scalar_lea.smem %s0, 27
  %s55 = sld [smem:[%s54]]
  %s56 = scalar_lea.smem %s0, 28
  %s57 = sld [smem:[%s56]]
  %s58 = scalar_lea.smem %s0, 29
  %s59 = sld [smem:[%s58]]
  %s60 = scalar_lea.smem %s0, 30
  %s61 = sld [smem:[%s60]]
  %s62 = scalar_lea.smem %s0, 31
  %s63 = sld [smem:[%s62]]
  %s64 = scalar_lea.smem %s0, 32
  %s65 = sld [smem:[%s64]]
  %s66 = sld [smem:[#allocation0]]
  $region206: #{forward.1} parent=0
    _
  %s68 = ssub.s32 1, %s66
  %s69 = scalar_select 0, %s68, %s66
  $region1: #{forward.1} parent=0
    #allocation2 [shape = 'u8[512]{0}', space=vmem, size = 0x400, scoped, tag = 'input window, operand 3, single buffered']
    #allocation3 [shape = 's32[1]{0}', space=sflag, size = 0x4, scoped, tag = 'scoped memory for forward.1']
    #allocation4 [shape = 'u8[6144]{0}', space=vmem, size = 0x1800, scoped, tag = 'input window, operand 7, single buffered']
    #allocation5 [shape = 's32[1]{0}', space=sflag, size = 0x4, scoped, tag = 'scoped memory for forward.1']
    #allocation6 [shape = 'u8[2048]{0}', space=vmem, size = 0x800, scoped, tag = 'input window, operand 9, single buffered']
    #allocation7 [shape = 'u8[512]{0}', space=vmem, size = 0x400, scoped, tag = 'input window, operand 10, single buffered']
    #allocation8 [shape = 's32[1]{0}', space=sflag, size = 0x4, scoped, tag = 'scoped memory for forward.1']
    #allocation9 [shape = 'u8[512]{0}', space=vmem, size = 0x400, scoped, tag = 'input window, operand 11, single buffered']
    #allocation10 [shape = 'u8[2048]{0}', space=vmem, size = 0x800, scoped, tag = 'input window, operand 13, single buffered']
    #allocation11 [shape = 's32[1]{0}', space=sflag, size = 0x4, scoped, tag = 'scoped memory for forward.1']
    #allocation12 [shape = 'u8[16384]{0}', space=vmem, size = 0x4000, scoped, tag = 'input window, operand 14, single buffered']
    #allocation13 [shape = 'u8[512]{0}', space=vmem, size = 0x400, scoped, tag = 'input window, operand 15, single buffered']
    #allocation14 [shape = 's32[1]{0}', space=sflag, size = 0x4, scoped, tag = 'scoped memory for forward.1']
    #allocation15 [shape = 'u8[512]{0}', space=vmem, size = 0x400, scoped, tag = 'input window, operand 16, single buffered']
    #allocation16 [shape = 'u8[55296]{0}', space=vmem, size = 0xd800, scoped, tag = 'input window, operand 17, single buffered']
    #allocation17 [shape = 's32[1]{0}', space=sflag, size = 0x4, scoped, tag = 'scoped memory for forward.1']
    #allocation18 [shape = 'u8[55296]{0}', space=vmem, size = 0xd800, scoped, tag = 'input window, operand 18, single buffered']
    #allocation19 [shape = 'u8[512]{0}', space=vmem, size = 0x400, scoped, tag = 'input window, operand 19, single buffered']
    #allocation20 [shape = 's32[1]{0}', space=sflag, size = 0x4, scoped, tag = 'scoped memory for forward.1']
    #allocation21 [shape = 'u8[512]{0}', space=vmem, size = 0x400, scoped, tag = 'input window, operand 20, single buffered']
    #allocation22 [shape = 'u8[589824]{0}', space=vmem, size = 0x90000, scoped, tag = 'input window, operand 22, single buffered']
    #allocation23 [shape = 's32[1]{0}', space=sflag, size = 0x4, scoped, tag = 'scoped memory for forward.1']
    #allocation24 [shape = 'u8[512]{0}', space=vmem, size = 0x400, scoped, tag = 'input window, operand 23, single buffered']
    #allocation25 [shape = 'u8[512]{0}', space=vmem, size = 0x400, scoped, tag = 'input window, operand 24, single buffered']
    #allocation26 [shape = 's32[1]{0}', space=sflag, size = 0x4, scoped, tag = 'scoped memory for forward.1']
    #allocation27 [shape = 'u8[32768]{0}', space=vmem, size = 0x8000, scoped, tag = 'input window, operand 31, single buffered']
    %70 = vsyncpa [#allocation3], 0
    %71 = vsyncpa [#allocation5], 0
    %72 = vsyncpa [#allocation8], 0
    %73 = vsyncpa [#allocation11], 0
    %74 = vsyncpa [#allocation14], 0
    %75 = vsyncpa [#allocation17], 0
    %76 = vsyncpa [#allocation20], 0
    %77 = vsyncpa [#allocation23], 0
    %78 = vsyncpa [#allocation26], 0
    // Predicated region
    $region2: #{forward.1} parent=1 // pred_check
      _
    $region3: #{forward.1} parent=1 // pred_check_branch
      %80 = sbr.rel (0) target = $region5
    $region4: #{forward.1} parent=1 // pred_region
      _
    $region5: #{forward.1} parent=1 // pred_fallthru
      _
    // Predicated region
    $region6: #{forward.1} parent=1 // pred_check
      _
    $region7: #{forward.1} parent=1 // pred_check_branch
      %82 = sbr.rel (0) target = $region9
    $region8: #{forward.1} parent=1 // pred_region
      _
    $region9: #{forward.1} parent=1 // pred_fallthru
      _
    // Predicated region
    $region10: #{forward.1} parent=1 // pred_check
      _
    $region11: #{forward.1} parent=1 // pred_check_branch
      %84 = sbr.rel (0) target = $region13
    $region12: #{forward.1} parent=1 // pred_region
      _
    $region13: #{forward.1} parent=1 // pred_fallthru
      _
    // Predicated region
    $region14: #{forward.1} parent=1 // pred_check
      _
    $region15: #{forward.1} parent=1 // pred_check_branch
      %86 = sbr.rel (0) target = $region17
    $region16: #{forward.1} parent=1 // pred_region
      %s88 = ssub.s32 16, 16
      %89 = vsyncadd [#allocation3], %s88
      %s91 = sshll.u32 [#allocation2], 4
      %s92 = int_to_ptr.vmem [resolvable:$true] %s91
      %94 = dma.hbm_to_vmem [thread:$0]  %s7, 16, %s92, [#allocation3]
    $region17: #{forward.1} parent=1 // pred_fallthru
      _
    // Predicated region
    $region18: #{forward.1} parent=1 // pred_check
      _
    $region19: #{forward.1} parent=1 // pred_check_branch
      %96 = sbr.rel (0) target = $region21
    $region20: #{forward.1} parent=1 // pred_region
      _
    $region21: #{forward.1} parent=1 // pred_fallthru
      _
    // Predicated region
    $region22: #{forward.1} parent=1 // pred_check
      _
    $region23: #{forward.1} parent=1 // pred_check_branch
      %98 = sbr.rel (0) target = $region25
    $region24: #{forward.1} parent=1 // pred_region
      _
    $region25: #{forward.1} parent=1 // pred_fallthru
      _
    // Predicated region
    $region26: #{forward.1} parent=1 // pred_check
      _
    $region27: #{forward.1} parent=1 // pred_check_branch
      %100 = sbr.rel (0) target = $region29
    $region28: #{forward.1} parent=1 // pred_region
      _
    $region29: #{forward.1} parent=1 // pred_fallthru
      _
    // Predicated region
    $region30: #{forward.1} parent=1 // pred_check
      _
    $region31: #{forward.1} parent=1 // pred_check_branch
      %102 = sbr.rel (0) target = $region33
    $region32: #{forward.1} parent=1 // pred_region
      %s104 = ssub.s32 192, 192
      %105 = vsyncadd [#allocation5], %s104
      %s107 = sshll.u32 [#allocation4], 4
      %s108 = int_to_ptr.vmem [resolvable:$true] %s107
      %110 = dma.hbm_to_vmem [thread:$0]  %s15, 192, %s108, [#allocation5]
    $region33: #{forward.1} parent=1 // pred_fallthru
      _
    // Predicated region
    $region34: #{forward.1} parent=1 // pred_check
      _
    $region35: #{forward.1} parent=1 // pred_check_branch
      %112 = sbr.rel (0) target = $region37
    $region36: #{forward.1} parent=1 // pred_region
      _
    $region37: #{forward.1} parent=1 // pred_fallthru
      _
    // Predicated region
    $region38: #{forward.1} parent=1 // pred_check
      _
    $region39: #{forward.1} parent=1 // pred_check_branch
      %114 = sbr.rel (0) target = $region41
    $region40: #{forward.1} parent=1 // pred_region
      %s116 = ssub.s32 64, 64
      %117 = vsyncadd [#allocation5], %s116
      %s119 = sshll.u32 [#allocation6], 4
      %s120 = int_to_ptr.vmem [resolvable:$true] %s119
      %122 = dma.hbm_to_vmem [thread:$0]  %s19, 64, %s120, [#allocation5]
    $region41: #{forward.1} parent=1 // pred_fallthru
      _
    // Predicated region
    $region42: #{forward.1} parent=1 // pred_check
      _
    $region43: #{forward.1} parent=1 // pred_check_branch
      %124 = sbr.rel (0) target = $region45
    $region44: #{forward.1} parent=1 // pred_region
      %s126 = ssub.s32 16, 16
      %127 = vsyncadd [#allocation8], %s126
      %s129 = sshll.u32 [#allocation7], 4
      %s130 = int_to_ptr.vmem [resolvable:$true] %s129
      %132 = dma.hbm_to_vmem [thread:$0]  %s21, 16, %s130, [#allocation8]
    $region45: #{forward.1} parent=1 // pred_fallthru
      _
    // Predicated region
    $region46: #{forward.1} parent=1 // pred_check
      _
    $region47: #{forward.1} parent=1 // pred_check_branch
      %134 = sbr.rel (0) target = $region49
    $region48: #{forward.1} parent=1 // pred_region
      %s136 = ssub.s32 16, 16
      %137 = vsyncadd [#allocation8], %s136
      %s139 = sshll.u32 [#allocation9], 4
      %s140 = int_to_ptr.vmem [resolvable:$true] %s139
      %142 = dma.hbm_to_vmem [thread:$0]  %s23, 16, %s140, [#allocation8]
    $region49: #{forward.1} parent=1 // pred_fallthru
      _
    // Predicated region
    $region50: #{forward.1} parent=1 // pred_check
      _
    $region51: #{forward.1} parent=1 // pred_check_branch
      %144 = sbr.rel (0) target = $region53
    $region52: #{forward.1} parent=1 // pred_region
      _
    $region53: #{forward.1} parent=1 // pred_fallthru
      _
    // Predicated region
    $region54: #{forward.1} parent=1 // pred_check
      _
    $region55: #{forward.1} parent=1 // pred_check_branch
      %146 = sbr.rel (0) target = $region57
    $region56: #{forward.1} parent=1 // pred_region
      %s148 = ssub.s32 64, 64
      %149 = vsyncadd [#allocation11], %s148
      %s151 = sshll.u32 [#allocation10], 4
      %s152 = int_to_ptr.vmem [resolvable:$true] %s151
      %154 = dma.hbm_to_vmem [thread:$0]  %s27, 64, %s152, [#allocation11]
    $region57: #{forward.1} parent=1 // pred_fallthru
      _
    // Predicated region
    $region58: #{forward.1} parent=1 // pred_check
      _
    $region59: #{forward.1} parent=1 // pred_check_branch
      %156 = sbr.rel (0) target = $region61
    $region60: #{forward.1} parent=1 // pred_region
      %s158 = ssub.s32 512, 512
      %159 = vsyncadd [#allocation11], %s158
      %s160 = sshll.u32 [#allocation12], 4
      %s161 = int_to_ptr.vmem [resolvable:$true] %s160
      %166 = dma.hbm_to_vmem [thread:$0]  %s29, 512, %s161, [#allocation11], 64, 64, 4
    $region61: #{forward.1} parent=1 // pred_fallthru
      _
    // Predicated region
    $region62: #{forward.1} parent=1 // pred_check
      _
    $region63: #{forward.1} parent=1 // pred_check_branch
      %168 = sbr.rel (0) target = $region65
    $region64: #{forward.1} parent=1 // pred_region
      %s170 = ssub.s32 16, 16
      %171 = vsyncadd [#allocation14], %s170
      %s173 = sshll.u32 [#allocation13], 4
      %s174 = int_to_ptr.vmem [resolvable:$true] %s173
      %176 = dma.hbm_to_vmem [thread:$0]  %s31, 16, %s174, [#allocation14]
    $region65: #{forward.1} parent=1 // pred_fallthru
      _
    // Predicated region
    $region66: #{forward.1} parent=1 // pred_check
      _
    $region67: #{forward.1} parent=1 // pred_check_branch
      %178 = sbr.rel (0) target = $region69
    $region68: #{forward.1} parent=1 // pred_region
      %s180 = ssub.s32 16, 16
      %181 = vsyncadd [#allocation14], %s180
      %s183 = sshll.u32 [#allocation15], 4
      %s184 = int_to_ptr.vmem [resolvable:$true] %s183
      %186 = dma.hbm_to_vmem [thread:$0]  %s33, 16, %s184, [#allocation14]
    $region69: #{forward.1} parent=1 // pred_fallthru
      _
    // Predicated region
    $region70: #{forward.1} parent=1 // pred_check
      _
    $region71: #{forward.1} parent=1 // pred_check_branch
      %188 = sbr.rel (0) target = $region73
    $region72: #{forward.1} parent=1 // pred_region
      %s190 = ssub.s32 1728, 1728
      %191 = vsyncadd [#allocation17], %s190
      %s192 = sshll.u32 [#allocation16], 4
      %s193 = int_to_ptr.vmem [resolvable:$true] %s192
      %198 = dma.hbm_to_vmem [thread:$0]  %s35, 1728, %s193, [#allocation17], 192, 192, 12
    $region73: #{forward.1} parent=1 // pred_fallthru
      _
    // Predicated region
    $region74: #{forward.1} parent=1 // pred_check
      _
    $region75: #{forward.1} parent=1 // pred_check_branch
      %200 = sbr.rel (0) target = $region77
    $region76: #{forward.1} parent=1 // pred_region
      %s202 = ssub.s32 1728, 1728
      %203 = vsyncadd [#allocation17], %s202
      %s204 = sshll.u32 [#allocation18], 4
      %s205 = int_to_ptr.vmem [resolvable:$true] %s204
      %210 = dma.hbm_to_vmem [thread:$0]  %s37, 1728, %s205, [#allocation17], 192, 192, 12
    $region77: #{forward.1} parent=1 // pred_fallthru
      _
    // Predicated region
    $region78: #{forward.1} parent=1 // pred_check
      _
    $region79: #{forward.1} parent=1 // pred_check_branch
      %212 = sbr.rel (0) target = $region81
    $region80: #{forward.1} parent=1 // pred_region
      %s214 = ssub.s32 16, 16
      %215 = vsyncadd [#allocation20], %s214
      %s217 = sshll.u32 [#allocation19], 4
      %s218 = int_to_ptr.vmem [resolvable:$true] %s217
      %220 = dma.hbm_to_vmem [thread:$0]  %s39, 16, %s218, [#allocation20]
    $region81: #{forward.1} parent=1 // pred_fallthru
      _
    // Predicated region
    $region82: #{forward.1} parent=1 // pred_check
      _
    $region83: #{forward.1} parent=1 // pred_check_branch
      %222 = sbr.rel (0) target = $region85
    $region84: #{forward.1} parent=1 // pred_region
      %s224 = ssub.s32 16, 16
      %225 = vsyncadd [#allocation20], %s224
      %s227 = sshll.u32 [#allocation21], 4
      %s228 = int_to_ptr.vmem [resolvable:$true] %s227
      %230 = dma.hbm_to_vmem [thread:$0]  %s41, 16, %s228, [#allocation20]
    $region85: #{forward.1} parent=1 // pred_fallthru
      _
    // Predicated region
    $region86: #{forward.1} parent=1 // pred_check
      _
    $region87: #{forward.1} parent=1 // pred_check_branch
      %232 = sbr.rel (0) target = $region89
    $region88: #{forward.1} parent=1 // pred_region
      _
    $region89: #{forward.1} parent=1 // pred_fallthru
      _
    // Predicated region
    $region90: #{forward.1} parent=1 // pred_check
      _
    $region91: #{forward.1} parent=1 // pred_check_branch
      %234 = sbr.rel (0) target = $region93
    $region92: #{forward.1} parent=1 // pred_region
      %s236 = ssub.s32 18432, 18432
      %237 = vsyncadd [#allocation23], %s236
      %s238 = sshll.u32 [#allocation22], 4
      %s239 = int_to_ptr.vmem [resolvable:$true] %s238
      %244 = dma.hbm_to_vmem [thread:$0]  %s45, 18432, %s239, [#allocation23], 512, 512, 32
    $region93: #{forward.1} parent=1 // pred_fallthru
      _
    // Predicated region
    $region94: #{forward.1} parent=1 // pred_check
      _
    $region95: #{forward.1} parent=1 // pred_check_branch
      %246 = sbr.rel (0) target = $region97
    $region96: #{forward.1} parent=1 // pred_region
      %s248 = ssub.s32 16, 16
      %249 = vsyncadd [#allocation23], %s248
      %s251 = sshll.u32 [#allocation24], 4
      %s252 = int_to_ptr.vmem [resolvable:$true] %s251
      %254 = dma.hbm_to_vmem [thread:$0]  %s47, 16, %s252, [#allocation23]
    $region97: #{forward.1} parent=1 // pred_fallthru
      _
    // Predicated region
    $region98: #{forward.1} parent=1 // pred_check
      _
    $region99: #{forward.1} parent=1 // pred_check_branch
      %256 = sbr.rel (0) target = $region101
    $region100: #{forward.1} parent=1 // pred_region
      %s258 = ssub.s32 16, 16
      %259 = vsyncadd [#allocation26], %s258
      %s261 = sshll.u32 [#allocation25], 4
      %s262 = int_to_ptr.vmem [resolvable:$true] %s261
      %264 = dma.hbm_to_vmem [thread:$0]  %s49, 16, %s262, [#allocation26]
    $region101: #{forward.1} parent=1 // pred_fallthru
      _
    // Predicated region
    $region102: #{forward.1} parent=1 // pred_check
      _
    $region103: #{forward.1} parent=1 // pred_check_branch
      %266 = sbr.rel (0) target = $region105
    $region104: #{forward.1} parent=1 // pred_region
      _
    $region105: #{forward.1} parent=1 // pred_fallthru
      _
    // Predicated region
    $region106: #{forward.1} parent=1 // pred_check
      _
    $region107: #{forward.1} parent=1 // pred_check_branch
      %268 = sbr.rel (0) target = $region109
    $region108: #{forward.1} parent=1 // pred_region
      _
    $region109: #{forward.1} parent=1 // pred_fallthru
      _
    // Predicated region
    $region110: #{forward.1} parent=1 // pred_check
      _
    $region111: #{forward.1} parent=1 // pred_check_branch
      %270 = sbr.rel (0) target = $region113
    $region112: #{forward.1} parent=1 // pred_region
      _
    $region113: #{forward.1} parent=1 // pred_fallthru
      _
    // Predicated region
    $region114: #{forward.1} parent=1 // pred_check
      _
    $region115: #{forward.1} parent=1 // pred_check_branch
      %272 = sbr.rel (0) target = $region117
    $region116: #{forward.1} parent=1 // pred_region
      _
    $region117: #{forward.1} parent=1 // pred_fallthru
      _
    // Predicated region
    $region118: #{forward.1} parent=1 // pred_check
      _
    $region119: #{forward.1} parent=1 // pred_check_branch
      %274 = sbr.rel (0) target = $region121
    $region120: #{forward.1} parent=1 // pred_region
      _
    $region121: #{forward.1} parent=1 // pred_fallthru
      _
    // Predicated region
    $region122: #{forward.1} parent=1 // pred_check
      _
    $region123: #{forward.1} parent=1 // pred_check_branch
      %276 = sbr.rel (0) target = $region125
    $region124: #{forward.1} parent=1 // pred_region
      _
    $region125: #{forward.1} parent=1 // pred_fallthru
      _
    // Predicated region
    $region126: #{forward.1} parent=1 // pred_check
      _
    $region127: #{forward.1} parent=1 // pred_check_branch
      %278 = sbr.rel (0) target = $region129
    $region128: #{forward.1} parent=1 // pred_region
      %s280 = ssub.s32 1024, 1024
      %281 = vsyncadd [#allocation26], %s280
      %s283 = sshll.u32 [#allocation27], 4
      %s284 = int_to_ptr.vmem [resolvable:$true] %s283
      %286 = dma.hbm_to_vmem [thread:$0]  %s63, 1024, %s284, [#allocation26]
    $region129: #{forward.1} parent=1 // pred_fallthru
      _
    // Predicated region
    $region130: #{forward.1} parent=1 // pred_check
      _
    $region131: #{forward.1} parent=1 // pred_check_branch
      %288 = sbr.rel (0) target = $region133
    $region132: #{forward.1} parent=1 // pred_region
      %289 = dma.done [#allocation3], 16
    $region133: #{forward.1} parent=1 // pred_fallthru
      _
    // Predicated region
    $region134: #{forward.1} parent=1 // pred_check
      _
    $region135: #{forward.1} parent=1 // pred_check_branch
      %291 = sbr.rel (0) target = $region137
    $region136: #{forward.1} parent=1 // pred_region
      %292 = dma.done [#allocation5], 192
    $region137: #{forward.1} parent=1 // pred_fallthru
      _
    // Predicated region
    $region138: #{forward.1} parent=1 // pred_check
      _
    $region139: #{forward.1} parent=1 // pred_check_branch
      %294 = sbr.rel (0) target = $region141
    $region140: #{forward.1} parent=1 // pred_region
      %295 = dma.done [#allocation5], 64
    $region141: #{forward.1} parent=1 // pred_fallthru
      _
    // Predicated region
    $region142: #{forward.1} parent=1 // pred_check
      _
    $region143: #{forward.1} parent=1 // pred_check_branch
      %297 = sbr.rel (0) target = $region145
    $region144: #{forward.1} parent=1 // pred_region
      %298 = dma.done [#allocation8], 16
    $region145: #{forward.1} parent=1 // pred_fallthru
      _
    // Predicated region
    $region146: #{forward.1} parent=1 // pred_check
      _
    $region147: #{forward.1} parent=1 // pred_check_branch
      %300 = sbr.rel (0) target = $region149
    $region148: #{forward.1} parent=1 // pred_region
      %301 = dma.done [#allocation8], 16
    $region149: #{forward.1} parent=1 // pred_fallthru
      _
    // Predicated region
    $region150: #{forward.1} parent=1 // pred_check
      _
    $region151: #{forward.1} parent=1 // pred_check_branch
      %303 = sbr.rel (0) target = $region153
    $region152: #{forward.1} parent=1 // pred_region
      %304 = dma.done [#allocation11], 64
    $region153: #{forward.1} parent=1 // pred_fallthru
      _
    // Predicated region
    $region154: #{forward.1} parent=1 // pred_check
      _
    $region155: #{forward.1} parent=1 // pred_check_branch
      %306 = sbr.rel (0) target = $region157
    $region156: #{forward.1} parent=1 // pred_region
      %307 = dma.done [#allocation11], 512
    $region157: #{forward.1} parent=1 // pred_fallthru
      _
    // Predicated region
    $region158: #{forward.1} parent=1 // pred_check
      _
    $region159: #{forward.1} parent=1 // pred_check_branch
      %309 = sbr.rel (0) target = $region161
    $region160: #{forward.1} parent=1 // pred_region
      %310 = dma.done [#allocation14], 16
    $region161: #{forward.1} parent=1 // pred_fallthru
      _
    // Predicated region
    $region162: #{forward.1} parent=1 // pred_check
      _
    $region163: #{forward.1} parent=1 // pred_check_branch
      %312 = sbr.rel (0) target = $region165
    $region164: #{forward.1} parent=1 // pred_region
      %313 = dma.done [#allocation14], 16
    $region165: #{forward.1} parent=1 // pred_fallthru
      _
    // Predicated region
    $region166: #{forward.1} parent=1 // pred_check
      _
    $region167: #{forward.1} parent=1 // pred_check_branch
      %315 = sbr.rel (0) target = $region169
    $region168: #{forward.1} parent=1 // pred_region
      %316 = dma.done [#allocation17], 1728
    $region169: #{forward.1} parent=1 // pred_fallthru
      _
    // Predicated region
    $region170: #{forward.1} parent=1 // pred_check
      _
    $region171: #{forward.1} parent=1 // pred_check_branch
      %318 = sbr.rel (0) target = $region173
    $region172: #{forward.1} parent=1 // pred_region
      %319 = dma.done [#allocation17], 1728
    $region173: #{forward.1} parent=1 // pred_fallthru
      _
    // Predicated region
    $region174: #{forward.1} parent=1 // pred_check
      _
    $region175: #{forward.1} parent=1 // pred_check_branch
      %321 = sbr.rel (0) target = $region177
    $region176: #{forward.1} parent=1 // pred_region
      %322 = dma.done [#allocation20], 16
    $region177: #{forward.1} parent=1 // pred_fallthru
      _
    // Predicated region
    $region178: #{forward.1} parent=1 // pred_check
      _
    $region179: #{forward.1} parent=1 // pred_check_branch
      %324 = sbr.rel (0) target = $region181
    $region180: #{forward.1} parent=1 // pred_region
      %325 = dma.done [#allocation20], 16
    $region181: #{forward.1} parent=1 // pred_fallthru
      _
    // Predicated region
    $region182: #{forward.1} parent=1 // pred_check
      _
    $region183: #{forward.1} parent=1 // pred_check_branch
      %327 = sbr.rel (0) target = $region185
    $region184: #{forward.1} parent=1 // pred_region
      %328 = dma.done [#allocation23], 18432
    $region185: #{forward.1} parent=1 // pred_fallthru
      _
    // Predicated region
    $region186: #{forward.1} parent=1 // pred_check
      _
    $region187: #{forward.1} parent=1 // pred_check_branch
      %330 = sbr.rel (0) target = $region189
    $region188: #{forward.1} parent=1 // pred_region
      %331 = dma.done [#allocation23], 16
    $region189: #{forward.1} parent=1 // pred_fallthru
      _
    // Predicated region
    $region190: #{forward.1} parent=1 // pred_check
      _
    $region191: #{forward.1} parent=1 // pred_check_branch
      %333 = sbr.rel (0) target = $region193
    $region192: #{forward.1} parent=1 // pred_region
      %334 = dma.done [#allocation26], 16
    $region193: #{forward.1} parent=1 // pred_fallthru
      _
    // Predicated region
    $region194: #{forward.1} parent=1 // pred_check
      _
    $region195: #{forward.1} parent=1 // pred_check_branch
      %336 = sbr.rel (0) target = $region197
    $region196: #{forward.1} parent=1 // pred_region
      %337 = dma.done [#allocation26], 1024
    $region197: #{forward.1} parent=1 // pred_fallthru
      _
    %v339 = vld [vmem:[%s3] sm:$0x3]
    %v340 = vld [vmem:[%s5] sm:$0xf]
    %v341 = vld [vmem:[#allocation2] sm:$0x1]
    %v343 = vlaneseq
    %v344 = vshrl.u32 %v343, 7
    %v345 = vsub.s32 0, %v344
    %v346 = vrot.slane %v341, %v345
    %vm348 = vcmask 31744
    %v350 = vsel %vm348, %v339, 0
    %vm352 = vcmask 1043456
    %v354 = vsel %vm352, %v340, 0
    %356 = vmatprep.subr.mxu0 0.0
    %357 = vmatpush1.msra.mxu0 %v354
    %358 = vmatprep.subr.mxu0 0.0
    %359 = vmatpush1.msra.mxu0 0.0
    %360 = vmatprep.subr.mxu0 0.0
    %361 = vmatpush1.msra.mxu0 0.0
    %362 = vmatprep.subr.mxu0 0.0
    %363 = vmatpush1.msra.mxu0 0.0
    %364 = vmatprep.subr.mxu0 0.0
    %365 = vmatpush1.msra.mxu0 0.0
    %366 = vmatprep.subr.mxu0 0.0
    %367 = vmatpush1.msra.mxu0 0.0
    %368 = vmatprep.subr.mxu0 0.0
    %369 = vmatpush1.msra.mxu0 0.0
    %370 = vmatprep.subr.mxu0 0.0
    %371 = vmatpush1.msra.mxu0 0.0
    %372 = vmatprep.subr.mxu0 0.0
    %373 = vmatpush1.msra.mxu0 0.0
    %374 = vmatprep.subr.mxu0 0.0
    %375 = vmatpush1.msra.mxu0 0.0
    %376 = vmatprep.subr.mxu0 0.0
    %377 = vmatpush1.msra.mxu0 0.0
    %378 = vmatprep.subr.mxu0 0.0
    %379 = vmatpush1.msra.mxu0 0.0
    %380 = vmatprep.subr.mxu0 0.0
    %381 = vmatpush1.msra.mxu0 0.0
    %382 = vmatprep.subr.mxu0 0.0
    %383 = vmatpush1.msra.mxu0 0.0
    %384 = vmatprep.subr.mxu0 0.0
    %385 = vmatpush1.msra.mxu0 0.0
    %386 = vmatprep.subr.mxu0 0.0
    %387 = vmatpush1.msra.mxu0 0.0
    %388 = vmatprep.subr.mxu0 0.0
    %389 = vmatpush1.msra.mxu0 0.0
    %390 = vmatprep.subr.mxu0 0.0
    %391 = vmatpush1.msra.mxu0 0.0
    %392 = vmatprep.subr.mxu0 0.0
    %393 = vmatpush1.msra.mxu0 0.0
    %394 = vmatprep.subr.mxu0 0.0
    %395 = vmatpush1.msra.mxu0 0.0
    %396 = vmatprep.subr.mxu0 0.0
    %397 = vmatpush1.msra.mxu0 0.0
    %398 = vmatprep.subr.mxu0 0.0
    %399 = vmatpush1.msra.mxu0 0.0
    %400 = vmatprep.subr.mxu0 0.0
    %401 = vmatpush1.msra.mxu0 0.0
    %402 = vmatprep.subr.mxu0 0.0
    %403 = vmatpush1.msra.mxu0 0.0
    %404 = vmatprep.subr.mxu0 0.0
    %405 = vmatpush1.msra.mxu0 0.0
    %406 = vmatprep.subr.mxu0 0.0
    %407 = vmatpush1.msra.mxu0 0.0
    %408 = vmatprep.subr.mxu0 0.0
    %409 = vmatpush1.msra.mxu0 0.0
    %410 = vmatprep.subr.mxu0 0.0
    %411 = vmatpush1.msra.mxu0 0.0
    %412 = vmatprep.subr.mxu0 0.0
    %413 = vmatpush1.msra.mxu0 0.0
    %414 = vmatprep.subr.mxu0 0.0
    %415 = vmatpush1.msra.mxu0 0.0
    %416 = vmatprep.subr.mxu0 0.0
    %417 = vmatpush1.msra.mxu0 0.0
    %418 = vmatprep.subr.mxu0 0.0
    %419 = vmatpush1.msra.mxu0 0.0
    %420 = vmatprep.mubr.f32.mxu0 0.0
    %421 = vmatmul.mubr.f32.gmra.mrb[0].mxu0 %v350
    %v422 = vpop.f32.mrb[0].mxu0
    %v423 = vadd.f32 %v346, %v422
    %v424 = vpop.f32.mrb[0].mxu0
    %425 = vdwg.mxu0
    %v426 = vmax.f32 %v423, 0.0
    %v427 = vld [vmem:[%s9] sm:$0xf]
    %v428 = vld [vmem:[%s11] sm:$0x1]
    %v430 = vlaneseq
    %v431 = vshrl.u32 %v430, 7
    %v432 = vsub.s32 0, %v431
    %v433 = vrot.slane %v428, %v432
    %v436 = vsel %vm348, %v426, 0
    %v439 = vsel %vm352, %v427, 0
    %441 = vmatprep.subr.mxu0 0.0
    %442 = vmatpush1.msra.mxu0 %v439
    %443 = vmatprep.subr.mxu0 0.0
    %444 = vmatpush1.msra.mxu0 0.0
    %445 = vmatprep.subr.mxu0 0.0
    %446 = vmatpush1.msra.mxu0 0.0
    %447 = vmatprep.subr.mxu0 0.0
    %448 = vmatpush1.msra.mxu0 0.0
    %449 = vmatprep.subr.mxu0 0.0
    %450 = vmatpush1.msra.mxu0 0.0
    %451 = vmatprep.subr.mxu0 0.0
    %452 = vmatpush1.msra.mxu0 0.0
    %453 = vmatprep.subr.mxu0 0.0
    %454 = vmatpush1.msra.mxu0 0.0
    %455 = vmatprep.subr.mxu0 0.0
    %456 = vmatpush1.msra.mxu0 0.0
    %457 = vmatprep.subr.mxu0 0.0
    %458 = vmatpush1.msra.mxu0 0.0
    %459 = vmatprep.subr.mxu0 0.0
    %460 = vmatpush1.msra.mxu0 0.0
    %461 = vmatprep.subr.mxu0 0.0
    %462 = vmatpush1.msra.mxu0 0.0
    %463 = vmatprep.subr.mxu0 0.0
    %464 = vmatpush1.msra.mxu0 0.0
    %465 = vmatprep.subr.mxu0 0.0
    %466 = vmatpush1.msra.mxu0 0.0
    %467 = vmatprep.subr.mxu0 0.0
    %468 = vmatpush1.msra.mxu0 0.0
    %469 = vmatprep.subr.mxu0 0.0
    %470 = vmatpush1.msra.mxu0 0.0
    %471 = vmatprep.subr.mxu0 0.0
    %472 = vmatpush1.msra.mxu0 0.0
    %473 = vmatprep.subr.mxu0 0.0
    %474 = vmatpush1.msra.mxu0 0.0
    %475 = vmatprep.subr.mxu0 0.0
    %476 = vmatpush1.msra.mxu0 0.0
    %477 = vmatprep.subr.mxu0 0.0
    %478 = vmatpush1.msra.mxu0 0.0
    %479 = vmatprep.subr.mxu0 0.0
    %480 = vmatpush1.msra.mxu0 0.0
    %481 = vmatprep.subr.mxu0 0.0
    %482 = vmatpush1.msra.mxu0 0.0
    %483 = vmatprep.subr.mxu0 0.0
    %484 = vmatpush1.msra.mxu0 0.0
    %485 = vmatprep.subr.mxu0 0.0
    %486 = vmatpush1.msra.mxu0 0.0
    %487 = vmatprep.subr.mxu0 0.0
    %488 = vmatpush1.msra.mxu0 0.0
    %489 = vmatprep.subr.mxu0 0.0
    %490 = vmatpush1.msra.mxu0 0.0
    %491 = vmatprep.subr.mxu0 0.0
    %492 = vmatpush1.msra.mxu0 0.0
    %493 = vmatprep.subr.mxu0 0.0
    %494 = vmatpush1.msra.mxu0 0.0
    %495 = vmatprep.subr.mxu0 0.0
    %496 = vmatpush1.msra.mxu0 0.0
    %497 = vmatprep.subr.mxu0 0.0
    %498 = vmatpush1.msra.mxu0 0.0
    %499 = vmatprep.subr.mxu0 0.0
    %500 = vmatpush1.msra.mxu0 0.0
    %501 = vmatprep.subr.mxu0 0.0
    %502 = vmatpush1.msra.mxu0 0.0
    %503 = vmatprep.subr.mxu0 0.0
    %504 = vmatpush1.msra.mxu0 0.0
    %505 = vmatprep.mubr.f32.mxu0 0.0
    %506 = vmatmul.mubr.f32.gmra.mrb[0].mxu0 %v436
    %v507 = vpop.f32.mrb[0].mxu0
    %v508 = vadd.f32 %v433, %v507
    %v509 = vpop.f32.mrb[0].mxu0
    %510 = vdwg.mxu0
    %v511 = vmax.f32 %v508, 0.0
    %v512 = vld [vmem:[%s1] sm:$0xff]
    %v514 = vcombine.high %v512, %v512
    %v516 = vunpack.c.l.s4 1983009808
    %v517 = vunpack.c.0.s8 %v516
    %v518 = vlaneseq
    %v519 = vshrl.u32 %v518, 7
    %v520 = vsub.s32 %v517, %v519
    %v521 = vrot.slane %v512, %v520
    %v523 = vunpack.c.l.s4 1983009808
    %v524 = vunpack.c.0.s8 %v523
    %v525 = vlaneseq
    %v526 = vshrl.u32 %v525, 7
    %v527 = vsub.s32 %v524, %v526
    %v528 = vrot.slane %v514, %v527
    %v529 = vcombine.high %v521, %v521
    %v530 = vcombine.high %v528, %v528
    %v535 = vpack.c.bf16 %v521, %v521
    %v536 = vpack.c.bf16 %v529, %v529
    %v537 = vpack.c.bf16 %v528, %v528
    %v538 = vpack.c.bf16 %v530, %v530
    %v539 = vld [vmem:[%s13] sm:$0xff]
    %v540 = vld [vmem:[%s13 + $0x8] sm:$0xf]
    %v541 = vld [vmem:[%s13 + $0xc] sm:$0xff]
    %v542 = vld [vmem:[%s13 + $0x14] sm:$0xf]
    %v543 = vld [vmem:[%s13 + $0x18] sm:$0xff]
    %v544 = vld [vmem:[%s13 + $0x20] sm:$0xf]
    %v545 = vld [vmem:[%s13 + $0x24] sm:$0xff]
    %v546 = vld [vmem:[%s13 + $0x2c] sm:$0xf]
    %v547 = vld [vmem:[%s13 + $0x30] sm:$0xff]
    %v548 = vld [vmem:[%s13 + $0x38] sm:$0xf]
    %v549 = vld [vmem:[%s13 + $0x3c] sm:$0xff]
    %v550 = vld [vmem:[%s13 + $0x44] sm:$0xf]
    %v551 = vld [vmem:[%s13 + $0x48] sm:$0xff]
    %v552 = vld [vmem:[%s13 + $0x50] sm:$0xf]
    %v553 = vld [vmem:[%s13 + $0x54] sm:$0xff]
    %v554 = vld [vmem:[%s13 + $0x5c] sm:$0xf]
    %v555 = vld [vmem:[%s13 + $0x60] sm:$0xff]
    %v556 = vld [vmem:[%s13 + $0x68] sm:$0xf]
    %v557 = vld [vmem:[%s13 + $0x6c] sm:$0xff]
    %v558 = vld [vmem:[%s13 + $0x74] sm:$0xf]
    %v559 = vld [vmem:[%s13 + $0x78] sm:$0xff]
    %v560 = vld [vmem:[%s13 + $0x80] sm:$0xf]
    %v561 = vld [vmem:[%s13 + $0x84] sm:$0xff]
    %v562 = vld [vmem:[%s13 + $0x8c] sm:$0xf]
    %v563 = vld [vmem:[%s13 + $0x90] sm:$0xff]
    %v564 = vld [vmem:[%s13 + $0x98] sm:$0xf]
    %v565 = vld [vmem:[%s13 + $0x9c] sm:$0xff]
    %v566 = vld [vmem:[%s13 + $0xa4] sm:$0xf]
    %v567 = vld [vmem:[%s13 + $0xa8] sm:$0xff]
    %v568 = vld [vmem:[%s13 + $0xb0] sm:$0xf]
    %v569 = vld [vmem:[%s13 + $0xb4] sm:$0xff]
    %v570 = vld [vmem:[%s13 + $0xbc] sm:$0xf]
    %v571 = vld [vmem:[%s13 + $0xc0] sm:$0xff]
    %v572 = vld [vmem:[%s13 + $0xc8] sm:$0xf]
    %v573 = vld [vmem:[%s13 + $0xcc] sm:$0xff]
    %v574 = vld [vmem:[%s13 + $0xd4] sm:$0xf]
    %v575 = vld [vmem:[%s13 + $0xd8] sm:$0xff]
    %v576 = vld [vmem:[%s13 + $0xe0] sm:$0xf]
    %v577 = vld [vmem:[%s13 + $0xe4] sm:$0xff]
    %v578 = vld [vmem:[%s13 + $0xec] sm:$0xf]
    %v579 = vld [vmem:[%s13 + $0xf0] sm:$0xff]
    %v580 = vld [vmem:[%s13 + $0xf8] sm:$0xf]
    %v581 = vld [vmem:[%s13 + $0xfc] sm:$0xff]
    %v582 = vld [vmem:[%s13 + $0x104] sm:$0xf]
    %v583 = vld [vmem:[%s13 + $0x108] sm:$0xff]
    %v584 = vld [vmem:[%s13 + $0x110] sm:$0xf]
    %v585 = vld [vmem:[%s13 + $0x114] sm:$0xff]
    %v586 = vld [vmem:[%s13 + $0x11c] sm:$0xf]
    %v587 = vld [vmem:[%s13 + $0x120] sm:$0xff]
    %v588 = vld [vmem:[%s13 + $0x128] sm:$0xf]
    %v589 = vld [vmem:[%s13 + $0x12c] sm:$0xff]
    %v590 = vld [vmem:[%s13 + $0x134] sm:$0xf]
    %v591 = vld [vmem:[%s13 + $0x138] sm:$0xff]
    %v592 = vld [vmem:[%s13 + $0x140] sm:$0xf]
    %v593 = vld [vmem:[%s13 + $0x144] sm:$0xff]
    %v594 = vld [vmem:[%s13 + $0x14c] sm:$0xf]
    %v595 = vld [vmem:[%s13 + $0x150] sm:$0xff]
    %v596 = vld [vmem:[%s13 + $0x158] sm:$0xf]
    %v597 = vld [vmem:[%s13 + $0x15c] sm:$0xff]
    %v598 = vld [vmem:[%s13 + $0x164] sm:$0xf]
    %v599 = vld [vmem:[%s13 + $0x168] sm:$0xff]
    %v600 = vld [vmem:[%s13 + $0x170] sm:$0xf]
    %v601 = vld [vmem:[%s13 + $0x174] sm:$0xff]
    %v602 = vld [vmem:[%s13 + $0x17c] sm:$0xf]
    %v603 = vld [vmem:[%s13 + $0x180] sm:$0xff]
    %v604 = vld [vmem:[%s13 + $0x188] sm:$0xf]
    %v605 = vld [vmem:[%s13 + $0x18c] sm:$0xff]
    %v606 = vld [vmem:[%s13 + $0x194] sm:$0xf]
    %v607 = vld [vmem:[%s13 + $0x198] sm:$0xff]
    %v608 = vld [vmem:[%s13 + $0x1a0] sm:$0xf]
    %v609 = vld [vmem:[%s13 + $0x1a4] sm:$0xff]
    %v610 = vld [vmem:[%s13 + $0x1ac] sm:$0xf]
    %v611 = vld [vmem:[%s13 + $0x1b0] sm:$0xff]
    %v612 = vld [vmem:[%s13 + $0x1b8] sm:$0xf]
    %v613 = vld [vmem:[%s13 + $0x1bc] sm:$0xff]
    %v614 = vld [vmem:[%s13 + $0x1c4] sm:$0xf]
    %v615 = vld [vmem:[%s13 + $0x1c8] sm:$0xff]
    %v616 = vld [vmem:[%s13 + $0x1d0] sm:$0xf]
    %v617 = vld [vmem:[%s13 + $0x1d4] sm:$0xff]
    %v618 = vld [vmem:[%s13 + $0x1dc] sm:$0xf]
    %v619 = vld [vmem:[%s13 + $0x1e0] sm:$0xff]
    %v620 = vld [vmem:[%s13 + $0x1e8] sm:$0xf]
    %v621 = vld [vmem:[%s13 + $0x1ec] sm:$0xff]
    %v622 = vld [vmem:[%s13 + $0x1f4] sm:$0xf]
    %v623 = vld [vmem:[%s13 + $0x1f8] sm:$0xff]
    %v624 = vld [vmem:[%s13 + $0x200] sm:$0xf]
    %v625 = vld [vmem:[%s13 + $0x204] sm:$0xff]
    %v626 = vld [vmem:[%s13 + $0x20c] sm:$0xf]
    %v627 = vld [vmem:[%s13 + $0x210] sm:$0xff]
    %v628 = vld [vmem:[%s13 + $0x218] sm:$0xf]
    %v629 = vld [vmem:[%s13 + $0x21c] sm:$0xff]
    %v630 = vld [vmem:[%s13 + $0x224] sm:$0xf]
    %v631 = vld [vmem:[%s13 + $0x228] sm:$0xff]
    %v632 = vld [vmem:[%s13 + $0x230] sm:$0xf]
    %v633 = vld [vmem:[%s13 + $0x234] sm:$0xff]
    %v634 = vld [vmem:[%s13 + $0x23c] sm:$0xf]
    %v635 = vld [vmem:[%s13 + $0x240] sm:$0xff]
    %v636 = vld [vmem:[%s13 + $0x248] sm:$0xf]
    %v637 = vld [vmem:[%s13 + $0x24c] sm:$0xff]
    %v638 = vld [vmem:[%s13 + $0x254] sm:$0xf]
    %v639 = vld [vmem:[%s13 + $0x258] sm:$0xff]
    %v640 = vld [vmem:[%s13 + $0x260] sm:$0xf]
    %v641 = vld [vmem:[%s13 + $0x264] sm:$0xff]
    %v642 = vld [vmem:[%s13 + $0x26c] sm:$0xf]
    %v643 = vld [vmem:[%s13 + $0x270] sm:$0xff]
    %v644 = vld [vmem:[%s13 + $0x278] sm:$0xf]
    %v645 = vld [vmem:[%s13 + $0x27c] sm:$0xff]
    %v646 = vld [vmem:[%s13 + $0x284] sm:$0xf]
    %v647 = vld [vmem:[#allocation4] sm:$0xff]
    %v648 = vld [vmem:[#allocation4 + $0x8] sm:$0xf]
    %v651 = vcombine.high %v647, %v647
    %v653 = vsel %vm348, %v511, 0
    %v655 = vsel %vm352, %v647, 0
    %v657 = vsel %vm352, %v651, 0
    %v659 = vsel %vm352, %v648, 0
    %661 = vmatprep.subr.mxu0 %v657
    %662 = vmatpush1.msra.mxu0 %v655
    %663 = vmatprep.subr.mxu0 0.0
    %664 = vmatpush1.msra.mxu0 0.0
    %665 = vmatprep.subr.mxu0 0.0
    %666 = vmatpush1.msra.mxu0 0.0
    %667 = vmatprep.subr.mxu0 0.0
    %668 = vmatpush1.msra.mxu0 0.0
    %669 = vmatprep.subr.mxu0 0.0
    %670 = vmatpush1.msra.mxu0 0.0
    %671 = vmatprep.subr.mxu0 0.0
    %672 = vmatpush1.msra.mxu0 0.0
    %673 = vmatprep.subr.mxu0 0.0
    %674 = vmatpush1.msra.mxu0 0.0
    %675 = vmatprep.subr.mxu0 0.0
    %676 = vmatpush1.msra.mxu0 0.0
    %677 = vmatprep.subr.mxu0 0.0
    %678 = vmatpush1.msra.mxu0 0.0
    %679 = vmatprep.subr.mxu0 0.0
    %680 = vmatpush1.msra.mxu0 0.0
    %681 = vmatprep.subr.mxu0 0.0
    %682 = vmatpush1.msra.mxu0 0.0
    %683 = vmatprep.subr.mxu0 0.0
    %684 = vmatpush1.msra.mxu0 0.0
    %685 = vmatprep.subr.mxu0 0.0
    %686 = vmatpush1.msra.mxu0 0.0
    %687 = vmatprep.subr.mxu0 0.0
    %688 = vmatpush1.msra.mxu0 0.0
    %689 = vmatprep.subr.mxu0 0.0
    %690 = vmatpush1.msra.mxu0 0.0
    %691 = vmatprep.subr.mxu0 0.0
    %692 = vmatpush1.msra.mxu0 0.0
    %693 = vmatprep.subr.mxu0 0.0
    %694 = vmatpush1.msra.mxu0 0.0
    %695 = vmatprep.subr.mxu0 0.0
    %696 = vmatpush1.msra.mxu0 0.0
    %697 = vmatprep.subr.mxu0 0.0
    %698 = vmatpush1.msra.mxu0 0.0
    %699 = vmatprep.subr.mxu0 0.0
    %700 = vmatpush1.msra.mxu0 0.0
    %701 = vmatprep.subr.mxu0 0.0
    %702 = vmatpush1.msra.mxu0 0.0
    %703 = vmatprep.subr.mxu0 0.0
    %704 = vmatpush1.msra.mxu0 0.0
    %705 = vmatprep.subr.mxu0 0.0
    %706 = vmatpush1.msra.mxu0 0.0
    %707 = vmatprep.subr.mxu0 0.0
    %708 = vmatpush1.msra.mxu0 0.0
    %709 = vmatprep.subr.mxu0 0.0
    %710 = vmatpush1.msra.mxu0 0.0
    %711 = vmatprep.subr.mxu0 0.0
    %712 = vmatpush1.msra.mxu0 0.0
    %713 = vmatprep.subr.mxu0 0.0
    %714 = vmatpush1.msra.mxu0 0.0
    %715 = vmatprep.subr.mxu0 0.0
    %716 = vmatpush1.msra.mxu0 0.0
    %717 = vmatprep.subr.mxu0 0.0
    %718 = vmatpush1.msra.mxu0 0.0
    %719 = vmatprep.subr.mxu0 0.0
    %720 = vmatpush1.msra.mxu0 0.0
    %721 = vmatprep.subr.mxu0 0.0
    %722 = vmatpush1.msra.mxu0 0.0
    %723 = vmatprep.subr.mxu0 0.0
    %724 = vmatpush1.msra.mxu0 0.0
    %725 = vmatprep.mubr.f32.mxu0 0.0
    %726 = vmatmul.mubr.f32.gmra.mrb[0].mxu0 %v653
    %v727 = vpop.f32.mrb[0].mxu0
    %v728 = vadd.f32 0.0, %v727
    %v729 = vpop.f32.mrb[0].mxu0
    %v730 = vadd.f32 0.0, %v729
    %731 = vdwg.mxu0
    %732 = vmatprep.subr.mxu0 0.0
    %733 = vmatpush1.msra.mxu0 %v659
    %734 = vmatprep.subr.mxu0 0.0
    %735 = vmatpush1.msra.mxu0 0.0
    %736 = vmatprep.subr.mxu0 0.0
    %737 = vmatpush1.msra.mxu0 0.0
    %738 = vmatprep.subr.mxu0 0.0
    %739 = vmatpush1.msra.mxu0 0.0
    %740 = vmatprep.subr.mxu0 0.0
    %741 = vmatpush1.msra.mxu0 0.0
    %742 = vmatprep.subr.mxu0 0.0
    %743 = vmatpush1.msra.mxu0 0.0
    %744 = vmatprep.subr.mxu0 0.0
    %745 = vmatpush1.msra.mxu0 0.0
    %746 = vmatprep.subr.mxu0 0.0
    %747 = vmatpush1.msra.mxu0 0.0
    %748 = vmatprep.subr.mxu0 0.0
    %749 = vmatpush1.msra.mxu0 0.0
    %750 = vmatprep.subr.mxu0 0.0
    %751 = vmatpush1.msra.mxu0 0.0
    %752 = vmatprep.subr.mxu0 0.0
    %753 = vmatpush1.msra.mxu0 0.0
    %754 = vmatprep.subr.mxu0 0.0
    %755 = vmatpush1.msra.mxu0 0.0
    %756 = vmatprep.subr.mxu0 0.0
    %757 = vmatpush1.msra.mxu0 0.0
    %758 = vmatprep.subr.mxu0 0.0
    %759 = vmatpush1.msra.mxu0 0.0
    %760 = vmatprep.subr.mxu0 0.0
    %761 = vmatpush1.msra.mxu0 0.0
    %762 = vmatprep.subr.mxu0 0.0
    %763 = vmatpush1.msra.mxu0 0.0
    %764 = vmatprep.subr.mxu0 0.0
    %765 = vmatpush1.msra.mxu0 0.0
    %766 = vmatprep.subr.mxu0 0.0
    %767 = vmatpush1.msra.mxu0 0.0
    %768 = vmatprep.subr.mxu0 0.0
    %769 = vmatpush1.msra.mxu0 0.0
    %770 = vmatprep.subr.mxu0 0.0
    %771 = vmatpush1.msra.mxu0 0.0
    %772 = vmatprep.subr.mxu0 0.0
    %773 = vmatpush1.msra.mxu0 0.0
    %774 = vmatprep.subr.mxu0 0.0
    %775 = vmatpush1.msra.mxu0 0.0
    %776 = vmatprep.subr.mxu0 0.0
    %777 = vmatpush1.msra.mxu0 0.0
    %778 = vmatprep.subr.mxu0 0.0
    %779 = vmatpush1.msra.mxu0 0.0
    %780 = vmatprep.subr.mxu0 0.0
    %781 = vmatpush1.msra.mxu0 0.0
    %782 = vmatprep.subr.mxu0 0.0
    %783 = vmatpush1.msra.mxu0 0.0
    %784 = vmatprep.subr.mxu0 0.0
    %785 = vmatpush1.msra.mxu0 0.0
    %786 = vmatprep.subr.mxu0 0.0
    %787 = vmatpush1.msra.mxu0 0.0
    %788 = vmatprep.subr.mxu0 0.0
    %789 = vmatpush1.msra.mxu0 0.0
    %790 = vmatprep.subr.mxu0 0.0
    %791 = vmatpush1.msra.mxu0 0.0
    %792 = vmatprep.subr.mxu0 0.0
    %793 = vmatpush1.msra.mxu0 0.0
    %794 = vmatprep.subr.mxu0 0.0
    %795 = vmatpush1.msra.mxu0 0.0
    %796 = vmatprep.mubr.f32.mxu0 0.0
    %797 = vmatmul.mubr.f32.gmra.mrb[0].mxu0 %v653
    %v798 = vpop.f32.mrb[0].mxu0
    %v799 = vadd.f32 0.0, %v798
    %v800 = vpop.f32.mrb[0].mxu0
    %801 = vdwg.mxu0
    %v910 = vunpack.c.l.b16 %v539
    %v911 = vunpack.c.h.b16 %v539
    %v912 = vunpack.c.l.b16 %v540
    %v913 = vunpack.c.l.b16 %v541
    %v914 = vunpack.c.h.b16 %v541
    %v915 = vunpack.c.l.b16 %v542
    %v916 = vunpack.c.l.b16 %v543
    %v917 = vunpack.c.h.b16 %v543
    %v918 = vunpack.c.l.b16 %v544
    %v919 = vunpack.c.l.b16 %v545
    %v920 = vunpack.c.h.b16 %v545
    %v921 = vunpack.c.l.b16 %v546
    %v922 = vunpack.c.l.b16 %v547
    %v923 = vunpack.c.h.b16 %v547
    %v924 = vunpack.c.l.b16 %v548
    %v925 = vunpack.c.l.b16 %v549
    %v926 = vunpack.c.h.b16 %v549
    %v927 = vunpack.c.l.b16 %v550
    %v928 = vunpack.c.l.b16 %v551
    %v929 = vunpack.c.h.b16 %v551
    %v930 = vunpack.c.l.b16 %v552
    %v931 = vunpack.c.l.b16 %v553
    %v932 = vunpack.c.h.b16 %v553
    %v933 = vunpack.c.l.b16 %v554
    %v934 = vunpack.c.l.b16 %v555
    %v935 = vunpack.c.h.b16 %v555
    %v936 = vunpack.c.l.b16 %v556
    %v937 = vunpack.c.l.b16 %v557
    %v938 = vunpack.c.h.b16 %v557
    %v939 = vunpack.c.l.b16 %v558
    %v940 = vunpack.c.l.b16 %v559
    %v941 = vunpack.c.h.b16 %v559
    %v942 = vunpack.c.l.b16 %v560
    %v943 = vunpack.c.l.b16 %v561
    %v944 = vunpack.c.h.b16 %v561
    %v945 = vunpack.c.l.b16 %v562
    %v946 = vunpack.c.l.b16 %v563
    %v947 = vunpack.c.h.b16 %v563
    %v948 = vunpack.c.l.b16 %v564
    %v949 = vunpack.c.l.b16 %v565
    %v950 = vunpack.c.h.b16 %v565
    %v951 = vunpack.c.l.b16 %v566
    %v952 = vunpack.c.l.b16 %v567
    %v953 = vunpack.c.h.b16 %v567
    %v954 = vunpack.c.l.b16 %v568
    %v955 = vunpack.c.l.b16 %v569
    %v956 = vunpack.c.h.b16 %v569
    %v957 = vunpack.c.l.b16 %v570
    %v958 = vunpack.c.l.b16 %v571
    %v959 = vunpack.c.h.b16 %v571
    %v960 = vunpack.c.l.b16 %v572
    %v961 = vunpack.c.l.b16 %v573
    %v962 = vunpack.c.h.b16 %v573
    %v963 = vunpack.c.l.b16 %v574
    %v964 = vunpack.c.l.b16 %v575
    %v965 = vunpack.c.h.b16 %v575
    %v966 = vunpack.c.l.b16 %v576
    %v967 = vunpack.c.l.b16 %v577
    %v968 = vunpack.c.h.b16 %v577
    %v969 = vunpack.c.l.b16 %v578
    %v970 = vunpack.c.l.b16 %v579
    %v971 = vunpack.c.h.b16 %v579
    %v972 = vunpack.c.l.b16 %v580
    %v973 = vunpack.c.l.b16 %v581
    %v974 = vunpack.c.h.b16 %v581
    %v975 = vunpack.c.l.b16 %v582
    %v976 = vunpack.c.l.b16 %v583
    %v977 = vunpack.c.h.b16 %v583
    %v978 = vunpack.c.l.b16 %v584
    %v979 = vunpack.c.l.b16 %v585
    %v980 = vunpack.c.h.b16 %v585
    %v981 = vunpack.c.l.b16 %v586
    %v982 = vunpack.c.l.b16 %v587
    %v983 = vunpack.c.h.b16 %v587
    %v984 = vunpack.c.l.b16 %v588
    %v985 = vunpack.c.l.b16 %v589
    %v986 = vunpack.c.h.b16 %v589
    %v987 = vunpack.c.l.b16 %v590
    %v988 = vunpack.c.l.b16 %v591
    %v989 = vunpack.c.h.b16 %v591
    %v990 = vunpack.c.l.b16 %v592
    %v991 = vunpack.c.l.b16 %v593
    %v992 = vunpack.c.h.b16 %v593
    %v993 = vunpack.c.l.b16 %v594
    %v994 = vunpack.c.l.b16 %v595
    %v995 = vunpack.c.h.b16 %v595
    %v996 = vunpack.c.l.b16 %v596
    %v997 = vunpack.c.l.b16 %v597
    %v998 = vunpack.c.h.b16 %v597
    %v999 = vunpack.c.l.b16 %v598
    %v1000 = vunpack.c.l.b16 %v599
    %v1001 = vunpack.c.h.b16 %v599
    %v1002 = vunpack.c.l.b16 %v600
    %v1003 = vunpack.c.l.b16 %v601
    %v1004 = vunpack.c.h.b16 %v601
    %v1005 = vunpack.c.l.b16 %v602
    %v1006 = vunpack.c.l.b16 %v603
    %v1007 = vunpack.c.h.b16 %v603
    %v1008 = vunpack.c.l.b16 %v604
    %v1009 = vunpack.c.l.b16 %v605
    %v1010 = vunpack.c.h.b16 %v605
    %v1011 = vunpack.c.l.b16 %v606
    %v1012 = vunpack.c.l.b16 %v607
    %v1013 = vunpack.c.h.b16 %v607
    %v1014 = vunpack.c.l.b16 %v608
    %v1015 = vunpack.c.l.b16 %v609
    %v1016 = vunpack.c.h.b16 %v609
    %v1017 = vunpack.c.l.b16 %v610
    %v1018 = vunpack.c.l.b16 %v611
    %v1019 = vunpack.c.h.b16 %v611
    %v1020 = vunpack.c.l.b16 %v612
    %v1021 = vunpack.c.l.b16 %v613
    %v1022 = vunpack.c.h.b16 %v613
    %v1023 = vunpack.c.l.b16 %v614
    %v1024 = vunpack.c.l.b16 %v615
    %v1025 = vunpack.c.h.b16 %v615
    %v1026 = vunpack.c.l.b16 %v616
    %v1027 = vunpack.c.l.b16 %v617
    %v1028 = vunpack.c.h.b16 %v617
    %v1029 = vunpack.c.l.b16 %v618
    %v1030 = vunpack.c.l.b16 %v619
    %v1031 = vunpack.c.h.b16 %v619
    %v1032 = vunpack.c.l.b16 %v620
    %v1033 = vunpack.c.l.b16 %v621
    %v1034 = vunpack.c.h.b16 %v621
    %v1035 = vunpack.c.l.b16 %v622
    %v1036 = vunpack.c.l.b16 %v623
    %v1037 = vunpack.c.h.b16 %v623
    %v1038 = vunpack.c.l.b16 %v624
    %v1039 = vunpack.c.l.b16 %v625
    %v1040 = vunpack.c.h.b16 %v625
    %v1041 = vunpack.c.l.b16 %v626
    %v1042 = vunpack.c.l.b16 %v627
    %v1043 = vunpack.c.h.b16 %v627
    %v1044 = vunpack.c.l.b16 %v628
    %v1045 = vunpack.c.l.b16 %v629
    %v1046 = vunpack.c.h.b16 %v629
    %v1047 = vunpack.c.l.b16 %v630
    %v1048 = vunpack.c.l.b16 %v631
    %v1049 = vunpack.c.h.b16 %v631
    %v1050 = vunpack.c.l.b16 %v632
    %v1051 = vunpack.c.l.b16 %v633
    %v1052 = vunpack.c.h.b16 %v633
    %v1053 = vunpack.c.l.b16 %v634
    %v1054 = vunpack.c.l.b16 %v635
    %v1055 = vunpack.c.h.b16 %v635
    %v1056 = vunpack.c.l.b16 %v636
    %v1057 = vunpack.c.l.b16 %v637
    %v1058 = vunpack.c.h.b16 %v637
    %v1059 = vunpack.c.l.b16 %v638
    %v1060 = vunpack.c.l.b16 %v639
    %v1061 = vunpack.c.h.b16 %v639
    %v1062 = vunpack.c.l.b16 %v640
    %v1063 = vunpack.c.l.b16 %v641
    %v1064 = vunpack.c.h.b16 %v641
    %v1065 = vunpack.c.l.b16 %v642
    %v1066 = vunpack.c.l.b16 %v643
    %v1067 = vunpack.c.h.b16 %v643
    %v1068 = vunpack.c.l.b16 %v644
    %v1069 = vunpack.c.l.b16 %v645
    %v1070 = vunpack.c.h.b16 %v645
    %v1071 = vunpack.c.l.b16 %v646
    %v1072 = vpack.c.b16 %v913, %v910
    %v1073 = vpack.c.b16 %v914, %v911
    %v1074 = vpack.c.b16 %v915, %v912
    %v1075 = vpack.c.b16 %v919, %v916
    %v1076 = vpack.c.b16 %v920, %v917
    %v1077 = vpack.c.b16 %v921, %v918
    %v1078 = vpack.c.b16 %v925, %v922
    %v1079 = vpack.c.b16 %v926, %v923
    %v1080 = vpack.c.b16 %v927, %v924
    %v1081 = vpack.c.b16 %v931, %v928
    %v1082 = vpack.c.b16 %v932, %v929
    %v1083 = vpack.c.b16 %v933, %v930
    %v1084 = vpack.c.b16 %v937, %v934
    %v1085 = vpack.c.b16 %v938, %v935
    %v1086 = vpack.c.b16 %v939, %v936
    %v1087 = vpack.c.b16 %v943, %v940
    %v1088 = vpack.c.b16 %v944, %v941
    %v1089 = vpack.c.b16 %v945, %v942
    %v1090 = vpack.c.b16 %v949, %v946
    %v1091 = vpack.c.b16 %v950, %v947
    %v1092 = vpack.c.b16 %v951, %v948
    %v1093 = vpack.c.b16 %v955, %v952
    %v1094 = vpack.c.b16 %v956, %v953
    %v1095 = vpack.c.b16 %v957, %v954
    %v1096 = vpack.c.b16 %v961, %v958
    %v1097 = vpack.c.b16 %v962, %v959
    %v1098 = vpack.c.b16 %v963, %v960
    %v1099 = vpack.c.b16 %v967, %v964
    %v1100 = vpack.c.b16 %v968, %v965
    %v1101 = vpack.c.b16 %v969, %v966
    %v1102 = vpack.c.b16 %v973, %v970
    %v1103 = vpack.c.b16 %v974, %v971
    %v1104 = vpack.c.b16 %v975, %v972
    %v1105 = vpack.c.b16 %v979, %v976
    %v1106 = vpack.c.b16 %v980, %v977
    %v1107 = vpack.c.b16 %v981, %v978
    %v1108 = vpack.c.b16 %v985, %v982
    %v1109 = vpack.c.b16 %v986, %v983
    %v1110 = vpack.c.b16 %v987, %v984
    %v1111 = vpack.c.b16 %v991, %v988
    %v1112 = vpack.c.b16 %v992, %v989
    %v1113 = vpack.c.b16 %v993, %v990
    %v1114 = vpack.c.b16 %v997, %v994
    %v1115 = vpack.c.b16 %v998, %v995
    %v1116 = vpack.c.b16 %v999, %v996
    %v1117 = vpack.c.b16 %v1003, %v1000
    %v1118 = vpack.c.b16 %v1004, %v1001
    %v1119 = vpack.c.b16 %v1005, %v1002
    %v1120 = vpack.c.b16 %v1009, %v1006
    %v1121 = vpack.c.b16 %v1010, %v1007
    %v1122 = vpack.c.b16 %v1011, %v1008
    %v1123 = vpack.c.b16 %v1015, %v1012
    %v1124 = vpack.c.b16 %v1016, %v1013
    %v1125 = vpack.c.b16 %v1017, %v1014
    %v1126 = vpack.c.b16 %v1021, %v1018
    %v1127 = vpack.c.b16 %v1022, %v1019
    %v1128 = vpack.c.b16 %v1023, %v1020
    %v1129 = vpack.c.b16 %v1027, %v1024
    %v1130 = vpack.c.b16 %v1028, %v1025
    %v1131 = vpack.c.b16 %v1029, %v1026
    %v1132 = vpack.c.b16 %v1033, %v1030
    %v1133 = vpack.c.b16 %v1034, %v1031
    %v1134 = vpack.c.b16 %v1035, %v1032
    %v1135 = vpack.c.b16 %v1039, %v1036
    %v1136 = vpack.c.b16 %v1040, %v1037
    %v1137 = vpack.c.b16 %v1041, %v1038
    %v1138 = vpack.c.b16 %v1045, %v1042
    %v1139 = vpack.c.b16 %v1046, %v1043
    %v1140 = vpack.c.b16 %v1047, %v1044
    %v1141 = vpack.c.b16 %v1051, %v1048
    %v1142 = vpack.c.b16 %v1052, %v1049
    %v1143 = vpack.c.b16 %v1053, %v1050
    %v1144 = vpack.c.b16 %v1057, %v1054
    %v1145 = vpack.c.b16 %v1058, %v1055
    %v1146 = vpack.c.b16 %v1059, %v1056
    %v1147 = vpack.c.b16 %v1063, %v1060
    %v1148 = vpack.c.b16 %v1064, %v1061
    %v1149 = vpack.c.b16 %v1065, %v1062
    %v1150 = vpack.c.b16 %v1069, %v1066
    %v1151 = vpack.c.b16 %v1070, %v1067
    %v1152 = vpack.c.b16 %v1071, %v1068
    %vm1234 = vcmask 392192
    %v1236 = vsel %vm1234, %v538, 0
    %1238 = vmatprep.subr.bf16.mxu0 %v1073
    %1239 = vmatpush1.bf16.msra.mxu0 %v1072
    %1240 = vmatprep.subr.bf16.mxu0 %v1076
    %1241 = vmatpush1.bf16.msra.mxu0 %v1075
    %1242 = vmatprep.subr.bf16.mxu0 %v1079
    %1243 = vmatpush1.bf16.msra.mxu0 %v1078
    %1244 = vmatprep.subr.bf16.mxu0 %v1082
    %1245 = vmatpush1.bf16.msra.mxu0 %v1081
    %1246 = vmatprep.subr.bf16.mxu0 %v1085
    %1247 = vmatpush1.bf16.msra.mxu0 %v1084
    %1248 = vmatprep.subr.bf16.mxu0 %v1088
    %1249 = vmatpush1.bf16.msra.mxu0 %v1087
    %1250 = vmatprep.subr.bf16.mxu0 %v1091
    %1251 = vmatpush1.bf16.msra.mxu0 %v1090
    %1252 = vmatprep.subr.bf16.mxu0 %v1094
    %1253 = vmatpush1.bf16.msra.mxu0 %v1093
    %1254 = vmatprep.subr.bf16.mxu0 %v1097
    %1255 = vmatpush1.bf16.msra.mxu0 %v1096
    %1256 = vmatprep.subr.bf16.mxu0 %v1100
    %1257 = vmatpush1.bf16.msra.mxu0 %v1099
    %1258 = vmatprep.subr.bf16.mxu0 %v1103
    %1259 = vmatpush1.bf16.msra.mxu0 %v1102
    %1260 = vmatprep.subr.bf16.mxu0 %v1106
    %1261 = vmatpush1.bf16.msra.mxu0 %v1105
    %1262 = vmatprep.subr.bf16.mxu0 %v1109
    %1263 = vmatpush1.bf16.msra.mxu0 %v1108
    %1264 = vmatprep.subr.bf16.mxu0 %v1112
    %1265 = vmatpush1.bf16.msra.mxu0 %v1111
    %1266 = vmatprep.subr.bf16.mxu0 %v1115
    %1267 = vmatpush1.bf16.msra.mxu0 %v1114
    %1268 = vmatprep.subr.bf16.mxu0 %v1118
    %1269 = vmatpush1.bf16.msra.mxu0 %v1117
    %1270 = vmatprep.mubr.bf16.mxu0 %v536
    %1271 = vmatmul.mubr.bf16.gmra.mrb[0].mxu0 %v535
    %v1272 = vpop.f32.mrb[0].mxu0
    %v1273 = vadd.f32 %v728, %v1272
    %v1274 = vpop.f32.mrb[0].mxu0
    %v1275 = vadd.f32 %v730, %v1274
    %v1276 = vpop.f32.mrb[0].mxu0
    %v1277 = vpop.f32.mrb[0].mxu0
    %1278 = vdwg.mxu0
    %1279 = vmatprep.subr.bf16.mxu0 %v1121
    %1280 = vmatpush1.bf16.msra.mxu0 %v1120
    %1281 = vmatprep.subr.bf16.mxu0 %v1124
    %1282 = vmatpush1.bf16.msra.mxu0 %v1123
    %1283 = vmatprep.subr.bf16.mxu0 %v1127
    %1284 = vmatpush1.bf16.msra.mxu0 %v1126
    %1285 = vmatprep.subr.bf16.mxu0 %v1130
    %1286 = vmatpush1.bf16.msra.mxu0 %v1129
    %1287 = vmatprep.subr.bf16.mxu0 %v1133
    %1288 = vmatpush1.bf16.msra.mxu0 %v1132
    %1289 = vmatprep.subr.bf16.mxu0 %v1136
    %1290 = vmatpush1.bf16.msra.mxu0 %v1135
    %1291 = vmatprep.subr.bf16.mxu0 %v1139
    %1292 = vmatpush1.bf16.msra.mxu0 %v1138
    %1293 = vmatprep.subr.bf16.mxu0 %v1142
    %1294 = vmatpush1.bf16.msra.mxu0 %v1141
    %1295 = vmatprep.subr.bf16.mxu0 %v1145
    %1296 = vmatpush1.bf16.msra.mxu0 %v1144
    %1297 = vmatprep.subr.bf16.mxu0 %v1148
    %1298 = vmatpush1.bf16.msra.mxu0 %v1147
    %1299 = vmatprep.subr.bf16.mxu0 %v1151
    %1300 = vmatpush1.bf16.msra.mxu0 %v1150
    %1301 = vmatprep.subr.bf16.mxu0 0
    %1302 = vmatpush1.bf16.msra.mxu0 0
    %1303 = vmatprep.subr.bf16.mxu0 0
    %1304 = vmatpush1.bf16.msra.mxu0 0
    %1305 = vmatprep.subr.bf16.mxu0 0
    %1306 = vmatpush1.bf16.msra.mxu0 0
    %1307 = vmatprep.subr.bf16.mxu0 0
    %1308 = vmatpush1.bf16.msra.mxu0 0
    %1309 = vmatprep.subr.bf16.mxu0 0
    %1310 = vmatpush1.bf16.msra.mxu0 0
    %1311 = vmatprep.mubr.bf16.mxu0 %v1236
    %1312 = vmatmul.mubr.bf16.gmra.mrb[0].mxu0 %v537
    %v1313 = vpop.f32.mrb[0].mxu0
    %v1314 = vadd.f32 %v1273, %v1313
    %v1315 = vpop.f32.mrb[0].mxu0
    %v1316 = vadd.f32 %v1275, %v1315
    %v1317 = vpop.f32.mrb[0].mxu0
    %v1318 = vpop.f32.mrb[0].mxu0
    %1319 = vdwg.mxu0
    %1320 = vmatprep.subr.bf16.mxu0 0
    %1321 = vmatpush1.bf16.msra.mxu0 %v1074
    %1322 = vmatprep.subr.bf16.mxu0 0
    %1323 = vmatpush1.bf16.msra.mxu0 %v1077
    %1324 = vmatprep.subr.bf16.mxu0 0
    %1325 = vmatpush1.bf16.msra.mxu0 %v1080
    %1326 = vmatprep.subr.bf16.mxu0 0
    %1327 = vmatpush1.bf16.msra.mxu0 %v1083
    %1328 = vmatprep.subr.bf16.mxu0 0
    %1329 = vmatpush1.bf16.msra.mxu0 %v1086
    %1330 = vmatprep.subr.bf16.mxu0 0
    %1331 = vmatpush1.bf16.msra.mxu0 %v1089
    %1332 = vmatprep.subr.bf16.mxu0 0
    %1333 = vmatpush1.bf16.msra.mxu0 %v1092
    %1334 = vmatprep.subr.bf16.mxu0 0
    %1335 = vmatpush1.bf16.msra.mxu0 %v1095
    %1336 = vmatprep.subr.bf16.mxu0 0
    %1337 = vmatpush1.bf16.msra.mxu0 %v1098
    %1338 = vmatprep.subr.bf16.mxu0 0
    %1339 = vmatpush1.bf16.msra.mxu0 %v1101
    %1340 = vmatprep.subr.bf16.mxu0 0
    %1341 = vmatpush1.bf16.msra.mxu0 %v1104
    %1342 = vmatprep.subr.bf16.mxu0 0
    %1343 = vmatpush1.bf16.msra.mxu0 %v1107
    %1344 = vmatprep.subr.bf16.mxu0 0
    %1345 = vmatpush1.bf16.msra.mxu0 %v1110
    %1346 = vmatprep.subr.bf16.mxu0 0
    %1347 = vmatpush1.bf16.msra.mxu0 %v1113
    %1348 = vmatprep.subr.bf16.mxu0 0
    %1349 = vmatpush1.bf16.msra.mxu0 %v1116
    %1350 = vmatprep.subr.bf16.mxu0 0
    %1351 = vmatpush1.bf16.msra.mxu0 %v1119
    %1352 = vmatprep.mubr.bf16.mxu0 %v536
    %1353 = vmatmul.mubr.bf16.gmra.mrb[0].mxu0 %v535
    %v1354 = vpop.f32.mrb[0].mxu0
    %v1355 = vadd.f32 %v799, %v1354
    %v1356 = vpop.f32.mrb[0].mxu0
    %v1357 = vpop.f32.mrb[0].mxu0
    %v1358 = vpop.f32.mrb[0].mxu0
    %1359 = vdwg.mxu0
    %1360 = vmatprep.subr.bf16.mxu0 0
    %1361 = vmatpush1.bf16.msra.mxu0 %v1122
    %1362 = vmatprep.subr.bf16.mxu0 0
    %1363 = vmatpush1.bf16.msra.mxu0 %v1125
    %1364 = vmatprep.subr.bf16.mxu0 0
    %1365 = vmatpush1.bf16.msra.mxu0 %v1128
    %1366 = vmatprep.subr.bf16.mxu0 0
    %1367 = vmatpush1.bf16.msra.mxu0 %v1131
    %1368 = vmatprep.subr.bf16.mxu0 0
    %1369 = vmatpush1.bf16.msra.mxu0 %v1134
    %1370 = vmatprep.subr.bf16.mxu0 0
    %1371 = vmatpush1.bf16.msra.mxu0 %v1137
    %1372 = vmatprep.subr.bf16.mxu0 0
    %1373 = vmatpush1.bf16.msra.mxu0 %v1140
    %1374 = vmatprep.subr.bf16.mxu0 0
    %1375 = vmatpush1.bf16.msra.mxu0 %v1143
    %1376 = vmatprep.subr.bf16.mxu0 0
    %1377 = vmatpush1.bf16.msra.mxu0 %v1146
    %1378 = vmatprep.subr.bf16.mxu0 0
    %1379 = vmatpush1.bf16.msra.mxu0 %v1149
    %1380 = vmatprep.subr.bf16.mxu0 0
    %1381 = vmatpush1.bf16.msra.mxu0 %v1152
    %1382 = vmatprep.subr.bf16.mxu0 0
    %1383 = vmatpush1.bf16.msra.mxu0 0
    %1384 = vmatprep.subr.bf16.mxu0 0
    %1385 = vmatpush1.bf16.msra.mxu0 0
    %1386 = vmatprep.subr.bf16.mxu0 0
    %1387 = vmatpush1.bf16.msra.mxu0 0
    %1388 = vmatprep.subr.bf16.mxu0 0
    %1389 = vmatpush1.bf16.msra.mxu0 0
    %1390 = vmatprep.subr.bf16.mxu0 0
    %1391 = vmatpush1.bf16.msra.mxu0 0
    %1392 = vmatprep.mubr.bf16.mxu0 %v1236
    %1393 = vmatmul.mubr.bf16.gmra.mrb[0].mxu0 %v537
    %v1394 = vpop.f32.mrb[0].mxu0
    %v1395 = vadd.f32 %v1355, %v1394
    %v1396 = vpop.f32.mrb[0].mxu0
    %v1397 = vpop.f32.mrb[0].mxu0
    %v1398 = vpop.f32.mrb[0].mxu0
    %1399 = vdwg.mxu0
    %vm1400 = vcmp.ge.f32.partialorder %v1314, 0.0
    %vm1401 = vcmp.ge.f32.partialorder %v1316, 0.0
    %vm1402 = vcmp.ge.f32.partialorder %v1395, 0.0
    %v1403 = vmul.f32 %v1314, 0.2
    %v1404 = vmul.f32 %v1316, 0.2
    %v1405 = vmul.f32 %v1395, 0.2
    %v1406 = vsel %vm1400, %v1314, %v1403
    %v1407 = vsel %vm1401, %v1316, %v1404
    %v1408 = vsel %vm1402, %v1395, %v1405
    %v1409 = vpack.c.bf16 %v1406, %v1406
    %v1410 = vpack.c.bf16 %v1407, %v1407
    %v1411 = vpack.c.bf16 %v1408, %v1408
    %v1412 = vld [vmem:[%s17] sm:$0xf]
    %v1413 = vld [vmem:[%s17 + $0x4] sm:$0xf]
    %v1414 = vld [vmem:[%s17 + $0x8] sm:$0xf]
    %v1415 = vld [vmem:[%s17 + $0xc] sm:$0xf]
    %v1416 = vld [vmem:[%s17 + $0x10] sm:$0xf]
    %v1417 = vld [vmem:[%s17 + $0x14] sm:$0xf]
    %v1418 = vld [vmem:[%s17 + $0x18] sm:$0xf]
    %v1419 = vld [vmem:[%s17 + $0x1c] sm:$0xf]
    %v1420 = vld [vmem:[%s17 + $0x20] sm:$0xf]
    %v1421 = vld [vmem:[%s17 + $0x24] sm:$0xf]
    %v1422 = vld [vmem:[%s17 + $0x28] sm:$0xf]
    %v1423 = vld [vmem:[%s17 + $0x2c] sm:$0xf]
    %v1424 = vld [vmem:[%s17 + $0x30] sm:$0xf]
    %v1425 = vld [vmem:[%s17 + $0x34] sm:$0xf]
    %v1426 = vld [vmem:[%s17 + $0x38] sm:$0xf]
    %v1427 = vld [vmem:[%s17 + $0x3c] sm:$0xf]
    %v1428 = vld [vmem:[%s17 + $0x40] sm:$0xf]
    %v1429 = vld [vmem:[%s17 + $0x44] sm:$0xf]
    %v1430 = vld [vmem:[%s17 + $0x48] sm:$0xf]
    %v1431 = vld [vmem:[%s17 + $0x4c] sm:$0xf]
    %v1432 = vld [vmem:[%s17 + $0x50] sm:$0xf]
    %v1433 = vld [vmem:[%s17 + $0x54] sm:$0xf]
    %v1434 = vld [vmem:[%s17 + $0x58] sm:$0xf]
    %v1435 = vld [vmem:[%s17 + $0x5c] sm:$0xf]
    %v1436 = vld [vmem:[%s17 + $0x60] sm:$0xf]
    %v1437 = vld [vmem:[%s17 + $0x64] sm:$0xf]
    %v1438 = vld [vmem:[%s17 + $0x68] sm:$0xf]
    %v1439 = vld [vmem:[%s17 + $0x6c] sm:$0xf]
    %v1440 = vld [vmem:[%s17 + $0x70] sm:$0xf]
    %v1441 = vld [vmem:[%s17 + $0x74] sm:$0xf]
    %v1442 = vld [vmem:[%s17 + $0x78] sm:$0xf]
    %v1443 = vld [vmem:[%s17 + $0x7c] sm:$0xf]
    %v1444 = vld [vmem:[%s17 + $0x80] sm:$0xf]
    %v1445 = vld [vmem:[%s17 + $0x84] sm:$0xf]
    %v1446 = vld [vmem:[%s17 + $0x88] sm:$0xf]
    %v1447 = vld [vmem:[%s17 + $0x8c] sm:$0xf]
    %v1448 = vld [vmem:[#allocation6] sm:$0xf]
    %v1450 = vsel %vm352, %v1448, 0
    %1452 = vmatprep.subr.mxu0 0.0
    %1453 = vmatpush1.msra.mxu0 %v1450
    %1454 = vmatprep.subr.mxu0 0.0
    %1455 = vmatpush1.msra.mxu0 0.0
    %1456 = vmatprep.subr.mxu0 0.0
    %1457 = vmatpush1.msra.mxu0 0.0
    %1458 = vmatprep.subr.mxu0 0.0
    %1459 = vmatpush1.msra.mxu0 0.0
    %1460 = vmatprep.subr.mxu0 0.0
    %1461 = vmatpush1.msra.mxu0 0.0
    %1462 = vmatprep.subr.mxu0 0.0
    %1463 = vmatpush1.msra.mxu0 0.0
    %1464 = vmatprep.subr.mxu0 0.0
    %1465 = vmatpush1.msra.mxu0 0.0
    %1466 = vmatprep.subr.mxu0 0.0
    %1467 = vmatpush1.msra.mxu0 0.0
    %1468 = vmatprep.subr.mxu0 0.0
    %1469 = vmatpush1.msra.mxu0 0.0
    %1470 = vmatprep.subr.mxu0 0.0
    %1471 = vmatpush1.msra.mxu0 0.0
    %1472 = vmatprep.subr.mxu0 0.0
    %1473 = vmatpush1.msra.mxu0 0.0
    %1474 = vmatprep.subr.mxu0 0.0
    %1475 = vmatpush1.msra.mxu0 0.0
    %1476 = vmatprep.subr.mxu0 0.0
    %1477 = vmatpush1.msra.mxu0 0.0
    %1478 = vmatprep.subr.mxu0 0.0
    %1479 = vmatpush1.msra.mxu0 0.0
    %1480 = vmatprep.subr.mxu0 0.0
    %1481 = vmatpush1.msra.mxu0 0.0
    %1482 = vmatprep.subr.mxu0 0.0
    %1483 = vmatpush1.msra.mxu0 0.0
    %1484 = vmatprep.subr.mxu0 0.0
    %1485 = vmatpush1.msra.mxu0 0.0
    %1486 = vmatprep.subr.mxu0 0.0
    %1487 = vmatpush1.msra.mxu0 0.0
    %1488 = vmatprep.subr.mxu0 0.0
    %1489 = vmatpush1.msra.mxu0 0.0
    %1490 = vmatprep.subr.mxu0 0.0
    %1491 = vmatpush1.msra.mxu0 0.0
    %1492 = vmatprep.subr.mxu0 0.0
    %1493 = vmatpush1.msra.mxu0 0.0
    %1494 = vmatprep.subr.mxu0 0.0
    %1495 = vmatpush1.msra.mxu0 0.0
    %1496 = vmatprep.subr.mxu0 0.0
    %1497 = vmatpush1.msra.mxu0 0.0
    %1498 = vmatprep.subr.mxu0 0.0
    %1499 = vmatpush1.msra.mxu0 0.0
    %1500 = vmatprep.subr.mxu0 0.0
    %1501 = vmatpush1.msra.mxu0 0.0
    %1502 = vmatprep.subr.mxu0 0.0
    %1503 = vmatpush1.msra.mxu0 0.0
    %1504 = vmatprep.subr.mxu0 0.0
    %1505 = vmatpush1.msra.mxu0 0.0
    %1506 = vmatprep.subr.mxu0 0.0
    %1507 = vmatpush1.msra.mxu0 0.0
    %1508 = vmatprep.subr.mxu0 0.0
    %1509 = vmatpush1.msra.mxu0 0.0
    %1510 = vmatprep.subr.mxu0 0.0
    %1511 = vmatpush1.msra.mxu0 0.0
    %1512 = vmatprep.subr.mxu0 0.0
    %1513 = vmatpush1.msra.mxu0 0.0
    %1514 = vmatprep.subr.mxu0 0.0
    %1515 = vmatpush1.msra.mxu0 0.0
    %1516 = vmatprep.mubr.f32.mxu0 0.0
    %1517 = vmatmul.mubr.f32.gmra.mrb[0].mxu0 %v653
    %v1518 = vpop.f32.mrb[0].mxu0
    %v1519 = vadd.f32 0.0, %v1518
    %v1520 = vpop.f32.mrb[0].mxu0
    %1521 = vdwg.mxu0
    %v1558 = vunpack.c.l.b16 %v1412
    %v1559 = vunpack.c.l.b16 %v1413
    %v1560 = vunpack.c.l.b16 %v1414
    %v1561 = vunpack.c.l.b16 %v1415
    %v1562 = vunpack.c.l.b16 %v1416
    %v1563 = vunpack.c.l.b16 %v1417
    %v1564 = vunpack.c.l.b16 %v1418
    %v1565 = vunpack.c.l.b16 %v1419
    %v1566 = vunpack.c.l.b16 %v1420
    %v1567 = vunpack.c.l.b16 %v1421
    %v1568 = vunpack.c.l.b16 %v1422
    %v1569 = vunpack.c.l.b16 %v1423
    %v1570 = vunpack.c.l.b16 %v1424
    %v1571 = vunpack.c.l.b16 %v1425
    %v1572 = vunpack.c.l.b16 %v1426
    %v1573 = vunpack.c.l.b16 %v1427
    %v1574 = vunpack.c.l.b16 %v1428
    %v1575 = vunpack.c.l.b16 %v1429
    %v1576 = vunpack.c.l.b16 %v1430
    %v1577 = vunpack.c.l.b16 %v1431
    %v1578 = vunpack.c.l.b16 %v1432
    %v1579 = vunpack.c.l.b16 %v1433
    %v1580 = vunpack.c.l.b16 %v1434
    %v1581 = vunpack.c.l.b16 %v1435
    %v1582 = vunpack.c.l.b16 %v1436
    %v1583 = vunpack.c.l.b16 %v1437
    %v1584 = vunpack.c.l.b16 %v1438
    %v1585 = vunpack.c.l.b16 %v1439
    %v1586 = vunpack.c.l.b16 %v1440
    %v1587 = vunpack.c.l.b16 %v1441
    %v1588 = vunpack.c.l.b16 %v1442
    %v1589 = vunpack.c.l.b16 %v1443
    %v1590 = vunpack.c.l.b16 %v1444
    %v1591 = vunpack.c.l.b16 %v1445
    %v1592 = vunpack.c.l.b16 %v1446
    %v1593 = vunpack.c.l.b16 %v1447
    %v1594 = vpack.c.b16 %v1559, %v1558
    %v1595 = vpack.c.b16 %v1561, %v1560
    %v1596 = vpack.c.b16 %v1563, %v1562
    %v1597 = vpack.c.b16 %v1565, %v1564
    %v1598 = vpack.c.b16 %v1567, %v1566
    %v1599 = vpack.c.b16 %v1569, %v1568
    %v1600 = vpack.c.b16 %v1571, %v1570
    %v1601 = vpack.c.b16 %v1573, %v1572
    %v1602 = vpack.c.b16 %v1575, %v1574
    %v1603 = vpack.c.b16 %v1577, %v1576
    %v1604 = vpack.c.b16 %v1579, %v1578
    %v1605 = vpack.c.b16 %v1581, %v1580
    %v1606 = vpack.c.b16 %v1583, %v1582
    %v1607 = vpack.c.b16 %v1585, %v1584
    %v1608 = vpack.c.b16 %v1587, %v1586
    %v1609 = vpack.c.b16 %v1589, %v1588
    %v1610 = vpack.c.b16 %v1591, %v1590
    %v1611 = vpack.c.b16 %v1593, %v1592
    %vm1630 = vcmask 261120
    %v1632 = vsel %vm1630, %v1411, 0
    %1634 = vmatprep.subr.bf16.mxu0 0
    %1635 = vmatpush1.bf16.msra.mxu0 %v1594
    %1636 = vmatprep.subr.bf16.mxu0 0
    %1637 = vmatpush1.bf16.msra.mxu0 %v1595
    %1638 = vmatprep.subr.bf16.mxu0 0
    %1639 = vmatpush1.bf16.msra.mxu0 %v1596
    %1640 = vmatprep.subr.bf16.mxu0 0
    %1641 = vmatpush1.bf16.msra.mxu0 %v1597
    %1642 = vmatprep.subr.bf16.mxu0 0
    %1643 = vmatpush1.bf16.msra.mxu0 %v1598
    %1644 = vmatprep.subr.bf16.mxu0 0
    %1645 = vmatpush1.bf16.msra.mxu0 %v1599
    %1646 = vmatprep.subr.bf16.mxu0 0
    %1647 = vmatpush1.bf16.msra.mxu0 %v1600
    %1648 = vmatprep.subr.bf16.mxu0 0
    %1649 = vmatpush1.bf16.msra.mxu0 %v1601
    %1650 = vmatprep.subr.bf16.mxu0 0
    %1651 = vmatpush1.bf16.msra.mxu0 %v1602
    %1652 = vmatprep.subr.bf16.mxu0 0
    %1653 = vmatpush1.bf16.msra.mxu0 %v1603
    %1654 = vmatprep.subr.bf16.mxu0 0
    %1655 = vmatpush1.bf16.msra.mxu0 %v1604
    %1656 = vmatprep.subr.bf16.mxu0 0
    %1657 = vmatpush1.bf16.msra.mxu0 %v1605
    %1658 = vmatprep.subr.bf16.mxu0 0
    %1659 = vmatpush1.bf16.msra.mxu0 %v1606
    %1660 = vmatprep.subr.bf16.mxu0 0
    %1661 = vmatpush1.bf16.msra.mxu0 %v1607
    %1662 = vmatprep.subr.bf16.mxu0 0
    %1663 = vmatpush1.bf16.msra.mxu0 %v1608
    %1664 = vmatprep.subr.bf16.mxu0 0
    %1665 = vmatpush1.bf16.msra.mxu0 %v1609
    %1666 = vmatprep.mubr.bf16.mxu0 %v1410
    %1667 = vmatmul.mubr.bf16.gmra.mrb[0].mxu0 %v1409
    %v1668 = vpop.f32.mrb[0].mxu0
    %v1669 = vadd.f32 %v1519, %v1668
    %v1670 = vpop.f32.mrb[0].mxu0
    %v1671 = vpop.f32.mrb[0].mxu0
    %v1672 = vpop.f32.mrb[0].mxu0
    %1673 = vdwg.mxu0
    %1674 = vmatprep.subr.bf16.mxu0 0
    %1675 = vmatpush1.bf16.msra.mxu0 %v1610
    %1676 = vmatprep.subr.bf16.mxu0 0
    %1677 = vmatpush1.bf16.msra.mxu0 %v1611
    %1678 = vmatprep.subr.bf16.mxu0 0
    %1679 = vmatpush1.bf16.msra.mxu0 0
    %1680 = vmatprep.subr.bf16.mxu0 0
    %1681 = vmatpush1.bf16.msra.mxu0 0
    %1682 = vmatprep.subr.bf16.mxu0 0
    %1683 = vmatpush1.bf16.msra.mxu0 0
    %1684 = vmatprep.subr.bf16.mxu0 0
    %1685 = vmatpush1.bf16.msra.mxu0 0
    %1686 = vmatprep.subr.bf16.mxu0 0
    %1687 = vmatpush1.bf16.msra.mxu0 0
    %1688 = vmatprep.subr.bf16.mxu0 0
    %1689 = vmatpush1.bf16.msra.mxu0 0
    %1690 = vmatprep.subr.bf16.mxu0 0
    %1691 = vmatpush1.bf16.msra.mxu0 0
    %1692 = vmatprep.subr.bf16.mxu0 0
    %1693 = vmatpush1.bf16.msra.mxu0 0
    %1694 = vmatprep.subr.bf16.mxu0 0
    %1695 = vmatpush1.bf16.msra.mxu0 0
    %1696 = vmatprep.subr.bf16.mxu0 0
    %1697 = vmatpush1.bf16.msra.mxu0 0
    %1698 = vmatprep.subr.bf16.mxu0 0
    %1699 = vmatpush1.bf16.msra.mxu0 0
    %1700 = vmatprep.subr.bf16.mxu0 0
    %1701 = vmatpush1.bf16.msra.mxu0 0
    %1702 = vmatprep.subr.bf16.mxu0 0
    %1703 = vmatpush1.bf16.msra.mxu0 0
    %1704 = vmatprep.subr.bf16.mxu0 0
    %1705 = vmatpush1.bf16.msra.mxu0 0
    %1706 = vmatprep.mubr.bf16.mxu0 0
    %1707 = vmatmul.mubr.bf16.gmra.mrb[0].mxu0 %v1632
    %v1708 = vpop.f32.mrb[0].mxu0
    %v1709 = vadd.f32 %v1669, %v1708
    %v1710 = vpop.f32.mrb[0].mxu0
    %v1711 = vpop.f32.mrb[0].mxu0
    %v1712 = vpop.f32.mrb[0].mxu0
    %1713 = vdwg.mxu0
    %v1714 = vld [vmem:[%s53] sm:$0xff]
    %v1715 = vld [vmem:[%s53 + $0x8] sm:$0xff]
    %v1716 = vld [vmem:[%s53 + $0x10] sm:$0xff]
    %v1717 = vld [vmem:[%s53 + $0x18] sm:$0xff]
    %v1718 = vld [vmem:[%s53 + $0x20] sm:$0xff]
    %v1719 = vld [vmem:[%s53 + $0x28] sm:$0xff]
    %v1720 = vld [vmem:[%s53 + $0x30] sm:$0xff]
    %v1721 = vld [vmem:[%s53 + $0x38] sm:$0xff]
    %v1722 = vld [vmem:[%s53 + $0x40] sm:$0xff]
    %v1723 = vld [vmem:[%s55] sm:$0xff]
    %vm1724 = vcmask 588800
    %v1726 = vsel %vm1724, %v1709, 0
    %1728 = vmatprep.subr.mxu0 0.0
    %1729 = vmatpush1.msra.mxu0 %v1714
    %1730 = vmatprep.subr.mxu0 0.0
    %1731 = vmatpush1.msra.mxu0 %v1715
    %1732 = vmatprep.subr.mxu0 0.0
    %1733 = vmatpush1.msra.mxu0 %v1716
    %1734 = vmatprep.subr.mxu0 0.0
    %1735 = vmatpush1.msra.mxu0 %v1717
    %1736 = vmatprep.subr.mxu0 0.0
    %1737 = vmatpush1.msra.mxu0 %v1718
    %1738 = vmatprep.subr.mxu0 0.0
    %1739 = vmatpush1.msra.mxu0 %v1719
    %1740 = vmatprep.subr.mxu0 0.0
    %1741 = vmatpush1.msra.mxu0 %v1720
    %1742 = vmatprep.subr.mxu0 0.0
    %1743 = vmatpush1.msra.mxu0 %v1721
    %1744 = vmatprep.subr.mxu0 0.0
    %1745 = vmatpush1.msra.mxu0 %v1722
    %1746 = vmatprep.subr.mxu0 0.0
    %1747 = vmatpush1.msra.mxu0 0.0
    %1748 = vmatprep.subr.mxu0 0.0
    %1749 = vmatpush1.msra.mxu0 0.0
    %1750 = vmatprep.subr.mxu0 0.0
    %1751 = vmatpush1.msra.mxu0 0.0
    %1752 = vmatprep.subr.mxu0 0.0
    %1753 = vmatpush1.msra.mxu0 0.0
    %1754 = vmatprep.subr.mxu0 0.0
    %1755 = vmatpush1.msra.mxu0 0.0
    %1756 = vmatprep.subr.mxu0 0.0
    %1757 = vmatpush1.msra.mxu0 0.0
    %1758 = vmatprep.subr.mxu0 0.0
    %1759 = vmatpush1.msra.mxu0 0.0
    %1760 = vmatprep.subr.mxu0 0.0
    %1761 = vmatpush1.msra.mxu0 0.0
    %1762 = vmatprep.subr.mxu0 0.0
    %1763 = vmatpush1.msra.mxu0 0.0
    %1764 = vmatprep.subr.mxu0 0.0
    %1765 = vmatpush1.msra.mxu0 0.0
    %1766 = vmatprep.subr.mxu0 0.0
    %1767 = vmatpush1.msra.mxu0 0.0
    %1768 = vmatprep.subr.mxu0 0.0
    %1769 = vmatpush1.msra.mxu0 0.0
    %1770 = vmatprep.subr.mxu0 0.0
    %1771 = vmatpush1.msra.mxu0 0.0
    %1772 = vmatprep.subr.mxu0 0.0
    %1773 = vmatpush1.msra.mxu0 0.0
    %1774 = vmatprep.subr.mxu0 0.0
    %1775 = vmatpush1.msra.mxu0 0.0
    %1776 = vmatprep.subr.mxu0 0.0
    %1777 = vmatpush1.msra.mxu0 0.0
    %1778 = vmatprep.subr.mxu0 0.0
    %1779 = vmatpush1.msra.mxu0 0.0
    %1780 = vmatprep.subr.mxu0 0.0
    %1781 = vmatpush1.msra.mxu0 0.0
    %1782 = vmatprep.subr.mxu0 0.0
    %1783 = vmatpush1.msra.mxu0 0.0
    %1784 = vmatprep.subr.mxu0 0.0
    %1785 = vmatpush1.msra.mxu0 0.0
    %1786 = vmatprep.subr.mxu0 0.0
    %1787 = vmatpush1.msra.mxu0 0.0
    %1788 = vmatprep.subr.mxu0 0.0
    %1789 = vmatpush1.msra.mxu0 0.0
    %1790 = vmatprep.subr.mxu0 0.0
    %1791 = vmatpush1.msra.mxu0 0.0
    %1792 = vmatprep.mubr.f32.mxu0 0.0
    %1793 = vmatmul.mubr.f32.gmra.mrb[0].mxu0 %v1726
    %v1794 = vpop.f32.mrb[0].mxu0
    %v1795 = vadd.f32 0.0, %v1794
    %v1796 = vpop.f32.mrb[0].mxu0
    %1797 = vdwg.mxu0
    %vm1798 = vcmask 58368
    %v1799 = vsel %vm1798, %v1795, 0.0
    %v1800 = vrot.slane %v1799, 4
    %v1801 = vadd.f32 %v1799, %v1800
    %v1802 = vrot.slane %v1801, 2
    %v1803 = vadd.f32 %v1801, %v1802
    %v1804 = vrot.slane %v1803, 1
    %v1805 = vadd.f32 %v1803, %v1804
    %v1806 = vmul.f32 %v1805, 0.055555556
    %vm1807 = vcmask 64512
    %v1809 = vsel %vm1807, %v1806, 0
    %1811 = vmatprep.subr.mxu0 0.0
    %1812 = vmatpush1.msra.mxu0 %v1723
    %1813 = vmatprep.subr.mxu0 0.0
    %1814 = vmatpush1.msra.mxu0 0.0
    %1815 = vmatprep.subr.mxu0 0.0
    %1816 = vmatpush1.msra.mxu0 0.0
    %1817 = vmatprep.subr.mxu0 0.0
    %1818 = vmatpush1.msra.mxu0 0.0
    %1819 = vmatprep.subr.mxu0 0.0
    %1820 = vmatpush1.msra.mxu0 0.0
    %1821 = vmatprep.subr.mxu0 0.0
    %1822 = vmatpush1.msra.mxu0 0.0
    %1823 = vmatprep.subr.mxu0 0.0
    %1824 = vmatpush1.msra.mxu0 0.0
    %1825 = vmatprep.subr.mxu0 0.0
    %1826 = vmatpush1.msra.mxu0 0.0
    %1827 = vmatprep.subr.mxu0 0.0
    %1828 = vmatpush1.msra.mxu0 0.0
    %1829 = vmatprep.subr.mxu0 0.0
    %1830 = vmatpush1.msra.mxu0 0.0
    %1831 = vmatprep.subr.mxu0 0.0
    %1832 = vmatpush1.msra.mxu0 0.0
    %1833 = vmatprep.subr.mxu0 0.0
    %1834 = vmatpush1.msra.mxu0 0.0
    %1835 = vmatprep.subr.mxu0 0.0
    %1836 = vmatpush1.msra.mxu0 0.0
    %1837 = vmatprep.subr.mxu0 0.0
    %1838 = vmatpush1.msra.mxu0 0.0
    %1839 = vmatprep.subr.mxu0 0.0
    %1840 = vmatpush1.msra.mxu0 0.0
    %1841 = vmatprep.subr.mxu0 0.0
    %1842 = vmatpush1.msra.mxu0 0.0
    %1843 = vmatprep.subr.mxu0 0.0
    %1844 = vmatpush1.msra.mxu0 0.0
    %1845 = vmatprep.subr.mxu0 0.0
    %1846 = vmatpush1.msra.mxu0 0.0
    %1847 = vmatprep.subr.mxu0 0.0
    %1848 = vmatpush1.msra.mxu0 0.0
    %1849 = vmatprep.subr.mxu0 0.0
    %1850 = vmatpush1.msra.mxu0 0.0
    %1851 = vmatprep.subr.mxu0 0.0
    %1852 = vmatpush1.msra.mxu0 0.0
    %1853 = vmatprep.subr.mxu0 0.0
    %1854 = vmatpush1.msra.mxu0 0.0
    %1855 = vmatprep.subr.mxu0 0.0
    %1856 = vmatpush1.msra.mxu0 0.0
    %1857 = vmatprep.subr.mxu0 0.0
    %1858 = vmatpush1.msra.mxu0 0.0
    %1859 = vmatprep.subr.mxu0 0.0
    %1860 = vmatpush1.msra.mxu0 0.0
    %1861 = vmatprep.subr.mxu0 0.0
    %1862 = vmatpush1.msra.mxu0 0.0
    %1863 = vmatprep.subr.mxu0 0.0
    %1864 = vmatpush1.msra.mxu0 0.0
    %1865 = vmatprep.subr.mxu0 0.0
    %1866 = vmatpush1.msra.mxu0 0.0
    %1867 = vmatprep.subr.mxu0 0.0
    %1868 = vmatpush1.msra.mxu0 0.0
    %1869 = vmatprep.subr.mxu0 0.0
    %1870 = vmatpush1.msra.mxu0 0.0
    %1871 = vmatprep.subr.mxu0 0.0
    %1872 = vmatpush1.msra.mxu0 0.0
    %1873 = vmatprep.subr.mxu0 0.0
    %1874 = vmatpush1.msra.mxu0 0.0
    %1875 = vmatprep.mubr.f32.mxu0 0.0
    %1876 = vmatmul.mubr.f32.gmra.mrb[0].mxu0 %v1809
    %v1877 = vpop.f32.mrb[0].mxu0
    %v1878 = vadd.f32 0.0, %v1877
    %v1879 = vpop.f32.mrb[0].mxu0
    %1880 = vdwg.mxu0
    %v1881 = vlaneseq
    %v1882 = vshrl.u32 %v1881, 7
    %v1883 = vsub.s32 0, %v1882
    %v1884 = vrot.slane %v1878, %v1883
    %v1885 = vsub.f32 %v1709, %v1884
    %v1886 = vmul.f32 %v1885, %v1885
    %v1888 = vsel %vm1724, %v1886, 0
    %1890 = vmatprep.subr.mxu0 0.0
    %1891 = vmatpush1.msra.mxu0 %v1714
    %1892 = vmatprep.subr.mxu0 0.0
    %1893 = vmatpush1.msra.mxu0 %v1715
    %1894 = vmatprep.subr.mxu0 0.0
    %1895 = vmatpush1.msra.mxu0 %v1716
    %1896 = vmatprep.subr.mxu0 0.0
    %1897 = vmatpush1.msra.mxu0 %v1717
    %1898 = vmatprep.subr.mxu0 0.0
    %1899 = vmatpush1.msra.mxu0 %v1718
    %1900 = vmatprep.subr.mxu0 0.0
    %1901 = vmatpush1.msra.mxu0 %v1719
    %1902 = vmatprep.subr.mxu0 0.0
    %1903 = vmatpush1.msra.mxu0 %v1720
    %1904 = vmatprep.subr.mxu0 0.0
    %1905 = vmatpush1.msra.mxu0 %v1721
    %1906 = vmatprep.subr.mxu0 0.0
    %1907 = vmatpush1.msra.mxu0 %v1722
    %1908 = vmatprep.subr.mxu0 0.0
    %1909 = vmatpush1.msra.mxu0 0.0
    %1910 = vmatprep.subr.mxu0 0.0
    %1911 = vmatpush1.msra.mxu0 0.0
    %1912 = vmatprep.subr.mxu0 0.0
    %1913 = vmatpush1.msra.mxu0 0.0
    %1914 = vmatprep.subr.mxu0 0.0
    %1915 = vmatpush1.msra.mxu0 0.0
    %1916 = vmatprep.subr.mxu0 0.0
    %1917 = vmatpush1.msra.mxu0 0.0
    %1918 = vmatprep.subr.mxu0 0.0
    %1919 = vmatpush1.msra.mxu0 0.0
    %1920 = vmatprep.subr.mxu0 0.0
    %1921 = vmatpush1.msra.mxu0 0.0
    %1922 = vmatprep.subr.mxu0 0.0
    %1923 = vmatpush1.msra.mxu0 0.0
    %1924 = vmatprep.subr.mxu0 0.0
    %1925 = vmatpush1.msra.mxu0 0.0
    %1926 = vmatprep.subr.mxu0 0.0
    %1927 = vmatpush1.msra.mxu0 0.0
    %1928 = vmatprep.subr.mxu0 0.0
    %1929 = vmatpush1.msra.mxu0 0.0
    %1930 = vmatprep.subr.mxu0 0.0
    %1931 = vmatpush1.msra.mxu0 0.0
    %1932 = vmatprep.subr.mxu0 0.0
    %1933 = vmatpush1.msra.mxu0 0.0
    %1934 = vmatprep.subr.mxu0 0.0
    %1935 = vmatpush1.msra.mxu0 0.0
    %1936 = vmatprep.subr.mxu0 0.0
    %1937 = vmatpush1.msra.mxu0 0.0
    %1938 = vmatprep.subr.mxu0 0.0
    %1939 = vmatpush1.msra.mxu0 0.0
    %1940 = vmatprep.subr.mxu0 0.0
    %1941 = vmatpush1.msra.mxu0 0.0
    %1942 = vmatprep.subr.mxu0 0.0
    %1943 = vmatpush1.msra.mxu0 0.0
    %1944 = vmatprep.subr.mxu0 0.0
    %1945 = vmatpush1.msra.mxu0 0.0
    %1946 = vmatprep.subr.mxu0 0.0
    %1947 = vmatpush1.msra.mxu0 0.0
    %1948 = vmatprep.subr.mxu0 0.0
    %1949 = vmatpush1.msra.mxu0 0.0
    %1950 = vmatprep.subr.mxu0 0.0
    %1951 = vmatpush1.msra.mxu0 0.0
    %1952 = vmatprep.subr.mxu0 0.0
    %1953 = vmatpush1.msra.mxu0 0.0
    %1954 = vmatprep.mubr.f32.mxu0 0.0
    %1955 = vmatmul.mubr.f32.gmra.mrb[0].mxu0 %v1888
    %v1956 = vpop.f32.mrb[0].mxu0
    %v1957 = vadd.f32 0.0, %v1956
    %v1958 = vpop.f32.mrb[0].mxu0
    %1959 = vdwg.mxu0
    %v1960 = vsel %vm1798, %v1957, 0.0
    %v1961 = vrot.slane %v1960, 4
    %v1962 = vadd.f32 %v1960, %v1961
    %v1963 = vrot.slane %v1962, 2
    %v1964 = vadd.f32 %v1962, %v1963
    %v1965 = vrot.slane %v1964, 1
    %v1966 = vadd.f32 %v1964, %v1965
    %v1967 = vmul.f32 %v1966, 0.055555556
    %v1968 = vld [vmem:[#allocation7] sm:$0x1]
    %v1969 = vadd.f32 %v1967, 1e-10
    %v1970 = vrsqrt.pop %v1969
    %v1971 = vmul.f32 %v1968, %v1970
    %v1973 = vsel %vm1807, %v1971, 0
    %1975 = vmatprep.subr.mxu0 0.0
    %1976 = vmatpush1.msra.mxu0 %v1723
    %1977 = vmatprep.subr.mxu0 0.0
    %1978 = vmatpush1.msra.mxu0 0.0
    %1979 = vmatprep.subr.mxu0 0.0
    %1980 = vmatpush1.msra.mxu0 0.0
    %1981 = vmatprep.subr.mxu0 0.0
    %1982 = vmatpush1.msra.mxu0 0.0
    %1983 = vmatprep.subr.mxu0 0.0
    %1984 = vmatpush1.msra.mxu0 0.0
    %1985 = vmatprep.subr.mxu0 0.0
    %1986 = vmatpush1.msra.mxu0 0.0
    %1987 = vmatprep.subr.mxu0 0.0
    %1988 = vmatpush1.msra.mxu0 0.0
    %1989 = vmatprep.subr.mxu0 0.0
    %1990 = vmatpush1.msra.mxu0 0.0
    %1991 = vmatprep.subr.mxu0 0.0
    %1992 = vmatpush1.msra.mxu0 0.0
    %1993 = vmatprep.subr.mxu0 0.0
    %1994 = vmatpush1.msra.mxu0 0.0
    %1995 = vmatprep.subr.mxu0 0.0
    %1996 = vmatpush1.msra.mxu0 0.0
    %1997 = vmatprep.subr.mxu0 0.0
    %1998 = vmatpush1.msra.mxu0 0.0
    %1999 = vmatprep.subr.mxu0 0.0
    %2000 = vmatpush1.msra.mxu0 0.0
    %2001 = vmatprep.subr.mxu0 0.0
    %2002 = vmatpush1.msra.mxu0 0.0
    %2003 = vmatprep.subr.mxu0 0.0
    %2004 = vmatpush1.msra.mxu0 0.0
    %2005 = vmatprep.subr.mxu0 0.0
    %2006 = vmatpush1.msra.mxu0 0.0
    %2007 = vmatprep.subr.mxu0 0.0
    %2008 = vmatpush1.msra.mxu0 0.0
    %2009 = vmatprep.subr.mxu0 0.0
    %2010 = vmatpush1.msra.mxu0 0.0
    %2011 = vmatprep.subr.mxu0 0.0
    %2012 = vmatpush1.msra.mxu0 0.0
    %2013 = vmatprep.subr.mxu0 0.0
    %2014 = vmatpush1.msra.mxu0 0.0
    %2015 = vmatprep.subr.mxu0 0.0
    %2016 = vmatpush1.msra.mxu0 0.0
    %2017 = vmatprep.subr.mxu0 0.0
    %2018 = vmatpush1.msra.mxu0 0.0
    %2019 = vmatprep.subr.mxu0 0.0
    %2020 = vmatpush1.msra.mxu0 0.0
    %2021 = vmatprep.subr.mxu0 0.0
    %2022 = vmatpush1.msra.mxu0 0.0
    %2023 = vmatprep.subr.mxu0 0.0
    %2024 = vmatpush1.msra.mxu0 0.0
    %2025 = vmatprep.subr.mxu0 0.0
    %2026 = vmatpush1.msra.mxu0 0.0
    %2027 = vmatprep.subr.mxu0 0.0
    %2028 = vmatpush1.msra.mxu0 0.0
    %2029 = vmatprep.subr.mxu0 0.0
    %2030 = vmatpush1.msra.mxu0 0.0
    %2031 = vmatprep.subr.mxu0 0.0
    %2032 = vmatpush1.msra.mxu0 0.0
    %2033 = vmatprep.subr.mxu0 0.0
    %2034 = vmatpush1.msra.mxu0 0.0
    %2035 = vmatprep.subr.mxu0 0.0
    %2036 = vmatpush1.msra.mxu0 0.0
    %2037 = vmatprep.subr.mxu0 0.0
    %2038 = vmatpush1.msra.mxu0 0.0
    %2039 = vmatprep.mubr.f32.mxu0 0.0
    %2040 = vmatmul.mubr.f32.gmra.mrb[0].mxu0 %v1973
    %v2041 = vpop.f32.mrb[0].mxu0
    %v2042 = vadd.f32 0.0, %v2041
    %v2043 = vpop.f32.mrb[0].mxu0
    %2044 = vdwg.mxu0
    %v2045 = vlaneseq
    %v2046 = vshrl.u32 %v2045, 7
    %v2047 = vsub.s32 0, %v2046
    %v2048 = vrot.slane %v2042, %v2047
    %v2049 = vmul.f32 %v1885, %v2048
    %v2050 = vld [vmem:[#allocation9] sm:$0x1]
    %v2052 = vsel %vm1807, %v2050, 0
    %2054 = vmatprep.subr.mxu0 0.0
    %2055 = vmatpush1.msra.mxu0 %v1723
    %2056 = vmatprep.subr.mxu0 0.0
    %2057 = vmatpush1.msra.mxu0 0.0
    %2058 = vmatprep.subr.mxu0 0.0
    %2059 = vmatpush1.msra.mxu0 0.0
    %2060 = vmatprep.subr.mxu0 0.0
    %2061 = vmatpush1.msra.mxu0 0.0
    %2062 = vmatprep.subr.mxu0 0.0
    %2063 = vmatpush1.msra.mxu0 0.0
    %2064 = vmatprep.subr.mxu0 0.0
    %2065 = vmatpush1.msra.mxu0 0.0
    %2066 = vmatprep.subr.mxu0 0.0
    %2067 = vmatpush1.msra.mxu0 0.0
    %2068 = vmatprep.subr.mxu0 0.0
    %2069 = vmatpush1.msra.mxu0 0.0
    %2070 = vmatprep.subr.mxu0 0.0
    %2071 = vmatpush1.msra.mxu0 0.0
    %2072 = vmatprep.subr.mxu0 0.0
    %2073 = vmatpush1.msra.mxu0 0.0
    %2074 = vmatprep.subr.mxu0 0.0
    %2075 = vmatpush1.msra.mxu0 0.0
    %2076 = vmatprep.subr.mxu0 0.0
    %2077 = vmatpush1.msra.mxu0 0.0
    %2078 = vmatprep.subr.mxu0 0.0
    %2079 = vmatpush1.msra.mxu0 0.0
    %2080 = vmatprep.subr.mxu0 0.0
    %2081 = vmatpush1.msra.mxu0 0.0
    %2082 = vmatprep.subr.mxu0 0.0
    %2083 = vmatpush1.msra.mxu0 0.0
    %2084 = vmatprep.subr.mxu0 0.0
    %2085 = vmatpush1.msra.mxu0 0.0
    %2086 = vmatprep.subr.mxu0 0.0
    %2087 = vmatpush1.msra.mxu0 0.0
    %2088 = vmatprep.subr.mxu0 0.0
    %2089 = vmatpush1.msra.mxu0 0.0
    %2090 = vmatprep.subr.mxu0 0.0
    %2091 = vmatpush1.msra.mxu0 0.0
    %2092 = vmatprep.subr.mxu0 0.0
    %2093 = vmatpush1.msra.mxu0 0.0
    %2094 = vmatprep.subr.mxu0 0.0
    %2095 = vmatpush1.msra.mxu0 0.0
    %2096 = vmatprep.subr.mxu0 0.0
    %2097 = vmatpush1.msra.mxu0 0.0
    %2098 = vmatprep.subr.mxu0 0.0
    %2099 = vmatpush1.msra.mxu0 0.0
    %2100 = vmatprep.subr.mxu0 0.0
    %2101 = vmatpush1.msra.mxu0 0.0
    %2102 = vmatprep.subr.mxu0 0.0
    %2103 = vmatpush1.msra.mxu0 0.0
    %2104 = vmatprep.subr.mxu0 0.0
    %2105 = vmatpush1.msra.mxu0 0.0
    %2106 = vmatprep.subr.mxu0 0.0
    %2107 = vmatpush1.msra.mxu0 0.0
    %2108 = vmatprep.subr.mxu0 0.0
    %2109 = vmatpush1.msra.mxu0 0.0
    %2110 = vmatprep.subr.mxu0 0.0
    %2111 = vmatpush1.msra.mxu0 0.0
    %2112 = vmatprep.subr.mxu0 0.0
    %2113 = vmatpush1.msra.mxu0 0.0
    %2114 = vmatprep.subr.mxu0 0.0
    %2115 = vmatpush1.msra.mxu0 0.0
    %2116 = vmatprep.subr.mxu0 0.0
    %2117 = vmatpush1.msra.mxu0 0.0
    %2118 = vmatprep.mubr.f32.mxu0 0.0
    %2119 = vmatmul.mubr.f32.gmra.mrb[0].mxu0 %v2052
    %v2120 = vpop.f32.mrb[0].mxu0
    %v2121 = vadd.f32 0.0, %v2120
    %v2122 = vpop.f32.mrb[0].mxu0
    %2123 = vdwg.mxu0
    %v2124 = vlaneseq
    %v2125 = vshrl.u32 %v2124, 7
    %v2126 = vsub.s32 0, %v2125
    %v2127 = vrot.slane %v2121, %v2126
    %v2128 = vadd.f32 %v2049, %v2127
    %vm2129 = vcmp.ge.f32.partialorder %v2128, 0.0
    %v2130 = vmul.f32 %v2128, 0.2
    %v2131 = vsel %vm2129, %v2128, %v2130
    %v2132 = vpack.c.bf16 %v2131, %v2131
    %v2133 = vld [vmem:[%s25] sm:$0xf]
    %v2134 = vld [vmem:[%s25 + $0x4] sm:$0xf]
    %v2135 = vld [vmem:[%s25 + $0x8] sm:$0xf]
    %v2136 = vld [vmem:[%s25 + $0xc] sm:$0xf]
    %v2137 = vld [vmem:[%s25 + $0x10] sm:$0xf]
    %v2138 = vld [vmem:[%s25 + $0x14] sm:$0xf]
    %v2139 = vld [vmem:[%s25 + $0x18] sm:$0xf]
    %v2140 = vld [vmem:[%s25 + $0x1c] sm:$0xf]
    %v2141 = vld [vmem:[%s25 + $0x20] sm:$0xf]
    %v2142 = vld [vmem:[#allocation10] sm:$0xf]
    %v2144 = vsel %vm352, %v2142, 0
    %2146 = vmatprep.subr.mxu0 0.0
    %2147 = vmatpush1.msra.mxu0 %v2144
    %2148 = vmatprep.subr.mxu0 0.0
    %2149 = vmatpush1.msra.mxu0 0.0
    %2150 = vmatprep.subr.mxu0 0.0
    %2151 = vmatpush1.msra.mxu0 0.0
    %2152 = vmatprep.subr.mxu0 0.0
    %2153 = vmatpush1.msra.mxu0 0.0
    %2154 = vmatprep.subr.mxu0 0.0
    %2155 = vmatpush1.msra.mxu0 0.0
    %2156 = vmatprep.subr.mxu0 0.0
    %2157 = vmatpush1.msra.mxu0 0.0
    %2158 = vmatprep.subr.mxu0 0.0
    %2159 = vmatpush1.msra.mxu0 0.0
    %2160 = vmatprep.subr.mxu0 0.0
    %2161 = vmatpush1.msra.mxu0 0.0
    %2162 = vmatprep.subr.mxu0 0.0
    %2163 = vmatpush1.msra.mxu0 0.0
    %2164 = vmatprep.subr.mxu0 0.0
    %2165 = vmatpush1.msra.mxu0 0.0
    %2166 = vmatprep.subr.mxu0 0.0
    %2167 = vmatpush1.msra.mxu0 0.0
    %2168 = vmatprep.subr.mxu0 0.0
    %2169 = vmatpush1.msra.mxu0 0.0
    %2170 = vmatprep.subr.mxu0 0.0
    %2171 = vmatpush1.msra.mxu0 0.0
    %2172 = vmatprep.subr.mxu0 0.0
    %2173 = vmatpush1.msra.mxu0 0.0
    %2174 = vmatprep.subr.mxu0 0.0
    %2175 = vmatpush1.msra.mxu0 0.0
    %2176 = vmatprep.subr.mxu0 0.0
    %2177 = vmatpush1.msra.mxu0 0.0
    %2178 = vmatprep.subr.mxu0 0.0
    %2179 = vmatpush1.msra.mxu0 0.0
    %2180 = vmatprep.subr.mxu0 0.0
    %2181 = vmatpush1.msra.mxu0 0.0
    %2182 = vmatprep.subr.mxu0 0.0
    %2183 = vmatpush1.msra.mxu0 0.0
    %2184 = vmatprep.subr.mxu0 0.0
    %2185 = vmatpush1.msra.mxu0 0.0
    %2186 = vmatprep.subr.mxu0 0.0
    %2187 = vmatpush1.msra.mxu0 0.0
    %2188 = vmatprep.subr.mxu0 0.0
    %2189 = vmatpush1.msra.mxu0 0.0
    %2190 = vmatprep.subr.mxu0 0.0
    %2191 = vmatpush1.msra.mxu0 0.0
    %2192 = vmatprep.subr.mxu0 0.0
    %2193 = vmatpush1.msra.mxu0 0.0
    %2194 = vmatprep.subr.mxu0 0.0
    %2195 = vmatpush1.msra.mxu0 0.0
    %2196 = vmatprep.subr.mxu0 0.0
    %2197 = vmatpush1.msra.mxu0 0.0
    %2198 = vmatprep.subr.mxu0 0.0
    %2199 = vmatpush1.msra.mxu0 0.0
    %2200 = vmatprep.subr.mxu0 0.0
    %2201 = vmatpush1.msra.mxu0 0.0
    %2202 = vmatprep.subr.mxu0 0.0
    %2203 = vmatpush1.msra.mxu0 0.0
    %2204 = vmatprep.subr.mxu0 0.0
    %2205 = vmatpush1.msra.mxu0 0.0
    %2206 = vmatprep.subr.mxu0 0.0
    %2207 = vmatpush1.msra.mxu0 0.0
    %2208 = vmatprep.subr.mxu0 0.0
    %2209 = vmatpush1.msra.mxu0 0.0
    %2210 = vmatprep.mubr.f32.mxu0 0.0
    %2211 = vmatmul.mubr.f32.gmra.mrb[0].mxu0 %v653
    %v2212 = vpop.f32.mrb[0].mxu0
    %v2213 = vadd.f32 0.0, %v2212
    %v2214 = vpop.f32.mrb[0].mxu0
    %2215 = vdwg.mxu0
    %v2225 = vunpack.c.l.b16 %v2133
    %v2226 = vunpack.c.l.b16 %v2134
    %v2227 = vunpack.c.l.b16 %v2135
    %v2228 = vunpack.c.l.b16 %v2136
    %v2229 = vunpack.c.l.b16 %v2137
    %v2230 = vunpack.c.l.b16 %v2138
    %v2231 = vunpack.c.l.b16 %v2139
    %v2232 = vunpack.c.l.b16 %v2140
    %v2233 = vunpack.c.l.b16 %v2141
    %v2234 = vpack.c.b16 %v2226, %v2225
    %v2235 = vpack.c.b16 %v2228, %v2227
    %v2236 = vpack.c.b16 %v2230, %v2229
    %v2237 = vpack.c.b16 %v2232, %v2231
    %v2238 = vpack.c.b16 %v2233, %v2233
    %v2244 = vsel %vm1724, %v2132, 0
    %v2247 = vsel %vm352, %v2238, 0
    %2249 = vmatprep.subr.bf16.mxu0 0
    %2250 = vmatpush1.bf16.msra.mxu0 %v2234
    %2251 = vmatprep.subr.bf16.mxu0 0
    %2252 = vmatpush1.bf16.msra.mxu0 %v2235
    %2253 = vmatprep.subr.bf16.mxu0 0
    %2254 = vmatpush1.bf16.msra.mxu0 %v2236
    %2255 = vmatprep.subr.bf16.mxu0 0
    %2256 = vmatpush1.bf16.msra.mxu0 %v2237
    %2257 = vmatprep.subr.bf16.mxu0 0
    %2258 = vmatpush1.bf16.msra.mxu0 %v2247
    %2259 = vmatprep.subr.bf16.mxu0 0
    %2260 = vmatpush1.bf16.msra.mxu0 0
    %2261 = vmatprep.subr.bf16.mxu0 0
    %2262 = vmatpush1.bf16.msra.mxu0 0
    %2263 = vmatprep.subr.bf16.mxu0 0
    %2264 = vmatpush1.bf16.msra.mxu0 0
    %2265 = vmatprep.subr.bf16.mxu0 0
    %2266 = vmatpush1.bf16.msra.mxu0 0
    %2267 = vmatprep.subr.bf16.mxu0 0
    %2268 = vmatpush1.bf16.msra.mxu0 0
    %2269 = vmatprep.subr.bf16.mxu0 0
    %2270 = vmatpush1.bf16.msra.mxu0 0
    %2271 = vmatprep.subr.bf16.mxu0 0
    %2272 = vmatpush1.bf16.msra.mxu0 0
    %2273 = vmatprep.subr.bf16.mxu0 0
    %2274 = vmatpush1.bf16.msra.mxu0 0
    %2275 = vmatprep.subr.bf16.mxu0 0
    %2276 = vmatpush1.bf16.msra.mxu0 0
    %2277 = vmatprep.subr.bf16.mxu0 0
    %2278 = vmatpush1.bf16.msra.mxu0 0
    %2279 = vmatprep.subr.bf16.mxu0 0
    %2280 = vmatpush1.bf16.msra.mxu0 0
    %2281 = vmatprep.mubr.bf16.mxu0 0
    %2282 = vmatmul.mubr.bf16.gmra.mrb[0].mxu0 %v2244
    %v2283 = vpop.f32.mrb[0].mxu0
    %v2284 = vadd.f32 %v2213, %v2283
    %v2285 = vpop.f32.mrb[0].mxu0
    %v2286 = vpop.f32.mrb[0].mxu0
    %v2287 = vpop.f32.mrb[0].mxu0
    %2288 = vdwg.mxu0
    %vm2289 = vcmp.ge.f32.partialorder %v2284, 0.0
    %v2290 = vmul.f32 %v2284, 0.2
    %v2291 = vsel %vm2289, %v2284, %v2290
    %v2292 = vpack.c.bf16 %v2291, %v2291
    %v2293 = vld [vmem:[#allocation12] sm:$0xf]
    %v2294 = vld [vmem:[#allocation12 + $0x4] sm:$0xf]
    %v2295 = vld [vmem:[#allocation12 + $0x8] sm:$0xf]
    %v2296 = vld [vmem:[#allocation12 + $0xc] sm:$0xf]
    %v2297 = vld [vmem:[#allocation12 + $0x10] sm:$0xf]
    %v2298 = vld [vmem:[#allocation12 + $0x14] sm:$0xf]
    %v2299 = vld [vmem:[#allocation12 + $0x18] sm:$0xf]
    %v2300 = vld [vmem:[#allocation12 + $0x1c] sm:$0xf]
    %v2309 = vunpack.c.l.b16 %v2293
    %v2310 = vunpack.c.l.b16 %v2294
    %v2311 = vunpack.c.l.b16 %v2295
    %v2312 = vunpack.c.l.b16 %v2296
    %v2313 = vunpack.c.l.b16 %v2297
    %v2314 = vunpack.c.l.b16 %v2298
    %v2315 = vunpack.c.l.b16 %v2299
    %v2316 = vunpack.c.l.b16 %v2300
    %v2317 = vpack.c.b16 %v2310, %v2309
    %v2318 = vpack.c.b16 %v2312, %v2311
    %v2319 = vpack.c.b16 %v2314, %v2313
    %v2320 = vpack.c.b16 %v2316, %v2315
    %vm2325 = vcmask 523264
    %v2327 = vsel %vm2325, %v2292, 0
    %2329 = vmatprep.subr.bf16.mxu0 0
    %2330 = vmatpush1.bf16.msra.mxu0 %v2317
    %2331 = vmatprep.subr.bf16.mxu0 0
    %2332 = vmatpush1.bf16.msra.mxu0 %v2318
    %2333 = vmatprep.subr.bf16.mxu0 0
    %2334 = vmatpush1.bf16.msra.mxu0 %v2319
    %2335 = vmatprep.subr.bf16.mxu0 0
    %2336 = vmatpush1.bf16.msra.mxu0 %v2320
    %2337 = vmatprep.subr.bf16.mxu0 0
    %2338 = vmatpush1.bf16.msra.mxu0 0
    %2339 = vmatprep.subr.bf16.mxu0 0
    %2340 = vmatpush1.bf16.msra.mxu0 0
    %2341 = vmatprep.subr.bf16.mxu0 0
    %2342 = vmatpush1.bf16.msra.mxu0 0
    %2343 = vmatprep.subr.bf16.mxu0 0
    %2344 = vmatpush1.bf16.msra.mxu0 0
    %2345 = vmatprep.subr.bf16.mxu0 0
    %2346 = vmatpush1.bf16.msra.mxu0 0
    %2347 = vmatprep.subr.bf16.mxu0 0
    %2348 = vmatpush1.bf16.msra.mxu0 0
    %2349 = vmatprep.subr.bf16.mxu0 0
    %2350 = vmatpush1.bf16.msra.mxu0 0
    %2351 = vmatprep.subr.bf16.mxu0 0
    %2352 = vmatpush1.bf16.msra.mxu0 0
    %2353 = vmatprep.subr.bf16.mxu0 0
    %2354 = vmatpush1.bf16.msra.mxu0 0
    %2355 = vmatprep.subr.bf16.mxu0 0
    %2356 = vmatpush1.bf16.msra.mxu0 0
    %2357 = vmatprep.subr.bf16.mxu0 0
    %2358 = vmatpush1.bf16.msra.mxu0 0
    %2359 = vmatprep.subr.bf16.mxu0 0
    %2360 = vmatpush1.bf16.msra.mxu0 0
    %2361 = vmatprep.mubr.bf16.mxu0 0
    %2362 = vmatmul.mubr.bf16.gmra.mrb[0].mxu0 %v2327
    %v2363 = vpop.f32.mrb[0].mxu0
    %v2364 = vadd.f32 0.0, %v2363
    %v2365 = vpop.f32.mrb[0].mxu0
    %v2366 = vpop.f32.mrb[0].mxu0
    %v2367 = vpop.f32.mrb[0].mxu0
    %2368 = vdwg.mxu0
    %v2370 = vsel %vm1724, %v2364, 0
    %2372 = vmatprep.subr.mxu0 0.0
    %2373 = vmatpush1.msra.mxu0 %v1714
    %2374 = vmatprep.subr.mxu0 0.0
    %2375 = vmatpush1.msra.mxu0 %v1715
    %2376 = vmatprep.subr.mxu0 0.0
    %2377 = vmatpush1.msra.mxu0 %v1716
    %2378 = vmatprep.subr.mxu0 0.0
    %2379 = vmatpush1.msra.mxu0 %v1717
    %2380 = vmatprep.subr.mxu0 0.0
    %2381 = vmatpush1.msra.mxu0 %v1718
    %2382 = vmatprep.subr.mxu0 0.0
    %2383 = vmatpush1.msra.mxu0 %v1719
    %2384 = vmatprep.subr.mxu0 0.0
    %2385 = vmatpush1.msra.mxu0 %v1720
    %2386 = vmatprep.subr.mxu0 0.0
    %2387 = vmatpush1.msra.mxu0 %v1721
    %2388 = vmatprep.subr.mxu0 0.0
    %2389 = vmatpush1.msra.mxu0 %v1722
    %2390 = vmatprep.subr.mxu0 0.0
    %2391 = vmatpush1.msra.mxu0 0.0
    %2392 = vmatprep.subr.mxu0 0.0
    %2393 = vmatpush1.msra.mxu0 0.0
    %2394 = vmatprep.subr.mxu0 0.0
    %2395 = vmatpush1.msra.mxu0 0.0
    %2396 = vmatprep.subr.mxu0 0.0
    %2397 = vmatpush1.msra.mxu0 0.0
    %2398 = vmatprep.subr.mxu0 0.0
    %2399 = vmatpush1.msra.mxu0 0.0
    %2400 = vmatprep.subr.mxu0 0.0
    %2401 = vmatpush1.msra.mxu0 0.0
    %2402 = vmatprep.subr.mxu0 0.0
    %2403 = vmatpush1.msra.mxu0 0.0
    %2404 = vmatprep.subr.mxu0 0.0
    %2405 = vmatpush1.msra.mxu0 0.0
    %2406 = vmatprep.subr.mxu0 0.0
    %2407 = vmatpush1.msra.mxu0 0.0
    %2408 = vmatprep.subr.mxu0 0.0
    %2409 = vmatpush1.msra.mxu0 0.0
    %2410 = vmatprep.subr.mxu0 0.0
    %2411 = vmatpush1.msra.mxu0 0.0
    %2412 = vmatprep.subr.mxu0 0.0
    %2413 = vmatpush1.msra.mxu0 0.0
    %2414 = vmatprep.subr.mxu0 0.0
    %2415 = vmatpush1.msra.mxu0 0.0
    %2416 = vmatprep.subr.mxu0 0.0
    %2417 = vmatpush1.msra.mxu0 0.0
    %2418 = vmatprep.subr.mxu0 0.0
    %2419 = vmatpush1.msra.mxu0 0.0
    %2420 = vmatprep.subr.mxu0 0.0
    %2421 = vmatpush1.msra.mxu0 0.0
    %2422 = vmatprep.subr.mxu0 0.0
    %2423 = vmatpush1.msra.mxu0 0.0
    %2424 = vmatprep.subr.mxu0 0.0
    %2425 = vmatpush1.msra.mxu0 0.0
    %2426 = vmatprep.subr.mxu0 0.0
    %2427 = vmatpush1.msra.mxu0 0.0
    %2428 = vmatprep.subr.mxu0 0.0
    %2429 = vmatpush1.msra.mxu0 0.0
    %2430 = vmatprep.subr.mxu0 0.0
    %2431 = vmatpush1.msra.mxu0 0.0
    %2432 = vmatprep.subr.mxu0 0.0
    %2433 = vmatpush1.msra.mxu0 0.0
    %2434 = vmatprep.subr.mxu0 0.0
    %2435 = vmatpush1.msra.mxu0 0.0
    %2436 = vmatprep.mubr.f32.mxu0 0.0
    %2437 = vmatmul.mubr.f32.gmra.mrb[0].mxu0 %v2370
    %v2438 = vpop.f32.mrb[0].mxu0
    %v2439 = vadd.f32 0.0, %v2438
    %v2440 = vpop.f32.mrb[0].mxu0
    %2441 = vdwg.mxu0
    %v2442 = vsel %vm1798, %v2439, 0.0
    %v2443 = vrot.slane %v2442, 4
    %v2444 = vadd.f32 %v2442, %v2443
    %v2445 = vrot.slane %v2444, 2
    %v2446 = vadd.f32 %v2444, %v2445
    %v2447 = vrot.slane %v2446, 1
    %v2448 = vadd.f32 %v2446, %v2447
    %v2449 = vmul.f32 %v2448, 0.055555556
    %v2451 = vsel %vm1807, %v2449, 0
    %2453 = vmatprep.subr.mxu0 0.0
    %2454 = vmatpush1.msra.mxu0 %v1723
    %2455 = vmatprep.subr.mxu0 0.0
    %2456 = vmatpush1.msra.mxu0 0.0
    %2457 = vmatprep.subr.mxu0 0.0
    %2458 = vmatpush1.msra.mxu0 0.0
    %2459 = vmatprep.subr.mxu0 0.0
    %2460 = vmatpush1.msra.mxu0 0.0
    %2461 = vmatprep.subr.mxu0 0.0
    %2462 = vmatpush1.msra.mxu0 0.0
    %2463 = vmatprep.subr.mxu0 0.0
    %2464 = vmatpush1.msra.mxu0 0.0
    %2465 = vmatprep.subr.mxu0 0.0
    %2466 = vmatpush1.msra.mxu0 0.0
    %2467 = vmatprep.subr.mxu0 0.0
    %2468 = vmatpush1.msra.mxu0 0.0
    %2469 = vmatprep.subr.mxu0 0.0
    %2470 = vmatpush1.msra.mxu0 0.0
    %2471 = vmatprep.subr.mxu0 0.0
    %2472 = vmatpush1.msra.mxu0 0.0
    %2473 = vmatprep.subr.mxu0 0.0
    %2474 = vmatpush1.msra.mxu0 0.0
    %2475 = vmatprep.subr.mxu0 0.0
    %2476 = vmatpush1.msra.mxu0 0.0
    %2477 = vmatprep.subr.mxu0 0.0
    %2478 = vmatpush1.msra.mxu0 0.0
    %2479 = vmatprep.subr.mxu0 0.0
    %2480 = vmatpush1.msra.mxu0 0.0
    %2481 = vmatprep.subr.mxu0 0.0
    %2482 = vmatpush1.msra.mxu0 0.0
    %2483 = vmatprep.subr.mxu0 0.0
    %2484 = vmatpush1.msra.mxu0 0.0
    %2485 = vmatprep.subr.mxu0 0.0
    %2486 = vmatpush1.msra.mxu0 0.0
    %2487 = vmatprep.subr.mxu0 0.0
    %2488 = vmatpush1.msra.mxu0 0.0
    %2489 = vmatprep.subr.mxu0 0.0
    %2490 = vmatpush1.msra.mxu0 0.0
    %2491 = vmatprep.subr.mxu0 0.0
    %2492 = vmatpush1.msra.mxu0 0.0
    %2493 = vmatprep.subr.mxu0 0.0
    %2494 = vmatpush1.msra.mxu0 0.0
    %2495 = vmatprep.subr.mxu0 0.0
    %2496 = vmatpush1.msra.mxu0 0.0
    %2497 = vmatprep.subr.mxu0 0.0
    %2498 = vmatpush1.msra.mxu0 0.0
    %2499 = vmatprep.subr.mxu0 0.0
    %2500 = vmatpush1.msra.mxu0 0.0
    %2501 = vmatprep.subr.mxu0 0.0
    %2502 = vmatpush1.msra.mxu0 0.0
    %2503 = vmatprep.subr.mxu0 0.0
    %2504 = vmatpush1.msra.mxu0 0.0
    %2505 = vmatprep.subr.mxu0 0.0
    %2506 = vmatpush1.msra.mxu0 0.0
    %2507 = vmatprep.subr.mxu0 0.0
    %2508 = vmatpush1.msra.mxu0 0.0
    %2509 = vmatprep.subr.mxu0 0.0
    %2510 = vmatpush1.msra.mxu0 0.0
    %2511 = vmatprep.subr.mxu0 0.0
    %2512 = vmatpush1.msra.mxu0 0.0
    %2513 = vmatprep.subr.mxu0 0.0
    %2514 = vmatpush1.msra.mxu0 0.0
    %2515 = vmatprep.subr.mxu0 0.0
    %2516 = vmatpush1.msra.mxu0 0.0
    %2517 = vmatprep.mubr.f32.mxu0 0.0
    %2518 = vmatmul.mubr.f32.gmra.mrb[0].mxu0 %v2451
    %v2519 = vpop.f32.mrb[0].mxu0
    %v2520 = vadd.f32 0.0, %v2519
    %v2521 = vpop.f32.mrb[0].mxu0
    %2522 = vdwg.mxu0
    %v2523 = vlaneseq
    %v2524 = vshrl.u32 %v2523, 7
    %v2525 = vsub.s32 0, %v2524
    %v2526 = vrot.slane %v2520, %v2525
    %v2527 = vsub.f32 %v2364, %v2526
    %v2528 = vmul.f32 %v2527, %v2527
    %v2530 = vsel %vm1724, %v2528, 0
    %2532 = vmatprep.subr.mxu0 0.0
    %2533 = vmatpush1.msra.mxu0 %v1714
    %2534 = vmatprep.subr.mxu0 0.0
    %2535 = vmatpush1.msra.mxu0 %v1715
    %2536 = vmatprep.subr.mxu0 0.0
    %2537 = vmatpush1.msra.mxu0 %v1716
    %2538 = vmatprep.subr.mxu0 0.0
    %2539 = vmatpush1.msra.mxu0 %v1717
    %2540 = vmatprep.subr.mxu0 0.0
    %2541 = vmatpush1.msra.mxu0 %v1718
    %2542 = vmatprep.subr.mxu0 0.0
    %2543 = vmatpush1.msra.mxu0 %v1719
    %2544 = vmatprep.subr.mxu0 0.0
    %2545 = vmatpush1.msra.mxu0 %v1720
    %2546 = vmatprep.subr.mxu0 0.0
    %2547 = vmatpush1.msra.mxu0 %v1721
    %2548 = vmatprep.subr.mxu0 0.0
    %2549 = vmatpush1.msra.mxu0 %v1722
    %2550 = vmatprep.subr.mxu0 0.0
    %2551 = vmatpush1.msra.mxu0 0.0
    %2552 = vmatprep.subr.mxu0 0.0
    %2553 = vmatpush1.msra.mxu0 0.0
    %2554 = vmatprep.subr.mxu0 0.0
    %2555 = vmatpush1.msra.mxu0 0.0
    %2556 = vmatprep.subr.mxu0 0.0
    %2557 = vmatpush1.msra.mxu0 0.0
    %2558 = vmatprep.subr.mxu0 0.0
    %2559 = vmatpush1.msra.mxu0 0.0
    %2560 = vmatprep.subr.mxu0 0.0
    %2561 = vmatpush1.msra.mxu0 0.0
    %2562 = vmatprep.subr.mxu0 0.0
    %2563 = vmatpush1.msra.mxu0 0.0
    %2564 = vmatprep.subr.mxu0 0.0
    %2565 = vmatpush1.msra.mxu0 0.0
    %2566 = vmatprep.subr.mxu0 0.0
    %2567 = vmatpush1.msra.mxu0 0.0
    %2568 = vmatprep.subr.mxu0 0.0
    %2569 = vmatpush1.msra.mxu0 0.0
    %2570 = vmatprep.subr.mxu0 0.0
    %2571 = vmatpush1.msra.mxu0 0.0
    %2572 = vmatprep.subr.mxu0 0.0
    %2573 = vmatpush1.msra.mxu0 0.0
    %2574 = vmatprep.subr.mxu0 0.0
    %2575 = vmatpush1.msra.mxu0 0.0
    %2576 = vmatprep.subr.mxu0 0.0
    %2577 = vmatpush1.msra.mxu0 0.0
    %2578 = vmatprep.subr.mxu0 0.0
    %2579 = vmatpush1.msra.mxu0 0.0
    %2580 = vmatprep.subr.mxu0 0.0
    %2581 = vmatpush1.msra.mxu0 0.0
    %2582 = vmatprep.subr.mxu0 0.0
    %2583 = vmatpush1.msra.mxu0 0.0
    %2584 = vmatprep.subr.mxu0 0.0
    %2585 = vmatpush1.msra.mxu0 0.0
    %2586 = vmatprep.subr.mxu0 0.0
    %2587 = vmatpush1.msra.mxu0 0.0
    %2588 = vmatprep.subr.mxu0 0.0
    %2589 = vmatpush1.msra.mxu0 0.0
    %2590 = vmatprep.subr.mxu0 0.0
    %2591 = vmatpush1.msra.mxu0 0.0
    %2592 = vmatprep.subr.mxu0 0.0
    %2593 = vmatpush1.msra.mxu0 0.0
    %2594 = vmatprep.subr.mxu0 0.0
    %2595 = vmatpush1.msra.mxu0 0.0
    %2596 = vmatprep.mubr.f32.mxu0 0.0
    %2597 = vmatmul.mubr.f32.gmra.mrb[0].mxu0 %v2530
    %v2598 = vpop.f32.mrb[0].mxu0
    %v2599 = vadd.f32 0.0, %v2598
    %v2600 = vpop.f32.mrb[0].mxu0
    %2601 = vdwg.mxu0
    %v2602 = vsel %vm1798, %v2599, 0.0
    %v2603 = vrot.slane %v2602, 4
    %v2604 = vadd.f32 %v2602, %v2603
    %v2605 = vrot.slane %v2604, 2
    %v2606 = vadd.f32 %v2604, %v2605
    %v2607 = vrot.slane %v2606, 1
    %v2608 = vadd.f32 %v2606, %v2607
    %v2609 = vmul.f32 %v2608, 0.055555556
    %v2610 = vld [vmem:[#allocation13] sm:$0x1]
    %v2611 = vadd.f32 %v2609, 1e-10
    %v2612 = vrsqrt.pop %v2611
    %v2613 = vmul.f32 %v2610, %v2612
    %v2615 = vsel %vm1807, %v2613, 0
    %2617 = vmatprep.subr.mxu0 0.0
    %2618 = vmatpush1.msra.mxu0 %v1723
    %2619 = vmatprep.subr.mxu0 0.0
    %2620 = vmatpush1.msra.mxu0 0.0
    %2621 = vmatprep.subr.mxu0 0.0
    %2622 = vmatpush1.msra.mxu0 0.0
    %2623 = vmatprep.subr.mxu0 0.0
    %2624 = vmatpush1.msra.mxu0 0.0
    %2625 = vmatprep.subr.mxu0 0.0
    %2626 = vmatpush1.msra.mxu0 0.0
    %2627 = vmatprep.subr.mxu0 0.0
    %2628 = vmatpush1.msra.mxu0 0.0
    %2629 = vmatprep.subr.mxu0 0.0
    %2630 = vmatpush1.msra.mxu0 0.0
    %2631 = vmatprep.subr.mxu0 0.0
    %2632 = vmatpush1.msra.mxu0 0.0
    %2633 = vmatprep.subr.mxu0 0.0
    %2634 = vmatpush1.msra.mxu0 0.0
    %2635 = vmatprep.subr.mxu0 0.0
    %2636 = vmatpush1.msra.mxu0 0.0
    %2637 = vmatprep.subr.mxu0 0.0
    %2638 = vmatpush1.msra.mxu0 0.0
    %2639 = vmatprep.subr.mxu0 0.0
    %2640 = vmatpush1.msra.mxu0 0.0
    %2641 = vmatprep.subr.mxu0 0.0
    %2642 = vmatpush1.msra.mxu0 0.0
    %2643 = vmatprep.subr.mxu0 0.0
    %2644 = vmatpush1.msra.mxu0 0.0
    %2645 = vmatprep.subr.mxu0 0.0
    %2646 = vmatpush1.msra.mxu0 0.0
    %2647 = vmatprep.subr.mxu0 0.0
    %2648 = vmatpush1.msra.mxu0 0.0
    %2649 = vmatprep.subr.mxu0 0.0
    %2650 = vmatpush1.msra.mxu0 0.0
    %2651 = vmatprep.subr.mxu0 0.0
    %2652 = vmatpush1.msra.mxu0 0.0
    %2653 = vmatprep.subr.mxu0 0.0
    %2654 = vmatpush1.msra.mxu0 0.0
    %2655 = vmatprep.subr.mxu0 0.0
    %2656 = vmatpush1.msra.mxu0 0.0
    %2657 = vmatprep.subr.mxu0 0.0
    %2658 = vmatpush1.msra.mxu0 0.0
    %2659 = vmatprep.subr.mxu0 0.0
    %2660 = vmatpush1.msra.mxu0 0.0
    %2661 = vmatprep.subr.mxu0 0.0
    %2662 = vmatpush1.msra.mxu0 0.0
    %2663 = vmatprep.subr.mxu0 0.0
    %2664 = vmatpush1.msra.mxu0 0.0
    %2665 = vmatprep.subr.mxu0 0.0
    %2666 = vmatpush1.msra.mxu0 0.0
    %2667 = vmatprep.subr.mxu0 0.0
    %2668 = vmatpush1.msra.mxu0 0.0
    %2669 = vmatprep.subr.mxu0 0.0
    %2670 = vmatpush1.msra.mxu0 0.0
    %2671 = vmatprep.subr.mxu0 0.0
    %2672 = vmatpush1.msra.mxu0 0.0
    %2673 = vmatprep.subr.mxu0 0.0
    %2674 = vmatpush1.msra.mxu0 0.0
    %2675 = vmatprep.subr.mxu0 0.0
    %2676 = vmatpush1.msra.mxu0 0.0
    %2677 = vmatprep.subr.mxu0 0.0
    %2678 = vmatpush1.msra.mxu0 0.0
    %2679 = vmatprep.subr.mxu0 0.0
    %2680 = vmatpush1.msra.mxu0 0.0
    %2681 = vmatprep.mubr.f32.mxu0 0.0
    %2682 = vmatmul.mubr.f32.gmra.mrb[0].mxu0 %v2615
    %v2683 = vpop.f32.mrb[0].mxu0
    %v2684 = vadd.f32 0.0, %v2683
    %v2685 = vpop.f32.mrb[0].mxu0
    %2686 = vdwg.mxu0
    %v2687 = vlaneseq
    %v2688 = vshrl.u32 %v2687, 7
    %v2689 = vsub.s32 0, %v2688
    %v2690 = vrot.slane %v2684, %v2689
    %v2691 = vmul.f32 %v2527, %v2690
    %v2692 = vld [vmem:[#allocation15] sm:$0x1]
    %v2694 = vsel %vm1807, %v2692, 0
    %2696 = vmatprep.subr.mxu0 0.0
    %2697 = vmatpush1.msra.mxu0 %v1723
    %2698 = vmatprep.subr.mxu0 0.0
    %2699 = vmatpush1.msra.mxu0 0.0
    %2700 = vmatprep.subr.mxu0 0.0
    %2701 = vmatpush1.msra.mxu0 0.0
    %2702 = vmatprep.subr.mxu0 0.0
    %2703 = vmatpush1.msra.mxu0 0.0
    %2704 = vmatprep.subr.mxu0 0.0
    %2705 = vmatpush1.msra.mxu0 0.0
    %2706 = vmatprep.subr.mxu0 0.0
    %2707 = vmatpush1.msra.mxu0 0.0
    %2708 = vmatprep.subr.mxu0 0.0
    %2709 = vmatpush1.msra.mxu0 0.0
    %2710 = vmatprep.subr.mxu0 0.0
    %2711 = vmatpush1.msra.mxu0 0.0
    %2712 = vmatprep.subr.mxu0 0.0
    %2713 = vmatpush1.msra.mxu0 0.0
    %2714 = vmatprep.subr.mxu0 0.0
    %2715 = vmatpush1.msra.mxu0 0.0
    %2716 = vmatprep.subr.mxu0 0.0
    %2717 = vmatpush1.msra.mxu0 0.0
    %2718 = vmatprep.subr.mxu0 0.0
    %2719 = vmatpush1.msra.mxu0 0.0
    %2720 = vmatprep.subr.mxu0 0.0
    %2721 = vmatpush1.msra.mxu0 0.0
    %2722 = vmatprep.subr.mxu0 0.0
    %2723 = vmatpush1.msra.mxu0 0.0
    %2724 = vmatprep.subr.mxu0 0.0
    %2725 = vmatpush1.msra.mxu0 0.0
    %2726 = vmatprep.subr.mxu0 0.0
    %2727 = vmatpush1.msra.mxu0 0.0
    %2728 = vmatprep.subr.mxu0 0.0
    %2729 = vmatpush1.msra.mxu0 0.0
    %2730 = vmatprep.subr.mxu0 0.0
    %2731 = vmatpush1.msra.mxu0 0.0
    %2732 = vmatprep.subr.mxu0 0.0
    %2733 = vmatpush1.msra.mxu0 0.0
    %2734 = vmatprep.subr.mxu0 0.0
    %2735 = vmatpush1.msra.mxu0 0.0
    %2736 = vmatprep.subr.mxu0 0.0
    %2737 = vmatpush1.msra.mxu0 0.0
    %2738 = vmatprep.subr.mxu0 0.0
    %2739 = vmatpush1.msra.mxu0 0.0
    %2740 = vmatprep.subr.mxu0 0.0
    %2741 = vmatpush1.msra.mxu0 0.0
    %2742 = vmatprep.subr.mxu0 0.0
    %2743 = vmatpush1.msra.mxu0 0.0
    %2744 = vmatprep.subr.mxu0 0.0
    %2745 = vmatpush1.msra.mxu0 0.0
    %2746 = vmatprep.subr.mxu0 0.0
    %2747 = vmatpush1.msra.mxu0 0.0
    %2748 = vmatprep.subr.mxu0 0.0
    %2749 = vmatpush1.msra.mxu0 0.0
    %2750 = vmatprep.subr.mxu0 0.0
    %2751 = vmatpush1.msra.mxu0 0.0
    %2752 = vmatprep.subr.mxu0 0.0
    %2753 = vmatpush1.msra.mxu0 0.0
    %2754 = vmatprep.subr.mxu0 0.0
    %2755 = vmatpush1.msra.mxu0 0.0
    %2756 = vmatprep.subr.mxu0 0.0
    %2757 = vmatpush1.msra.mxu0 0.0
    %2758 = vmatprep.subr.mxu0 0.0
    %2759 = vmatpush1.msra.mxu0 0.0
    %2760 = vmatprep.mubr.f32.mxu0 0.0
    %2761 = vmatmul.mubr.f32.gmra.mrb[0].mxu0 %v2694
    %v2762 = vpop.f32.mrb[0].mxu0
    %v2763 = vadd.f32 0.0, %v2762
    %v2764 = vpop.f32.mrb[0].mxu0
    %2765 = vdwg.mxu0
    %v2766 = vlaneseq
    %v2767 = vshrl.u32 %v2766, 7
    %v2768 = vsub.s32 0, %v2767
    %v2769 = vrot.slane %v2763, %v2768
    %v2770 = vadd.f32 %v2691, %v2769
    %v2771 = vmax.f32 %v2770, 0.0
    %v2772 = vpack.c.bf16 %v2771, %v2771
    %v2773 = vld [vmem:[#allocation16] sm:$0xff]
    %v2774 = vld [vmem:[#allocation16 + $0x8] sm:$0xf]
    %v2775 = vld [vmem:[#allocation16 + $0xc] sm:$0xff]
    %v2776 = vld [vmem:[#allocation16 + $0x14] sm:$0xf]
    %v2777 = vld [vmem:[#allocation16 + $0x18] sm:$0xff]
    %v2778 = vld [vmem:[#allocation16 + $0x20] sm:$0xf]
    %v2779 = vld [vmem:[#allocation16 + $0x24] sm:$0xff]
    %v2780 = vld [vmem:[#allocation16 + $0x2c] sm:$0xf]
    %v2781 = vld [vmem:[#allocation16 + $0x30] sm:$0xff]
    %v2782 = vld [vmem:[#allocation16 + $0x38] sm:$0xf]
    %v2783 = vld [vmem:[#allocation16 + $0x3c] sm:$0xff]
    %v2784 = vld [vmem:[#allocation16 + $0x44] sm:$0xf]
    %v2785 = vld [vmem:[#allocation16 + $0x48] sm:$0xff]
    %v2786 = vld [vmem:[#allocation16 + $0x50] sm:$0xf]
    %v2787 = vld [vmem:[#allocation16 + $0x54] sm:$0xff]
    %v2788 = vld [vmem:[#allocation16 + $0x5c] sm:$0xf]
    %v2789 = vld [vmem:[#allocation16 + $0x60] sm:$0xff]
    %v2790 = vld [vmem:[#allocation16 + $0x68] sm:$0xf]
    %v2791 = vld [vmem:[#allocation18] sm:$0xff]
    %v2792 = vld [vmem:[#allocation18 + $0x8] sm:$0xf]
    %v2793 = vld [vmem:[#allocation18 + $0xc] sm:$0xff]
    %v2794 = vld [vmem:[#allocation18 + $0x14] sm:$0xf]
    %v2795 = vld [vmem:[#allocation18 + $0x18] sm:$0xff]
    %v2796 = vld [vmem:[#allocation18 + $0x20] sm:$0xf]
    %v2797 = vld [vmem:[#allocation18 + $0x24] sm:$0xff]
    %v2798 = vld [vmem:[#allocation18 + $0x2c] sm:$0xf]
    %v2799 = vld [vmem:[#allocation18 + $0x30] sm:$0xff]
    %v2800 = vld [vmem:[#allocation18 + $0x38] sm:$0xf]
    %v2801 = vld [vmem:[#allocation18 + $0x3c] sm:$0xff]
    %v2802 = vld [vmem:[#allocation18 + $0x44] sm:$0xf]
    %v2803 = vld [vmem:[#allocation18 + $0x48] sm:$0xff]
    %v2804 = vld [vmem:[#allocation18 + $0x50] sm:$0xf]
    %v2805 = vld [vmem:[#allocation18 + $0x54] sm:$0xff]
    %v2806 = vld [vmem:[#allocation18 + $0x5c] sm:$0xf]
    %v2807 = vld [vmem:[#allocation18 + $0x60] sm:$0xff]
    %v2808 = vld [vmem:[#allocation18 + $0x68] sm:$0xf]
    %v2827 = vunpack.c.l.b16 %v2791
    %v2828 = vunpack.c.h.b16 %v2791
    %v2829 = vunpack.c.l.b16 %v2792
    %v2830 = vunpack.c.l.b16 %v2793
    %v2831 = vunpack.c.h.b16 %v2793
    %v2832 = vunpack.c.l.b16 %v2794
    %v2833 = vunpack.c.l.b16 %v2795
    %v2834 = vunpack.c.h.b16 %v2795
    %v2835 = vunpack.c.l.b16 %v2796
    %v2836 = vunpack.c.l.b16 %v2797
    %v2837 = vunpack.c.h.b16 %v2797
    %v2838 = vunpack.c.l.b16 %v2798
    %v2839 = vunpack.c.l.b16 %v2799
    %v2840 = vunpack.c.h.b16 %v2799
    %v2841 = vunpack.c.l.b16 %v2800
    %v2842 = vunpack.c.l.b16 %v2801
    %v2843 = vunpack.c.h.b16 %v2801
    %v2844 = vunpack.c.l.b16 %v2802
    %v2845 = vunpack.c.l.b16 %v2803
    %v2846 = vunpack.c.h.b16 %v2803
    %v2847 = vunpack.c.l.b16 %v2804
    %v2848 = vunpack.c.l.b16 %v2805
    %v2849 = vunpack.c.h.b16 %v2805
    %v2850 = vunpack.c.l.b16 %v2806
    %v2851 = vunpack.c.l.b16 %v2807
    %v2852 = vunpack.c.h.b16 %v2807
    %v2853 = vunpack.c.l.b16 %v2808
    %v2854 = vpack.c.b16 %v2830, %v2827
    %v2855 = vpack.c.b16 %v2831, %v2828
    %v2856 = vpack.c.b16 %v2832, %v2829
    %v2857 = vpack.c.b16 %v2836, %v2833
    %v2858 = vpack.c.b16 %v2837, %v2834
    %v2859 = vpack.c.b16 %v2838, %v2835
    %v2860 = vpack.c.b16 %v2842, %v2839
    %v2861 = vpack.c.b16 %v2843, %v2840
    %v2862 = vpack.c.b16 %v2844, %v2841
    %v2863 = vpack.c.b16 %v2848, %v2845
    %v2864 = vpack.c.b16 %v2849, %v2846
    %v2865 = vpack.c.b16 %v2850, %v2847
    %v2866 = vpack.c.b16 %v2851, %v2851
    %v2867 = vpack.c.b16 %v2852, %v2852
    %v2868 = vpack.c.b16 %v2853, %v2853
    %v2882 = vsel %vm352, %v2866, 0
    %v2885 = vsel %vm352, %v2867, 0
    %v2888 = vsel %vm352, %v2868, 0
    %2890 = vmatprep.subr.bf16.mxu0 %v2855
    %2891 = vmatpush1.bf16.msra.mxu0 %v2854
    %2892 = vmatprep.subr.bf16.mxu0 %v2858
    %2893 = vmatpush1.bf16.msra.mxu0 %v2857
    %2894 = vmatprep.subr.bf16.mxu0 %v2861
    %2895 = vmatpush1.bf16.msra.mxu0 %v2860
    %2896 = vmatprep.subr.bf16.mxu0 %v2864
    %2897 = vmatpush1.bf16.msra.mxu0 %v2863
    %2898 = vmatprep.subr.bf16.mxu0 %v2885
    %2899 = vmatpush1.bf16.msra.mxu0 %v2882
    %2900 = vmatprep.subr.bf16.mxu0 0
    %2901 = vmatpush1.bf16.msra.mxu0 0
    %2902 = vmatprep.subr.bf16.mxu0 0
    %2903 = vmatpush1.bf16.msra.mxu0 0
    %2904 = vmatprep.subr.bf16.mxu0 0
    %2905 = vmatpush1.bf16.msra.mxu0 0
    %2906 = vmatprep.subr.bf16.mxu0 0
    %2907 = vmatpush1.bf16.msra.mxu0 0
    %2908 = vmatprep.subr.bf16.mxu0 0
    %2909 = vmatpush1.bf16.msra.mxu0 0
    %2910 = vmatprep.subr.bf16.mxu0 0
    %2911 = vmatpush1.bf16.msra.mxu0 0
    %2912 = vmatprep.subr.bf16.mxu0 0
    %2913 = vmatpush1.bf16.msra.mxu0 0
    %2914 = vmatprep.subr.bf16.mxu0 0
    %2915 = vmatpush1.bf16.msra.mxu0 0
    %2916 = vmatprep.subr.bf16.mxu0 0
    %2917 = vmatpush1.bf16.msra.mxu0 0
    %2918 = vmatprep.subr.bf16.mxu0 0
    %2919 = vmatpush1.bf16.msra.mxu0 0
    %2920 = vmatprep.subr.bf16.mxu0 0
    %2921 = vmatpush1.bf16.msra.mxu0 0
    %2922 = vmatprep.mubr.bf16.mxu0 0
    %2923 = vmatmul.mubr.bf16.gmra.mrb[0].mxu0 %v2244
    %v2924 = vpop.f32.mrb[0].mxu0
    %v2925 = vadd.f32 0.0, %v2924
    %v2926 = vpop.f32.mrb[0].mxu0
    %v2927 = vadd.f32 0.0, %v2926
    %v2928 = vpop.f32.mrb[0].mxu0
    %v2929 = vpop.f32.mrb[0].mxu0
    %2930 = vdwg.mxu0
    %2931 = vmatprep.subr.bf16.mxu0 0
    %2932 = vmatpush1.bf16.msra.mxu0 %v2856
    %2933 = vmatprep.subr.bf16.mxu0 0
    %2934 = vmatpush1.bf16.msra.mxu0 %v2859
    %2935 = vmatprep.subr.bf16.mxu0 0
    %2936 = vmatpush1.bf16.msra.mxu0 %v2862
    %2937 = vmatprep.subr.bf16.mxu0 0
    %2938 = vmatpush1.bf16.msra.mxu0 %v2865
    %2939 = vmatprep.subr.bf16.mxu0 0
    %2940 = vmatpush1.bf16.msra.mxu0 %v2888
    %2941 = vmatprep.subr.bf16.mxu0 0
    %2942 = vmatpush1.bf16.msra.mxu0 0
    %2943 = vmatprep.subr.bf16.mxu0 0
    %2944 = vmatpush1.bf16.msra.mxu0 0
    %2945 = vmatprep.subr.bf16.mxu0 0
    %2946 = vmatpush1.bf16.msra.mxu0 0
    %2947 = vmatprep.subr.bf16.mxu0 0
    %2948 = vmatpush1.bf16.msra.mxu0 0
    %2949 = vmatprep.subr.bf16.mxu0 0
    %2950 = vmatpush1.bf16.msra.mxu0 0
    %2951 = vmatprep.subr.bf16.mxu0 0
    %2952 = vmatpush1.bf16.msra.mxu0 0
    %2953 = vmatprep.subr.bf16.mxu0 0
    %2954 = vmatpush1.bf16.msra.mxu0 0
    %2955 = vmatprep.subr.bf16.mxu0 0
    %2956 = vmatpush1.bf16.msra.mxu0 0
    %2957 = vmatprep.subr.bf16.mxu0 0
    %2958 = vmatpush1.bf16.msra.mxu0 0
    %2959 = vmatprep.subr.bf16.mxu0 0
    %2960 = vmatpush1.bf16.msra.mxu0 0
    %2961 = vmatprep.subr.bf16.mxu0 0
    %2962 = vmatpush1.bf16.msra.mxu0 0
    %2963 = vmatprep.mubr.bf16.mxu0 0
    %2964 = vmatmul.mubr.bf16.gmra.mrb[0].mxu0 %v2244
    %v2965 = vpop.f32.mrb[0].mxu0
    %v2966 = vadd.f32 0.0, %v2965
    %v2967 = vpop.f32.mrb[0].mxu0
    %v2968 = vpop.f32.mrb[0].mxu0
    %v2969 = vpop.f32.mrb[0].mxu0
    %2970 = vdwg.mxu0
    %v2989 = vunpack.c.l.b16 %v2773
    %v2990 = vunpack.c.h.b16 %v2773
    %v2991 = vunpack.c.l.b16 %v2774
    %v2992 = vunpack.c.l.b16 %v2775
    %v2993 = vunpack.c.h.b16 %v2775
    %v2994 = vunpack.c.l.b16 %v2776
    %v2995 = vunpack.c.l.b16 %v2777
    %v2996 = vunpack.c.h.b16 %v2777
    %v2997 = vunpack.c.l.b16 %v2778
    %v2998 = vunpack.c.l.b16 %v2779
    %v2999 = vunpack.c.h.b16 %v2779
    %v3000 = vunpack.c.l.b16 %v2780
    %v3001 = vunpack.c.l.b16 %v2781
    %v3002 = vunpack.c.h.b16 %v2781
    %v3003 = vunpack.c.l.b16 %v2782
    %v3004 = vunpack.c.l.b16 %v2783
    %v3005 = vunpack.c.h.b16 %v2783
    %v3006 = vunpack.c.l.b16 %v2784
    %v3007 = vunpack.c.l.b16 %v2785
    %v3008 = vunpack.c.h.b16 %v2785
    %v3009 = vunpack.c.l.b16 %v2786
    %v3010 = vunpack.c.l.b16 %v2787
    %v3011 = vunpack.c.h.b16 %v2787
    %v3012 = vunpack.c.l.b16 %v2788
    %v3013 = vunpack.c.l.b16 %v2789
    %v3014 = vunpack.c.h.b16 %v2789
    %v3015 = vunpack.c.l.b16 %v2790
    %v3016 = vpack.c.b16 %v2992, %v2989
    %v3017 = vpack.c.b16 %v2993, %v2990
    %v3018 = vpack.c.b16 %v2994, %v2991
    %v3019 = vpack.c.b16 %v2998, %v2995
    %v3020 = vpack.c.b16 %v2999, %v2996
    %v3021 = vpack.c.b16 %v3000, %v2997
    %v3022 = vpack.c.b16 %v3004, %v3001
    %v3023 = vpack.c.b16 %v3005, %v3002
    %v3024 = vpack.c.b16 %v3006, %v3003
    %v3025 = vpack.c.b16 %v3010, %v3007
    %v3026 = vpack.c.b16 %v3011, %v3008
    %v3027 = vpack.c.b16 %v3012, %v3009
    %v3028 = vpack.c.b16 %v3013, %v3013
    %v3029 = vpack.c.b16 %v3014, %v3014
    %v3030 = vpack.c.b16 %v3015, %v3015
    %v3044 = vsel %vm1724, %v2772, 0
    %v3047 = vsel %vm352, %v3028, 0
    %v3050 = vsel %vm352, %v3029, 0
    %v3053 = vsel %vm352, %v3030, 0
    %3055 = vmatprep.subr.bf16.mxu0 %v3017
    %3056 = vmatpush1.bf16.msra.mxu0 %v3016
    %3057 = vmatprep.subr.bf16.mxu0 %v3020
    %3058 = vmatpush1.bf16.msra.mxu0 %v3019
    %3059 = vmatprep.subr.bf16.mxu0 %v3023
    %3060 = vmatpush1.bf16.msra.mxu0 %v3022
    %3061 = vmatprep.subr.bf16.mxu0 %v3026
    %3062 = vmatpush1.bf16.msra.mxu0 %v3025
    %3063 = vmatprep.subr.bf16.mxu0 %v3050
    %3064 = vmatpush1.bf16.msra.mxu0 %v3047
    %3065 = vmatprep.subr.bf16.mxu0 0
    %3066 = vmatpush1.bf16.msra.mxu0 0
    %3067 = vmatprep.subr.bf16.mxu0 0
    %3068 = vmatpush1.bf16.msra.mxu0 0
    %3069 = vmatprep.subr.bf16.mxu0 0
    %3070 = vmatpush1.bf16.msra.mxu0 0
    %3071 = vmatprep.subr.bf16.mxu0 0
    %3072 = vmatpush1.bf16.msra.mxu0 0
    %3073 = vmatprep.subr.bf16.mxu0 0
    %3074 = vmatpush1.bf16.msra.mxu0 0
    %3075 = vmatprep.subr.bf16.mxu0 0
    %3076 = vmatpush1.bf16.msra.mxu0 0
    %3077 = vmatprep.subr.bf16.mxu0 0
    %3078 = vmatpush1.bf16.msra.mxu0 0
    %3079 = vmatprep.subr.bf16.mxu0 0
    %3080 = vmatpush1.bf16.msra.mxu0 0
    %3081 = vmatprep.subr.bf16.mxu0 0
    %3082 = vmatpush1.bf16.msra.mxu0 0
    %3083 = vmatprep.subr.bf16.mxu0 0
    %3084 = vmatpush1.bf16.msra.mxu0 0
    %3085 = vmatprep.subr.bf16.mxu0 0
    %3086 = vmatpush1.bf16.msra.mxu0 0
    %3087 = vmatprep.mubr.bf16.mxu0 0
    %3088 = vmatmul.mubr.bf16.gmra.mrb[0].mxu0 %v3044
    %v3089 = vpop.f32.mrb[0].mxu0
    %v3090 = vadd.f32 %v2925, %v3089
    %v3091 = vpop.f32.mrb[0].mxu0
    %v3092 = vadd.f32 %v2927, %v3091
    %v3093 = vpop.f32.mrb[0].mxu0
    %v3094 = vpop.f32.mrb[0].mxu0
    %3095 = vdwg.mxu0
    %3096 = vmatprep.subr.bf16.mxu0 0
    %3097 = vmatpush1.bf16.msra.mxu0 %v3018
    %3098 = vmatprep.subr.bf16.mxu0 0
    %3099 = vmatpush1.bf16.msra.mxu0 %v3021
    %3100 = vmatprep.subr.bf16.mxu0 0
    %3101 = vmatpush1.bf16.msra.mxu0 %v3024
    %3102 = vmatprep.subr.bf16.mxu0 0
    %3103 = vmatpush1.bf16.msra.mxu0 %v3027
    %3104 = vmatprep.subr.bf16.mxu0 0
    %3105 = vmatpush1.bf16.msra.mxu0 %v3053
    %3106 = vmatprep.subr.bf16.mxu0 0
    %3107 = vmatpush1.bf16.msra.mxu0 0
    %3108 = vmatprep.subr.bf16.mxu0 0
    %3109 = vmatpush1.bf16.msra.mxu0 0
    %3110 = vmatprep.subr.bf16.mxu0 0
    %3111 = vmatpush1.bf16.msra.mxu0 0
    %3112 = vmatprep.subr.bf16.mxu0 0
    %3113 = vmatpush1.bf16.msra.mxu0 0
    %3114 = vmatprep.subr.bf16.mxu0 0
    %3115 = vmatpush1.bf16.msra.mxu0 0
    %3116 = vmatprep.subr.bf16.mxu0 0
    %3117 = vmatpush1.bf16.msra.mxu0 0
    %3118 = vmatprep.subr.bf16.mxu0 0
    %3119 = vmatpush1.bf16.msra.mxu0 0
    %3120 = vmatprep.subr.bf16.mxu0 0
    %3121 = vmatpush1.bf16.msra.mxu0 0
    %3122 = vmatprep.subr.bf16.mxu0 0
    %3123 = vmatpush1.bf16.msra.mxu0 0
    %3124 = vmatprep.subr.bf16.mxu0 0
    %3125 = vmatpush1.bf16.msra.mxu0 0
    %3126 = vmatprep.subr.bf16.mxu0 0
    %3127 = vmatpush1.bf16.msra.mxu0 0
    %3128 = vmatprep.mubr.bf16.mxu0 0
    %3129 = vmatmul.mubr.bf16.gmra.mrb[0].mxu0 %v3044
    %v3130 = vpop.f32.mrb[0].mxu0
    %v3131 = vadd.f32 %v2966, %v3130
    %v3132 = vpop.f32.mrb[0].mxu0
    %v3133 = vpop.f32.mrb[0].mxu0
    %v3134 = vpop.f32.mrb[0].mxu0
    %3135 = vdwg.mxu0
    %v3136 = vld [vmem:[%s57] sm:$0xff]
    %v3137 = vld [vmem:[%s57 + $0x8] sm:$0xff]
    %v3138 = vld [vmem:[%s57 + $0x10] sm:$0xff]
    %v3139 = vld [vmem:[%s57 + $0x18] sm:$0xff]
    %v3140 = vld [vmem:[%s57 + $0x20] sm:$0xff]
    %v3141 = vld [vmem:[%s57 + $0x28] sm:$0xff]
    %v3142 = vld [vmem:[%s57 + $0x30] sm:$0xff]
    %v3143 = vld [vmem:[%s57 + $0x38] sm:$0xff]
    %v3144 = vld [vmem:[%s57 + $0x40] sm:$0xff]
    %v3145 = vld [vmem:[%s57 + $0x48] sm:$0xff]
    %v3146 = vld [vmem:[%s57 + $0x50] sm:$0xff]
    %v3147 = vld [vmem:[%s57 + $0x58] sm:$0xff]
    %v3148 = vld [vmem:[%s57 + $0x60] sm:$0xff]
    %v3149 = vld [vmem:[%s57 + $0x68] sm:$0xff]
    %v3150 = vld [vmem:[%s57 + $0x70] sm:$0xff]
    %v3151 = vld [vmem:[%s57 + $0x78] sm:$0xff]
    %v3152 = vld [vmem:[%s57 + $0x80] sm:$0xff]
    %v3153 = vld [vmem:[%s57 + $0x88] sm:$0xff]
    %v3154 = vld [vmem:[%s57 + $0x90] sm:$0xff]
    %v3155 = vld [vmem:[%s57 + $0x98] sm:$0xff]
    %v3156 = vld [vmem:[%s57 + $0xa0] sm:$0xff]
    %v3157 = vld [vmem:[%s57 + $0xa8] sm:$0xff]
    %v3158 = vld [vmem:[%s57 + $0xb0] sm:$0xff]
    %v3159 = vld [vmem:[%s57 + $0xb8] sm:$0xff]
    %v3160 = vld [vmem:[%s57 + $0xc0] sm:$0xff]
    %v3161 = vld [vmem:[%s57 + $0xc8] sm:$0xff]
    %v3162 = vld [vmem:[%s57 + $0xd0] sm:$0xff]
    %v3163 = vld [vmem:[%s57 + $0xd8] sm:$0xff]
    %v3164 = vld [vmem:[%s57 + $0xe0] sm:$0xff]
    %v3165 = vld [vmem:[%s57 + $0xe8] sm:$0xff]
    %v3166 = vld [vmem:[%s57 + $0xf0] sm:$0xff]
    %v3167 = vld [vmem:[%s57 + $0xf8] sm:$0xff]
    %v3168 = vld [vmem:[%s57 + $0x100] sm:$0xff]
    %v3169 = vld [vmem:[%s57 + $0x108] sm:$0xff]
    %v3170 = vld [vmem:[%s57 + $0x110] sm:$0xff]
    %v3171 = vld [vmem:[%s57 + $0x118] sm:$0xff]
    %v3172 = vld [vmem:[%s59] sm:$0xff]
    %v3173 = vld [vmem:[%s59 + $0x8] sm:$0xff]
    %v3174 = vld [vmem:[%s59 + $0x10] sm:$0xff]
    %v3176 = vsel %vm1630, %v3131, 0
    %3178 = vmatprep.subr.mxu0 0.0
    %3179 = vmatpush1.msra.mxu0 %v3136
    %3180 = vmatprep.subr.mxu0 0.0
    %3181 = vmatpush1.msra.mxu0 %v3137
    %3182 = vmatprep.subr.mxu0 0.0
    %3183 = vmatpush1.msra.mxu0 %v3138
    %3184 = vmatprep.subr.mxu0 0.0
    %3185 = vmatpush1.msra.mxu0 %v3139
    %3186 = vmatprep.subr.mxu0 0.0
    %3187 = vmatpush1.msra.mxu0 %v3140
    %3188 = vmatprep.subr.mxu0 0.0
    %3189 = vmatpush1.msra.mxu0 %v3141
    %3190 = vmatprep.subr.mxu0 0.0
    %3191 = vmatpush1.msra.mxu0 %v3142
    %3192 = vmatprep.subr.mxu0 0.0
    %3193 = vmatpush1.msra.mxu0 %v3143
    %3194 = vmatprep.subr.mxu0 0.0
    %3195 = vmatpush1.msra.mxu0 %v3144
    %3196 = vmatprep.subr.mxu0 0.0
    %3197 = vmatpush1.msra.mxu0 %v3145
    %3198 = vmatprep.subr.mxu0 0.0
    %3199 = vmatpush1.msra.mxu0 %v3146
    %3200 = vmatprep.subr.mxu0 0.0
    %3201 = vmatpush1.msra.mxu0 %v3147
    %3202 = vmatprep.subr.mxu0 0.0
    %3203 = vmatpush1.msra.mxu0 %v3148
    %3204 = vmatprep.subr.mxu0 0.0
    %3205 = vmatpush1.msra.mxu0 %v3149
    %3206 = vmatprep.subr.mxu0 0.0
    %3207 = vmatpush1.msra.mxu0 %v3150
    %3208 = vmatprep.subr.mxu0 0.0
    %3209 = vmatpush1.msra.mxu0 %v3151
    %3210 = vmatprep.subr.mxu0 0.0
    %3211 = vmatpush1.msra.mxu0 %v3152
    %3212 = vmatprep.subr.mxu0 0.0
    %3213 = vmatpush1.msra.mxu0 %v3153
    %3214 = vmatprep.subr.mxu0 0.0
    %3215 = vmatpush1.msra.mxu0 %v3154
    %3216 = vmatprep.subr.mxu0 0.0
    %3217 = vmatpush1.msra.mxu0 %v3155
    %3218 = vmatprep.subr.mxu0 0.0
    %3219 = vmatpush1.msra.mxu0 %v3156
    %3220 = vmatprep.subr.mxu0 0.0
    %3221 = vmatpush1.msra.mxu0 %v3157
    %3222 = vmatprep.subr.mxu0 0.0
    %3223 = vmatpush1.msra.mxu0 %v3158
    %3224 = vmatprep.subr.mxu0 0.0
    %3225 = vmatpush1.msra.mxu0 %v3159
    %3226 = vmatprep.subr.mxu0 0.0
    %3227 = vmatpush1.msra.mxu0 %v3160
    %3228 = vmatprep.subr.mxu0 0.0
    %3229 = vmatpush1.msra.mxu0 %v3161
    %3230 = vmatprep.subr.mxu0 0.0
    %3231 = vmatpush1.msra.mxu0 %v3162
    %3232 = vmatprep.subr.mxu0 0.0
    %3233 = vmatpush1.msra.mxu0 %v3163
    %3234 = vmatprep.subr.mxu0 0.0
    %3235 = vmatpush1.msra.mxu0 %v3164
    %3236 = vmatprep.subr.mxu0 0.0
    %3237 = vmatpush1.msra.mxu0 %v3165
    %3238 = vmatprep.subr.mxu0 0.0
    %3239 = vmatpush1.msra.mxu0 %v3166
    %3240 = vmatprep.subr.mxu0 0.0
    %3241 = vmatpush1.msra.mxu0 %v3167
    %3242 = vmatprep.mubr.f32.mxu0 %v3092
    %3243 = vmatmul.mubr.f32.gmra.mrb[0].mxu0 %v3090
    %v3244 = vpop.f32.mrb[0].mxu0
    %v3245 = vadd.f32 0.0, %v3244
    %v3246 = vpop.f32.mrb[0].mxu0
    %3247 = vdwg.mxu0
    %3248 = vmatprep.subr.mxu0 0.0
    %3249 = vmatpush1.msra.mxu0 %v3168
    %3250 = vmatprep.subr.mxu0 0.0
    %3251 = vmatpush1.msra.mxu0 %v3169
    %3252 = vmatprep.subr.mxu0 0.0
    %3253 = vmatpush1.msra.mxu0 %v3170
    %3254 = vmatprep.subr.mxu0 0.0
    %3255 = vmatpush1.msra.mxu0 %v3171
    %3256 = vmatprep.subr.mxu0 0.0
    %3257 = vmatpush1.msra.mxu0 0.0
    %3258 = vmatprep.subr.mxu0 0.0
    %3259 = vmatpush1.msra.mxu0 0.0
    %3260 = vmatprep.subr.mxu0 0.0
    %3261 = vmatpush1.msra.mxu0 0.0
    %3262 = vmatprep.subr.mxu0 0.0
    %3263 = vmatpush1.msra.mxu0 0.0
    %3264 = vmatprep.subr.mxu0 0.0
    %3265 = vmatpush1.msra.mxu0 0.0
    %3266 = vmatprep.subr.mxu0 0.0
    %3267 = vmatpush1.msra.mxu0 0.0
    %3268 = vmatprep.subr.mxu0 0.0
    %3269 = vmatpush1.msra.mxu0 0.0
    %3270 = vmatprep.subr.mxu0 0.0
    %3271 = vmatpush1.msra.mxu0 0.0
    %3272 = vmatprep.subr.mxu0 0.0
    %3273 = vmatpush1.msra.mxu0 0.0
    %3274 = vmatprep.subr.mxu0 0.0
    %3275 = vmatpush1.msra.mxu0 0.0
    %3276 = vmatprep.subr.mxu0 0.0
    %3277 = vmatpush1.msra.mxu0 0.0
    %3278 = vmatprep.subr.mxu0 0.0
    %3279 = vmatpush1.msra.mxu0 0.0
    %3280 = vmatprep.subr.mxu0 0.0
    %3281 = vmatpush1.msra.mxu0 0.0
    %3282 = vmatprep.subr.mxu0 0.0
    %3283 = vmatpush1.msra.mxu0 0.0
    %3284 = vmatprep.subr.mxu0 0.0
    %3285 = vmatpush1.msra.mxu0 0.0
    %3286 = vmatprep.subr.mxu0 0.0
    %3287 = vmatpush1.msra.mxu0 0.0
    %3288 = vmatprep.subr.mxu0 0.0
    %3289 = vmatpush1.msra.mxu0 0.0
    %3290 = vmatprep.subr.mxu0 0.0
    %3291 = vmatpush1.msra.mxu0 0.0
    %3292 = vmatprep.subr.mxu0 0.0
    %3293 = vmatpush1.msra.mxu0 0.0
    %3294 = vmatprep.subr.mxu0 0.0
    %3295 = vmatpush1.msra.mxu0 0.0
    %3296 = vmatprep.subr.mxu0 0.0
    %3297 = vmatpush1.msra.mxu0 0.0
    %3298 = vmatprep.subr.mxu0 0.0
    %3299 = vmatpush1.msra.mxu0 0.0
    %3300 = vmatprep.subr.mxu0 0.0
    %3301 = vmatpush1.msra.mxu0 0.0
    %3302 = vmatprep.subr.mxu0 0.0
    %3303 = vmatpush1.msra.mxu0 0.0
    %3304 = vmatprep.subr.mxu0 0.0
    %3305 = vmatpush1.msra.mxu0 0.0
    %3306 = vmatprep.subr.mxu0 0.0
    %3307 = vmatpush1.msra.mxu0 0.0
    %3308 = vmatprep.subr.mxu0 0.0
    %3309 = vmatpush1.msra.mxu0 0.0
    %3310 = vmatprep.subr.mxu0 0.0
    %3311 = vmatpush1.msra.mxu0 0.0
    %3312 = vmatprep.mubr.f32.mxu0 0.0
    %3313 = vmatmul.mubr.f32.gmra.mrb[0].mxu0 %v3176
    %v3314 = vpop.f32.mrb[0].mxu0
    %v3315 = vadd.f32 %v3245, %v3314
    %v3316 = vpop.f32.mrb[0].mxu0
    %3317 = vdwg.mxu0
    %v3318 = vsel %vm1798, %v3315, 0.0
    %v3319 = vrot.slane %v3318, 4
    %v3320 = vadd.f32 %v3318, %v3319
    %v3321 = vrot.slane %v3320, 2
    %v3322 = vadd.f32 %v3320, %v3321
    %v3323 = vrot.slane %v3322, 1
    %v3324 = vadd.f32 %v3322, %v3323
    %v3325 = vmul.f32 %v3324, 0.013888889
    %v3327 = vsel %vm1807, %v3325, 0
    %3329 = vmatprep.subr.mxu0 %v3173
    %3330 = vmatpush1.msra.mxu0 %v3172
    %3331 = vmatprep.subr.mxu0 0.0
    %3332 = vmatpush1.msra.mxu0 0.0
    %3333 = vmatprep.subr.mxu0 0.0
    %3334 = vmatpush1.msra.mxu0 0.0
    %3335 = vmatprep.subr.mxu0 0.0
    %3336 = vmatpush1.msra.mxu0 0.0
    %3337 = vmatprep.subr.mxu0 0.0
    %3338 = vmatpush1.msra.mxu0 0.0
    %3339 = vmatprep.subr.mxu0 0.0
    %3340 = vmatpush1.msra.mxu0 0.0
    %3341 = vmatprep.subr.mxu0 0.0
    %3342 = vmatpush1.msra.mxu0 0.0
    %3343 = vmatprep.subr.mxu0 0.0
    %3344 = vmatpush1.msra.mxu0 0.0
    %3345 = vmatprep.subr.mxu0 0.0
    %3346 = vmatpush1.msra.mxu0 0.0
    %3347 = vmatprep.subr.mxu0 0.0
    %3348 = vmatpush1.msra.mxu0 0.0
    %3349 = vmatprep.subr.mxu0 0.0
    %3350 = vmatpush1.msra.mxu0 0.0
    %3351 = vmatprep.subr.mxu0 0.0
    %3352 = vmatpush1.msra.mxu0 0.0
    %3353 = vmatprep.subr.mxu0 0.0
    %3354 = vmatpush1.msra.mxu0 0.0
    %3355 = vmatprep.subr.mxu0 0.0
    %3356 = vmatpush1.msra.mxu0 0.0
    %3357 = vmatprep.subr.mxu0 0.0
    %3358 = vmatpush1.msra.mxu0 0.0
    %3359 = vmatprep.subr.mxu0 0.0
    %3360 = vmatpush1.msra.mxu0 0.0
    %3361 = vmatprep.subr.mxu0 0.0
    %3362 = vmatpush1.msra.mxu0 0.0
    %3363 = vmatprep.subr.mxu0 0.0
    %3364 = vmatpush1.msra.mxu0 0.0
    %3365 = vmatprep.subr.mxu0 0.0
    %3366 = vmatpush1.msra.mxu0 0.0
    %3367 = vmatprep.subr.mxu0 0.0
    %3368 = vmatpush1.msra.mxu0 0.0
    %3369 = vmatprep.subr.mxu0 0.0
    %3370 = vmatpush1.msra.mxu0 0.0
    %3371 = vmatprep.subr.mxu0 0.0
    %3372 = vmatpush1.msra.mxu0 0.0
    %3373 = vmatprep.subr.mxu0 0.0
    %3374 = vmatpush1.msra.mxu0 0.0
    %3375 = vmatprep.subr.mxu0 0.0
    %3376 = vmatpush1.msra.mxu0 0.0
    %3377 = vmatprep.subr.mxu0 0.0
    %3378 = vmatpush1.msra.mxu0 0.0
    %3379 = vmatprep.subr.mxu0 0.0
    %3380 = vmatpush1.msra.mxu0 0.0
    %3381 = vmatprep.subr.mxu0 0.0
    %3382 = vmatpush1.msra.mxu0 0.0
    %3383 = vmatprep.subr.mxu0 0.0
    %3384 = vmatpush1.msra.mxu0 0.0
    %3385 = vmatprep.subr.mxu0 0.0
    %3386 = vmatpush1.msra.mxu0 0.0
    %3387 = vmatprep.subr.mxu0 0.0
    %3388 = vmatpush1.msra.mxu0 0.0
    %3389 = vmatprep.subr.mxu0 0.0
    %3390 = vmatpush1.msra.mxu0 0.0
    %3391 = vmatprep.subr.mxu0 0.0
    %3392 = vmatpush1.msra.mxu0 0.0
    %3393 = vmatprep.mubr.f32.mxu0 0.0
    %3394 = vmatmul.mubr.f32.gmra.mrb[0].mxu0 %v3327
    %v3395 = vpop.f32.mrb[0].mxu0
    %v3396 = vadd.f32 0.0, %v3395
    %v3397 = vpop.f32.mrb[0].mxu0
    %v3398 = vadd.f32 0.0, %v3397
    %3399 = vdwg.mxu0
    %3400 = vmatprep.subr.mxu0 0.0
    %3401 = vmatpush1.msra.mxu0 %v3174
    %3402 = vmatprep.subr.mxu0 0.0
    %3403 = vmatpush1.msra.mxu0 0.0
    %3404 = vmatprep.subr.mxu0 0.0
    %3405 = vmatpush1.msra.mxu0 0.0
    %3406 = vmatprep.subr.mxu0 0.0
    %3407 = vmatpush1.msra.mxu0 0.0
    %3408 = vmatprep.subr.mxu0 0.0
    %3409 = vmatpush1.msra.mxu0 0.0
    %3410 = vmatprep.subr.mxu0 0.0
    %3411 = vmatpush1.msra.mxu0 0.0
    %3412 = vmatprep.subr.mxu0 0.0
    %3413 = vmatpush1.msra.mxu0 0.0
    %3414 = vmatprep.subr.mxu0 0.0
    %3415 = vmatpush1.msra.mxu0 0.0
    %3416 = vmatprep.subr.mxu0 0.0
    %3417 = vmatpush1.msra.mxu0 0.0
    %3418 = vmatprep.subr.mxu0 0.0
    %3419 = vmatpush1.msra.mxu0 0.0
    %3420 = vmatprep.subr.mxu0 0.0
    %3421 = vmatpush1.msra.mxu0 0.0
    %3422 = vmatprep.subr.mxu0 0.0
    %3423 = vmatpush1.msra.mxu0 0.0
    %3424 = vmatprep.subr.mxu0 0.0
    %3425 = vmatpush1.msra.mxu0 0.0
    %3426 = vmatprep.subr.mxu0 0.0
    %3427 = vmatpush1.msra.mxu0 0.0
    %3428 = vmatprep.subr.mxu0 0.0
    %3429 = vmatpush1.msra.mxu0 0.0
    %3430 = vmatprep.subr.mxu0 0.0
    %3431 = vmatpush1.msra.mxu0 0.0
    %3432 = vmatprep.subr.mxu0 0.0
    %3433 = vmatpush1.msra.mxu0 0.0
    %3434 = vmatprep.subr.mxu0 0.0
    %3435 = vmatpush1.msra.mxu0 0.0
    %3436 = vmatprep.subr.mxu0 0.0
    %3437 = vmatpush1.msra.mxu0 0.0
    %3438 = vmatprep.subr.mxu0 0.0
    %3439 = vmatpush1.msra.mxu0 0.0
    %3440 = vmatprep.subr.mxu0 0.0
    %3441 = vmatpush1.msra.mxu0 0.0
    %3442 = vmatprep.subr.mxu0 0.0
    %3443 = vmatpush1.msra.mxu0 0.0
    %3444 = vmatprep.subr.mxu0 0.0
    %3445 = vmatpush1.msra.mxu0 0.0
    %3446 = vmatprep.subr.mxu0 0.0
    %3447 = vmatpush1.msra.mxu0 0.0
    %3448 = vmatprep.subr.mxu0 0.0
    %3449 = vmatpush1.msra.mxu0 0.0
    %3450 = vmatprep.subr.mxu0 0.0
    %3451 = vmatpush1.msra.mxu0 0.0
    %3452 = vmatprep.subr.mxu0 0.0
    %3453 = vmatpush1.msra.mxu0 0.0
    %3454 = vmatprep.subr.mxu0 0.0
    %3455 = vmatpush1.msra.mxu0 0.0
    %3456 = vmatprep.subr.mxu0 0.0
    %3457 = vmatpush1.msra.mxu0 0.0
    %3458 = vmatprep.subr.mxu0 0.0
    %3459 = vmatpush1.msra.mxu0 0.0
    %3460 = vmatprep.subr.mxu0 0.0
    %3461 = vmatpush1.msra.mxu0 0.0
    %3462 = vmatprep.subr.mxu0 0.0
    %3463 = vmatpush1.msra.mxu0 0.0
    %3464 = vmatprep.mubr.f32.mxu0 0.0
    %3465 = vmatmul.mubr.f32.gmra.mrb[0].mxu0 %v3327
    %v3466 = vpop.f32.mrb[0].mxu0
    %v3467 = vadd.f32 0.0, %v3466
    %v3468 = vpop.f32.mrb[0].mxu0
    %3469 = vdwg.mxu0
    %v3470 = vlaneseq
    %v3471 = vshrl.u32 %v3470, 7
    %v3472 = vsub.s32 0, %v3471
    %v3473 = vrot.slane %v3396, %v3472
    %v3474 = vlaneseq
    %v3475 = vshrl.u32 %v3474, 7
    %v3476 = vsub.s32 0, %v3475
    %v3477 = vrot.slane %v3398, %v3476
    %v3478 = vlaneseq
    %v3479 = vshrl.u32 %v3478, 7
    %v3480 = vsub.s32 0, %v3479
    %v3481 = vrot.slane %v3467, %v3480
    %v3482 = vsub.f32 %v3090, %v3473
    %v3483 = vsub.f32 %v3092, %v3477
    %v3484 = vsub.f32 %v3131, %v3481
    %v3485 = vmul.f32 %v3482, %v3482
    %v3486 = vmul.f32 %v3483, %v3483
    %v3487 = vmul.f32 %v3484, %v3484
    %v3489 = vsel %vm1630, %v3487, 0
    %3491 = vmatprep.subr.mxu0 0.0
    %3492 = vmatpush1.msra.mxu0 %v3136
    %3493 = vmatprep.subr.mxu0 0.0
    %3494 = vmatpush1.msra.mxu0 %v3137
    %3495 = vmatprep.subr.mxu0 0.0
    %3496 = vmatpush1.msra.mxu0 %v3138
    %3497 = vmatprep.subr.mxu0 0.0
    %3498 = vmatpush1.msra.mxu0 %v3139
    %3499 = vmatprep.subr.mxu0 0.0
    %3500 = vmatpush1.msra.mxu0 %v3140
    %3501 = vmatprep.subr.mxu0 0.0
    %3502 = vmatpush1.msra.mxu0 %v3141
    %3503 = vmatprep.subr.mxu0 0.0
    %3504 = vmatpush1.msra.mxu0 %v3142
    %3505 = vmatprep.subr.mxu0 0.0
    %3506 = vmatpush1.msra.mxu0 %v3143
    %3507 = vmatprep.subr.mxu0 0.0
    %3508 = vmatpush1.msra.mxu0 %v3144
    %3509 = vmatprep.subr.mxu0 0.0
    %3510 = vmatpush1.msra.mxu0 %v3145
    %3511 = vmatprep.subr.mxu0 0.0
    %3512 = vmatpush1.msra.mxu0 %v3146
    %3513 = vmatprep.subr.mxu0 0.0
    %3514 = vmatpush1.msra.mxu0 %v3147
    %3515 = vmatprep.subr.mxu0 0.0
    %3516 = vmatpush1.msra.mxu0 %v3148
    %3517 = vmatprep.subr.mxu0 0.0
    %3518 = vmatpush1.msra.mxu0 %v3149
    %3519 = vmatprep.subr.mxu0 0.0
    %3520 = vmatpush1.msra.mxu0 %v3150
    %3521 = vmatprep.subr.mxu0 0.0
    %3522 = vmatpush1.msra.mxu0 %v3151
    %3523 = vmatprep.subr.mxu0 0.0
    %3524 = vmatpush1.msra.mxu0 %v3152
    %3525 = vmatprep.subr.mxu0 0.0
    %3526 = vmatpush1.msra.mxu0 %v3153
    %3527 = vmatprep.subr.mxu0 0.0
    %3528 = vmatpush1.msra.mxu0 %v3154
    %3529 = vmatprep.subr.mxu0 0.0
    %3530 = vmatpush1.msra.mxu0 %v3155
    %3531 = vmatprep.subr.mxu0 0.0
    %3532 = vmatpush1.msra.mxu0 %v3156
    %3533 = vmatprep.subr.mxu0 0.0
    %3534 = vmatpush1.msra.mxu0 %v3157
    %3535 = vmatprep.subr.mxu0 0.0
    %3536 = vmatpush1.msra.mxu0 %v3158
    %3537 = vmatprep.subr.mxu0 0.0
    %3538 = vmatpush1.msra.mxu0 %v3159
    %3539 = vmatprep.subr.mxu0 0.0
    %3540 = vmatpush1.msra.mxu0 %v3160
    %3541 = vmatprep.subr.mxu0 0.0
    %3542 = vmatpush1.msra.mxu0 %v3161
    %3543 = vmatprep.subr.mxu0 0.0
    %3544 = vmatpush1.msra.mxu0 %v3162
    %3545 = vmatprep.subr.mxu0 0.0
    %3546 = vmatpush1.msra.mxu0 %v3163
    %3547 = vmatprep.subr.mxu0 0.0
    %3548 = vmatpush1.msra.mxu0 %v3164
    %3549 = vmatprep.subr.mxu0 0.0
    %3550 = vmatpush1.msra.mxu0 %v3165
    %3551 = vmatprep.subr.mxu0 0.0
    %3552 = vmatpush1.msra.mxu0 %v3166
    %3553 = vmatprep.subr.mxu0 0.0
    %3554 = vmatpush1.msra.mxu0 %v3167
    %3555 = vmatprep.mubr.f32.mxu0 %v3486
    %3556 = vmatmul.mubr.f32.gmra.mrb[0].mxu0 %v3485
    %v3557 = vpop.f32.mrb[0].mxu0
    %v3558 = vadd.f32 0.0, %v3557
    %v3559 = vpop.f32.mrb[0].mxu0
    %3560 = vdwg.mxu0
    %3561 = vmatprep.subr.mxu0 0.0
    %3562 = vmatpush1.msra.mxu0 %v3168
    %3563 = vmatprep.subr.mxu0 0.0
    %3564 = vmatpush1.msra.mxu0 %v3169
    %3565 = vmatprep.subr.mxu0 0.0
    %3566 = vmatpush1.msra.mxu0 %v3170
    %3567 = vmatprep.subr.mxu0 0.0
    %3568 = vmatpush1.msra.mxu0 %v3171
    %3569 = vmatprep.subr.mxu0 0.0
    %3570 = vmatpush1.msra.mxu0 0.0
    %3571 = vmatprep.subr.mxu0 0.0
    %3572 = vmatpush1.msra.mxu0 0.0
    %3573 = vmatprep.subr.mxu0 0.0
    %3574 = vmatpush1.msra.mxu0 0.0
    %3575 = vmatprep.subr.mxu0 0.0
    %3576 = vmatpush1.msra.mxu0 0.0
    %3577 = vmatprep.subr.mxu0 0.0
    %3578 = vmatpush1.msra.mxu0 0.0
    %3579 = vmatprep.subr.mxu0 0.0
    %3580 = vmatpush1.msra.mxu0 0.0
    %3581 = vmatprep.subr.mxu0 0.0
    %3582 = vmatpush1.msra.mxu0 0.0
    %3583 = vmatprep.subr.mxu0 0.0
    %3584 = vmatpush1.msra.mxu0 0.0
    %3585 = vmatprep.subr.mxu0 0.0
    %3586 = vmatpush1.msra.mxu0 0.0
    %3587 = vmatprep.subr.mxu0 0.0
    %3588 = vmatpush1.msra.mxu0 0.0
    %3589 = vmatprep.subr.mxu0 0.0
    %3590 = vmatpush1.msra.mxu0 0.0
    %3591 = vmatprep.subr.mxu0 0.0
    %3592 = vmatpush1.msra.mxu0 0.0
    %3593 = vmatprep.subr.mxu0 0.0
    %3594 = vmatpush1.msra.mxu0 0.0
    %3595 = vmatprep.subr.mxu0 0.0
    %3596 = vmatpush1.msra.mxu0 0.0
    %3597 = vmatprep.subr.mxu0 0.0
    %3598 = vmatpush1.msra.mxu0 0.0
    %3599 = vmatprep.subr.mxu0 0.0
    %3600 = vmatpush1.msra.mxu0 0.0
    %3601 = vmatprep.subr.mxu0 0.0
    %3602 = vmatpush1.msra.mxu0 0.0
    %3603 = vmatprep.subr.mxu0 0.0
    %3604 = vmatpush1.msra.mxu0 0.0
    %3605 = vmatprep.subr.mxu0 0.0
    %3606 = vmatpush1.msra.mxu0 0.0
    %3607 = vmatprep.subr.mxu0 0.0
    %3608 = vmatpush1.msra.mxu0 0.0
    %3609 = vmatprep.subr.mxu0 0.0
    %3610 = vmatpush1.msra.mxu0 0.0
    %3611 = vmatprep.subr.mxu0 0.0
    %3612 = vmatpush1.msra.mxu0 0.0
    %3613 = vmatprep.subr.mxu0 0.0
    %3614 = vmatpush1.msra.mxu0 0.0
    %3615 = vmatprep.subr.mxu0 0.0
    %3616 = vmatpush1.msra.mxu0 0.0
    %3617 = vmatprep.subr.mxu0 0.0
    %3618 = vmatpush1.msra.mxu0 0.0
    %3619 = vmatprep.subr.mxu0 0.0
    %3620 = vmatpush1.msra.mxu0 0.0
    %3621 = vmatprep.subr.mxu0 0.0
    %3622 = vmatpush1.msra.mxu0 0.0
    %3623 = vmatprep.subr.mxu0 0.0
    %3624 = vmatpush1.msra.mxu0 0.0
    %3625 = vmatprep.mubr.f32.mxu0 0.0
    %3626 = vmatmul.mubr.f32.gmra.mrb[0].mxu0 %v3489
    %v3627 = vpop.f32.mrb[0].mxu0
    %v3628 = vadd.f32 %v3558, %v3627
    %v3629 = vpop.f32.mrb[0].mxu0
    %3630 = vdwg.mxu0
    %v3631 = vsel %vm1798, %v3628, 0.0
    %v3632 = vrot.slane %v3631, 4
    %v3633 = vadd.f32 %v3631, %v3632
    %v3634 = vrot.slane %v3633, 2
    %v3635 = vadd.f32 %v3633, %v3634
    %v3636 = vrot.slane %v3635, 1
    %v3637 = vadd.f32 %v3635, %v3636
    %v3638 = vmul.f32 %v3637, 0.013888889
    %v3639 = vld [vmem:[#allocation19] sm:$0x1]
    %v3640 = vadd.f32 %v3638, 1e-10
    %v3641 = vrsqrt.pop %v3640
    %v3642 = vmul.f32 %v3639, %v3641
    %v3644 = vsel %vm1807, %v3642, 0
    %3646 = vmatprep.subr.mxu0 %v3173
    %3647 = vmatpush1.msra.mxu0 %v3172
    %3648 = vmatprep.subr.mxu0 0.0
    %3649 = vmatpush1.msra.mxu0 0.0
    %3650 = vmatprep.subr.mxu0 0.0
    %3651 = vmatpush1.msra.mxu0 0.0
    %3652 = vmatprep.subr.mxu0 0.0
    %3653 = vmatpush1.msra.mxu0 0.0
    %3654 = vmatprep.subr.mxu0 0.0
    %3655 = vmatpush1.msra.mxu0 0.0
    %3656 = vmatprep.subr.mxu0 0.0
    %3657 = vmatpush1.msra.mxu0 0.0
    %3658 = vmatprep.subr.mxu0 0.0
    %3659 = vmatpush1.msra.mxu0 0.0
    %3660 = vmatprep.subr.mxu0 0.0
    %3661 = vmatpush1.msra.mxu0 0.0
    %3662 = vmatprep.subr.mxu0 0.0
    %3663 = vmatpush1.msra.mxu0 0.0
    %3664 = vmatprep.subr.mxu0 0.0
    %3665 = vmatpush1.msra.mxu0 0.0
    %3666 = vmatprep.subr.mxu0 0.0
    %3667 = vmatpush1.msra.mxu0 0.0
    %3668 = vmatprep.subr.mxu0 0.0
    %3669 = vmatpush1.msra.mxu0 0.0
    %3670 = vmatprep.subr.mxu0 0.0
    %3671 = vmatpush1.msra.mxu0 0.0
    %3672 = vmatprep.subr.mxu0 0.0
    %3673 = vmatpush1.msra.mxu0 0.0
    %3674 = vmatprep.subr.mxu0 0.0
    %3675 = vmatpush1.msra.mxu0 0.0
    %3676 = vmatprep.subr.mxu0 0.0
    %3677 = vmatpush1.msra.mxu0 0.0
    %3678 = vmatprep.subr.mxu0 0.0
    %3679 = vmatpush1.msra.mxu0 0.0
    %3680 = vmatprep.subr.mxu0 0.0
    %3681 = vmatpush1.msra.mxu0 0.0
    %3682 = vmatprep.subr.mxu0 0.0
    %3683 = vmatpush1.msra.mxu0 0.0
    %3684 = vmatprep.subr.mxu0 0.0
    %3685 = vmatpush1.msra.mxu0 0.0
    %3686 = vmatprep.subr.mxu0 0.0
    %3687 = vmatpush1.msra.mxu0 0.0
    %3688 = vmatprep.subr.mxu0 0.0
    %3689 = vmatpush1.msra.mxu0 0.0
    %3690 = vmatprep.subr.mxu0 0.0
    %3691 = vmatpush1.msra.mxu0 0.0
    %3692 = vmatprep.subr.mxu0 0.0
    %3693 = vmatpush1.msra.mxu0 0.0
    %3694 = vmatprep.subr.mxu0 0.0
    %3695 = vmatpush1.msra.mxu0 0.0
    %3696 = vmatprep.subr.mxu0 0.0
    %3697 = vmatpush1.msra.mxu0 0.0
    %3698 = vmatprep.subr.mxu0 0.0
    %3699 = vmatpush1.msra.mxu0 0.0
    %3700 = vmatprep.subr.mxu0 0.0
    %3701 = vmatpush1.msra.mxu0 0.0
    %3702 = vmatprep.subr.mxu0 0.0
    %3703 = vmatpush1.msra.mxu0 0.0
    %3704 = vmatprep.subr.mxu0 0.0
    %3705 = vmatpush1.msra.mxu0 0.0
    %3706 = vmatprep.subr.mxu0 0.0
    %3707 = vmatpush1.msra.mxu0 0.0
    %3708 = vmatprep.subr.mxu0 0.0
    %3709 = vmatpush1.msra.mxu0 0.0
    %3710 = vmatprep.mubr.f32.mxu0 0.0
    %3711 = vmatmul.mubr.f32.gmra.mrb[0].mxu0 %v3644
    %v3712 = vpop.f32.mrb[0].mxu0
    %v3713 = vadd.f32 0.0, %v3712
    %v3714 = vpop.f32.mrb[0].mxu0
    %v3715 = vadd.f32 0.0, %v3714
    %3716 = vdwg.mxu0
    %3717 = vmatprep.subr.mxu0 0.0
    %3718 = vmatpush1.msra.mxu0 %v3174
    %3719 = vmatprep.subr.mxu0 0.0
    %3720 = vmatpush1.msra.mxu0 0.0
    %3721 = vmatprep.subr.mxu0 0.0
    %3722 = vmatpush1.msra.mxu0 0.0
    %3723 = vmatprep.subr.mxu0 0.0
    %3724 = vmatpush1.msra.mxu0 0.0
    %3725 = vmatprep.subr.mxu0 0.0
    %3726 = vmatpush1.msra.mxu0 0.0
    %3727 = vmatprep.subr.mxu0 0.0
    %3728 = vmatpush1.msra.mxu0 0.0
    %3729 = vmatprep.subr.mxu0 0.0
    %3730 = vmatpush1.msra.mxu0 0.0
    %3731 = vmatprep.subr.mxu0 0.0
    %3732 = vmatpush1.msra.mxu0 0.0
    %3733 = vmatprep.subr.mxu0 0.0
    %3734 = vmatpush1.msra.mxu0 0.0
    %3735 = vmatprep.subr.mxu0 0.0
    %3736 = vmatpush1.msra.mxu0 0.0
    %3737 = vmatprep.subr.mxu0 0.0
    %3738 = vmatpush1.msra.mxu0 0.0
    %3739 = vmatprep.subr.mxu0 0.0
    %3740 = vmatpush1.msra.mxu0 0.0
    %3741 = vmatprep.subr.mxu0 0.0
    %3742 = vmatpush1.msra.mxu0 0.0
    %3743 = vmatprep.subr.mxu0 0.0
    %3744 = vmatpush1.msra.mxu0 0.0
    %3745 = vmatprep.subr.mxu0 0.0
    %3746 = vmatpush1.msra.mxu0 0.0
    %3747 = vmatprep.subr.mxu0 0.0
    %3748 = vmatpush1.msra.mxu0 0.0
    %3749 = vmatprep.subr.mxu0 0.0
    %3750 = vmatpush1.msra.mxu0 0.0
    %3751 = vmatprep.subr.mxu0 0.0
    %3752 = vmatpush1.msra.mxu0 0.0
    %3753 = vmatprep.subr.mxu0 0.0
    %3754 = vmatpush1.msra.mxu0 0.0
    %3755 = vmatprep.subr.mxu0 0.0
    %3756 = vmatpush1.msra.mxu0 0.0
    %3757 = vmatprep.subr.mxu0 0.0
    %3758 = vmatpush1.msra.mxu0 0.0
    %3759 = vmatprep.subr.mxu0 0.0
    %3760 = vmatpush1.msra.mxu0 0.0
    %3761 = vmatprep.subr.mxu0 0.0
    %3762 = vmatpush1.msra.mxu0 0.0
    %3763 = vmatprep.subr.mxu0 0.0
    %3764 = vmatpush1.msra.mxu0 0.0
    %3765 = vmatprep.subr.mxu0 0.0
    %3766 = vmatpush1.msra.mxu0 0.0
    %3767 = vmatprep.subr.mxu0 0.0
    %3768 = vmatpush1.msra.mxu0 0.0
    %3769 = vmatprep.subr.mxu0 0.0
    %3770 = vmatpush1.msra.mxu0 0.0
    %3771 = vmatprep.subr.mxu0 0.0
    %3772 = vmatpush1.msra.mxu0 0.0
    %3773 = vmatprep.subr.mxu0 0.0
    %3774 = vmatpush1.msra.mxu0 0.0
    %3775 = vmatprep.subr.mxu0 0.0
    %3776 = vmatpush1.msra.mxu0 0.0
    %3777 = vmatprep.subr.mxu0 0.0
    %3778 = vmatpush1.msra.mxu0 0.0
    %3779 = vmatprep.subr.mxu0 0.0
    %3780 = vmatpush1.msra.mxu0 0.0
    %3781 = vmatprep.mubr.f32.mxu0 0.0
    %3782 = vmatmul.mubr.f32.gmra.mrb[0].mxu0 %v3644
    %v3783 = vpop.f32.mrb[0].mxu0
    %v3784 = vadd.f32 0.0, %v3783
    %v3785 = vpop.f32.mrb[0].mxu0
    %3786 = vdwg.mxu0
    %v3787 = vlaneseq
    %v3788 = vshrl.u32 %v3787, 7
    %v3789 = vsub.s32 0, %v3788
    %v3790 = vrot.slane %v3713, %v3789
    %v3791 = vlaneseq
    %v3792 = vshrl.u32 %v3791, 7
    %v3793 = vsub.s32 0, %v3792
    %v3794 = vrot.slane %v3715, %v3793
    %v3795 = vlaneseq
    %v3796 = vshrl.u32 %v3795, 7
    %v3797 = vsub.s32 0, %v3796
    %v3798 = vrot.slane %v3784, %v3797
    %v3799 = vmul.f32 %v3482, %v3790
    %v3800 = vmul.f32 %v3483, %v3794
    %v3801 = vmul.f32 %v3484, %v3798
    %v3802 = vld [vmem:[#allocation21] sm:$0x1]
    %v3804 = vsel %vm1807, %v3802, 0
    %3806 = vmatprep.subr.mxu0 %v3173
    %3807 = vmatpush1.msra.mxu0 %v3172
    %3808 = vmatprep.subr.mxu0 0.0
    %3809 = vmatpush1.msra.mxu0 0.0
    %3810 = vmatprep.subr.mxu0 0.0
    %3811 = vmatpush1.msra.mxu0 0.0
    %3812 = vmatprep.subr.mxu0 0.0
    %3813 = vmatpush1.msra.mxu0 0.0
    %3814 = vmatprep.subr.mxu0 0.0
    %3815 = vmatpush1.msra.mxu0 0.0
    %3816 = vmatprep.subr.mxu0 0.0
    %3817 = vmatpush1.msra.mxu0 0.0
    %3818 = vmatprep.subr.mxu0 0.0
    %3819 = vmatpush1.msra.mxu0 0.0
    %3820 = vmatprep.subr.mxu0 0.0
    %3821 = vmatpush1.msra.mxu0 0.0
    %3822 = vmatprep.subr.mxu0 0.0
    %3823 = vmatpush1.msra.mxu0 0.0
    %3824 = vmatprep.subr.mxu0 0.0
    %3825 = vmatpush1.msra.mxu0 0.0
    %3826 = vmatprep.subr.mxu0 0.0
    %3827 = vmatpush1.msra.mxu0 0.0
    %3828 = vmatprep.subr.mxu0 0.0
    %3829 = vmatpush1.msra.mxu0 0.0
    %3830 = vmatprep.subr.mxu0 0.0
    %3831 = vmatpush1.msra.mxu0 0.0
    %3832 = vmatprep.subr.mxu0 0.0
    %3833 = vmatpush1.msra.mxu0 0.0
    %3834 = vmatprep.subr.mxu0 0.0
    %3835 = vmatpush1.msra.mxu0 0.0
    %3836 = vmatprep.subr.mxu0 0.0
    %3837 = vmatpush1.msra.mxu0 0.0
    %3838 = vmatprep.subr.mxu0 0.0
    %3839 = vmatpush1.msra.mxu0 0.0
    %3840 = vmatprep.subr.mxu0 0.0
    %3841 = vmatpush1.msra.mxu0 0.0
    %3842 = vmatprep.subr.mxu0 0.0
    %3843 = vmatpush1.msra.mxu0 0.0
    %3844 = vmatprep.subr.mxu0 0.0
    %3845 = vmatpush1.msra.mxu0 0.0
    %3846 = vmatprep.subr.mxu0 0.0
    %3847 = vmatpush1.msra.mxu0 0.0
    %3848 = vmatprep.subr.mxu0 0.0
    %3849 = vmatpush1.msra.mxu0 0.0
    %3850 = vmatprep.subr.mxu0 0.0
    %3851 = vmatpush1.msra.mxu0 0.0
    %3852 = vmatprep.subr.mxu0 0.0
    %3853 = vmatpush1.msra.mxu0 0.0
    %3854 = vmatprep.subr.mxu0 0.0
    %3855 = vmatpush1.msra.mxu0 0.0
    %3856 = vmatprep.subr.mxu0 0.0
    %3857 = vmatpush1.msra.mxu0 0.0
    %3858 = vmatprep.subr.mxu0 0.0
    %3859 = vmatpush1.msra.mxu0 0.0
    %3860 = vmatprep.subr.mxu0 0.0
    %3861 = vmatpush1.msra.mxu0 0.0
    %3862 = vmatprep.subr.mxu0 0.0
    %3863 = vmatpush1.msra.mxu0 0.0
    %3864 = vmatprep.subr.mxu0 0.0
    %3865 = vmatpush1.msra.mxu0 0.0
    %3866 = vmatprep.subr.mxu0 0.0
    %3867 = vmatpush1.msra.mxu0 0.0
    %3868 = vmatprep.subr.mxu0 0.0
    %3869 = vmatpush1.msra.mxu0 0.0
    %3870 = vmatprep.mubr.f32.mxu0 0.0
    %3871 = vmatmul.mubr.f32.gmra.mrb[0].mxu0 %v3804
    %v3872 = vpop.f32.mrb[0].mxu0
    %v3873 = vadd.f32 0.0, %v3872
    %v3874 = vpop.f32.mrb[0].mxu0
    %v3875 = vadd.f32 0.0, %v3874
    %3876 = vdwg.mxu0
    %3877 = vmatprep.subr.mxu0 0.0
    %3878 = vmatpush1.msra.mxu0 %v3174
    %3879 = vmatprep.subr.mxu0 0.0
    %3880 = vmatpush1.msra.mxu0 0.0
    %3881 = vmatprep.subr.mxu0 0.0
    %3882 = vmatpush1.msra.mxu0 0.0
    %3883 = vmatprep.subr.mxu0 0.0
    %3884 = vmatpush1.msra.mxu0 0.0
    %3885 = vmatprep.subr.mxu0 0.0
    %3886 = vmatpush1.msra.mxu0 0.0
    %3887 = vmatprep.subr.mxu0 0.0
    %3888 = vmatpush1.msra.mxu0 0.0
    %3889 = vmatprep.subr.mxu0 0.0
    %3890 = vmatpush1.msra.mxu0 0.0
    %3891 = vmatprep.subr.mxu0 0.0
    %3892 = vmatpush1.msra.mxu0 0.0
    %3893 = vmatprep.subr.mxu0 0.0
    %3894 = vmatpush1.msra.mxu0 0.0
    %3895 = vmatprep.subr.mxu0 0.0
    %3896 = vmatpush1.msra.mxu0 0.0
    %3897 = vmatprep.subr.mxu0 0.0
    %3898 = vmatpush1.msra.mxu0 0.0
    %3899 = vmatprep.subr.mxu0 0.0
    %3900 = vmatpush1.msra.mxu0 0.0
    %3901 = vmatprep.subr.mxu0 0.0
    %3902 = vmatpush1.msra.mxu0 0.0
    %3903 = vmatprep.subr.mxu0 0.0
    %3904 = vmatpush1.msra.mxu0 0.0
    %3905 = vmatprep.subr.mxu0 0.0
    %3906 = vmatpush1.msra.mxu0 0.0
    %3907 = vmatprep.subr.mxu0 0.0
    %3908 = vmatpush1.msra.mxu0 0.0
    %3909 = vmatprep.subr.mxu0 0.0
    %3910 = vmatpush1.msra.mxu0 0.0
    %3911 = vmatprep.subr.mxu0 0.0
    %3912 = vmatpush1.msra.mxu0 0.0
    %3913 = vmatprep.subr.mxu0 0.0
    %3914 = vmatpush1.msra.mxu0 0.0
    %3915 = vmatprep.subr.mxu0 0.0
    %3916 = vmatpush1.msra.mxu0 0.0
    %3917 = vmatprep.subr.mxu0 0.0
    %3918 = vmatpush1.msra.mxu0 0.0
    %3919 = vmatprep.subr.mxu0 0.0
    %3920 = vmatpush1.msra.mxu0 0.0
    %3921 = vmatprep.subr.mxu0 0.0
    %3922 = vmatpush1.msra.mxu0 0.0
    %3923 = vmatprep.subr.mxu0 0.0
    %3924 = vmatpush1.msra.mxu0 0.0
    %3925 = vmatprep.subr.mxu0 0.0
    %3926 = vmatpush1.msra.mxu0 0.0
    %3927 = vmatprep.subr.mxu0 0.0
    %3928 = vmatpush1.msra.mxu0 0.0
    %3929 = vmatprep.subr.mxu0 0.0
    %3930 = vmatpush1.msra.mxu0 0.0
    %3931 = vmatprep.subr.mxu0 0.0
    %3932 = vmatpush1.msra.mxu0 0.0
    %3933 = vmatprep.subr.mxu0 0.0
    %3934 = vmatpush1.msra.mxu0 0.0
    %3935 = vmatprep.subr.mxu0 0.0
    %3936 = vmatpush1.msra.mxu0 0.0
    %3937 = vmatprep.subr.mxu0 0.0
    %3938 = vmatpush1.msra.mxu0 0.0
    %3939 = vmatprep.subr.mxu0 0.0
    %3940 = vmatpush1.msra.mxu0 0.0
    %3941 = vmatprep.mubr.f32.mxu0 0.0
    %3942 = vmatmul.mubr.f32.gmra.mrb[0].mxu0 %v3804
    %v3943 = vpop.f32.mrb[0].mxu0
    %v3944 = vadd.f32 0.0, %v3943
    %v3945 = vpop.f32.mrb[0].mxu0
    %3946 = vdwg.mxu0
    %v3947 = vlaneseq
    %v3948 = vshrl.u32 %v3947, 7
    %v3949 = vsub.s32 0, %v3948
    %v3950 = vrot.slane %v3873, %v3949
    %v3951 = vlaneseq
    %v3952 = vshrl.u32 %v3951, 7
    %v3953 = vsub.s32 0, %v3952
    %v3954 = vrot.slane %v3875, %v3953
    %v3955 = vlaneseq
    %v3956 = vshrl.u32 %v3955, 7
    %v3957 = vsub.s32 0, %v3956
    %v3958 = vrot.slane %v3944, %v3957
    %v3959 = vadd.f32 %v3799, %v3950
    %v3960 = vadd.f32 %v3800, %v3954
    %v3961 = vadd.f32 %v3801, %v3958
    %v3962 = vmax.f32 %v3959, 0.0
    %v3963 = vmax.f32 %v3960, 0.0
    %v3964 = vmax.f32 %v3961, 0.0
    %v3965 = vpack.c.bf16 %v3962, %v3962
    %v3966 = vpack.c.bf16 %v3963, %v3963
    %v3967 = vpack.c.bf16 %v3964, %v3964
    %v3968 = vld [vmem:[%s43] sm:$0xff]
    %v3969 = vld [vmem:[%s43 + $0x8] sm:$0xff]
    %v3970 = vld [vmem:[%s43 + $0x10] sm:$0xff]
    %v3971 = vld [vmem:[%s43 + $0x18] sm:$0xff]
    %v3972 = vld [vmem:[%s43 + $0x20] sm:$0xff]
    %v3973 = vld [vmem:[%s43 + $0x28] sm:$0xff]
    %v3974 = vld [vmem:[%s43 + $0x30] sm:$0xff]
    %v3975 = vld [vmem:[%s43 + $0x38] sm:$0xff]
    %v3976 = vld [vmem:[%s43 + $0x40] sm:$0xff]
    %v3977 = vld [vmem:[%s43 + $0x48] sm:$0xff]
    %v3978 = vld [vmem:[%s43 + $0x50] sm:$0xff]
    %v3979 = vld [vmem:[%s43 + $0x58] sm:$0xff]
    %v3980 = vld [vmem:[%s43 + $0x60] sm:$0xff]
    %v3981 = vld [vmem:[%s43 + $0x68] sm:$0xff]
    %v3982 = vld [vmem:[%s43 + $0x70] sm:$0xff]
    %v3983 = vld [vmem:[%s43 + $0x78] sm:$0xff]
    %v3984 = vld [vmem:[%s43 + $0x80] sm:$0xff]
    %v3985 = vld [vmem:[%s43 + $0x88] sm:$0xff]
    %v3986 = vld [vmem:[%s43 + $0x90] sm:$0xff]
    %v3987 = vld [vmem:[%s43 + $0x98] sm:$0xff]
    %v3988 = vld [vmem:[%s43 + $0xa0] sm:$0xff]
    %v3989 = vld [vmem:[%s43 + $0xa8] sm:$0xff]
    %v3990 = vld [vmem:[%s43 + $0xb0] sm:$0xff]
    %v3991 = vld [vmem:[%s43 + $0xb8] sm:$0xff]
    %v3992 = vld [vmem:[%s43 + $0xc0] sm:$0xff]
    %v3993 = vld [vmem:[%s43 + $0xc8] sm:$0xff]
    %v3994 = vld [vmem:[%s43 + $0xd0] sm:$0xff]
    %v3995 = vld [vmem:[%s43 + $0xd8] sm:$0xff]
    %v3996 = vld [vmem:[%s43 + $0xe0] sm:$0xff]
    %v3997 = vld [vmem:[%s43 + $0xe8] sm:$0xff]
    %v3998 = vld [vmem:[%s43 + $0xf0] sm:$0xff]
    %v3999 = vld [vmem:[%s43 + $0xf8] sm:$0xff]
    %v4000 = vld [vmem:[%s43 + $0x100] sm:$0xff]
    %v4001 = vld [vmem:[%s43 + $0x108] sm:$0xff]
    %v4002 = vld [vmem:[%s43 + $0x110] sm:$0xff]
    %v4003 = vld [vmem:[%s43 + $0x118] sm:$0xff]
    %v4004 = vld [vmem:[%s43 + $0x120] sm:$0xff]
    %v4005 = vld [vmem:[%s43 + $0x128] sm:$0xff]
    %v4006 = vld [vmem:[%s43 + $0x130] sm:$0xff]
    %v4007 = vld [vmem:[%s43 + $0x138] sm:$0xff]
    %v4008 = vld [vmem:[%s43 + $0x140] sm:$0xff]
    %v4009 = vld [vmem:[%s43 + $0x148] sm:$0xff]
    %v4010 = vld [vmem:[%s43 + $0x150] sm:$0xff]
    %v4011 = vld [vmem:[%s43 + $0x158] sm:$0xff]
    %v4012 = vld [vmem:[%s43 + $0x160] sm:$0xff]
    %v4013 = vld [vmem:[%s43 + $0x168] sm:$0xff]
    %v4014 = vld [vmem:[%s43 + $0x170] sm:$0xff]
    %v4015 = vld [vmem:[%s43 + $0x178] sm:$0xff]
    %v4016 = vld [vmem:[%s43 + $0x180] sm:$0xff]
    %v4017 = vld [vmem:[%s43 + $0x188] sm:$0xff]
    %v4018 = vld [vmem:[%s43 + $0x190] sm:$0xff]
    %v4019 = vld [vmem:[%s43 + $0x198] sm:$0xff]
    %v4020 = vld [vmem:[%s43 + $0x1a0] sm:$0xff]
    %v4021 = vld [vmem:[%s43 + $0x1a8] sm:$0xff]
    %v4022 = vld [vmem:[%s43 + $0x1b0] sm:$0xff]
    %v4023 = vld [vmem:[%s43 + $0x1b8] sm:$0xff]
    %v4024 = vld [vmem:[%s43 + $0x1c0] sm:$0xff]
    %v4025 = vld [vmem:[%s43 + $0x1c8] sm:$0xff]
    %v4026 = vld [vmem:[%s43 + $0x1d0] sm:$0xff]
    %v4027 = vld [vmem:[%s43 + $0x1d8] sm:$0xff]
    %v4028 = vld [vmem:[%s43 + $0x1e0] sm:$0xff]
    %v4029 = vld [vmem:[%s43 + $0x1e8] sm:$0xff]
    %v4030 = vld [vmem:[%s43 + $0x1f0] sm:$0xff]
    %v4031 = vld [vmem:[%s43 + $0x1f8] sm:$0xff]
    %v4032 = vld [vmem:[%s43 + $0x200] sm:$0xff]
    %v4033 = vld [vmem:[%s43 + $0x208] sm:$0xff]
    %v4034 = vld [vmem:[%s43 + $0x210] sm:$0xff]
    %v4035 = vld [vmem:[%s43 + $0x218] sm:$0xff]
    %v4036 = vld [vmem:[%s43 + $0x220] sm:$0xff]
    %v4037 = vld [vmem:[%s43 + $0x228] sm:$0xff]
    %v4038 = vld [vmem:[%s43 + $0x230] sm:$0xff]
    %v4039 = vld [vmem:[%s43 + $0x238] sm:$0xff]
    %v4040 = vld [vmem:[%s43 + $0x240] sm:$0xff]
    %v4041 = vld [vmem:[%s43 + $0x248] sm:$0xff]
    %v4042 = vld [vmem:[%s43 + $0x250] sm:$0xff]
    %v4043 = vld [vmem:[%s43 + $0x258] sm:$0xff]
    %v4044 = vld [vmem:[%s43 + $0x260] sm:$0xff]
    %v4045 = vld [vmem:[%s43 + $0x268] sm:$0xff]
    %v4046 = vld [vmem:[%s43 + $0x270] sm:$0xff]
    %v4047 = vld [vmem:[%s43 + $0x278] sm:$0xff]
    %v4048 = vld [vmem:[%s43 + $0x280] sm:$0xff]
    %v4049 = vld [vmem:[%s43 + $0x288] sm:$0xff]
    %v4050 = vld [vmem:[%s43 + $0x290] sm:$0xff]
    %v4051 = vld [vmem:[%s43 + $0x298] sm:$0xff]
    %v4052 = vld [vmem:[%s43 + $0x2a0] sm:$0xff]
    %v4053 = vld [vmem:[%s43 + $0x2a8] sm:$0xff]
    %v4054 = vld [vmem:[%s43 + $0x2b0] sm:$0xff]
    %v4055 = vld [vmem:[%s43 + $0x2b8] sm:$0xff]
    %v4056 = vld [vmem:[%s43 + $0x2c0] sm:$0xff]
    %v4057 = vld [vmem:[%s43 + $0x2c8] sm:$0xff]
    %v4058 = vld [vmem:[%s43 + $0x2d0] sm:$0xff]
    %v4059 = vld [vmem:[%s43 + $0x2d8] sm:$0xff]
    %v4060 = vld [vmem:[%s43 + $0x2e0] sm:$0xff]
    %v4061 = vld [vmem:[%s43 + $0x2e8] sm:$0xff]
    %v4062 = vld [vmem:[%s43 + $0x2f0] sm:$0xff]
    %v4063 = vld [vmem:[%s43 + $0x2f8] sm:$0xff]
    %v4064 = vld [vmem:[%s43 + $0x300] sm:$0xff]
    %v4065 = vld [vmem:[%s43 + $0x308] sm:$0xff]
    %v4066 = vld [vmem:[%s43 + $0x310] sm:$0xff]
    %v4067 = vld [vmem:[%s43 + $0x318] sm:$0xff]
    %v4068 = vld [vmem:[%s43 + $0x320] sm:$0xff]
    %v4069 = vld [vmem:[%s43 + $0x328] sm:$0xff]
    %v4070 = vld [vmem:[%s43 + $0x330] sm:$0xff]
    %v4071 = vld [vmem:[%s43 + $0x338] sm:$0xff]
    %v4072 = vld [vmem:[%s43 + $0x340] sm:$0xff]
    %v4073 = vld [vmem:[%s43 + $0x348] sm:$0xff]
    %v4074 = vld [vmem:[%s43 + $0x350] sm:$0xff]
    %v4075 = vld [vmem:[%s43 + $0x358] sm:$0xff]
    %v4076 = vld [vmem:[%s43 + $0x360] sm:$0xff]
    %v4077 = vld [vmem:[%s43 + $0x368] sm:$0xff]
    %v4078 = vld [vmem:[%s43 + $0x370] sm:$0xff]
    %v4079 = vld [vmem:[%s43 + $0x378] sm:$0xff]
    %v4080 = vld [vmem:[%s43 + $0x380] sm:$0xff]
    %v4081 = vld [vmem:[%s43 + $0x388] sm:$0xff]
    %v4082 = vld [vmem:[%s43 + $0x390] sm:$0xff]
    %v4083 = vld [vmem:[%s43 + $0x398] sm:$0xff]
    %v4084 = vld [vmem:[%s43 + $0x3a0] sm:$0xff]
    %v4085 = vld [vmem:[%s43 + $0x3a8] sm:$0xff]
    %v4086 = vld [vmem:[%s43 + $0x3b0] sm:$0xff]
    %v4087 = vld [vmem:[%s43 + $0x3b8] sm:$0xff]
    %v4088 = vld [vmem:[%s43 + $0x3c0] sm:$0xff]
    %v4089 = vld [vmem:[%s43 + $0x3c8] sm:$0xff]
    %v4090 = vld [vmem:[%s43 + $0x3d0] sm:$0xff]
    %v4091 = vld [vmem:[%s43 + $0x3d8] sm:$0xff]
    %v4092 = vld [vmem:[%s43 + $0x3e0] sm:$0xff]
    %v4093 = vld [vmem:[%s43 + $0x3e8] sm:$0xff]
    %v4094 = vld [vmem:[%s43 + $0x3f0] sm:$0xff]
    %v4095 = vld [vmem:[%s43 + $0x3f8] sm:$0xff]
    %v4096 = vld [vmem:[%s43 + $0x400] sm:$0xff]
    %v4097 = vld [vmem:[%s43 + $0x408] sm:$0xff]
    %v4098 = vld [vmem:[%s43 + $0x410] sm:$0xff]
    %v4099 = vld [vmem:[%s43 + $0x418] sm:$0xff]
    %v4100 = vld [vmem:[%s43 + $0x420] sm:$0xff]
    %v4101 = vld [vmem:[%s43 + $0x428] sm:$0xff]
    %v4102 = vld [vmem:[%s43 + $0x430] sm:$0xff]
    %v4103 = vld [vmem:[%s43 + $0x438] sm:$0xff]
    %v4104 = vld [vmem:[%s43 + $0x440] sm:$0xff]
    %v4105 = vld [vmem:[%s43 + $0x448] sm:$0xff]
    %v4106 = vld [vmem:[%s43 + $0x450] sm:$0xff]
    %v4107 = vld [vmem:[%s43 + $0x458] sm:$0xff]
    %v4108 = vld [vmem:[%s43 + $0x460] sm:$0xff]
    %v4109 = vld [vmem:[%s43 + $0x468] sm:$0xff]
    %v4110 = vld [vmem:[%s43 + $0x470] sm:$0xff]
    %v4111 = vld [vmem:[%s43 + $0x478] sm:$0xff]
    %v4112 = vld [vmem:[#allocation22] sm:$0xff]
    %v4113 = vld [vmem:[#allocation22 + $0x8] sm:$0xff]
    %v4114 = vld [vmem:[#allocation22 + $0x10] sm:$0xff]
    %v4115 = vld [vmem:[#allocation22 + $0x18] sm:$0xff]
    %v4116 = vld [vmem:[#allocation22 + $0x20] sm:$0xff]
    %v4117 = vld [vmem:[#allocation22 + $0x28] sm:$0xff]
    %v4118 = vld [vmem:[#allocation22 + $0x30] sm:$0xff]
    %v4119 = vld [vmem:[#allocation22 + $0x38] sm:$0xff]
    %v4120 = vld [vmem:[#allocation22 + $0x40] sm:$0xff]
    %v4121 = vld [vmem:[#allocation22 + $0x48] sm:$0xff]
    %v4122 = vld [vmem:[#allocation22 + $0x50] sm:$0xff]
    %v4123 = vld [vmem:[#allocation22 + $0x58] sm:$0xff]
    %v4124 = vld [vmem:[#allocation22 + $0x60] sm:$0xff]
    %v4125 = vld [vmem:[#allocation22 + $0x68] sm:$0xff]
    %v4126 = vld [vmem:[#allocation22 + $0x70] sm:$0xff]
    %v4127 = vld [vmem:[#allocation22 + $0x78] sm:$0xff]
    %v4128 = vld [vmem:[#allocation22 + $0x80] sm:$0xff]
    %v4129 = vld [vmem:[#allocation22 + $0x88] sm:$0xff]
    %v4130 = vld [vmem:[#allocation22 + $0x90] sm:$0xff]
    %v4131 = vld [vmem:[#allocation22 + $0x98] sm:$0xff]
    %v4132 = vld [vmem:[#allocation22 + $0xa0] sm:$0xff]
    %v4133 = vld [vmem:[#allocation22 + $0xa8] sm:$0xff]
    %v4134 = vld [vmem:[#allocation22 + $0xb0] sm:$0xff]
    %v4135 = vld [vmem:[#allocation22 + $0xb8] sm:$0xff]
    %v4136 = vld [vmem:[#allocation22 + $0xc0] sm:$0xff]
    %v4137 = vld [vmem:[#allocation22 + $0xc8] sm:$0xff]
    %v4138 = vld [vmem:[#allocation22 + $0xd0] sm:$0xff]
    %v4139 = vld [vmem:[#allocation22 + $0xd8] sm:$0xff]
    %v4140 = vld [vmem:[#allocation22 + $0xe0] sm:$0xff]
    %v4141 = vld [vmem:[#allocation22 + $0xe8] sm:$0xff]
    %v4142 = vld [vmem:[#allocation22 + $0xf0] sm:$0xff]
    %v4143 = vld [vmem:[#allocation22 + $0xf8] sm:$0xff]
    %v4144 = vld [vmem:[#allocation22 + $0x100] sm:$0xff]
    %v4145 = vld [vmem:[#allocation22 + $0x108] sm:$0xff]
    %v4146 = vld [vmem:[#allocation22 + $0x110] sm:$0xff]
    %v4147 = vld [vmem:[#allocation22 + $0x118] sm:$0xff]
    %v4148 = vld [vmem:[#allocation22 + $0x120] sm:$0xff]
    %v4149 = vld [vmem:[#allocation22 + $0x128] sm:$0xff]
    %v4150 = vld [vmem:[#allocation22 + $0x130] sm:$0xff]
    %v4151 = vld [vmem:[#allocation22 + $0x138] sm:$0xff]
    %v4152 = vld [vmem:[#allocation22 + $0x140] sm:$0xff]
    %v4153 = vld [vmem:[#allocation22 + $0x148] sm:$0xff]
    %v4154 = vld [vmem:[#allocation22 + $0x150] sm:$0xff]
    %v4155 = vld [vmem:[#allocation22 + $0x158] sm:$0xff]
    %v4156 = vld [vmem:[#allocation22 + $0x160] sm:$0xff]
    %v4157 = vld [vmem:[#allocation22 + $0x168] sm:$0xff]
    %v4158 = vld [vmem:[#allocation22 + $0x170] sm:$0xff]
    %v4159 = vld [vmem:[#allocation22 + $0x178] sm:$0xff]
    %v4160 = vld [vmem:[#allocation22 + $0x180] sm:$0xff]
    %v4161 = vld [vmem:[#allocation22 + $0x188] sm:$0xff]
    %v4162 = vld [vmem:[#allocation22 + $0x190] sm:$0xff]
    %v4163 = vld [vmem:[#allocation22 + $0x198] sm:$0xff]
    %v4164 = vld [vmem:[#allocation22 + $0x1a0] sm:$0xff]
    %v4165 = vld [vmem:[#allocation22 + $0x1a8] sm:$0xff]
    %v4166 = vld [vmem:[#allocation22 + $0x1b0] sm:$0xff]
    %v4167 = vld [vmem:[#allocation22 + $0x1b8] sm:$0xff]
    %v4168 = vld [vmem:[#allocation22 + $0x1c0] sm:$0xff]
    %v4169 = vld [vmem:[#allocation22 + $0x1c8] sm:$0xff]
    %v4170 = vld [vmem:[#allocation22 + $0x1d0] sm:$0xff]
    %v4171 = vld [vmem:[#allocation22 + $0x1d8] sm:$0xff]
    %v4172 = vld [vmem:[#allocation22 + $0x1e0] sm:$0xff]
    %v4173 = vld [vmem:[#allocation22 + $0x1e8] sm:$0xff]
    %v4174 = vld [vmem:[#allocation22 + $0x1f0] sm:$0xff]
    %v4175 = vld [vmem:[#allocation22 + $0x1f8] sm:$0xff]
    %v4176 = vld [vmem:[#allocation22 + $0x200] sm:$0xff]
    %v4177 = vld [vmem:[#allocation22 + $0x208] sm:$0xff]
    %v4178 = vld [vmem:[#allocation22 + $0x210] sm:$0xff]
    %v4179 = vld [vmem:[#allocation22 + $0x218] sm:$0xff]
    %v4180 = vld [vmem:[#allocation22 + $0x220] sm:$0xff]
    %v4181 = vld [vmem:[#allocation22 + $0x228] sm:$0xff]
    %v4182 = vld [vmem:[#allocation22 + $0x230] sm:$0xff]
    %v4183 = vld [vmem:[#allocation22 + $0x238] sm:$0xff]
    %v4184 = vld [vmem:[#allocation22 + $0x240] sm:$0xff]
    %v4185 = vld [vmem:[#allocation22 + $0x248] sm:$0xff]
    %v4186 = vld [vmem:[#allocation22 + $0x250] sm:$0xff]
    %v4187 = vld [vmem:[#allocation22 + $0x258] sm:$0xff]
    %v4188 = vld [vmem:[#allocation22 + $0x260] sm:$0xff]
    %v4189 = vld [vmem:[#allocation22 + $0x268] sm:$0xff]
    %v4190 = vld [vmem:[#allocation22 + $0x270] sm:$0xff]
    %v4191 = vld [vmem:[#allocation22 + $0x278] sm:$0xff]
    %v4192 = vld [vmem:[#allocation22 + $0x280] sm:$0xff]
    %v4193 = vld [vmem:[#allocation22 + $0x288] sm:$0xff]
    %v4194 = vld [vmem:[#allocation22 + $0x290] sm:$0xff]
    %v4195 = vld [vmem:[#allocation22 + $0x298] sm:$0xff]
    %v4196 = vld [vmem:[#allocation22 + $0x2a0] sm:$0xff]
    %v4197 = vld [vmem:[#allocation22 + $0x2a8] sm:$0xff]
    %v4198 = vld [vmem:[#allocation22 + $0x2b0] sm:$0xff]
    %v4199 = vld [vmem:[#allocation22 + $0x2b8] sm:$0xff]
    %v4200 = vld [vmem:[#allocation22 + $0x2c0] sm:$0xff]
    %v4201 = vld [vmem:[#allocation22 + $0x2c8] sm:$0xff]
    %v4202 = vld [vmem:[#allocation22 + $0x2d0] sm:$0xff]
    %v4203 = vld [vmem:[#allocation22 + $0x2d8] sm:$0xff]
    %v4204 = vld [vmem:[#allocation22 + $0x2e0] sm:$0xff]
    %v4205 = vld [vmem:[#allocation22 + $0x2e8] sm:$0xff]
    %v4206 = vld [vmem:[#allocation22 + $0x2f0] sm:$0xff]
    %v4207 = vld [vmem:[#allocation22 + $0x2f8] sm:$0xff]
    %v4208 = vld [vmem:[#allocation22 + $0x300] sm:$0xff]
    %v4209 = vld [vmem:[#allocation22 + $0x308] sm:$0xff]
    %v4210 = vld [vmem:[#allocation22 + $0x310] sm:$0xff]
    %v4211 = vld [vmem:[#allocation22 + $0x318] sm:$0xff]
    %v4212 = vld [vmem:[#allocation22 + $0x320] sm:$0xff]
    %v4213 = vld [vmem:[#allocation22 + $0x328] sm:$0xff]
    %v4214 = vld [vmem:[#allocation22 + $0x330] sm:$0xff]
    %v4215 = vld [vmem:[#allocation22 + $0x338] sm:$0xff]
    %v4216 = vld [vmem:[#allocation22 + $0x340] sm:$0xff]
    %v4217 = vld [vmem:[#allocation22 + $0x348] sm:$0xff]
    %v4218 = vld [vmem:[#allocation22 + $0x350] sm:$0xff]
    %v4219 = vld [vmem:[#allocation22 + $0x358] sm:$0xff]
    %v4220 = vld [vmem:[#allocation22 + $0x360] sm:$0xff]
    %v4221 = vld [vmem:[#allocation22 + $0x368] sm:$0xff]
    %v4222 = vld [vmem:[#allocation22 + $0x370] sm:$0xff]
    %v4223 = vld [vmem:[#allocation22 + $0x378] sm:$0xff]
    %v4224 = vld [vmem:[#allocation22 + $0x380] sm:$0xff]
    %v4225 = vld [vmem:[#allocation22 + $0x388] sm:$0xff]
    %v4226 = vld [vmem:[#allocation22 + $0x390] sm:$0xff]
    %v4227 = vld [vmem:[#allocation22 + $0x398] sm:$0xff]
    %v4228 = vld [vmem:[#allocation22 + $0x3a0] sm:$0xff]
    %v4229 = vld [vmem:[#allocation22 + $0x3a8] sm:$0xff]
    %v4230 = vld [vmem:[#allocation22 + $0x3b0] sm:$0xff]
    %v4231 = vld [vmem:[#allocation22 + $0x3b8] sm:$0xff]
    %v4232 = vld [vmem:[#allocation22 + $0x3c0] sm:$0xff]
    %v4233 = vld [vmem:[#allocation22 + $0x3c8] sm:$0xff]
    %v4234 = vld [vmem:[#allocation22 + $0x3d0] sm:$0xff]
    %v4235 = vld [vmem:[#allocation22 + $0x3d8] sm:$0xff]
    %v4236 = vld [vmem:[#allocation22 + $0x3e0] sm:$0xff]
    %v4237 = vld [vmem:[#allocation22 + $0x3e8] sm:$0xff]
    %v4238 = vld [vmem:[#allocation22 + $0x3f0] sm:$0xff]
    %v4239 = vld [vmem:[#allocation22 + $0x3f8] sm:$0xff]
    %v4240 = vld [vmem:[#allocation22 + $0x400] sm:$0xff]
    %v4241 = vld [vmem:[#allocation22 + $0x408] sm:$0xff]
    %v4242 = vld [vmem:[#allocation22 + $0x410] sm:$0xff]
    %v4243 = vld [vmem:[#allocation22 + $0x418] sm:$0xff]
    %v4244 = vld [vmem:[#allocation22 + $0x420] sm:$0xff]
    %v4245 = vld [vmem:[#allocation22 + $0x428] sm:$0xff]
    %v4246 = vld [vmem:[#allocation22 + $0x430] sm:$0xff]
    %v4247 = vld [vmem:[#allocation22 + $0x438] sm:$0xff]
    %v4248 = vld [vmem:[#allocation22 + $0x440] sm:$0xff]
    %v4249 = vld [vmem:[#allocation22 + $0x448] sm:$0xff]
    %v4250 = vld [vmem:[#allocation22 + $0x450] sm:$0xff]
    %v4251 = vld [vmem:[#allocation22 + $0x458] sm:$0xff]
    %v4252 = vld [vmem:[#allocation22 + $0x460] sm:$0xff]
    %v4253 = vld [vmem:[#allocation22 + $0x468] sm:$0xff]
    %v4254 = vld [vmem:[#allocation22 + $0x470] sm:$0xff]
    %v4255 = vld [vmem:[#allocation22 + $0x478] sm:$0xff]
    %v4400 = vunpack.c.l.b16 %v4112
    %v4401 = vunpack.c.h.b16 %v4112
    %v4402 = vunpack.c.l.b16 %v4113
    %v4403 = vunpack.c.h.b16 %v4113
    %v4404 = vunpack.c.l.b16 %v4114
    %v4405 = vunpack.c.h.b16 %v4114
    %v4406 = vunpack.c.l.b16 %v4115
    %v4407 = vunpack.c.h.b16 %v4115
    %v4408 = vunpack.c.l.b16 %v4116
    %v4409 = vunpack.c.h.b16 %v4116
    %v4410 = vunpack.c.l.b16 %v4117
    %v4411 = vunpack.c.h.b16 %v4117
    %v4412 = vunpack.c.l.b16 %v4118
    %v4413 = vunpack.c.h.b16 %v4118
    %v4414 = vunpack.c.l.b16 %v4119
    %v4415 = vunpack.c.h.b16 %v4119
    %v4416 = vunpack.c.l.b16 %v4120
    %v4417 = vunpack.c.h.b16 %v4120
    %v4418 = vunpack.c.l.b16 %v4121
    %v4419 = vunpack.c.h.b16 %v4121
    %v4420 = vunpack.c.l.b16 %v4122
    %v4421 = vunpack.c.h.b16 %v4122
    %v4422 = vunpack.c.l.b16 %v4123
    %v4423 = vunpack.c.h.b16 %v4123
    %v4424 = vunpack.c.l.b16 %v4124
    %v4425 = vunpack.c.h.b16 %v4124
    %v4426 = vunpack.c.l.b16 %v4125
    %v4427 = vunpack.c.h.b16 %v4125
    %v4428 = vunpack.c.l.b16 %v4126
    %v4429 = vunpack.c.h.b16 %v4126
    %v4430 = vunpack.c.l.b16 %v4127
    %v4431 = vunpack.c.h.b16 %v4127
    %v4432 = vunpack.c.l.b16 %v4128
    %v4433 = vunpack.c.h.b16 %v4128
    %v4434 = vunpack.c.l.b16 %v4129
    %v4435 = vunpack.c.h.b16 %v4129
    %v4436 = vunpack.c.l.b16 %v4130
    %v4437 = vunpack.c.h.b16 %v4130
    %v4438 = vunpack.c.l.b16 %v4131
    %v4439 = vunpack.c.h.b16 %v4131
    %v4440 = vunpack.c.l.b16 %v4132
    %v4441 = vunpack.c.h.b16 %v4132
    %v4442 = vunpack.c.l.b16 %v4133
    %v4443 = vunpack.c.h.b16 %v4133
    %v4444 = vunpack.c.l.b16 %v4134
    %v4445 = vunpack.c.h.b16 %v4134
    %v4446 = vunpack.c.l.b16 %v4135
    %v4447 = vunpack.c.h.b16 %v4135
    %v4448 = vunpack.c.l.b16 %v4136
    %v4449 = vunpack.c.h.b16 %v4136
    %v4450 = vunpack.c.l.b16 %v4137
    %v4451 = vunpack.c.h.b16 %v4137
    %v4452 = vunpack.c.l.b16 %v4138
    %v4453 = vunpack.c.h.b16 %v4138
    %v4454 = vunpack.c.l.b16 %v4139
    %v4455 = vunpack.c.h.b16 %v4139
    %v4456 = vunpack.c.l.b16 %v4140
    %v4457 = vunpack.c.h.b16 %v4140
    %v4458 = vunpack.c.l.b16 %v4141
    %v4459 = vunpack.c.h.b16 %v4141
    %v4460 = vunpack.c.l.b16 %v4142
    %v4461 = vunpack.c.h.b16 %v4142
    %v4462 = vunpack.c.l.b16 %v4143
    %v4463 = vunpack.c.h.b16 %v4143
    %v4464 = vunpack.c.l.b16 %v4144
    %v4465 = vunpack.c.h.b16 %v4144
    %v4466 = vunpack.c.l.b16 %v4145
    %v4467 = vunpack.c.h.b16 %v4145
    %v4468 = vunpack.c.l.b16 %v4146
    %v4469 = vunpack.c.h.b16 %v4146
    %v4470 = vunpack.c.l.b16 %v4147
    %v4471 = vunpack.c.h.b16 %v4147
    %v4472 = vunpack.c.l.b16 %v4148
    %v4473 = vunpack.c.h.b16 %v4148
    %v4474 = vunpack.c.l.b16 %v4149
    %v4475 = vunpack.c.h.b16 %v4149
    %v4476 = vunpack.c.l.b16 %v4150
    %v4477 = vunpack.c.h.b16 %v4150
    %v4478 = vunpack.c.l.b16 %v4151
    %v4479 = vunpack.c.h.b16 %v4151
    %v4480 = vunpack.c.l.b16 %v4152
    %v4481 = vunpack.c.h.b16 %v4152
    %v4482 = vunpack.c.l.b16 %v4153
    %v4483 = vunpack.c.h.b16 %v4153
    %v4484 = vunpack.c.l.b16 %v4154
    %v4485 = vunpack.c.h.b16 %v4154
    %v4486 = vunpack.c.l.b16 %v4155
    %v4487 = vunpack.c.h.b16 %v4155
    %v4488 = vunpack.c.l.b16 %v4156
    %v4489 = vunpack.c.h.b16 %v4156
    %v4490 = vunpack.c.l.b16 %v4157
    %v4491 = vunpack.c.h.b16 %v4157
    %v4492 = vunpack.c.l.b16 %v4158
    %v4493 = vunpack.c.h.b16 %v4158
    %v4494 = vunpack.c.l.b16 %v4159
    %v4495 = vunpack.c.h.b16 %v4159
    %v4496 = vunpack.c.l.b16 %v4160
    %v4497 = vunpack.c.h.b16 %v4160
    %v4498 = vunpack.c.l.b16 %v4161
    %v4499 = vunpack.c.h.b16 %v4161
    %v4500 = vunpack.c.l.b16 %v4162
    %v4501 = vunpack.c.h.b16 %v4162
    %v4502 = vunpack.c.l.b16 %v4163
    %v4503 = vunpack.c.h.b16 %v4163
    %v4504 = vunpack.c.l.b16 %v4164
    %v4505 = vunpack.c.h.b16 %v4164
    %v4506 = vunpack.c.l.b16 %v4165
    %v4507 = vunpack.c.h.b16 %v4165
    %v4508 = vunpack.c.l.b16 %v4166
    %v4509 = vunpack.c.h.b16 %v4166
    %v4510 = vunpack.c.l.b16 %v4167
    %v4511 = vunpack.c.h.b16 %v4167
    %v4512 = vunpack.c.l.b16 %v4168
    %v4513 = vunpack.c.h.b16 %v4168
    %v4514 = vunpack.c.l.b16 %v4169
    %v4515 = vunpack.c.h.b16 %v4169
    %v4516 = vunpack.c.l.b16 %v4170
    %v4517 = vunpack.c.h.b16 %v4170
    %v4518 = vunpack.c.l.b16 %v4171
    %v4519 = vunpack.c.h.b16 %v4171
    %v4520 = vunpack.c.l.b16 %v4172
    %v4521 = vunpack.c.h.b16 %v4172
    %v4522 = vunpack.c.l.b16 %v4173
    %v4523 = vunpack.c.h.b16 %v4173
    %v4524 = vunpack.c.l.b16 %v4174
    %v4525 = vunpack.c.h.b16 %v4174
    %v4526 = vunpack.c.l.b16 %v4175
    %v4527 = vunpack.c.h.b16 %v4175
    %v4528 = vunpack.c.l.b16 %v4176
    %v4529 = vunpack.c.h.b16 %v4176
    %v4530 = vunpack.c.l.b16 %v4177
    %v4531 = vunpack.c.h.b16 %v4177
    %v4532 = vunpack.c.l.b16 %v4178
    %v4533 = vunpack.c.h.b16 %v4178
    %v4534 = vunpack.c.l.b16 %v4179
    %v4535 = vunpack.c.h.b16 %v4179
    %v4536 = vunpack.c.l.b16 %v4180
    %v4537 = vunpack.c.h.b16 %v4180
    %v4538 = vunpack.c.l.b16 %v4181
    %v4539 = vunpack.c.h.b16 %v4181
    %v4540 = vunpack.c.l.b16 %v4182
    %v4541 = vunpack.c.h.b16 %v4182
    %v4542 = vunpack.c.l.b16 %v4183
    %v4543 = vunpack.c.h.b16 %v4183
    %v4544 = vunpack.c.l.b16 %v4184
    %v4545 = vunpack.c.h.b16 %v4184
    %v4546 = vunpack.c.l.b16 %v4185
    %v4547 = vunpack.c.h.b16 %v4185
    %v4548 = vunpack.c.l.b16 %v4186
    %v4549 = vunpack.c.h.b16 %v4186
    %v4550 = vunpack.c.l.b16 %v4187
    %v4551 = vunpack.c.h.b16 %v4187
    %v4552 = vunpack.c.l.b16 %v4188
    %v4553 = vunpack.c.h.b16 %v4188
    %v4554 = vunpack.c.l.b16 %v4189
    %v4555 = vunpack.c.h.b16 %v4189
    %v4556 = vunpack.c.l.b16 %v4190
    %v4557 = vunpack.c.h.b16 %v4190
    %v4558 = vunpack.c.l.b16 %v4191
    %v4559 = vunpack.c.h.b16 %v4191
    %v4560 = vunpack.c.l.b16 %v4192
    %v4561 = vunpack.c.h.b16 %v4192
    %v4562 = vunpack.c.l.b16 %v4193
    %v4563 = vunpack.c.h.b16 %v4193
    %v4564 = vunpack.c.l.b16 %v4194
    %v4565 = vunpack.c.h.b16 %v4194
    %v4566 = vunpack.c.l.b16 %v4195
    %v4567 = vunpack.c.h.b16 %v4195
    %v4568 = vunpack.c.l.b16 %v4196
    %v4569 = vunpack.c.h.b16 %v4196
    %v4570 = vunpack.c.l.b16 %v4197
    %v4571 = vunpack.c.h.b16 %v4197
    %v4572 = vunpack.c.l.b16 %v4198
    %v4573 = vunpack.c.h.b16 %v4198
    %v4574 = vunpack.c.l.b16 %v4199
    %v4575 = vunpack.c.h.b16 %v4199
    %v4576 = vunpack.c.l.b16 %v4200
    %v4577 = vunpack.c.h.b16 %v4200
    %v4578 = vunpack.c.l.b16 %v4201
    %v4579 = vunpack.c.h.b16 %v4201
    %v4580 = vunpack.c.l.b16 %v4202
    %v4581 = vunpack.c.h.b16 %v4202
    %v4582 = vunpack.c.l.b16 %v4203
    %v4583 = vunpack.c.h.b16 %v4203
    %v4584 = vunpack.c.l.b16 %v4204
    %v4585 = vunpack.c.h.b16 %v4204
    %v4586 = vunpack.c.l.b16 %v4205
    %v4587 = vunpack.c.h.b16 %v4205
    %v4588 = vunpack.c.l.b16 %v4206
    %v4589 = vunpack.c.h.b16 %v4206
    %v4590 = vunpack.c.l.b16 %v4207
    %v4591 = vunpack.c.h.b16 %v4207
    %v4592 = vunpack.c.l.b16 %v4208
    %v4593 = vunpack.c.h.b16 %v4208
    %v4594 = vunpack.c.l.b16 %v4209
    %v4595 = vunpack.c.h.b16 %v4209
    %v4596 = vunpack.c.l.b16 %v4210
    %v4597 = vunpack.c.h.b16 %v4210
    %v4598 = vunpack.c.l.b16 %v4211
    %v4599 = vunpack.c.h.b16 %v4211
    %v4600 = vunpack.c.l.b16 %v4212
    %v4601 = vunpack.c.h.b16 %v4212
    %v4602 = vunpack.c.l.b16 %v4213
    %v4603 = vunpack.c.h.b16 %v4213
    %v4604 = vunpack.c.l.b16 %v4214
    %v4605 = vunpack.c.h.b16 %v4214
    %v4606 = vunpack.c.l.b16 %v4215
    %v4607 = vunpack.c.h.b16 %v4215
    %v4608 = vunpack.c.l.b16 %v4216
    %v4609 = vunpack.c.h.b16 %v4216
    %v4610 = vunpack.c.l.b16 %v4217
    %v4611 = vunpack.c.h.b16 %v4217
    %v4612 = vunpack.c.l.b16 %v4218
    %v4613 = vunpack.c.h.b16 %v4218
    %v4614 = vunpack.c.l.b16 %v4219
    %v4615 = vunpack.c.h.b16 %v4219
    %v4616 = vunpack.c.l.b16 %v4220
    %v4617 = vunpack.c.h.b16 %v4220
    %v4618 = vunpack.c.l.b16 %v4221
    %v4619 = vunpack.c.h.b16 %v4221
    %v4620 = vunpack.c.l.b16 %v4222
    %v4621 = vunpack.c.h.b16 %v4222
    %v4622 = vunpack.c.l.b16 %v4223
    %v4623 = vunpack.c.h.b16 %v4223
    %v4624 = vunpack.c.l.b16 %v4224
    %v4625 = vunpack.c.h.b16 %v4224
    %v4626 = vunpack.c.l.b16 %v4225
    %v4627 = vunpack.c.h.b16 %v4225
    %v4628 = vunpack.c.l.b16 %v4226
    %v4629 = vunpack.c.h.b16 %v4226
    %v4630 = vunpack.c.l.b16 %v4227
    %v4631 = vunpack.c.h.b16 %v4227
    %v4632 = vunpack.c.l.b16 %v4228
    %v4633 = vunpack.c.h.b16 %v4228
    %v4634 = vunpack.c.l.b16 %v4229
    %v4635 = vunpack.c.h.b16 %v4229
    %v4636 = vunpack.c.l.b16 %v4230
    %v4637 = vunpack.c.h.b16 %v4230
    %v4638 = vunpack.c.l.b16 %v4231
    %v4639 = vunpack.c.h.b16 %v4231
    %v4640 = vunpack.c.l.b16 %v4232
    %v4641 = vunpack.c.h.b16 %v4232
    %v4642 = vunpack.c.l.b16 %v4233
    %v4643 = vunpack.c.h.b16 %v4233
    %v4644 = vunpack.c.l.b16 %v4234
    %v4645 = vunpack.c.h.b16 %v4234
    %v4646 = vunpack.c.l.b16 %v4235
    %v4647 = vunpack.c.h.b16 %v4235
    %v4648 = vunpack.c.l.b16 %v4236
    %v4649 = vunpack.c.h.b16 %v4236
    %v4650 = vunpack.c.l.b16 %v4237
    %v4651 = vunpack.c.h.b16 %v4237
    %v4652 = vunpack.c.l.b16 %v4238
    %v4653 = vunpack.c.h.b16 %v4238
    %v4654 = vunpack.c.l.b16 %v4239
    %v4655 = vunpack.c.h.b16 %v4239
    %v4656 = vunpack.c.l.b16 %v4240
    %v4657 = vunpack.c.h.b16 %v4240
    %v4658 = vunpack.c.l.b16 %v4241
    %v4659 = vunpack.c.h.b16 %v4241
    %v4660 = vunpack.c.l.b16 %v4242
    %v4661 = vunpack.c.h.b16 %v4242
    %v4662 = vunpack.c.l.b16 %v4243
    %v4663 = vunpack.c.h.b16 %v4243
    %v4664 = vunpack.c.l.b16 %v4244
    %v4665 = vunpack.c.h.b16 %v4244
    %v4666 = vunpack.c.l.b16 %v4245
    %v4667 = vunpack.c.h.b16 %v4245
    %v4668 = vunpack.c.l.b16 %v4246
    %v4669 = vunpack.c.h.b16 %v4246
    %v4670 = vunpack.c.l.b16 %v4247
    %v4671 = vunpack.c.h.b16 %v4247
    %v4672 = vunpack.c.l.b16 %v4248
    %v4673 = vunpack.c.h.b16 %v4248
    %v4674 = vunpack.c.l.b16 %v4249
    %v4675 = vunpack.c.h.b16 %v4249
    %v4676 = vunpack.c.l.b16 %v4250
    %v4677 = vunpack.c.h.b16 %v4250
    %v4678 = vunpack.c.l.b16 %v4251
    %v4679 = vunpack.c.h.b16 %v4251
    %v4680 = vunpack.c.l.b16 %v4252
    %v4681 = vunpack.c.h.b16 %v4252
    %v4682 = vunpack.c.l.b16 %v4253
    %v4683 = vunpack.c.h.b16 %v4253
    %v4684 = vunpack.c.l.b16 %v4254
    %v4685 = vunpack.c.h.b16 %v4254
    %v4686 = vunpack.c.l.b16 %v4255
    %v4687 = vunpack.c.h.b16 %v4255
    %v4688 = vpack.c.b16 %v4408, %v4400
    %v4689 = vpack.c.b16 %v4409, %v4401
    %v4690 = vpack.c.b16 %v4410, %v4402
    %v4691 = vpack.c.b16 %v4411, %v4403
    %v4692 = vpack.c.b16 %v4412, %v4404
    %v4693 = vpack.c.b16 %v4413, %v4405
    %v4694 = vpack.c.b16 %v4414, %v4406
    %v4695 = vpack.c.b16 %v4415, %v4407
    %v4696 = vpack.c.b16 %v4424, %v4416
    %v4697 = vpack.c.b16 %v4425, %v4417
    %v4698 = vpack.c.b16 %v4426, %v4418
    %v4699 = vpack.c.b16 %v4427, %v4419
    %v4700 = vpack.c.b16 %v4428, %v4420
    %v4701 = vpack.c.b16 %v4429, %v4421
    %v4702 = vpack.c.b16 %v4430, %v4422
    %v4703 = vpack.c.b16 %v4431, %v4423
    %v4704 = vpack.c.b16 %v4440, %v4432
    %v4705 = vpack.c.b16 %v4441, %v4433
    %v4706 = vpack.c.b16 %v4442, %v4434
    %v4707 = vpack.c.b16 %v4443, %v4435
    %v4708 = vpack.c.b16 %v4444, %v4436
    %v4709 = vpack.c.b16 %v4445, %v4437
    %v4710 = vpack.c.b16 %v4446, %v4438
    %v4711 = vpack.c.b16 %v4447, %v4439
    %v4712 = vpack.c.b16 %v4456, %v4448
    %v4713 = vpack.c.b16 %v4457, %v4449
    %v4714 = vpack.c.b16 %v4458, %v4450
    %v4715 = vpack.c.b16 %v4459, %v4451
    %v4716 = vpack.c.b16 %v4460, %v4452
    %v4717 = vpack.c.b16 %v4461, %v4453
    %v4718 = vpack.c.b16 %v4462, %v4454
    %v4719 = vpack.c.b16 %v4463, %v4455
    %v4720 = vpack.c.b16 %v4472, %v4464
    %v4721 = vpack.c.b16 %v4473, %v4465
    %v4722 = vpack.c.b16 %v4474, %v4466
    %v4723 = vpack.c.b16 %v4475, %v4467
    %v4724 = vpack.c.b16 %v4476, %v4468
    %v4725 = vpack.c.b16 %v4477, %v4469
    %v4726 = vpack.c.b16 %v4478, %v4470
    %v4727 = vpack.c.b16 %v4479, %v4471
    %v4728 = vpack.c.b16 %v4488, %v4480
    %v4729 = vpack.c.b16 %v4489, %v4481
    %v4730 = vpack.c.b16 %v4490, %v4482
    %v4731 = vpack.c.b16 %v4491, %v4483
    %v4732 = vpack.c.b16 %v4492, %v4484
    %v4733 = vpack.c.b16 %v4493, %v4485
    %v4734 = vpack.c.b16 %v4494, %v4486
    %v4735 = vpack.c.b16 %v4495, %v4487
    %v4736 = vpack.c.b16 %v4504, %v4496
    %v4737 = vpack.c.b16 %v4505, %v4497
    %v4738 = vpack.c.b16 %v4506, %v4498
    %v4739 = vpack.c.b16 %v4507, %v4499
    %v4740 = vpack.c.b16 %v4508, %v4500
    %v4741 = vpack.c.b16 %v4509, %v4501
    %v4742 = vpack.c.b16 %v4510, %v4502
    %v4743 = vpack.c.b16 %v4511, %v4503
    %v4744 = vpack.c.b16 %v4520, %v4512
    %v4745 = vpack.c.b16 %v4521, %v4513
    %v4746 = vpack.c.b16 %v4522, %v4514
    %v4747 = vpack.c.b16 %v4523, %v4515
    %v4748 = vpack.c.b16 %v4524, %v4516
    %v4749 = vpack.c.b16 %v4525, %v4517
    %v4750 = vpack.c.b16 %v4526, %v4518
    %v4751 = vpack.c.b16 %v4527, %v4519
    %v4752 = vpack.c.b16 %v4536, %v4528
    %v4753 = vpack.c.b16 %v4537, %v4529
    %v4754 = vpack.c.b16 %v4538, %v4530
    %v4755 = vpack.c.b16 %v4539, %v4531
    %v4756 = vpack.c.b16 %v4540, %v4532
    %v4757 = vpack.c.b16 %v4541, %v4533
    %v4758 = vpack.c.b16 %v4542, %v4534
    %v4759 = vpack.c.b16 %v4543, %v4535
    %v4760 = vpack.c.b16 %v4552, %v4544
    %v4761 = vpack.c.b16 %v4553, %v4545
    %v4762 = vpack.c.b16 %v4554, %v4546
    %v4763 = vpack.c.b16 %v4555, %v4547
    %v4764 = vpack.c.b16 %v4556, %v4548
    %v4765 = vpack.c.b16 %v4557, %v4549
    %v4766 = vpack.c.b16 %v4558, %v4550
    %v4767 = vpack.c.b16 %v4559, %v4551
    %v4768 = vpack.c.b16 %v4568, %v4560
    %v4769 = vpack.c.b16 %v4569, %v4561
    %v4770 = vpack.c.b16 %v4570, %v4562
    %v4771 = vpack.c.b16 %v4571, %v4563
    %v4772 = vpack.c.b16 %v4572, %v4564
    %v4773 = vpack.c.b16 %v4573, %v4565
    %v4774 = vpack.c.b16 %v4574, %v4566
    %v4775 = vpack.c.b16 %v4575, %v4567
    %v4776 = vpack.c.b16 %v4584, %v4576
    %v4777 = vpack.c.b16 %v4585, %v4577
    %v4778 = vpack.c.b16 %v4586, %v4578
    %v4779 = vpack.c.b16 %v4587, %v4579
    %v4780 = vpack.c.b16 %v4588, %v4580
    %v4781 = vpack.c.b16 %v4589, %v4581
    %v4782 = vpack.c.b16 %v4590, %v4582
    %v4783 = vpack.c.b16 %v4591, %v4583
    %v4784 = vpack.c.b16 %v4600, %v4592
    %v4785 = vpack.c.b16 %v4601, %v4593
    %v4786 = vpack.c.b16 %v4602, %v4594
    %v4787 = vpack.c.b16 %v4603, %v4595
    %v4788 = vpack.c.b16 %v4604, %v4596
    %v4789 = vpack.c.b16 %v4605, %v4597
    %v4790 = vpack.c.b16 %v4606, %v4598
    %v4791 = vpack.c.b16 %v4607, %v4599
    %v4792 = vpack.c.b16 %v4616, %v4608
    %v4793 = vpack.c.b16 %v4617, %v4609
    %v4794 = vpack.c.b16 %v4618, %v4610
    %v4795 = vpack.c.b16 %v4619, %v4611
    %v4796 = vpack.c.b16 %v4620, %v4612
    %v4797 = vpack.c.b16 %v4621, %v4613
    %v4798 = vpack.c.b16 %v4622, %v4614
    %v4799 = vpack.c.b16 %v4623, %v4615
    %v4800 = vpack.c.b16 %v4632, %v4624
    %v4801 = vpack.c.b16 %v4633, %v4625
    %v4802 = vpack.c.b16 %v4634, %v4626
    %v4803 = vpack.c.b16 %v4635, %v4627
    %v4804 = vpack.c.b16 %v4636, %v4628
    %v4805 = vpack.c.b16 %v4637, %v4629
    %v4806 = vpack.c.b16 %v4638, %v4630
    %v4807 = vpack.c.b16 %v4639, %v4631
    %v4808 = vpack.c.b16 %v4648, %v4640
    %v4809 = vpack.c.b16 %v4649, %v4641
    %v4810 = vpack.c.b16 %v4650, %v4642
    %v4811 = vpack.c.b16 %v4651, %v4643
    %v4812 = vpack.c.b16 %v4652, %v4644
    %v4813 = vpack.c.b16 %v4653, %v4645
    %v4814 = vpack.c.b16 %v4654, %v4646
    %v4815 = vpack.c.b16 %v4655, %v4647
    %v4816 = vpack.c.b16 %v4664, %v4656
    %v4817 = vpack.c.b16 %v4665, %v4657
    %v4818 = vpack.c.b16 %v4666, %v4658
    %v4819 = vpack.c.b16 %v4667, %v4659
    %v4820 = vpack.c.b16 %v4668, %v4660
    %v4821 = vpack.c.b16 %v4669, %v4661
    %v4822 = vpack.c.b16 %v4670, %v4662
    %v4823 = vpack.c.b16 %v4671, %v4663
    %v4824 = vpack.c.b16 %v4680, %v4672
    %v4825 = vpack.c.b16 %v4681, %v4673
    %v4826 = vpack.c.b16 %v4682, %v4674
    %v4827 = vpack.c.b16 %v4683, %v4675
    %v4828 = vpack.c.b16 %v4684, %v4676
    %v4829 = vpack.c.b16 %v4685, %v4677
    %v4830 = vpack.c.b16 %v4686, %v4678
    %v4831 = vpack.c.b16 %v4687, %v4679
    %4976 = vmatprep.subr.bf16.mxu0 %v4689
    %4977 = vmatpush1.bf16.msra.mxu0 %v4688
    %4978 = vmatprep.subr.bf16.mxu0 %v4697
    %4979 = vmatpush1.bf16.msra.mxu0 %v4696
    %4980 = vmatprep.subr.bf16.mxu0 %v4705
    %4981 = vmatpush1.bf16.msra.mxu0 %v4704
    %4982 = vmatprep.subr.bf16.mxu0 %v4713
    %4983 = vmatpush1.bf16.msra.mxu0 %v4712
    %4984 = vmatprep.subr.bf16.mxu0 %v4721
    %4985 = vmatpush1.bf16.msra.mxu0 %v4720
    %4986 = vmatprep.subr.bf16.mxu0 %v4729
    %4987 = vmatpush1.bf16.msra.mxu0 %v4728
    %4988 = vmatprep.subr.bf16.mxu0 %v4737
    %4989 = vmatpush1.bf16.msra.mxu0 %v4736
    %4990 = vmatprep.subr.bf16.mxu0 %v4745
    %4991 = vmatpush1.bf16.msra.mxu0 %v4744
    %4992 = vmatprep.subr.bf16.mxu0 %v4753
    %4993 = vmatpush1.bf16.msra.mxu0 %v4752
    %4994 = vmatprep.subr.bf16.mxu0 %v4761
    %4995 = vmatpush1.bf16.msra.mxu0 %v4760
    %4996 = vmatprep.subr.bf16.mxu0 %v4769
    %4997 = vmatpush1.bf16.msra.mxu0 %v4768
    %4998 = vmatprep.subr.bf16.mxu0 %v4777
    %4999 = vmatpush1.bf16.msra.mxu0 %v4776
    %5000 = vmatprep.subr.bf16.mxu0 %v4785
    %5001 = vmatpush1.bf16.msra.mxu0 %v4784
    %5002 = vmatprep.subr.bf16.mxu0 %v4793
    %5003 = vmatpush1.bf16.msra.mxu0 %v4792
    %5004 = vmatprep.subr.bf16.mxu0 %v4801
    %5005 = vmatpush1.bf16.msra.mxu0 %v4800
    %5006 = vmatprep.subr.bf16.mxu0 %v4809
    %5007 = vmatpush1.bf16.msra.mxu0 %v4808
    %5008 = vmatprep.mubr.bf16.mxu0 %v1410
    %5009 = vmatmul.mubr.bf16.gmra.mrb[0].mxu0 %v1409
    %v5010 = vpop.f32.mrb[0].mxu0
    %v5011 = vadd.f32 0.0, %v5010
    %v5012 = vpop.f32.mrb[0].mxu0
    %v5013 = vadd.f32 0.0, %v5012
    %v5014 = vpop.f32.mrb[0].mxu0
    %v5015 = vpop.f32.mrb[0].mxu0
    %5016 = vdwg.mxu0
    %5017 = vmatprep.subr.bf16.mxu0 %v4817
    %5018 = vmatpush1.bf16.msra.mxu0 %v4816
    %5019 = vmatprep.subr.bf16.mxu0 %v4825
    %5020 = vmatpush1.bf16.msra.mxu0 %v4824
    %5021 = vmatprep.subr.bf16.mxu0 0
    %5022 = vmatpush1.bf16.msra.mxu0 0
    %5023 = vmatprep.subr.bf16.mxu0 0
    %5024 = vmatpush1.bf16.msra.mxu0 0
    %5025 = vmatprep.subr.bf16.mxu0 0
    %5026 = vmatpush1.bf16.msra.mxu0 0
    %5027 = vmatprep.subr.bf16.mxu0 0
    %5028 = vmatpush1.bf16.msra.mxu0 0
    %5029 = vmatprep.subr.bf16.mxu0 0
    %5030 = vmatpush1.bf16.msra.mxu0 0
    %5031 = vmatprep.subr.bf16.mxu0 0
    %5032 = vmatpush1.bf16.msra.mxu0 0
    %5033 = vmatprep.subr.bf16.mxu0 0
    %5034 = vmatpush1.bf16.msra.mxu0 0
    %5035 = vmatprep.subr.bf16.mxu0 0
    %5036 = vmatpush1.bf16.msra.mxu0 0
    %5037 = vmatprep.subr.bf16.mxu0 0
    %5038 = vmatpush1.bf16.msra.mxu0 0
    %5039 = vmatprep.subr.bf16.mxu0 0
    %5040 = vmatpush1.bf16.msra.mxu0 0
    %5041 = vmatprep.subr.bf16.mxu0 0
    %5042 = vmatpush1.bf16.msra.mxu0 0
    %5043 = vmatprep.subr.bf16.mxu0 0
    %5044 = vmatpush1.bf16.msra.mxu0 0
    %5045 = vmatprep.subr.bf16.mxu0 0
    %5046 = vmatpush1.bf16.msra.mxu0 0
    %5047 = vmatprep.subr.bf16.mxu0 0
    %5048 = vmatpush1.bf16.msra.mxu0 0
    %5049 = vmatprep.mubr.bf16.mxu0 0
    %5050 = vmatmul.mubr.bf16.gmra.mrb[0].mxu0 %v1632
    %v5051 = vpop.f32.mrb[0].mxu0
    %v5052 = vadd.f32 %v5011, %v5051
    %v5053 = vpop.f32.mrb[0].mxu0
    %v5054 = vadd.f32 %v5013, %v5053
    %v5055 = vpop.f32.mrb[0].mxu0
    %v5056 = vpop.f32.mrb[0].mxu0
    %5057 = vdwg.mxu0
    %5058 = vmatprep.subr.bf16.mxu0 %v4691
    %5059 = vmatpush1.bf16.msra.mxu0 %v4690
    %5060 = vmatprep.subr.bf16.mxu0 %v4699
    %5061 = vmatpush1.bf16.msra.mxu0 %v4698
    %5062 = vmatprep.subr.bf16.mxu0 %v4707
    %5063 = vmatpush1.bf16.msra.mxu0 %v4706
    %5064 = vmatprep.subr.bf16.mxu0 %v4715
    %5065 = vmatpush1.bf16.msra.mxu0 %v4714
    %5066 = vmatprep.subr.bf16.mxu0 %v4723
    %5067 = vmatpush1.bf16.msra.mxu0 %v4722
    %5068 = vmatprep.subr.bf16.mxu0 %v4731
    %5069 = vmatpush1.bf16.msra.mxu0 %v4730
    %5070 = vmatprep.subr.bf16.mxu0 %v4739
    %5071 = vmatpush1.bf16.msra.mxu0 %v4738
    %5072 = vmatprep.subr.bf16.mxu0 %v4747
    %5073 = vmatpush1.bf16.msra.mxu0 %v4746
    %5074 = vmatprep.subr.bf16.mxu0 %v4755
    %5075 = vmatpush1.bf16.msra.mxu0 %v4754
    %5076 = vmatprep.subr.bf16.mxu0 %v4763
    %5077 = vmatpush1.bf16.msra.mxu0 %v4762
    %5078 = vmatprep.subr.bf16.mxu0 %v4771
    %5079 = vmatpush1.bf16.msra.mxu0 %v4770
    %5080 = vmatprep.subr.bf16.mxu0 %v4779
    %5081 = vmatpush1.bf16.msra.mxu0 %v4778
    %5082 = vmatprep.subr.bf16.mxu0 %v4787
    %5083 = vmatpush1.bf16.msra.mxu0 %v4786
    %5084 = vmatprep.subr.bf16.mxu0 %v4795
    %5085 = vmatpush1.bf16.msra.mxu0 %v4794
    %5086 = vmatprep.subr.bf16.mxu0 %v4803
    %5087 = vmatpush1.bf16.msra.mxu0 %v4802
    %5088 = vmatprep.subr.bf16.mxu0 %v4811
    %5089 = vmatpush1.bf16.msra.mxu0 %v4810
    %5090 = vmatprep.mubr.bf16.mxu0 %v1410
    %5091 = vmatmul.mubr.bf16.gmra.mrb[0].mxu0 %v1409
    %v5092 = vpop.f32.mrb[0].mxu0
    %v5093 = vadd.f32 0.0, %v5092
    %v5094 = vpop.f32.mrb[0].mxu0
    %v5095 = vadd.f32 0.0, %v5094
    %v5096 = vpop.f32.mrb[0].mxu0
    %v5097 = vpop.f32.mrb[0].mxu0
    %5098 = vdwg.mxu0
    %5099 = vmatprep.subr.bf16.mxu0 %v4819
    %5100 = vmatpush1.bf16.msra.mxu0 %v4818
    %5101 = vmatprep.subr.bf16.mxu0 %v4827
    %5102 = vmatpush1.bf16.msra.mxu0 %v4826
    %5103 = vmatprep.subr.bf16.mxu0 0
    %5104 = vmatpush1.bf16.msra.mxu0 0
    %5105 = vmatprep.subr.bf16.mxu0 0
    %5106 = vmatpush1.bf16.msra.mxu0 0
    %5107 = vmatprep.subr.bf16.mxu0 0
    %5108 = vmatpush1.bf16.msra.mxu0 0
    %5109 = vmatprep.subr.bf16.mxu0 0
    %5110 = vmatpush1.bf16.msra.mxu0 0
    %5111 = vmatprep.subr.bf16.mxu0 0
    %5112 = vmatpush1.bf16.msra.mxu0 0
    %5113 = vmatprep.subr.bf16.mxu0 0
    %5114 = vmatpush1.bf16.msra.mxu0 0
    %5115 = vmatprep.subr.bf16.mxu0 0
    %5116 = vmatpush1.bf16.msra.mxu0 0
    %5117 = vmatprep.subr.bf16.mxu0 0
    %5118 = vmatpush1.bf16.msra.mxu0 0
    %5119 = vmatprep.subr.bf16.mxu0 0
    %5120 = vmatpush1.bf16.msra.mxu0 0
    %5121 = vmatprep.subr.bf16.mxu0 0
    %5122 = vmatpush1.bf16.msra.mxu0 0
    %5123 = vmatprep.subr.bf16.mxu0 0
    %5124 = vmatpush1.bf16.msra.mxu0 0
    %5125 = vmatprep.subr.bf16.mxu0 0
    %5126 = vmatpush1.bf16.msra.mxu0 0
    %5127 = vmatprep.subr.bf16.mxu0 0
    %5128 = vmatpush1.bf16.msra.mxu0 0
    %5129 = vmatprep.subr.bf16.mxu0 0
    %5130 = vmatpush1.bf16.msra.mxu0 0
    %5131 = vmatprep.mubr.bf16.mxu0 0
    %5132 = vmatmul.mubr.bf16.gmra.mrb[0].mxu0 %v1632
    %v5133 = vpop.f32.mrb[0].mxu0
    %v5134 = vadd.f32 %v5093, %v5133
    %v5135 = vpop.f32.mrb[0].mxu0
    %v5136 = vadd.f32 %v5095, %v5135
    %v5137 = vpop.f32.mrb[0].mxu0
    %v5138 = vpop.f32.mrb[0].mxu0
    %5139 = vdwg.mxu0
    %5140 = vmatprep.subr.bf16.mxu0 %v4693
    %5141 = vmatpush1.bf16.msra.mxu0 %v4692
    %5142 = vmatprep.subr.bf16.mxu0 %v4701
    %5143 = vmatpush1.bf16.msra.mxu0 %v4700
    %5144 = vmatprep.subr.bf16.mxu0 %v4709
    %5145 = vmatpush1.bf16.msra.mxu0 %v4708
    %5146 = vmatprep.subr.bf16.mxu0 %v4717
    %5147 = vmatpush1.bf16.msra.mxu0 %v4716
    %5148 = vmatprep.subr.bf16.mxu0 %v4725
    %5149 = vmatpush1.bf16.msra.mxu0 %v4724
    %5150 = vmatprep.subr.bf16.mxu0 %v4733
    %5151 = vmatpush1.bf16.msra.mxu0 %v4732
    %5152 = vmatprep.subr.bf16.mxu0 %v4741
    %5153 = vmatpush1.bf16.msra.mxu0 %v4740
    %5154 = vmatprep.subr.bf16.mxu0 %v4749
    %5155 = vmatpush1.bf16.msra.mxu0 %v4748
    %5156 = vmatprep.subr.bf16.mxu0 %v4757
    %5157 = vmatpush1.bf16.msra.mxu0 %v4756
    %5158 = vmatprep.subr.bf16.mxu0 %v4765
    %5159 = vmatpush1.bf16.msra.mxu0 %v4764
    %5160 = vmatprep.subr.bf16.mxu0 %v4773
    %5161 = vmatpush1.bf16.msra.mxu0 %v4772
    %5162 = vmatprep.subr.bf16.mxu0 %v4781
    %5163 = vmatpush1.bf16.msra.mxu0 %v4780
    %5164 = vmatprep.subr.bf16.mxu0 %v4789
    %5165 = vmatpush1.bf16.msra.mxu0 %v4788
    %5166 = vmatprep.subr.bf16.mxu0 %v4797
    %5167 = vmatpush1.bf16.msra.mxu0 %v4796
    %5168 = vmatprep.subr.bf16.mxu0 %v4805
    %5169 = vmatpush1.bf16.msra.mxu0 %v4804
    %5170 = vmatprep.subr.bf16.mxu0 %v4813
    %5171 = vmatpush1.bf16.msra.mxu0 %v4812
    %5172 = vmatprep.mubr.bf16.mxu0 %v1410
    %5173 = vmatmul.mubr.bf16.gmra.mrb[0].mxu0 %v1409
    %v5174 = vpop.f32.mrb[0].mxu0
    %v5175 = vadd.f32 0.0, %v5174
    %v5176 = vpop.f32.mrb[0].mxu0
    %v5177 = vadd.f32 0.0, %v5176
    %v5178 = vpop.f32.mrb[0].mxu0
    %v5179 = vpop.f32.mrb[0].mxu0
    %5180 = vdwg.mxu0
    %5181 = vmatprep.subr.bf16.mxu0 %v4821
    %5182 = vmatpush1.bf16.msra.mxu0 %v4820
    %5183 = vmatprep.subr.bf16.mxu0 %v4829
    %5184 = vmatpush1.bf16.msra.mxu0 %v4828
    %5185 = vmatprep.subr.bf16.mxu0 0
    %5186 = vmatpush1.bf16.msra.mxu0 0
    %5187 = vmatprep.subr.bf16.mxu0 0
    %5188 = vmatpush1.bf16.msra.mxu0 0
    %5189 = vmatprep.subr.bf16.mxu0 0
    %5190 = vmatpush1.bf16.msra.mxu0 0
    %5191 = vmatprep.subr.bf16.mxu0 0
    %5192 = vmatpush1.bf16.msra.mxu0 0
    %5193 = vmatprep.subr.bf16.mxu0 0
    %5194 = vmatpush1.bf16.msra.mxu0 0
    %5195 = vmatprep.subr.bf16.mxu0 0
    %5196 = vmatpush1.bf16.msra.mxu0 0
    %5197 = vmatprep.subr.bf16.mxu0 0
    %5198 = vmatpush1.bf16.msra.mxu0 0
    %5199 = vmatprep.subr.bf16.mxu0 0
    %5200 = vmatpush1.bf16.msra.mxu0 0
    %5201 = vmatprep.subr.bf16.mxu0 0
    %5202 = vmatpush1.bf16.msra.mxu0 0
    %5203 = vmatprep.subr.bf16.mxu0 0
    %5204 = vmatpush1.bf16.msra.mxu0 0
    %5205 = vmatprep.subr.bf16.mxu0 0
    %5206 = vmatpush1.bf16.msra.mxu0 0
    %5207 = vmatprep.subr.bf16.mxu0 0
    %5208 = vmatpush1.bf16.msra.mxu0 0
    %5209 = vmatprep.subr.bf16.mxu0 0
    %5210 = vmatpush1.bf16.msra.mxu0 0
    %5211 = vmatprep.subr.bf16.mxu0 0
    %5212 = vmatpush1.bf16.msra.mxu0 0
    %5213 = vmatprep.mubr.bf16.mxu0 0
    %5214 = vmatmul.mubr.bf16.gmra.mrb[0].mxu0 %v1632
    %v5215 = vpop.f32.mrb[0].mxu0
    %v5216 = vadd.f32 %v5175, %v5215
    %v5217 = vpop.f32.mrb[0].mxu0
    %v5218 = vadd.f32 %v5177, %v5217
    %v5219 = vpop.f32.mrb[0].mxu0
    %v5220 = vpop.f32.mrb[0].mxu0
    %5221 = vdwg.mxu0
    %5222 = vmatprep.subr.bf16.mxu0 %v4695
    %5223 = vmatpush1.bf16.msra.mxu0 %v4694
    %5224 = vmatprep.subr.bf16.mxu0 %v4703
    %5225 = vmatpush1.bf16.msra.mxu0 %v4702
    %5226 = vmatprep.subr.bf16.mxu0 %v4711
    %5227 = vmatpush1.bf16.msra.mxu0 %v4710
    %5228 = vmatprep.subr.bf16.mxu0 %v4719
    %5229 = vmatpush1.bf16.msra.mxu0 %v4718
    %5230 = vmatprep.subr.bf16.mxu0 %v4727
    %5231 = vmatpush1.bf16.msra.mxu0 %v4726
    %5232 = vmatprep.subr.bf16.mxu0 %v4735
    %5233 = vmatpush1.bf16.msra.mxu0 %v4734
    %5234 = vmatprep.subr.bf16.mxu0 %v4743
    %5235 = vmatpush1.bf16.msra.mxu0 %v4742
    %5236 = vmatprep.subr.bf16.mxu0 %v4751
    %5237 = vmatpush1.bf16.msra.mxu0 %v4750
    %5238 = vmatprep.subr.bf16.mxu0 %v4759
    %5239 = vmatpush1.bf16.msra.mxu0 %v4758
    %5240 = vmatprep.subr.bf16.mxu0 %v4767
    %5241 = vmatpush1.bf16.msra.mxu0 %v4766
    %5242 = vmatprep.subr.bf16.mxu0 %v4775
    %5243 = vmatpush1.bf16.msra.mxu0 %v4774
    %5244 = vmatprep.subr.bf16.mxu0 %v4783
    %5245 = vmatpush1.bf16.msra.mxu0 %v4782
    %5246 = vmatprep.subr.bf16.mxu0 %v4791
    %5247 = vmatpush1.bf16.msra.mxu0 %v4790
    %5248 = vmatprep.subr.bf16.mxu0 %v4799
    %5249 = vmatpush1.bf16.msra.mxu0 %v4798
    %5250 = vmatprep.subr.bf16.mxu0 %v4807
    %5251 = vmatpush1.bf16.msra.mxu0 %v4806
    %5252 = vmatprep.subr.bf16.mxu0 %v4815
    %5253 = vmatpush1.bf16.msra.mxu0 %v4814
    %5254 = vmatprep.mubr.bf16.mxu0 %v1410
    %5255 = vmatmul.mubr.bf16.gmra.mrb[0].mxu0 %v1409
    %v5256 = vpop.f32.mrb[0].mxu0
    %v5257 = vadd.f32 0.0, %v5256
    %v5258 = vpop.f32.mrb[0].mxu0
    %v5259 = vadd.f32 0.0, %v5258
    %v5260 = vpop.f32.mrb[0].mxu0
    %v5261 = vpop.f32.mrb[0].mxu0
    %5262 = vdwg.mxu0
    %5263 = vmatprep.subr.bf16.mxu0 %v4823
    %5264 = vmatpush1.bf16.msra.mxu0 %v4822
    %5265 = vmatprep.subr.bf16.mxu0 %v4831
    %5266 = vmatpush1.bf16.msra.mxu0 %v4830
    %5267 = vmatprep.subr.bf16.mxu0 0
    %5268 = vmatpush1.bf16.msra.mxu0 0
    %5269 = vmatprep.subr.bf16.mxu0 0
    %5270 = vmatpush1.bf16.msra.mxu0 0
    %5271 = vmatprep.subr.bf16.mxu0 0
    %5272 = vmatpush1.bf16.msra.mxu0 0
    %5273 = vmatprep.subr.bf16.mxu0 0
    %5274 = vmatpush1.bf16.msra.mxu0 0
    %5275 = vmatprep.subr.bf16.mxu0 0
    %5276 = vmatpush1.bf16.msra.mxu0 0
    %5277 = vmatprep.subr.bf16.mxu0 0
    %5278 = vmatpush1.bf16.msra.mxu0 0
    %5279 = vmatprep.subr.bf16.mxu0 0
    %5280 = vmatpush1.bf16.msra.mxu0 0
    %5281 = vmatprep.subr.bf16.mxu0 0
    %5282 = vmatpush1.bf16.msra.mxu0 0
    %5283 = vmatprep.subr.bf16.mxu0 0
    %5284 = vmatpush1.bf16.msra.mxu0 0
    %5285 = vmatprep.subr.bf16.mxu0 0
    %5286 = vmatpush1.bf16.msra.mxu0 0
    %5287 = vmatprep.subr.bf16.mxu0 0
    %5288 = vmatpush1.bf16.msra.mxu0 0
    %5289 = vmatprep.subr.bf16.mxu0 0
    %5290 = vmatpush1.bf16.msra.mxu0 0
    %5291 = vmatprep.subr.bf16.mxu0 0
    %5292 = vmatpush1.bf16.msra.mxu0 0
    %5293 = vmatprep.subr.bf16.mxu0 0
    %5294 = vmatpush1.bf16.msra.mxu0 0
    %5295 = vmatprep.mubr.bf16.mxu0 0
    %5296 = vmatmul.mubr.bf16.gmra.mrb[0].mxu0 %v1632
    %v5297 = vpop.f32.mrb[0].mxu0
    %v5298 = vadd.f32 %v5257, %v5297
    %v5299 = vpop.f32.mrb[0].mxu0
    %v5300 = vadd.f32 %v5259, %v5299
    %v5301 = vpop.f32.mrb[0].mxu0
    %v5302 = vpop.f32.mrb[0].mxu0
    %5303 = vdwg.mxu0
    %v5448 = vunpack.c.l.b16 %v3968
    %v5449 = vunpack.c.h.b16 %v3968
    %v5450 = vunpack.c.l.b16 %v3969
    %v5451 = vunpack.c.h.b16 %v3969
    %v5452 = vunpack.c.l.b16 %v3970
    %v5453 = vunpack.c.h.b16 %v3970
    %v5454 = vunpack.c.l.b16 %v3971
    %v5455 = vunpack.c.h.b16 %v3971
    %v5456 = vunpack.c.l.b16 %v3972
    %v5457 = vunpack.c.h.b16 %v3972
    %v5458 = vunpack.c.l.b16 %v3973
    %v5459 = vunpack.c.h.b16 %v3973
    %v5460 = vunpack.c.l.b16 %v3974
    %v5461 = vunpack.c.h.b16 %v3974
    %v5462 = vunpack.c.l.b16 %v3975
    %v5463 = vunpack.c.h.b16 %v3975
    %v5464 = vunpack.c.l.b16 %v3976
    %v5465 = vunpack.c.h.b16 %v3976
    %v5466 = vunpack.c.l.b16 %v3977
    %v5467 = vunpack.c.h.b16 %v3977
    %v5468 = vunpack.c.l.b16 %v3978
    %v5469 = vunpack.c.h.b16 %v3978
    %v5470 = vunpack.c.l.b16 %v3979
    %v5471 = vunpack.c.h.b16 %v3979
    %v5472 = vunpack.c.l.b16 %v3980
    %v5473 = vunpack.c.h.b16 %v3980
    %v5474 = vunpack.c.l.b16 %v3981
    %v5475 = vunpack.c.h.b16 %v3981
    %v5476 = vunpack.c.l.b16 %v3982
    %v5477 = vunpack.c.h.b16 %v3982
    %v5478 = vunpack.c.l.b16 %v3983
    %v5479 = vunpack.c.h.b16 %v3983
    %v5480 = vunpack.c.l.b16 %v3984
    %v5481 = vunpack.c.h.b16 %v3984
    %v5482 = vunpack.c.l.b16 %v3985
    %v5483 = vunpack.c.h.b16 %v3985
    %v5484 = vunpack.c.l.b16 %v3986
    %v5485 = vunpack.c.h.b16 %v3986
    %v5486 = vunpack.c.l.b16 %v3987
    %v5487 = vunpack.c.h.b16 %v3987
    %v5488 = vunpack.c.l.b16 %v3988
    %v5489 = vunpack.c.h.b16 %v3988
    %v5490 = vunpack.c.l.b16 %v3989
    %v5491 = vunpack.c.h.b16 %v3989
    %v5492 = vunpack.c.l.b16 %v3990
    %v5493 = vunpack.c.h.b16 %v3990
    %v5494 = vunpack.c.l.b16 %v3991
    %v5495 = vunpack.c.h.b16 %v3991
    %v5496 = vunpack.c.l.b16 %v3992
    %v5497 = vunpack.c.h.b16 %v3992
    %v5498 = vunpack.c.l.b16 %v3993
    %v5499 = vunpack.c.h.b16 %v3993
    %v5500 = vunpack.c.l.b16 %v3994
    %v5501 = vunpack.c.h.b16 %v3994
    %v5502 = vunpack.c.l.b16 %v3995
    %v5503 = vunpack.c.h.b16 %v3995
    %v5504 = vunpack.c.l.b16 %v3996
    %v5505 = vunpack.c.h.b16 %v3996
    %v5506 = vunpack.c.l.b16 %v3997
    %v5507 = vunpack.c.h.b16 %v3997
    %v5508 = vunpack.c.l.b16 %v3998
    %v5509 = vunpack.c.h.b16 %v3998
    %v5510 = vunpack.c.l.b16 %v3999
    %v5511 = vunpack.c.h.b16 %v3999
    %v5512 = vunpack.c.l.b16 %v4000
    %v5513 = vunpack.c.h.b16 %v4000
    %v5514 = vunpack.c.l.b16 %v4001
    %v5515 = vunpack.c.h.b16 %v4001
    %v5516 = vunpack.c.l.b16 %v4002
    %v5517 = vunpack.c.h.b16 %v4002
    %v5518 = vunpack.c.l.b16 %v4003
    %v5519 = vunpack.c.h.b16 %v4003
    %v5520 = vunpack.c.l.b16 %v4004
    %v5521 = vunpack.c.h.b16 %v4004
    %v5522 = vunpack.c.l.b16 %v4005
    %v5523 = vunpack.c.h.b16 %v4005
    %v5524 = vunpack.c.l.b16 %v4006
    %v5525 = vunpack.c.h.b16 %v4006
    %v5526 = vunpack.c.l.b16 %v4007
    %v5527 = vunpack.c.h.b16 %v4007
    %v5528 = vunpack.c.l.b16 %v4008
    %v5529 = vunpack.c.h.b16 %v4008
    %v5530 = vunpack.c.l.b16 %v4009
    %v5531 = vunpack.c.h.b16 %v4009
    %v5532 = vunpack.c.l.b16 %v4010
    %v5533 = vunpack.c.h.b16 %v4010
    %v5534 = vunpack.c.l.b16 %v4011
    %v5535 = vunpack.c.h.b16 %v4011
    %v5536 = vunpack.c.l.b16 %v4012
    %v5537 = vunpack.c.h.b16 %v4012
    %v5538 = vunpack.c.l.b16 %v4013
    %v5539 = vunpack.c.h.b16 %v4013
    %v5540 = vunpack.c.l.b16 %v4014
    %v5541 = vunpack.c.h.b16 %v4014
    %v5542 = vunpack.c.l.b16 %v4015
    %v5543 = vunpack.c.h.b16 %v4015
    %v5544 = vunpack.c.l.b16 %v4016
    %v5545 = vunpack.c.h.b16 %v4016
    %v5546 = vunpack.c.l.b16 %v4017
    %v5547 = vunpack.c.h.b16 %v4017
    %v5548 = vunpack.c.l.b16 %v4018
    %v5549 = vunpack.c.h.b16 %v4018
    %v5550 = vunpack.c.l.b16 %v4019
    %v5551 = vunpack.c.h.b16 %v4019
    %v5552 = vunpack.c.l.b16 %v4020
    %v5553 = vunpack.c.h.b16 %v4020
    %v5554 = vunpack.c.l.b16 %v4021
    %v5555 = vunpack.c.h.b16 %v4021
    %v5556 = vunpack.c.l.b16 %v4022
    %v5557 = vunpack.c.h.b16 %v4022
    %v5558 = vunpack.c.l.b16 %v4023
    %v5559 = vunpack.c.h.b16 %v4023
    %v5560 = vunpack.c.l.b16 %v4024
    %v5561 = vunpack.c.h.b16 %v4024
    %v5562 = vunpack.c.l.b16 %v4025
    %v5563 = vunpack.c.h.b16 %v4025
    %v5564 = vunpack.c.l.b16 %v4026
    %v5565 = vunpack.c.h.b16 %v4026
    %v5566 = vunpack.c.l.b16 %v4027
    %v5567 = vunpack.c.h.b16 %v4027
    %v5568 = vunpack.c.l.b16 %v4028
    %v5569 = vunpack.c.h.b16 %v4028
    %v5570 = vunpack.c.l.b16 %v4029
    %v5571 = vunpack.c.h.b16 %v4029
    %v5572 = vunpack.c.l.b16 %v4030
    %v5573 = vunpack.c.h.b16 %v4030
    %v5574 = vunpack.c.l.b16 %v4031
    %v5575 = vunpack.c.h.b16 %v4031
    %v5576 = vunpack.c.l.b16 %v4032
    %v5577 = vunpack.c.h.b16 %v4032
    %v5578 = vunpack.c.l.b16 %v4033
    %v5579 = vunpack.c.h.b16 %v4033
    %v5580 = vunpack.c.l.b16 %v4034
    %v5581 = vunpack.c.h.b16 %v4034
    %v5582 = vunpack.c.l.b16 %v4035
    %v5583 = vunpack.c.h.b16 %v4035
    %v5584 = vunpack.c.l.b16 %v4036
    %v5585 = vunpack.c.h.b16 %v4036
    %v5586 = vunpack.c.l.b16 %v4037
    %v5587 = vunpack.c.h.b16 %v4037
    %v5588 = vunpack.c.l.b16 %v4038
    %v5589 = vunpack.c.h.b16 %v4038
    %v5590 = vunpack.c.l.b16 %v4039
    %v5591 = vunpack.c.h.b16 %v4039
    %v5592 = vunpack.c.l.b16 %v4040
    %v5593 = vunpack.c.h.b16 %v4040
    %v5594 = vunpack.c.l.b16 %v4041
    %v5595 = vunpack.c.h.b16 %v4041
    %v5596 = vunpack.c.l.b16 %v4042
    %v5597 = vunpack.c.h.b16 %v4042
    %v5598 = vunpack.c.l.b16 %v4043
    %v5599 = vunpack.c.h.b16 %v4043
    %v5600 = vunpack.c.l.b16 %v4044
    %v5601 = vunpack.c.h.b16 %v4044
    %v5602 = vunpack.c.l.b16 %v4045
    %v5603 = vunpack.c.h.b16 %v4045
    %v5604 = vunpack.c.l.b16 %v4046
    %v5605 = vunpack.c.h.b16 %v4046
    %v5606 = vunpack.c.l.b16 %v4047
    %v5607 = vunpack.c.h.b16 %v4047
    %v5608 = vunpack.c.l.b16 %v4048
    %v5609 = vunpack.c.h.b16 %v4048
    %v5610 = vunpack.c.l.b16 %v4049
    %v5611 = vunpack.c.h.b16 %v4049
    %v5612 = vunpack.c.l.b16 %v4050
    %v5613 = vunpack.c.h.b16 %v4050
    %v5614 = vunpack.c.l.b16 %v4051
    %v5615 = vunpack.c.h.b16 %v4051
    %v5616 = vunpack.c.l.b16 %v4052
    %v5617 = vunpack.c.h.b16 %v4052
    %v5618 = vunpack.c.l.b16 %v4053
    %v5619 = vunpack.c.h.b16 %v4053
    %v5620 = vunpack.c.l.b16 %v4054
    %v5621 = vunpack.c.h.b16 %v4054
    %v5622 = vunpack.c.l.b16 %v4055
    %v5623 = vunpack.c.h.b16 %v4055
    %v5624 = vunpack.c.l.b16 %v4056
    %v5625 = vunpack.c.h.b16 %v4056
    %v5626 = vunpack.c.l.b16 %v4057
    %v5627 = vunpack.c.h.b16 %v4057
    %v5628 = vunpack.c.l.b16 %v4058
    %v5629 = vunpack.c.h.b16 %v4058
    %v5630 = vunpack.c.l.b16 %v4059
    %v5631 = vunpack.c.h.b16 %v4059
    %v5632 = vunpack.c.l.b16 %v4060
    %v5633 = vunpack.c.h.b16 %v4060
    %v5634 = vunpack.c.l.b16 %v4061
    %v5635 = vunpack.c.h.b16 %v4061
    %v5636 = vunpack.c.l.b16 %v4062
    %v5637 = vunpack.c.h.b16 %v4062
    %v5638 = vunpack.c.l.b16 %v4063
    %v5639 = vunpack.c.h.b16 %v4063
    %v5640 = vunpack.c.l.b16 %v4064
    %v5641 = vunpack.c.h.b16 %v4064
    %v5642 = vunpack.c.l.b16 %v4065
    %v5643 = vunpack.c.h.b16 %v4065
    %v5644 = vunpack.c.l.b16 %v4066
    %v5645 = vunpack.c.h.b16 %v4066
    %v5646 = vunpack.c.l.b16 %v4067
    %v5647 = vunpack.c.h.b16 %v4067
    %v5648 = vunpack.c.l.b16 %v4068
    %v5649 = vunpack.c.h.b16 %v4068
    %v5650 = vunpack.c.l.b16 %v4069
    %v5651 = vunpack.c.h.b16 %v4069
    %v5652 = vunpack.c.l.b16 %v4070
    %v5653 = vunpack.c.h.b16 %v4070
    %v5654 = vunpack.c.l.b16 %v4071
    %v5655 = vunpack.c.h.b16 %v4071
    %v5656 = vunpack.c.l.b16 %v4072
    %v5657 = vunpack.c.h.b16 %v4072
    %v5658 = vunpack.c.l.b16 %v4073
    %v5659 = vunpack.c.h.b16 %v4073
    %v5660 = vunpack.c.l.b16 %v4074
    %v5661 = vunpack.c.h.b16 %v4074
    %v5662 = vunpack.c.l.b16 %v4075
    %v5663 = vunpack.c.h.b16 %v4075
    %v5664 = vunpack.c.l.b16 %v4076
    %v5665 = vunpack.c.h.b16 %v4076
    %v5666 = vunpack.c.l.b16 %v4077
    %v5667 = vunpack.c.h.b16 %v4077
    %v5668 = vunpack.c.l.b16 %v4078
    %v5669 = vunpack.c.h.b16 %v4078
    %v5670 = vunpack.c.l.b16 %v4079
    %v5671 = vunpack.c.h.b16 %v4079
    %v5672 = vunpack.c.l.b16 %v4080
    %v5673 = vunpack.c.h.b16 %v4080
    %v5674 = vunpack.c.l.b16 %v4081
    %v5675 = vunpack.c.h.b16 %v4081
    %v5676 = vunpack.c.l.b16 %v4082
    %v5677 = vunpack.c.h.b16 %v4082
    %v5678 = vunpack.c.l.b16 %v4083
    %v5679 = vunpack.c.h.b16 %v4083
    %v5680 = vunpack.c.l.b16 %v4084
    %v5681 = vunpack.c.h.b16 %v4084
    %v5682 = vunpack.c.l.b16 %v4085
    %v5683 = vunpack.c.h.b16 %v4085
    %v5684 = vunpack.c.l.b16 %v4086
    %v5685 = vunpack.c.h.b16 %v4086
    %v5686 = vunpack.c.l.b16 %v4087
    %v5687 = vunpack.c.h.b16 %v4087
    %v5688 = vunpack.c.l.b16 %v4088
    %v5689 = vunpack.c.h.b16 %v4088
    %v5690 = vunpack.c.l.b16 %v4089
    %v5691 = vunpack.c.h.b16 %v4089
    %v5692 = vunpack.c.l.b16 %v4090
    %v5693 = vunpack.c.h.b16 %v4090
    %v5694 = vunpack.c.l.b16 %v4091
    %v5695 = vunpack.c.h.b16 %v4091
    %v5696 = vunpack.c.l.b16 %v4092
    %v5697 = vunpack.c.h.b16 %v4092
    %v5698 = vunpack.c.l.b16 %v4093
    %v5699 = vunpack.c.h.b16 %v4093
    %v5700 = vunpack.c.l.b16 %v4094
    %v5701 = vunpack.c.h.b16 %v4094
    %v5702 = vunpack.c.l.b16 %v4095
    %v5703 = vunpack.c.h.b16 %v4095
    %v5704 = vunpack.c.l.b16 %v4096
    %v5705 = vunpack.c.h.b16 %v4096
    %v5706 = vunpack.c.l.b16 %v4097
    %v5707 = vunpack.c.h.b16 %v4097
    %v5708 = vunpack.c.l.b16 %v4098
    %v5709 = vunpack.c.h.b16 %v4098
    %v5710 = vunpack.c.l.b16 %v4099
    %v5711 = vunpack.c.h.b16 %v4099
    %v5712 = vunpack.c.l.b16 %v4100
    %v5713 = vunpack.c.h.b16 %v4100
    %v5714 = vunpack.c.l.b16 %v4101
    %v5715 = vunpack.c.h.b16 %v4101
    %v5716 = vunpack.c.l.b16 %v4102
    %v5717 = vunpack.c.h.b16 %v4102
    %v5718 = vunpack.c.l.b16 %v4103
    %v5719 = vunpack.c.h.b16 %v4103
    %v5720 = vunpack.c.l.b16 %v4104
    %v5721 = vunpack.c.h.b16 %v4104
    %v5722 = vunpack.c.l.b16 %v4105
    %v5723 = vunpack.c.h.b16 %v4105
    %v5724 = vunpack.c.l.b16 %v4106
    %v5725 = vunpack.c.h.b16 %v4106
    %v5726 = vunpack.c.l.b16 %v4107
    %v5727 = vunpack.c.h.b16 %v4107
    %v5728 = vunpack.c.l.b16 %v4108
    %v5729 = vunpack.c.h.b16 %v4108
    %v5730 = vunpack.c.l.b16 %v4109
    %v5731 = vunpack.c.h.b16 %v4109
    %v5732 = vunpack.c.l.b16 %v4110
    %v5733 = vunpack.c.h.b16 %v4110
    %v5734 = vunpack.c.l.b16 %v4111
    %v5735 = vunpack.c.h.b16 %v4111
    %v5736 = vpack.c.b16 %v5456, %v5448
    %v5737 = vpack.c.b16 %v5457, %v5449
    %v5738 = vpack.c.b16 %v5458, %v5450
    %v5739 = vpack.c.b16 %v5459, %v5451
    %v5740 = vpack.c.b16 %v5460, %v5452
    %v5741 = vpack.c.b16 %v5461, %v5453
    %v5742 = vpack.c.b16 %v5462, %v5454
    %v5743 = vpack.c.b16 %v5463, %v5455
    %v5744 = vpack.c.b16 %v5472, %v5464
    %v5745 = vpack.c.b16 %v5473, %v5465
    %v5746 = vpack.c.b16 %v5474, %v5466
    %v5747 = vpack.c.b16 %v5475, %v5467
    %v5748 = vpack.c.b16 %v5476, %v5468
    %v5749 = vpack.c.b16 %v5477, %v5469
    %v5750 = vpack.c.b16 %v5478, %v5470
    %v5751 = vpack.c.b16 %v5479, %v5471
    %v5752 = vpack.c.b16 %v5488, %v5480
    %v5753 = vpack.c.b16 %v5489, %v5481
    %v5754 = vpack.c.b16 %v5490, %v5482
    %v5755 = vpack.c.b16 %v5491, %v5483
    %v5756 = vpack.c.b16 %v5492, %v5484
    %v5757 = vpack.c.b16 %v5493, %v5485
    %v5758 = vpack.c.b16 %v5494, %v5486
    %v5759 = vpack.c.b16 %v5495, %v5487
    %v5760 = vpack.c.b16 %v5504, %v5496
    %v5761 = vpack.c.b16 %v5505, %v5497
    %v5762 = vpack.c.b16 %v5506, %v5498
    %v5763 = vpack.c.b16 %v5507, %v5499
    %v5764 = vpack.c.b16 %v5508, %v5500
    %v5765 = vpack.c.b16 %v5509, %v5501
    %v5766 = vpack.c.b16 %v5510, %v5502
    %v5767 = vpack.c.b16 %v5511, %v5503
    %v5768 = vpack.c.b16 %v5520, %v5512
    %v5769 = vpack.c.b16 %v5521, %v5513
    %v5770 = vpack.c.b16 %v5522, %v5514
    %v5771 = vpack.c.b16 %v5523, %v5515
    %v5772 = vpack.c.b16 %v5524, %v5516
    %v5773 = vpack.c.b16 %v5525, %v5517
    %v5774 = vpack.c.b16 %v5526, %v5518
    %v5775 = vpack.c.b16 %v5527, %v5519
    %v5776 = vpack.c.b16 %v5536, %v5528
    %v5777 = vpack.c.b16 %v5537, %v5529
    %v5778 = vpack.c.b16 %v5538, %v5530
    %v5779 = vpack.c.b16 %v5539, %v5531
    %v5780 = vpack.c.b16 %v5540, %v5532
    %v5781 = vpack.c.b16 %v5541, %v5533
    %v5782 = vpack.c.b16 %v5542, %v5534
    %v5783 = vpack.c.b16 %v5543, %v5535
    %v5784 = vpack.c.b16 %v5552, %v5544
    %v5785 = vpack.c.b16 %v5553, %v5545
    %v5786 = vpack.c.b16 %v5554, %v5546
    %v5787 = vpack.c.b16 %v5555, %v5547
    %v5788 = vpack.c.b16 %v5556, %v5548
    %v5789 = vpack.c.b16 %v5557, %v5549
    %v5790 = vpack.c.b16 %v5558, %v5550
    %v5791 = vpack.c.b16 %v5559, %v5551
    %v5792 = vpack.c.b16 %v5568, %v5560
    %v5793 = vpack.c.b16 %v5569, %v5561
    %v5794 = vpack.c.b16 %v5570, %v5562
    %v5795 = vpack.c.b16 %v5571, %v5563
    %v5796 = vpack.c.b16 %v5572, %v5564
    %v5797 = vpack.c.b16 %v5573, %v5565
    %v5798 = vpack.c.b16 %v5574, %v5566
    %v5799 = vpack.c.b16 %v5575, %v5567
    %v5800 = vpack.c.b16 %v5584, %v5576
    %v5801 = vpack.c.b16 %v5585, %v5577
    %v5802 = vpack.c.b16 %v5586, %v5578
    %v5803 = vpack.c.b16 %v5587, %v5579
    %v5804 = vpack.c.b16 %v5588, %v5580
    %v5805 = vpack.c.b16 %v5589, %v5581
    %v5806 = vpack.c.b16 %v5590, %v5582
    %v5807 = vpack.c.b16 %v5591, %v5583
    %v5808 = vpack.c.b16 %v5600, %v5592
    %v5809 = vpack.c.b16 %v5601, %v5593
    %v5810 = vpack.c.b16 %v5602, %v5594
    %v5811 = vpack.c.b16 %v5603, %v5595
    %v5812 = vpack.c.b16 %v5604, %v5596
    %v5813 = vpack.c.b16 %v5605, %v5597
    %v5814 = vpack.c.b16 %v5606, %v5598
    %v5815 = vpack.c.b16 %v5607, %v5599
    %v5816 = vpack.c.b16 %v5616, %v5608
    %v5817 = vpack.c.b16 %v5617, %v5609
    %v5818 = vpack.c.b16 %v5618, %v5610
    %v5819 = vpack.c.b16 %v5619, %v5611
    %v5820 = vpack.c.b16 %v5620, %v5612
    %v5821 = vpack.c.b16 %v5621, %v5613
    %v5822 = vpack.c.b16 %v5622, %v5614
    %v5823 = vpack.c.b16 %v5623, %v5615
    %v5824 = vpack.c.b16 %v5632, %v5624
    %v5825 = vpack.c.b16 %v5633, %v5625
    %v5826 = vpack.c.b16 %v5634, %v5626
    %v5827 = vpack.c.b16 %v5635, %v5627
    %v5828 = vpack.c.b16 %v5636, %v5628
    %v5829 = vpack.c.b16 %v5637, %v5629
    %v5830 = vpack.c.b16 %v5638, %v5630
    %v5831 = vpack.c.b16 %v5639, %v5631
    %v5832 = vpack.c.b16 %v5648, %v5640
    %v5833 = vpack.c.b16 %v5649, %v5641
    %v5834 = vpack.c.b16 %v5650, %v5642
    %v5835 = vpack.c.b16 %v5651, %v5643
    %v5836 = vpack.c.b16 %v5652, %v5644
    %v5837 = vpack.c.b16 %v5653, %v5645
    %v5838 = vpack.c.b16 %v5654, %v5646
    %v5839 = vpack.c.b16 %v5655, %v5647
    %v5840 = vpack.c.b16 %v5664, %v5656
    %v5841 = vpack.c.b16 %v5665, %v5657
    %v5842 = vpack.c.b16 %v5666, %v5658
    %v5843 = vpack.c.b16 %v5667, %v5659
    %v5844 = vpack.c.b16 %v5668, %v5660
    %v5845 = vpack.c.b16 %v5669, %v5661
    %v5846 = vpack.c.b16 %v5670, %v5662
    %v5847 = vpack.c.b16 %v5671, %v5663
    %v5848 = vpack.c.b16 %v5680, %v5672
    %v5849 = vpack.c.b16 %v5681, %v5673
    %v5850 = vpack.c.b16 %v5682, %v5674
    %v5851 = vpack.c.b16 %v5683, %v5675
    %v5852 = vpack.c.b16 %v5684, %v5676
    %v5853 = vpack.c.b16 %v5685, %v5677
    %v5854 = vpack.c.b16 %v5686, %v5678
    %v5855 = vpack.c.b16 %v5687, %v5679
    %v5856 = vpack.c.b16 %v5696, %v5688
    %v5857 = vpack.c.b16 %v5697, %v5689
    %v5858 = vpack.c.b16 %v5698, %v5690
    %v5859 = vpack.c.b16 %v5699, %v5691
    %v5860 = vpack.c.b16 %v5700, %v5692
    %v5861 = vpack.c.b16 %v5701, %v5693
    %v5862 = vpack.c.b16 %v5702, %v5694
    %v5863 = vpack.c.b16 %v5703, %v5695
    %v5864 = vpack.c.b16 %v5712, %v5704
    %v5865 = vpack.c.b16 %v5713, %v5705
    %v5866 = vpack.c.b16 %v5714, %v5706
    %v5867 = vpack.c.b16 %v5715, %v5707
    %v5868 = vpack.c.b16 %v5716, %v5708
    %v5869 = vpack.c.b16 %v5717, %v5709
    %v5870 = vpack.c.b16 %v5718, %v5710
    %v5871 = vpack.c.b16 %v5719, %v5711
    %v5872 = vpack.c.b16 %v5728, %v5720
    %v5873 = vpack.c.b16 %v5729, %v5721
    %v5874 = vpack.c.b16 %v5730, %v5722
    %v5875 = vpack.c.b16 %v5731, %v5723
    %v5876 = vpack.c.b16 %v5732, %v5724
    %v5877 = vpack.c.b16 %v5733, %v5725
    %v5878 = vpack.c.b16 %v5734, %v5726
    %v5879 = vpack.c.b16 %v5735, %v5727
    %v6025 = vsel %vm1630, %v3967, 0
    %6027 = vmatprep.subr.bf16.mxu0 %v5737
    %6028 = vmatpush1.bf16.msra.mxu0 %v5736
    %6029 = vmatprep.subr.bf16.mxu0 %v5745
    %6030 = vmatpush1.bf16.msra.mxu0 %v5744
    %6031 = vmatprep.subr.bf16.mxu0 %v5753
    %6032 = vmatpush1.bf16.msra.mxu0 %v5752
    %6033 = vmatprep.subr.bf16.mxu0 %v5761
    %6034 = vmatpush1.bf16.msra.mxu0 %v5760
    %6035 = vmatprep.subr.bf16.mxu0 %v5769
    %6036 = vmatpush1.bf16.msra.mxu0 %v5768
    %6037 = vmatprep.subr.bf16.mxu0 %v5777
    %6038 = vmatpush1.bf16.msra.mxu0 %v5776
    %6039 = vmatprep.subr.bf16.mxu0 %v5785
    %6040 = vmatpush1.bf16.msra.mxu0 %v5784
    %6041 = vmatprep.subr.bf16.mxu0 %v5793
    %6042 = vmatpush1.bf16.msra.mxu0 %v5792
    %6043 = vmatprep.subr.bf16.mxu0 %v5801
    %6044 = vmatpush1.bf16.msra.mxu0 %v5800
    %6045 = vmatprep.subr.bf16.mxu0 %v5809
    %6046 = vmatpush1.bf16.msra.mxu0 %v5808
    %6047 = vmatprep.subr.bf16.mxu0 %v5817
    %6048 = vmatpush1.bf16.msra.mxu0 %v5816
    %6049 = vmatprep.subr.bf16.mxu0 %v5825
    %6050 = vmatpush1.bf16.msra.mxu0 %v5824
    %6051 = vmatprep.subr.bf16.mxu0 %v5833
    %6052 = vmatpush1.bf16.msra.mxu0 %v5832
    %6053 = vmatprep.subr.bf16.mxu0 %v5841
    %6054 = vmatpush1.bf16.msra.mxu0 %v5840
    %6055 = vmatprep.subr.bf16.mxu0 %v5849
    %6056 = vmatpush1.bf16.msra.mxu0 %v5848
    %6057 = vmatprep.subr.bf16.mxu0 %v5857
    %6058 = vmatpush1.bf16.msra.mxu0 %v5856
    %6059 = vmatprep.mubr.bf16.mxu0 %v3966
    %6060 = vmatmul.mubr.bf16.gmra.mrb[0].mxu0 %v3965
    %v6061 = vpop.f32.mrb[0].mxu0
    %v6062 = vadd.f32 %v5052, %v6061
    %v6063 = vpop.f32.mrb[0].mxu0
    %v6064 = vadd.f32 %v5054, %v6063
    %v6065 = vpop.f32.mrb[0].mxu0
    %v6066 = vpop.f32.mrb[0].mxu0
    %6067 = vdwg.mxu0
    %6068 = vmatprep.subr.bf16.mxu0 %v5865
    %6069 = vmatpush1.bf16.msra.mxu0 %v5864
    %6070 = vmatprep.subr.bf16.mxu0 %v5873
    %6071 = vmatpush1.bf16.msra.mxu0 %v5872
    %6072 = vmatprep.subr.bf16.mxu0 0
    %6073 = vmatpush1.bf16.msra.mxu0 0
    %6074 = vmatprep.subr.bf16.mxu0 0
    %6075 = vmatpush1.bf16.msra.mxu0 0
    %6076 = vmatprep.subr.bf16.mxu0 0
    %6077 = vmatpush1.bf16.msra.mxu0 0
    %6078 = vmatprep.subr.bf16.mxu0 0
    %6079 = vmatpush1.bf16.msra.mxu0 0
    %6080 = vmatprep.subr.bf16.mxu0 0
    %6081 = vmatpush1.bf16.msra.mxu0 0
    %6082 = vmatprep.subr.bf16.mxu0 0
    %6083 = vmatpush1.bf16.msra.mxu0 0
    %6084 = vmatprep.subr.bf16.mxu0 0
    %6085 = vmatpush1.bf16.msra.mxu0 0
    %6086 = vmatprep.subr.bf16.mxu0 0
    %6087 = vmatpush1.bf16.msra.mxu0 0
    %6088 = vmatprep.subr.bf16.mxu0 0
    %6089 = vmatpush1.bf16.msra.mxu0 0
    %6090 = vmatprep.subr.bf16.mxu0 0
    %6091 = vmatpush1.bf16.msra.mxu0 0
    %6092 = vmatprep.subr.bf16.mxu0 0
    %6093 = vmatpush1.bf16.msra.mxu0 0
    %6094 = vmatprep.subr.bf16.mxu0 0
    %6095 = vmatpush1.bf16.msra.mxu0 0
    %6096 = vmatprep.subr.bf16.mxu0 0
    %6097 = vmatpush1.bf16.msra.mxu0 0
    %6098 = vmatprep.subr.bf16.mxu0 0
    %6099 = vmatpush1.bf16.msra.mxu0 0
    %6100 = vmatprep.mubr.bf16.mxu0 0
    %6101 = vmatmul.mubr.bf16.gmra.mrb[0].mxu0 %v6025
    %v6102 = vpop.f32.mrb[0].mxu0
    %v6103 = vadd.f32 %v6062, %v6102
    %v6104 = vpop.f32.mrb[0].mxu0
    %v6105 = vadd.f32 %v6064, %v6104
    %v6106 = vpop.f32.mrb[0].mxu0
    %v6107 = vpop.f32.mrb[0].mxu0
    %6108 = vdwg.mxu0
    %6109 = vmatprep.subr.bf16.mxu0 %v5739
    %6110 = vmatpush1.bf16.msra.mxu0 %v5738
    %6111 = vmatprep.subr.bf16.mxu0 %v5747
    %6112 = vmatpush1.bf16.msra.mxu0 %v5746
    %6113 = vmatprep.subr.bf16.mxu0 %v5755
    %6114 = vmatpush1.bf16.msra.mxu0 %v5754
    %6115 = vmatprep.subr.bf16.mxu0 %v5763
    %6116 = vmatpush1.bf16.msra.mxu0 %v5762
    %6117 = vmatprep.subr.bf16.mxu0 %v5771
    %6118 = vmatpush1.bf16.msra.mxu0 %v5770
    %6119 = vmatprep.subr.bf16.mxu0 %v5779
    %6120 = vmatpush1.bf16.msra.mxu0 %v5778
    %6121 = vmatprep.subr.bf16.mxu0 %v5787
    %6122 = vmatpush1.bf16.msra.mxu0 %v5786
    %6123 = vmatprep.subr.bf16.mxu0 %v5795
    %6124 = vmatpush1.bf16.msra.mxu0 %v5794
    %6125 = vmatprep.subr.bf16.mxu0 %v5803
    %6126 = vmatpush1.bf16.msra.mxu0 %v5802
    %6127 = vmatprep.subr.bf16.mxu0 %v5811
    %6128 = vmatpush1.bf16.msra.mxu0 %v5810
    %6129 = vmatprep.subr.bf16.mxu0 %v5819
    %6130 = vmatpush1.bf16.msra.mxu0 %v5818
    %6131 = vmatprep.subr.bf16.mxu0 %v5827
    %6132 = vmatpush1.bf16.msra.mxu0 %v5826
    %6133 = vmatprep.subr.bf16.mxu0 %v5835
    %6134 = vmatpush1.bf16.msra.mxu0 %v5834
    %6135 = vmatprep.subr.bf16.mxu0 %v5843
    %6136 = vmatpush1.bf16.msra.mxu0 %v5842
    %6137 = vmatprep.subr.bf16.mxu0 %v5851
    %6138 = vmatpush1.bf16.msra.mxu0 %v5850
    %6139 = vmatprep.subr.bf16.mxu0 %v5859
    %6140 = vmatpush1.bf16.msra.mxu0 %v5858
    %6141 = vmatprep.mubr.bf16.mxu0 %v3966
    %6142 = vmatmul.mubr.bf16.gmra.mrb[0].mxu0 %v3965
    %v6143 = vpop.f32.mrb[0].mxu0
    %v6144 = vadd.f32 %v5134, %v6143
    %v6145 = vpop.f32.mrb[0].mxu0
    %v6146 = vadd.f32 %v5136, %v6145
    %v6147 = vpop.f32.mrb[0].mxu0
    %v6148 = vpop.f32.mrb[0].mxu0
    %6149 = vdwg.mxu0
    %6150 = vmatprep.subr.bf16.mxu0 %v5867
    %6151 = vmatpush1.bf16.msra.mxu0 %v5866
    %6152 = vmatprep.subr.bf16.mxu0 %v5875
    %6153 = vmatpush1.bf16.msra.mxu0 %v5874
    %6154 = vmatprep.subr.bf16.mxu0 0
    %6155 = vmatpush1.bf16.msra.mxu0 0
    %6156 = vmatprep.subr.bf16.mxu0 0
    %6157 = vmatpush1.bf16.msra.mxu0 0
    %6158 = vmatprep.subr.bf16.mxu0 0
    %6159 = vmatpush1.bf16.msra.mxu0 0
    %6160 = vmatprep.subr.bf16.mxu0 0
    %6161 = vmatpush1.bf16.msra.mxu0 0
    %6162 = vmatprep.subr.bf16.mxu0 0
    %6163 = vmatpush1.bf16.msra.mxu0 0
    %6164 = vmatprep.subr.bf16.mxu0 0
    %6165 = vmatpush1.bf16.msra.mxu0 0
    %6166 = vmatprep.subr.bf16.mxu0 0
    %6167 = vmatpush1.bf16.msra.mxu0 0
    %6168 = vmatprep.subr.bf16.mxu0 0
    %6169 = vmatpush1.bf16.msra.mxu0 0
    %6170 = vmatprep.subr.bf16.mxu0 0
    %6171 = vmatpush1.bf16.msra.mxu0 0
    %6172 = vmatprep.subr.bf16.mxu0 0
    %6173 = vmatpush1.bf16.msra.mxu0 0
    %6174 = vmatprep.subr.bf16.mxu0 0
    %6175 = vmatpush1.bf16.msra.mxu0 0
    %6176 = vmatprep.subr.bf16.mxu0 0
    %6177 = vmatpush1.bf16.msra.mxu0 0
    %6178 = vmatprep.subr.bf16.mxu0 0
    %6179 = vmatpush1.bf16.msra.mxu0 0
    %6180 = vmatprep.subr.bf16.mxu0 0
    %6181 = vmatpush1.bf16.msra.mxu0 0
    %6182 = vmatprep.mubr.bf16.mxu0 0
    %6183 = vmatmul.mubr.bf16.gmra.mrb[0].mxu0 %v6025
    %v6184 = vpop.f32.mrb[0].mxu0
    %v6185 = vadd.f32 %v6144, %v6184
    %v6186 = vpop.f32.mrb[0].mxu0
    %v6187 = vadd.f32 %v6146, %v6186
    %v6188 = vpop.f32.mrb[0].mxu0
    %v6189 = vpop.f32.mrb[0].mxu0
    %6190 = vdwg.mxu0
    %6191 = vmatprep.subr.bf16.mxu0 %v5741
    %6192 = vmatpush1.bf16.msra.mxu0 %v5740
    %6193 = vmatprep.subr.bf16.mxu0 %v5749
    %6194 = vmatpush1.bf16.msra.mxu0 %v5748
    %6195 = vmatprep.subr.bf16.mxu0 %v5757
    %6196 = vmatpush1.bf16.msra.mxu0 %v5756
    %6197 = vmatprep.subr.bf16.mxu0 %v5765
    %6198 = vmatpush1.bf16.msra.mxu0 %v5764
    %6199 = vmatprep.subr.bf16.mxu0 %v5773
    %6200 = vmatpush1.bf16.msra.mxu0 %v5772
    %6201 = vmatprep.subr.bf16.mxu0 %v5781
    %6202 = vmatpush1.bf16.msra.mxu0 %v5780
    %6203 = vmatprep.subr.bf16.mxu0 %v5789
    %6204 = vmatpush1.bf16.msra.mxu0 %v5788
    %6205 = vmatprep.subr.bf16.mxu0 %v5797
    %6206 = vmatpush1.bf16.msra.mxu0 %v5796
    %6207 = vmatprep.subr.bf16.mxu0 %v5805
    %6208 = vmatpush1.bf16.msra.mxu0 %v5804
    %6209 = vmatprep.subr.bf16.mxu0 %v5813
    %6210 = vmatpush1.bf16.msra.mxu0 %v5812
    %6211 = vmatprep.subr.bf16.mxu0 %v5821
    %6212 = vmatpush1.bf16.msra.mxu0 %v5820
    %6213 = vmatprep.subr.bf16.mxu0 %v5829
    %6214 = vmatpush1.bf16.msra.mxu0 %v5828
    %6215 = vmatprep.subr.bf16.mxu0 %v5837
    %6216 = vmatpush1.bf16.msra.mxu0 %v5836
    %6217 = vmatprep.subr.bf16.mxu0 %v5845
    %6218 = vmatpush1.bf16.msra.mxu0 %v5844
    %6219 = vmatprep.subr.bf16.mxu0 %v5853
    %6220 = vmatpush1.bf16.msra.mxu0 %v5852
    %6221 = vmatprep.subr.bf16.mxu0 %v5861
    %6222 = vmatpush1.bf16.msra.mxu0 %v5860
    %6223 = vmatprep.mubr.bf16.mxu0 %v3966
    %6224 = vmatmul.mubr.bf16.gmra.mrb[0].mxu0 %v3965
    %v6225 = vpop.f32.mrb[0].mxu0
    %v6226 = vadd.f32 %v5216, %v6225
    %v6227 = vpop.f32.mrb[0].mxu0
    %v6228 = vadd.f32 %v5218, %v6227
    %v6229 = vpop.f32.mrb[0].mxu0
    %v6230 = vpop.f32.mrb[0].mxu0
    %6231 = vdwg.mxu0
    %6232 = vmatprep.subr.bf16.mxu0 %v5869
    %6233 = vmatpush1.bf16.msra.mxu0 %v5868
    %6234 = vmatprep.subr.bf16.mxu0 %v5877
    %6235 = vmatpush1.bf16.msra.mxu0 %v5876
    %6236 = vmatprep.subr.bf16.mxu0 0
    %6237 = vmatpush1.bf16.msra.mxu0 0
    %6238 = vmatprep.subr.bf16.mxu0 0
    %6239 = vmatpush1.bf16.msra.mxu0 0
    %6240 = vmatprep.subr.bf16.mxu0 0
    %6241 = vmatpush1.bf16.msra.mxu0 0
    %6242 = vmatprep.subr.bf16.mxu0 0
    %6243 = vmatpush1.bf16.msra.mxu0 0
    %6244 = vmatprep.subr.bf16.mxu0 0
    %6245 = vmatpush1.bf16.msra.mxu0 0
    %6246 = vmatprep.subr.bf16.mxu0 0
    %6247 = vmatpush1.bf16.msra.mxu0 0
    %6248 = vmatprep.subr.bf16.mxu0 0
    %6249 = vmatpush1.bf16.msra.mxu0 0
    %6250 = vmatprep.subr.bf16.mxu0 0
    %6251 = vmatpush1.bf16.msra.mxu0 0
    %6252 = vmatprep.subr.bf16.mxu0 0
    %6253 = vmatpush1.bf16.msra.mxu0 0
    %6254 = vmatprep.subr.bf16.mxu0 0
    %6255 = vmatpush1.bf16.msra.mxu0 0
    %6256 = vmatprep.subr.bf16.mxu0 0
    %6257 = vmatpush1.bf16.msra.mxu0 0
    %6258 = vmatprep.subr.bf16.mxu0 0
    %6259 = vmatpush1.bf16.msra.mxu0 0
    %6260 = vmatprep.subr.bf16.mxu0 0
    %6261 = vmatpush1.bf16.msra.mxu0 0
    %6262 = vmatprep.subr.bf16.mxu0 0
    %6263 = vmatpush1.bf16.msra.mxu0 0
    %6264 = vmatprep.mubr.bf16.mxu0 0
    %6265 = vmatmul.mubr.bf16.gmra.mrb[0].mxu0 %v6025
    %v6266 = vpop.f32.mrb[0].mxu0
    %v6267 = vadd.f32 %v6226, %v6266
    %v6268 = vpop.f32.mrb[0].mxu0
    %v6269 = vadd.f32 %v6228, %v6268
    %v6270 = vpop.f32.mrb[0].mxu0
    %v6271 = vpop.f32.mrb[0].mxu0
    %6272 = vdwg.mxu0
    %6273 = vmatprep.subr.bf16.mxu0 %v5743
    %6274 = vmatpush1.bf16.msra.mxu0 %v5742
    %6275 = vmatprep.subr.bf16.mxu0 %v5751
    %6276 = vmatpush1.bf16.msra.mxu0 %v5750
    %6277 = vmatprep.subr.bf16.mxu0 %v5759
    %6278 = vmatpush1.bf16.msra.mxu0 %v5758
    %6279 = vmatprep.subr.bf16.mxu0 %v5767
    %6280 = vmatpush1.bf16.msra.mxu0 %v5766
    %6281 = vmatprep.subr.bf16.mxu0 %v5775
    %6282 = vmatpush1.bf16.msra.mxu0 %v5774
    %6283 = vmatprep.subr.bf16.mxu0 %v5783
    %6284 = vmatpush1.bf16.msra.mxu0 %v5782
    %6285 = vmatprep.subr.bf16.mxu0 %v5791
    %6286 = vmatpush1.bf16.msra.mxu0 %v5790
    %6287 = vmatprep.subr.bf16.mxu0 %v5799
    %6288 = vmatpush1.bf16.msra.mxu0 %v5798
    %6289 = vmatprep.subr.bf16.mxu0 %v5807
    %6290 = vmatpush1.bf16.msra.mxu0 %v5806
    %6291 = vmatprep.subr.bf16.mxu0 %v5815
    %6292 = vmatpush1.bf16.msra.mxu0 %v5814
    %6293 = vmatprep.subr.bf16.mxu0 %v5823
    %6294 = vmatpush1.bf16.msra.mxu0 %v5822
    %6295 = vmatprep.subr.bf16.mxu0 %v5831
    %6296 = vmatpush1.bf16.msra.mxu0 %v5830
    %6297 = vmatprep.subr.bf16.mxu0 %v5839
    %6298 = vmatpush1.bf16.msra.mxu0 %v5838
    %6299 = vmatprep.subr.bf16.mxu0 %v5847
    %6300 = vmatpush1.bf16.msra.mxu0 %v5846
    %6301 = vmatprep.subr.bf16.mxu0 %v5855
    %6302 = vmatpush1.bf16.msra.mxu0 %v5854
    %6303 = vmatprep.subr.bf16.mxu0 %v5863
    %6304 = vmatpush1.bf16.msra.mxu0 %v5862
    %6305 = vmatprep.mubr.bf16.mxu0 %v3966
    %6306 = vmatmul.mubr.bf16.gmra.mrb[0].mxu0 %v3965
    %v6307 = vpop.f32.mrb[0].mxu0
    %v6308 = vadd.f32 %v5298, %v6307
    %v6309 = vpop.f32.mrb[0].mxu0
    %v6310 = vadd.f32 %v5300, %v6309
    %v6311 = vpop.f32.mrb[0].mxu0
    %v6312 = vpop.f32.mrb[0].mxu0
    %6313 = vdwg.mxu0
    %6314 = vmatprep.subr.bf16.mxu0 %v5871
    %6315 = vmatpush1.bf16.msra.mxu0 %v5870
    %6316 = vmatprep.subr.bf16.mxu0 %v5879
    %6317 = vmatpush1.bf16.msra.mxu0 %v5878
    %6318 = vmatprep.subr.bf16.mxu0 0
    %6319 = vmatpush1.bf16.msra.mxu0 0
    %6320 = vmatprep.subr.bf16.mxu0 0
    %6321 = vmatpush1.bf16.msra.mxu0 0
    %6322 = vmatprep.subr.bf16.mxu0 0
    %6323 = vmatpush1.bf16.msra.mxu0 0
    %6324 = vmatprep.subr.bf16.mxu0 0
    %6325 = vmatpush1.bf16.msra.mxu0 0
    %6326 = vmatprep.subr.bf16.mxu0 0
    %6327 = vmatpush1.bf16.msra.mxu0 0
    %6328 = vmatprep.subr.bf16.mxu0 0
    %6329 = vmatpush1.bf16.msra.mxu0 0
    %6330 = vmatprep.subr.bf16.mxu0 0
    %6331 = vmatpush1.bf16.msra.mxu0 0
    %6332 = vmatprep.subr.bf16.mxu0 0
    %6333 = vmatpush1.bf16.msra.mxu0 0
    %6334 = vmatprep.subr.bf16.mxu0 0
    %6335 = vmatpush1.bf16.msra.mxu0 0
    %6336 = vmatprep.subr.bf16.mxu0 0
    %6337 = vmatpush1.bf16.msra.mxu0 0
    %6338 = vmatprep.subr.bf16.mxu0 0
    %6339 = vmatpush1.bf16.msra.mxu0 0
    %6340 = vmatprep.subr.bf16.mxu0 0
    %6341 = vmatpush1.bf16.msra.mxu0 0
    %6342 = vmatprep.subr.bf16.mxu0 0
    %6343 = vmatpush1.bf16.msra.mxu0 0
    %6344 = vmatprep.subr.bf16.mxu0 0
    %6345 = vmatpush1.bf16.msra.mxu0 0
    %6346 = vmatprep.mubr.bf16.mxu0 0
    %6347 = vmatmul.mubr.bf16.gmra.mrb[0].mxu0 %v6025
    %v6348 = vpop.f32.mrb[0].mxu0
    %v6349 = vadd.f32 %v6308, %v6348
    %v6350 = vpop.f32.mrb[0].mxu0
    %v6351 = vadd.f32 %v6310, %v6350
    %v6352 = vpop.f32.mrb[0].mxu0
    %v6353 = vpop.f32.mrb[0].mxu0
    %6354 = vdwg.mxu0
    %v6355 = vld [vmem:[%s61] sm:$0xff]
    %v6356 = vld [vmem:[%s61 + $0x8] sm:$0xff]
    %v6357 = vld [vmem:[%s61 + $0x10] sm:$0xff]
    %v6358 = vld [vmem:[%s61 + $0x18] sm:$0xff]
    %v6359 = vld [vmem:[%s61 + $0x20] sm:$0xff]
    %v6360 = vld [vmem:[%s61 + $0x28] sm:$0xff]
    %v6361 = vld [vmem:[%s61 + $0x30] sm:$0xff]
    %v6362 = vld [vmem:[%s61 + $0x38] sm:$0xff]
    %v6363 = vld [vmem:[%s61 + $0x40] sm:$0xff]
    %v6364 = vld [vmem:[%s61 + $0x48] sm:$0xff]
    %v6365 = vld [vmem:[%s61 + $0x50] sm:$0xff]
    %v6366 = vld [vmem:[%s61 + $0x58] sm:$0xff]
    %v6367 = vld [vmem:[%s61 + $0x60] sm:$0xff]
    %v6368 = vld [vmem:[%s61 + $0x68] sm:$0xff]
    %v6369 = vld [vmem:[%s61 + $0x70] sm:$0xff]
    %v6370 = vld [vmem:[%s61 + $0x78] sm:$0xff]
    %v6371 = vld [vmem:[%s61 + $0x80] sm:$0xff]
    %v6372 = vld [vmem:[%s61 + $0x88] sm:$0xff]
    %v6373 = vld [vmem:[%s61 + $0x90] sm:$0xff]
    %v6374 = vld [vmem:[%s61 + $0x98] sm:$0xff]
    %v6375 = vld [vmem:[%s61 + $0xa0] sm:$0xff]
    %v6376 = vld [vmem:[%s61 + $0xa8] sm:$0xff]
    %v6377 = vld [vmem:[%s61 + $0xb0] sm:$0xff]
    %v6378 = vld [vmem:[%s61 + $0xb8] sm:$0xff]
    %v6379 = vld [vmem:[%s61 + $0xc0] sm:$0xff]
    %v6380 = vld [vmem:[%s61 + $0xc8] sm:$0xff]
    %v6381 = vld [vmem:[%s61 + $0xd0] sm:$0xff]
    %v6382 = vld [vmem:[%s61 + $0xd8] sm:$0xff]
    %v6383 = vld [vmem:[%s61 + $0xe0] sm:$0xff]
    %v6384 = vld [vmem:[%s61 + $0xe8] sm:$0xff]
    %v6385 = vld [vmem:[%s61 + $0xf0] sm:$0xff]
    %v6386 = vld [vmem:[%s61 + $0xf8] sm:$0xff]
    %v6387 = vld [vmem:[%s61 + $0x100] sm:$0xff]
    %v6388 = vld [vmem:[%s61 + $0x108] sm:$0xff]
    %v6389 = vld [vmem:[%s61 + $0x110] sm:$0xff]
    %v6390 = vld [vmem:[%s61 + $0x118] sm:$0xff]
    %v6391 = vld [vmem:[%s61 + $0x120] sm:$0xff]
    %v6392 = vld [vmem:[%s61 + $0x128] sm:$0xff]
    %v6393 = vld [vmem:[%s61 + $0x130] sm:$0xff]
    %v6394 = vld [vmem:[%s61 + $0x138] sm:$0xff]
    %v6395 = vld [vmem:[%s61 + $0x140] sm:$0xff]
    %v6396 = vld [vmem:[%s61 + $0x148] sm:$0xff]
    %v6397 = vld [vmem:[%s61 + $0x150] sm:$0xff]
    %v6398 = vld [vmem:[%s61 + $0x158] sm:$0xff]
    %v6399 = vld [vmem:[%s61 + $0x160] sm:$0xff]
    %v6400 = vld [vmem:[%s61 + $0x168] sm:$0xff]
    %v6401 = vld [vmem:[%s61 + $0x170] sm:$0xff]
    %v6402 = vld [vmem:[%s61 + $0x178] sm:$0xff]
    %v6403 = vld [vmem:[%s61 + $0x180] sm:$0xff]
    %v6404 = vld [vmem:[%s61 + $0x188] sm:$0xff]
    %v6405 = vld [vmem:[%s61 + $0x190] sm:$0xff]
    %v6406 = vld [vmem:[%s61 + $0x198] sm:$0xff]
    %v6407 = vld [vmem:[%s61 + $0x1a0] sm:$0xff]
    %v6408 = vld [vmem:[%s61 + $0x1a8] sm:$0xff]
    %v6409 = vld [vmem:[%s61 + $0x1b0] sm:$0xff]
    %v6410 = vld [vmem:[%s61 + $0x1b8] sm:$0xff]
    %v6411 = vld [vmem:[%s61 + $0x1c0] sm:$0xff]
    %v6412 = vld [vmem:[%s61 + $0x1c8] sm:$0xff]
    %v6413 = vld [vmem:[%s61 + $0x1d0] sm:$0xff]
    %v6414 = vld [vmem:[%s61 + $0x1d8] sm:$0xff]
    %v6415 = vld [vmem:[%s61 + $0x1e0] sm:$0xff]
    %v6416 = vld [vmem:[%s61 + $0x1e8] sm:$0xff]
    %v6417 = vld [vmem:[%s61 + $0x1f0] sm:$0xff]
    %v6418 = vld [vmem:[%s61 + $0x1f8] sm:$0xff]
    %v6419 = vld [vmem:[%s61 + $0x200] sm:$0xff]
    %v6420 = vld [vmem:[%s61 + $0x208] sm:$0xff]
    %v6421 = vld [vmem:[%s61 + $0x210] sm:$0xff]
    %v6422 = vld [vmem:[%s61 + $0x218] sm:$0xff]
    %v6423 = vld [vmem:[%s61 + $0x220] sm:$0xff]
    %v6424 = vld [vmem:[%s61 + $0x228] sm:$0xff]
    %v6425 = vld [vmem:[%s61 + $0x230] sm:$0xff]
    %v6426 = vld [vmem:[%s61 + $0x238] sm:$0xff]
    %v6427 = vld [vmem:[%s61 + $0x240] sm:$0xff]
    %v6428 = vld [vmem:[%s61 + $0x248] sm:$0xff]
    %v6429 = vld [vmem:[%s61 + $0x250] sm:$0xff]
    %v6430 = vld [vmem:[%s61 + $0x258] sm:$0xff]
    %v6431 = vld [vmem:[%s61 + $0x260] sm:$0xff]
    %v6432 = vld [vmem:[%s61 + $0x268] sm:$0xff]
    %v6433 = vld [vmem:[%s61 + $0x270] sm:$0xff]
    %v6434 = vld [vmem:[%s61 + $0x278] sm:$0xff]
    %v6435 = vld [vmem:[%s61 + $0x280] sm:$0xff]
    %v6436 = vld [vmem:[%s61 + $0x288] sm:$0xff]
    %v6437 = vld [vmem:[%s61 + $0x290] sm:$0xff]
    %v6438 = vld [vmem:[%s61 + $0x298] sm:$0xff]
    %v6439 = vld [vmem:[%s61 + $0x2a0] sm:$0xff]
    %v6440 = vld [vmem:[%s61 + $0x2a8] sm:$0xff]
    %v6441 = vld [vmem:[%s61 + $0x2b0] sm:$0xff]
    %v6442 = vld [vmem:[%s61 + $0x2b8] sm:$0xff]
    %v6443 = vld [vmem:[%s61 + $0x2c0] sm:$0xff]
    %v6444 = vld [vmem:[%s61 + $0x2c8] sm:$0xff]
    %v6445 = vld [vmem:[%s61 + $0x2d0] sm:$0xff]
    %v6446 = vld [vmem:[%s61 + $0x2d8] sm:$0xff]
    %v6447 = vld [vmem:[%s61 + $0x2e0] sm:$0xff]
    %v6448 = vld [vmem:[%s61 + $0x2e8] sm:$0xff]
    %v6449 = vld [vmem:[%s61 + $0x2f0] sm:$0xff]
    %v6450 = vld [vmem:[%s61 + $0x2f8] sm:$0xff]
    %v6451 = vld [vmem:[%s61 + $0x300] sm:$0xff]
    %v6452 = vld [vmem:[%s61 + $0x308] sm:$0xff]
    %v6453 = vld [vmem:[%s61 + $0x310] sm:$0xff]
    %v6454 = vld [vmem:[%s61 + $0x318] sm:$0xff]
    %v6455 = vld [vmem:[%s61 + $0x320] sm:$0xff]
    %v6456 = vld [vmem:[%s61 + $0x328] sm:$0xff]
    %v6457 = vld [vmem:[%s61 + $0x330] sm:$0xff]
    %v6458 = vld [vmem:[%s61 + $0x338] sm:$0xff]
    %v6459 = vld [vmem:[%s61 + $0x340] sm:$0xff]
    %v6460 = vld [vmem:[%s61 + $0x348] sm:$0xff]
    %v6461 = vld [vmem:[%s61 + $0x350] sm:$0xff]
    %v6462 = vld [vmem:[%s61 + $0x358] sm:$0xff]
    %v6463 = vld [vmem:[%s61 + $0x360] sm:$0xff]
    %v6464 = vld [vmem:[%s61 + $0x368] sm:$0xff]
    %v6465 = vld [vmem:[%s61 + $0x370] sm:$0xff]
    %v6466 = vld [vmem:[%s61 + $0x378] sm:$0xff]
    %v6467 = vld [vmem:[%s61 + $0x380] sm:$0xff]
    %v6468 = vld [vmem:[%s61 + $0x388] sm:$0xff]
    %v6469 = vld [vmem:[%s61 + $0x390] sm:$0xff]
    %v6470 = vld [vmem:[%s61 + $0x398] sm:$0xff]
    %v6471 = vld [vmem:[%s61 + $0x3a0] sm:$0xff]
    %v6472 = vld [vmem:[%s61 + $0x3a8] sm:$0xff]
    %v6473 = vld [vmem:[%s61 + $0x3b0] sm:$0xff]
    %v6474 = vld [vmem:[%s61 + $0x3b8] sm:$0xff]
    %v6475 = vld [vmem:[%s61 + $0x3c0] sm:$0xff]
    %v6476 = vld [vmem:[#allocation27] sm:$0xff]
    %v6477 = vld [vmem:[#allocation27 + $0x8] sm:$0xff]
    %v6478 = vld [vmem:[#allocation27 + $0x10] sm:$0xff]
    %v6479 = vld [vmem:[#allocation27 + $0x18] sm:$0xff]
    %v6480 = vld [vmem:[#allocation27 + $0x20] sm:$0xff]
    %v6481 = vld [vmem:[#allocation27 + $0x28] sm:$0xff]
    %v6482 = vld [vmem:[#allocation27 + $0x30] sm:$0xff]
    %v6483 = vld [vmem:[#allocation27 + $0x38] sm:$0xff]
    %v6485 = vsel %vm1724, %v6351, 0
    %6487 = vmatprep.subr.mxu0 0.0
    %6488 = vmatpush1.msra.mxu0 %v6355
    %6489 = vmatprep.subr.mxu0 0.0
    %6490 = vmatpush1.msra.mxu0 %v6356
    %6491 = vmatprep.subr.mxu0 0.0
    %6492 = vmatpush1.msra.mxu0 %v6357
    %6493 = vmatprep.subr.mxu0 0.0
    %6494 = vmatpush1.msra.mxu0 %v6358
    %6495 = vmatprep.subr.mxu0 0.0
    %6496 = vmatpush1.msra.mxu0 %v6359
    %6497 = vmatprep.subr.mxu0 0.0
    %6498 = vmatpush1.msra.mxu0 %v6360
    %6499 = vmatprep.subr.mxu0 0.0
    %6500 = vmatpush1.msra.mxu0 %v6361
    %6501 = vmatprep.subr.mxu0 0.0
    %6502 = vmatpush1.msra.mxu0 %v6362
    %6503 = vmatprep.subr.mxu0 0.0
    %6504 = vmatpush1.msra.mxu0 %v6363
    %6505 = vmatprep.subr.mxu0 0.0
    %6506 = vmatpush1.msra.mxu0 %v6364
    %6507 = vmatprep.subr.mxu0 0.0
    %6508 = vmatpush1.msra.mxu0 %v6365
    %6509 = vmatprep.subr.mxu0 0.0
    %6510 = vmatpush1.msra.mxu0 %v6366
    %6511 = vmatprep.subr.mxu0 0.0
    %6512 = vmatpush1.msra.mxu0 %v6367
    %6513 = vmatprep.subr.mxu0 0.0
    %6514 = vmatpush1.msra.mxu0 %v6368
    %6515 = vmatprep.subr.mxu0 0.0
    %6516 = vmatpush1.msra.mxu0 %v6369
    %6517 = vmatprep.subr.mxu0 0.0
    %6518 = vmatpush1.msra.mxu0 %v6370
    %6519 = vmatprep.subr.mxu0 0.0
    %6520 = vmatpush1.msra.mxu0 %v6371
    %6521 = vmatprep.subr.mxu0 0.0
    %6522 = vmatpush1.msra.mxu0 %v6372
    %6523 = vmatprep.subr.mxu0 0.0
    %6524 = vmatpush1.msra.mxu0 %v6373
    %6525 = vmatprep.subr.mxu0 0.0
    %6526 = vmatpush1.msra.mxu0 %v6374
    %6527 = vmatprep.subr.mxu0 0.0
    %6528 = vmatpush1.msra.mxu0 %v6375
    %6529 = vmatprep.subr.mxu0 0.0
    %6530 = vmatpush1.msra.mxu0 %v6376
    %6531 = vmatprep.subr.mxu0 0.0
    %6532 = vmatpush1.msra.mxu0 %v6377
    %6533 = vmatprep.subr.mxu0 0.0
    %6534 = vmatpush1.msra.mxu0 %v6378
    %6535 = vmatprep.subr.mxu0 0.0
    %6536 = vmatpush1.msra.mxu0 %v6379
    %6537 = vmatprep.subr.mxu0 0.0
    %6538 = vmatpush1.msra.mxu0 %v6380
    %6539 = vmatprep.subr.mxu0 0.0
    %6540 = vmatpush1.msra.mxu0 %v6381
    %6541 = vmatprep.subr.mxu0 0.0
    %6542 = vmatpush1.msra.mxu0 %v6382
    %6543 = vmatprep.subr.mxu0 0.0
    %6544 = vmatpush1.msra.mxu0 %v6383
    %6545 = vmatprep.subr.mxu0 0.0
    %6546 = vmatpush1.msra.mxu0 %v6384
    %6547 = vmatprep.subr.mxu0 0.0
    %6548 = vmatpush1.msra.mxu0 %v6385
    %6549 = vmatprep.subr.mxu0 0.0
    %6550 = vmatpush1.msra.mxu0 %v6386
    %6551 = vmatprep.mubr.f32.mxu0 %v6105
    %6552 = vmatmul.mubr.f32.gmra.mrb[0].mxu0 %v6103
    %v6553 = vpop.f32.mrb[0].mxu0
    %v6554 = vadd.f32 0.0, %v6553
    %v6555 = vpop.f32.mrb[0].mxu0
    %6556 = vdwg.mxu0
    %6557 = vmatprep.subr.mxu0 0.0
    %6558 = vmatpush1.msra.mxu0 %v6387
    %6559 = vmatprep.subr.mxu0 0.0
    %6560 = vmatpush1.msra.mxu0 %v6388
    %6561 = vmatprep.subr.mxu0 0.0
    %6562 = vmatpush1.msra.mxu0 %v6389
    %6563 = vmatprep.subr.mxu0 0.0
    %6564 = vmatpush1.msra.mxu0 %v6390
    %6565 = vmatprep.subr.mxu0 0.0
    %6566 = vmatpush1.msra.mxu0 %v6391
    %6567 = vmatprep.subr.mxu0 0.0
    %6568 = vmatpush1.msra.mxu0 %v6392
    %6569 = vmatprep.subr.mxu0 0.0
    %6570 = vmatpush1.msra.mxu0 %v6393
    %6571 = vmatprep.subr.mxu0 0.0
    %6572 = vmatpush1.msra.mxu0 %v6394
    %6573 = vmatprep.subr.mxu0 0.0
    %6574 = vmatpush1.msra.mxu0 %v6395
    %6575 = vmatprep.subr.mxu0 0.0
    %6576 = vmatpush1.msra.mxu0 %v6396
    %6577 = vmatprep.subr.mxu0 0.0
    %6578 = vmatpush1.msra.mxu0 %v6397
    %6579 = vmatprep.subr.mxu0 0.0
    %6580 = vmatpush1.msra.mxu0 %v6398
    %6581 = vmatprep.subr.mxu0 0.0
    %6582 = vmatpush1.msra.mxu0 %v6399
    %6583 = vmatprep.subr.mxu0 0.0
    %6584 = vmatpush1.msra.mxu0 %v6400
    %6585 = vmatprep.subr.mxu0 0.0
    %6586 = vmatpush1.msra.mxu0 %v6401
    %6587 = vmatprep.subr.mxu0 0.0
    %6588 = vmatpush1.msra.mxu0 %v6402
    %6589 = vmatprep.subr.mxu0 0.0
    %6590 = vmatpush1.msra.mxu0 %v6403
    %6591 = vmatprep.subr.mxu0 0.0
    %6592 = vmatpush1.msra.mxu0 %v6404
    %6593 = vmatprep.subr.mxu0 0.0
    %6594 = vmatpush1.msra.mxu0 %v6405
    %6595 = vmatprep.subr.mxu0 0.0
    %6596 = vmatpush1.msra.mxu0 %v6406
    %6597 = vmatprep.subr.mxu0 0.0
    %6598 = vmatpush1.msra.mxu0 %v6407
    %6599 = vmatprep.subr.mxu0 0.0
    %6600 = vmatpush1.msra.mxu0 %v6408
    %6601 = vmatprep.subr.mxu0 0.0
    %6602 = vmatpush1.msra.mxu0 %v6409
    %6603 = vmatprep.subr.mxu0 0.0
    %6604 = vmatpush1.msra.mxu0 %v6410
    %6605 = vmatprep.subr.mxu0 0.0
    %6606 = vmatpush1.msra.mxu0 %v6411
    %6607 = vmatprep.subr.mxu0 0.0
    %6608 = vmatpush1.msra.mxu0 %v6412
    %6609 = vmatprep.subr.mxu0 0.0
    %6610 = vmatpush1.msra.mxu0 %v6413
    %6611 = vmatprep.subr.mxu0 0.0
    %6612 = vmatpush1.msra.mxu0 %v6414
    %6613 = vmatprep.subr.mxu0 0.0
    %6614 = vmatpush1.msra.mxu0 %v6415
    %6615 = vmatprep.subr.mxu0 0.0
    %6616 = vmatpush1.msra.mxu0 %v6416
    %6617 = vmatprep.subr.mxu0 0.0
    %6618 = vmatpush1.msra.mxu0 %v6417
    %6619 = vmatprep.subr.mxu0 0.0
    %6620 = vmatpush1.msra.mxu0 %v6418
    %6621 = vmatprep.mubr.f32.mxu0 %v6187
    %6622 = vmatmul.mubr.f32.gmra.mrb[0].mxu0 %v6185
    %v6623 = vpop.f32.mrb[0].mxu0
    %v6624 = vadd.f32 %v6554, %v6623
    %v6625 = vpop.f32.mrb[0].mxu0
    %6626 = vdwg.mxu0
    %6627 = vmatprep.subr.mxu0 0.0
    %6628 = vmatpush1.msra.mxu0 %v6419
    %6629 = vmatprep.subr.mxu0 0.0
    %6630 = vmatpush1.msra.mxu0 %v6420
    %6631 = vmatprep.subr.mxu0 0.0
    %6632 = vmatpush1.msra.mxu0 %v6421
    %6633 = vmatprep.subr.mxu0 0.0
    %6634 = vmatpush1.msra.mxu0 %v6422
    %6635 = vmatprep.subr.mxu0 0.0
    %6636 = vmatpush1.msra.mxu0 %v6423
    %6637 = vmatprep.subr.mxu0 0.0
    %6638 = vmatpush1.msra.mxu0 %v6424
    %6639 = vmatprep.subr.mxu0 0.0
    %6640 = vmatpush1.msra.mxu0 %v6425
    %6641 = vmatprep.subr.mxu0 0.0
    %6642 = vmatpush1.msra.mxu0 %v6426
    %6643 = vmatprep.subr.mxu0 0.0
    %6644 = vmatpush1.msra.mxu0 %v6427
    %6645 = vmatprep.subr.mxu0 0.0
    %6646 = vmatpush1.msra.mxu0 %v6428
    %6647 = vmatprep.subr.mxu0 0.0
    %6648 = vmatpush1.msra.mxu0 %v6429
    %6649 = vmatprep.subr.mxu0 0.0
    %6650 = vmatpush1.msra.mxu0 %v6430
    %6651 = vmatprep.subr.mxu0 0.0
    %6652 = vmatpush1.msra.mxu0 %v6431
    %6653 = vmatprep.subr.mxu0 0.0
    %6654 = vmatpush1.msra.mxu0 %v6432
    %6655 = vmatprep.subr.mxu0 0.0
    %6656 = vmatpush1.msra.mxu0 %v6433
    %6657 = vmatprep.subr.mxu0 0.0
    %6658 = vmatpush1.msra.mxu0 %v6434
    %6659 = vmatprep.subr.mxu0 0.0
    %6660 = vmatpush1.msra.mxu0 %v6435
    %6661 = vmatprep.subr.mxu0 0.0
    %6662 = vmatpush1.msra.mxu0 %v6436
    %6663 = vmatprep.subr.mxu0 0.0
    %6664 = vmatpush1.msra.mxu0 %v6437
    %6665 = vmatprep.subr.mxu0 0.0
    %6666 = vmatpush1.msra.mxu0 %v6438
    %6667 = vmatprep.subr.mxu0 0.0
    %6668 = vmatpush1.msra.mxu0 %v6439
    %6669 = vmatprep.subr.mxu0 0.0
    %6670 = vmatpush1.msra.mxu0 %v6440
    %6671 = vmatprep.subr.mxu0 0.0
    %6672 = vmatpush1.msra.mxu0 %v6441
    %6673 = vmatprep.subr.mxu0 0.0
    %6674 = vmatpush1.msra.mxu0 %v6442
    %6675 = vmatprep.subr.mxu0 0.0
    %6676 = vmatpush1.msra.mxu0 %v6443
    %6677 = vmatprep.subr.mxu0 0.0
    %6678 = vmatpush1.msra.mxu0 %v6444
    %6679 = vmatprep.subr.mxu0 0.0
    %6680 = vmatpush1.msra.mxu0 %v6445
    %6681 = vmatprep.subr.mxu0 0.0
    %6682 = vmatpush1.msra.mxu0 %v6446
    %6683 = vmatprep.subr.mxu0 0.0
    %6684 = vmatpush1.msra.mxu0 %v6447
    %6685 = vmatprep.subr.mxu0 0.0
    %6686 = vmatpush1.msra.mxu0 %v6448
    %6687 = vmatprep.subr.mxu0 0.0
    %6688 = vmatpush1.msra.mxu0 %v6449
    %6689 = vmatprep.subr.mxu0 0.0
    %6690 = vmatpush1.msra.mxu0 %v6450
    %6691 = vmatprep.mubr.f32.mxu0 %v6269
    %6692 = vmatmul.mubr.f32.gmra.mrb[0].mxu0 %v6267
    %v6693 = vpop.f32.mrb[0].mxu0
    %v6694 = vadd.f32 %v6624, %v6693
    %v6695 = vpop.f32.mrb[0].mxu0
    %6696 = vdwg.mxu0
    %6697 = vmatprep.subr.mxu0 0.0
    %6698 = vmatpush1.msra.mxu0 %v6451
    %6699 = vmatprep.subr.mxu0 0.0
    %6700 = vmatpush1.msra.mxu0 %v6452
    %6701 = vmatprep.subr.mxu0 0.0
    %6702 = vmatpush1.msra.mxu0 %v6453
    %6703 = vmatprep.subr.mxu0 0.0
    %6704 = vmatpush1.msra.mxu0 %v6454
    %6705 = vmatprep.subr.mxu0 0.0
    %6706 = vmatpush1.msra.mxu0 %v6455
    %6707 = vmatprep.subr.mxu0 0.0
    %6708 = vmatpush1.msra.mxu0 %v6456
    %6709 = vmatprep.subr.mxu0 0.0
    %6710 = vmatpush1.msra.mxu0 %v6457
    %6711 = vmatprep.subr.mxu0 0.0
    %6712 = vmatpush1.msra.mxu0 %v6458
    %6713 = vmatprep.subr.mxu0 0.0
    %6714 = vmatpush1.msra.mxu0 %v6459
    %6715 = vmatprep.subr.mxu0 0.0
    %6716 = vmatpush1.msra.mxu0 %v6460
    %6717 = vmatprep.subr.mxu0 0.0
    %6718 = vmatpush1.msra.mxu0 %v6461
    %6719 = vmatprep.subr.mxu0 0.0
    %6720 = vmatpush1.msra.mxu0 %v6462
    %6721 = vmatprep.subr.mxu0 0.0
    %6722 = vmatpush1.msra.mxu0 %v6463
    %6723 = vmatprep.subr.mxu0 0.0
    %6724 = vmatpush1.msra.mxu0 %v6464
    %6725 = vmatprep.subr.mxu0 0.0
    %6726 = vmatpush1.msra.mxu0 %v6465
    %6727 = vmatprep.subr.mxu0 0.0
    %6728 = vmatpush1.msra.mxu0 %v6466
    %6729 = vmatprep.subr.mxu0 0.0
    %6730 = vmatpush1.msra.mxu0 %v6467
    %6731 = vmatprep.subr.mxu0 0.0
    %6732 = vmatpush1.msra.mxu0 %v6468
    %6733 = vmatprep.subr.mxu0 0.0
    %6734 = vmatpush1.msra.mxu0 %v6469
    %6735 = vmatprep.subr.mxu0 0.0
    %6736 = vmatpush1.msra.mxu0 %v6470
    %6737 = vmatprep.subr.mxu0 0.0
    %6738 = vmatpush1.msra.mxu0 %v6471
    %6739 = vmatprep.subr.mxu0 0.0
    %6740 = vmatpush1.msra.mxu0 %v6472
    %6741 = vmatprep.subr.mxu0 0.0
    %6742 = vmatpush1.msra.mxu0 %v6473
    %6743 = vmatprep.subr.mxu0 0.0
    %6744 = vmatpush1.msra.mxu0 %v6474
    %6745 = vmatprep.subr.mxu0 0.0
    %6746 = vmatpush1.msra.mxu0 %v6475
    %6747 = vmatprep.subr.mxu0 0.0
    %6748 = vmatpush1.msra.mxu0 0.0
    %6749 = vmatprep.subr.mxu0 0.0
    %6750 = vmatpush1.msra.mxu0 0.0
    %6751 = vmatprep.subr.mxu0 0.0
    %6752 = vmatpush1.msra.mxu0 0.0
    %6753 = vmatprep.subr.mxu0 0.0
    %6754 = vmatpush1.msra.mxu0 0.0
    %6755 = vmatprep.subr.mxu0 0.0
    %6756 = vmatpush1.msra.mxu0 0.0
    %6757 = vmatprep.subr.mxu0 0.0
    %6758 = vmatpush1.msra.mxu0 0.0
    %6759 = vmatprep.subr.mxu0 0.0
    %6760 = vmatpush1.msra.mxu0 0.0
    %6761 = vmatprep.mubr.f32.mxu0 %v6485
    %6762 = vmatmul.mubr.f32.gmra.mrb[0].mxu0 %v6349
    %v6763 = vpop.f32.mrb[0].mxu0
    %v6764 = vadd.f32 %v6694, %v6763
    %v6765 = vpop.f32.mrb[0].mxu0
    %6766 = vdwg.mxu0
    %v6767 = vsel %vm1798, %v6764, 0.0
    %v6768 = vrot.slane %v6767, 4
    %v6769 = vadd.f32 %v6767, %v6768
    %v6770 = vrot.slane %v6769, 2
    %v6771 = vadd.f32 %v6769, %v6770
    %v6772 = vrot.slane %v6771, 1
    %v6773 = vadd.f32 %v6771, %v6772
    %v6774 = vmul.f32 %v6773, 0.004132231
    %v6776 = vsel %vm1807, %v6774, 0
    %6778 = vmatprep.subr.mxu0 %v6477
    %6779 = vmatpush1.msra.mxu0 %v6476
    %6780 = vmatprep.subr.mxu0 0.0
    %6781 = vmatpush1.msra.mxu0 0.0
    %6782 = vmatprep.subr.mxu0 0.0
    %6783 = vmatpush1.msra.mxu0 0.0
    %6784 = vmatprep.subr.mxu0 0.0
    %6785 = vmatpush1.msra.mxu0 0.0
    %6786 = vmatprep.subr.mxu0 0.0
    %6787 = vmatpush1.msra.mxu0 0.0
    %6788 = vmatprep.subr.mxu0 0.0
    %6789 = vmatpush1.msra.mxu0 0.0
    %6790 = vmatprep.subr.mxu0 0.0
    %6791 = vmatpush1.msra.mxu0 0.0
    %6792 = vmatprep.subr.mxu0 0.0
    %6793 = vmatpush1.msra.mxu0 0.0
    %6794 = vmatprep.subr.mxu0 0.0
    %6795 = vmatpush1.msra.mxu0 0.0
    %6796 = vmatprep.subr.mxu0 0.0
    %6797 = vmatpush1.msra.mxu0 0.0
    %6798 = vmatprep.subr.mxu0 0.0
    %6799 = vmatpush1.msra.mxu0 0.0
    %6800 = vmatprep.subr.mxu0 0.0
    %6801 = vmatpush1.msra.mxu0 0.0
    %6802 = vmatprep.subr.mxu0 0.0
    %6803 = vmatpush1.msra.mxu0 0.0
    %6804 = vmatprep.subr.mxu0 0.0
    %6805 = vmatpush1.msra.mxu0 0.0
    %6806 = vmatprep.subr.mxu0 0.0
    %6807 = vmatpush1.msra.mxu0 0.0
    %6808 = vmatprep.subr.mxu0 0.0
    %6809 = vmatpush1.msra.mxu0 0.0
    %6810 = vmatprep.subr.mxu0 0.0
    %6811 = vmatpush1.msra.mxu0 0.0
    %6812 = vmatprep.subr.mxu0 0.0
    %6813 = vmatpush1.msra.mxu0 0.0
    %6814 = vmatprep.subr.mxu0 0.0
    %6815 = vmatpush1.msra.mxu0 0.0
    %6816 = vmatprep.subr.mxu0 0.0
    %6817 = vmatpush1.msra.mxu0 0.0
    %6818 = vmatprep.subr.mxu0 0.0
    %6819 = vmatpush1.msra.mxu0 0.0
    %6820 = vmatprep.subr.mxu0 0.0
    %6821 = vmatpush1.msra.mxu0 0.0
    %6822 = vmatprep.subr.mxu0 0.0
    %6823 = vmatpush1.msra.mxu0 0.0
    %6824 = vmatprep.subr.mxu0 0.0
    %6825 = vmatpush1.msra.mxu0 0.0
    %6826 = vmatprep.subr.mxu0 0.0
    %6827 = vmatpush1.msra.mxu0 0.0
    %6828 = vmatprep.subr.mxu0 0.0
    %6829 = vmatpush1.msra.mxu0 0.0
    %6830 = vmatprep.subr.mxu0 0.0
    %6831 = vmatpush1.msra.mxu0 0.0
    %6832 = vmatprep.subr.mxu0 0.0
    %6833 = vmatpush1.msra.mxu0 0.0
    %6834 = vmatprep.subr.mxu0 0.0
    %6835 = vmatpush1.msra.mxu0 0.0
    %6836 = vmatprep.subr.mxu0 0.0
    %6837 = vmatpush1.msra.mxu0 0.0
    %6838 = vmatprep.subr.mxu0 0.0
    %6839 = vmatpush1.msra.mxu0 0.0
    %6840 = vmatprep.subr.mxu0 0.0
    %6841 = vmatpush1.msra.mxu0 0.0
    %6842 = vmatprep.mubr.f32.mxu0 0.0
    %6843 = vmatmul.mubr.f32.gmra.mrb[0].mxu0 %v6776
    %v6844 = vpop.f32.mrb[0].mxu0
    %v6845 = vadd.f32 0.0, %v6844
    %v6846 = vpop.f32.mrb[0].mxu0
    %v6847 = vadd.f32 0.0, %v6846
    %6848 = vdwg.mxu0
    %6849 = vmatprep.subr.mxu0 %v6479
    %6850 = vmatpush1.msra.mxu0 %v6478
    %6851 = vmatprep.subr.mxu0 0.0
    %6852 = vmatpush1.msra.mxu0 0.0
    %6853 = vmatprep.subr.mxu0 0.0
    %6854 = vmatpush1.msra.mxu0 0.0
    %6855 = vmatprep.subr.mxu0 0.0
    %6856 = vmatpush1.msra.mxu0 0.0
    %6857 = vmatprep.subr.mxu0 0.0
    %6858 = vmatpush1.msra.mxu0 0.0
    %6859 = vmatprep.subr.mxu0 0.0
    %6860 = vmatpush1.msra.mxu0 0.0
    %6861 = vmatprep.subr.mxu0 0.0
    %6862 = vmatpush1.msra.mxu0 0.0
    %6863 = vmatprep.subr.mxu0 0.0
    %6864 = vmatpush1.msra.mxu0 0.0
    %6865 = vmatprep.subr.mxu0 0.0
    %6866 = vmatpush1.msra.mxu0 0.0
    %6867 = vmatprep.subr.mxu0 0.0
    %6868 = vmatpush1.msra.mxu0 0.0
    %6869 = vmatprep.subr.mxu0 0.0
    %6870 = vmatpush1.msra.mxu0 0.0
    %6871 = vmatprep.subr.mxu0 0.0
    %6872 = vmatpush1.msra.mxu0 0.0
    %6873 = vmatprep.subr.mxu0 0.0
    %6874 = vmatpush1.msra.mxu0 0.0
    %6875 = vmatprep.subr.mxu0 0.0
    %6876 = vmatpush1.msra.mxu0 0.0
    %6877 = vmatprep.subr.mxu0 0.0
    %6878 = vmatpush1.msra.mxu0 0.0
    %6879 = vmatprep.subr.mxu0 0.0
    %6880 = vmatpush1.msra.mxu0 0.0
    %6881 = vmatprep.subr.mxu0 0.0
    %6882 = vmatpush1.msra.mxu0 0.0
    %6883 = vmatprep.subr.mxu0 0.0
    %6884 = vmatpush1.msra.mxu0 0.0
    %6885 = vmatprep.subr.mxu0 0.0
    %6886 = vmatpush1.msra.mxu0 0.0
    %6887 = vmatprep.subr.mxu0 0.0
    %6888 = vmatpush1.msra.mxu0 0.0
    %6889 = vmatprep.subr.mxu0 0.0
    %6890 = vmatpush1.msra.mxu0 0.0
    %6891 = vmatprep.subr.mxu0 0.0
    %6892 = vmatpush1.msra.mxu0 0.0
    %6893 = vmatprep.subr.mxu0 0.0
    %6894 = vmatpush1.msra.mxu0 0.0
    %6895 = vmatprep.subr.mxu0 0.0
    %6896 = vmatpush1.msra.mxu0 0.0
    %6897 = vmatprep.subr.mxu0 0.0
    %6898 = vmatpush1.msra.mxu0 0.0
    %6899 = vmatprep.subr.mxu0 0.0
    %6900 = vmatpush1.msra.mxu0 0.0
    %6901 = vmatprep.subr.mxu0 0.0
    %6902 = vmatpush1.msra.mxu0 0.0
    %6903 = vmatprep.subr.mxu0 0.0
    %6904 = vmatpush1.msra.mxu0 0.0
    %6905 = vmatprep.subr.mxu0 0.0
    %6906 = vmatpush1.msra.mxu0 0.0
    %6907 = vmatprep.subr.mxu0 0.0
    %6908 = vmatpush1.msra.mxu0 0.0
    %6909 = vmatprep.subr.mxu0 0.0
    %6910 = vmatpush1.msra.mxu0 0.0
    %6911 = vmatprep.subr.mxu0 0.0
    %6912 = vmatpush1.msra.mxu0 0.0
    %6913 = vmatprep.mubr.f32.mxu0 0.0
    %6914 = vmatmul.mubr.f32.gmra.mrb[0].mxu0 %v6776
    %v6915 = vpop.f32.mrb[0].mxu0
    %v6916 = vadd.f32 0.0, %v6915
    %v6917 = vpop.f32.mrb[0].mxu0
    %v6918 = vadd.f32 0.0, %v6917
    %6919 = vdwg.mxu0
    %6920 = vmatprep.subr.mxu0 %v6481
    %6921 = vmatpush1.msra.mxu0 %v6480
    %6922 = vmatprep.subr.mxu0 0.0
    %6923 = vmatpush1.msra.mxu0 0.0
    %6924 = vmatprep.subr.mxu0 0.0
    %6925 = vmatpush1.msra.mxu0 0.0
    %6926 = vmatprep.subr.mxu0 0.0
    %6927 = vmatpush1.msra.mxu0 0.0
    %6928 = vmatprep.subr.mxu0 0.0
    %6929 = vmatpush1.msra.mxu0 0.0
    %6930 = vmatprep.subr.mxu0 0.0
    %6931 = vmatpush1.msra.mxu0 0.0
    %6932 = vmatprep.subr.mxu0 0.0
    %6933 = vmatpush1.msra.mxu0 0.0
    %6934 = vmatprep.subr.mxu0 0.0
    %6935 = vmatpush1.msra.mxu0 0.0
    %6936 = vmatprep.subr.mxu0 0.0
    %6937 = vmatpush1.msra.mxu0 0.0
    %6938 = vmatprep.subr.mxu0 0.0
    %6939 = vmatpush1.msra.mxu0 0.0
    %6940 = vmatprep.subr.mxu0 0.0
    %6941 = vmatpush1.msra.mxu0 0.0
    %6942 = vmatprep.subr.mxu0 0.0
    %6943 = vmatpush1.msra.mxu0 0.0
    %6944 = vmatprep.subr.mxu0 0.0
    %6945 = vmatpush1.msra.mxu0 0.0
    %6946 = vmatprep.subr.mxu0 0.0
    %6947 = vmatpush1.msra.mxu0 0.0
    %6948 = vmatprep.subr.mxu0 0.0
    %6949 = vmatpush1.msra.mxu0 0.0
    %6950 = vmatprep.subr.mxu0 0.0
    %6951 = vmatpush1.msra.mxu0 0.0
    %6952 = vmatprep.subr.mxu0 0.0
    %6953 = vmatpush1.msra.mxu0 0.0
    %6954 = vmatprep.subr.mxu0 0.0
    %6955 = vmatpush1.msra.mxu0 0.0
    %6956 = vmatprep.subr.mxu0 0.0
    %6957 = vmatpush1.msra.mxu0 0.0
    %6958 = vmatprep.subr.mxu0 0.0
    %6959 = vmatpush1.msra.mxu0 0.0
    %6960 = vmatprep.subr.mxu0 0.0
    %6961 = vmatpush1.msra.mxu0 0.0
    %6962 = vmatprep.subr.mxu0 0.0
    %6963 = vmatpush1.msra.mxu0 0.0
    %6964 = vmatprep.subr.mxu0 0.0
    %6965 = vmatpush1.msra.mxu0 0.0
    %6966 = vmatprep.subr.mxu0 0.0
    %6967 = vmatpush1.msra.mxu0 0.0
    %6968 = vmatprep.subr.mxu0 0.0
    %6969 = vmatpush1.msra.mxu0 0.0
    %6970 = vmatprep.subr.mxu0 0.0
    %6971 = vmatpush1.msra.mxu0 0.0
    %6972 = vmatprep.subr.mxu0 0.0
    %6973 = vmatpush1.msra.mxu0 0.0
    %6974 = vmatprep.subr.mxu0 0.0
    %6975 = vmatpush1.msra.mxu0 0.0
    %6976 = vmatprep.subr.mxu0 0.0
    %6977 = vmatpush1.msra.mxu0 0.0
    %6978 = vmatprep.subr.mxu0 0.0
    %6979 = vmatpush1.msra.mxu0 0.0
    %6980 = vmatprep.subr.mxu0 0.0
    %6981 = vmatpush1.msra.mxu0 0.0
    %6982 = vmatprep.subr.mxu0 0.0
    %6983 = vmatpush1.msra.mxu0 0.0
    %6984 = vmatprep.mubr.f32.mxu0 0.0
    %6985 = vmatmul.mubr.f32.gmra.mrb[0].mxu0 %v6776
    %v6986 = vpop.f32.mrb[0].mxu0
    %v6987 = vadd.f32 0.0, %v6986
    %v6988 = vpop.f32.mrb[0].mxu0
    %v6989 = vadd.f32 0.0, %v6988
    %6990 = vdwg.mxu0
    %6991 = vmatprep.subr.mxu0 %v6483
    %6992 = vmatpush1.msra.mxu0 %v6482
    %6993 = vmatprep.subr.mxu0 0.0
    %6994 = vmatpush1.msra.mxu0 0.0
    %6995 = vmatprep.subr.mxu0 0.0
    %6996 = vmatpush1.msra.mxu0 0.0
    %6997 = vmatprep.subr.mxu0 0.0
    %6998 = vmatpush1.msra.mxu0 0.0
    %6999 = vmatprep.subr.mxu0 0.0
    %7000 = vmatpush1.msra.mxu0 0.0
    %7001 = vmatprep.subr.mxu0 0.0
    %7002 = vmatpush1.msra.mxu0 0.0
    %7003 = vmatprep.subr.mxu0 0.0
    %7004 = vmatpush1.msra.mxu0 0.0
    %7005 = vmatprep.subr.mxu0 0.0
    %7006 = vmatpush1.msra.mxu0 0.0
    %7007 = vmatprep.subr.mxu0 0.0
    %7008 = vmatpush1.msra.mxu0 0.0
    %7009 = vmatprep.subr.mxu0 0.0
    %7010 = vmatpush1.msra.mxu0 0.0
    %7011 = vmatprep.subr.mxu0 0.0
    %7012 = vmatpush1.msra.mxu0 0.0
    %7013 = vmatprep.subr.mxu0 0.0
    %7014 = vmatpush1.msra.mxu0 0.0
    %7015 = vmatprep.subr.mxu0 0.0
    %7016 = vmatpush1.msra.mxu0 0.0
    %7017 = vmatprep.subr.mxu0 0.0
    %7018 = vmatpush1.msra.mxu0 0.0
    %7019 = vmatprep.subr.mxu0 0.0
    %7020 = vmatpush1.msra.mxu0 0.0
    %7021 = vmatprep.subr.mxu0 0.0
    %7022 = vmatpush1.msra.mxu0 0.0
    %7023 = vmatprep.subr.mxu0 0.0
    %7024 = vmatpush1.msra.mxu0 0.0
    %7025 = vmatprep.subr.mxu0 0.0
    %7026 = vmatpush1.msra.mxu0 0.0
    %7027 = vmatprep.subr.mxu0 0.0
    %7028 = vmatpush1.msra.mxu0 0.0
    %7029 = vmatprep.subr.mxu0 0.0
    %7030 = vmatpush1.msra.mxu0 0.0
    %7031 = vmatprep.subr.mxu0 0.0
    %7032 = vmatpush1.msra.mxu0 0.0
    %7033 = vmatprep.subr.mxu0 0.0
    %7034 = vmatpush1.msra.mxu0 0.0
    %7035 = vmatprep.subr.mxu0 0.0
    %7036 = vmatpush1.msra.mxu0 0.0
    %7037 = vmatprep.subr.mxu0 0.0
    %7038 = vmatpush1.msra.mxu0 0.0
    %7039 = vmatprep.subr.mxu0 0.0
    %7040 = vmatpush1.msra.mxu0 0.0
    %7041 = vmatprep.subr.mxu0 0.0
    %7042 = vmatpush1.msra.mxu0 0.0
    %7043 = vmatprep.subr.mxu0 0.0
    %7044 = vmatpush1.msra.mxu0 0.0
    %7045 = vmatprep.subr.mxu0 0.0
    %7046 = vmatpush1.msra.mxu0 0.0
    %7047 = vmatprep.subr.mxu0 0.0
    %7048 = vmatpush1.msra.mxu0 0.0
    %7049 = vmatprep.subr.mxu0 0.0
    %7050 = vmatpush1.msra.mxu0 0.0
    %7051 = vmatprep.subr.mxu0 0.0
    %7052 = vmatpush1.msra.mxu0 0.0
    %7053 = vmatprep.subr.mxu0 0.0
    %7054 = vmatpush1.msra.mxu0 0.0
    %7055 = vmatprep.mubr.f32.mxu0 0.0
    %7056 = vmatmul.mubr.f32.gmra.mrb[0].mxu0 %v6776
    %v7057 = vpop.f32.mrb[0].mxu0
    %v7058 = vadd.f32 0.0, %v7057
    %v7059 = vpop.f32.mrb[0].mxu0
    %v7060 = vadd.f32 0.0, %v7059
    %7061 = vdwg.mxu0
    %v7062 = vlaneseq
    %v7063 = vshrl.u32 %v7062, 7
    %v7064 = vsub.s32 0, %v7063
    %v7065 = vrot.slane %v6845, %v7064
    %v7066 = vlaneseq
    %v7067 = vshrl.u32 %v7066, 7
    %v7068 = vsub.s32 0, %v7067
    %v7069 = vrot.slane %v6847, %v7068
    %v7070 = vlaneseq
    %v7071 = vshrl.u32 %v7070, 7
    %v7072 = vsub.s32 0, %v7071
    %v7073 = vrot.slane %v6916, %v7072
    %v7074 = vlaneseq
    %v7075 = vshrl.u32 %v7074, 7
    %v7076 = vsub.s32 0, %v7075
    %v7077 = vrot.slane %v6918, %v7076
    %v7078 = vlaneseq
    %v7079 = vshrl.u32 %v7078, 7
    %v7080 = vsub.s32 0, %v7079
    %v7081 = vrot.slane %v6987, %v7080
    %v7082 = vlaneseq
    %v7083 = vshrl.u32 %v7082, 7
    %v7084 = vsub.s32 0, %v7083
    %v7085 = vrot.slane %v6989, %v7084
    %v7086 = vlaneseq
    %v7087 = vshrl.u32 %v7086, 7
    %v7088 = vsub.s32 0, %v7087
    %v7089 = vrot.slane %v7058, %v7088
    %v7090 = vlaneseq
    %v7091 = vshrl.u32 %v7090, 7
    %v7092 = vsub.s32 0, %v7091
    %v7093 = vrot.slane %v7060, %v7092
    %v7094 = vsub.f32 %v6103, %v7065
    %v7095 = vsub.f32 %v6105, %v7069
    %v7096 = vsub.f32 %v6185, %v7073
    %v7097 = vsub.f32 %v6187, %v7077
    %v7098 = vsub.f32 %v6267, %v7081
    %v7099 = vsub.f32 %v6269, %v7085
    %v7100 = vsub.f32 %v6349, %v7089
    %v7101 = vsub.f32 %v6351, %v7093
    %v7102 = vmul.f32 %v7094, %v7094
    %v7103 = vmul.f32 %v7095, %v7095
    %v7104 = vmul.f32 %v7096, %v7096
    %v7105 = vmul.f32 %v7097, %v7097
    %v7106 = vmul.f32 %v7098, %v7098
    %v7107 = vmul.f32 %v7099, %v7099
    %v7108 = vmul.f32 %v7100, %v7100
    %v7109 = vmul.f32 %v7101, %v7101
    %v7111 = vsel %vm1724, %v7109, 0
    %7113 = vmatprep.subr.mxu0 0.0
    %7114 = vmatpush1.msra.mxu0 %v6355
    %7115 = vmatprep.subr.mxu0 0.0
    %7116 = vmatpush1.msra.mxu0 %v6356
    %7117 = vmatprep.subr.mxu0 0.0
    %7118 = vmatpush1.msra.mxu0 %v6357
    %7119 = vmatprep.subr.mxu0 0.0
    %7120 = vmatpush1.msra.mxu0 %v6358
    %7121 = vmatprep.subr.mxu0 0.0
    %7122 = vmatpush1.msra.mxu0 %v6359
    %7123 = vmatprep.subr.mxu0 0.0
    %7124 = vmatpush1.msra.mxu0 %v6360
    %7125 = vmatprep.subr.mxu0 0.0
    %7126 = vmatpush1.msra.mxu0 %v6361
    %7127 = vmatprep.subr.mxu0 0.0
    %7128 = vmatpush1.msra.mxu0 %v6362
    %7129 = vmatprep.subr.mxu0 0.0
    %7130 = vmatpush1.msra.mxu0 %v6363
    %7131 = vmatprep.subr.mxu0 0.0
    %7132 = vmatpush1.msra.mxu0 %v6364
    %7133 = vmatprep.subr.mxu0 0.0
    %7134 = vmatpush1.msra.mxu0 %v6365
    %7135 = vmatprep.subr.mxu0 0.0
    %7136 = vmatpush1.msra.mxu0 %v6366
    %7137 = vmatprep.subr.mxu0 0.0
    %7138 = vmatpush1.msra.mxu0 %v6367
    %7139 = vmatprep.subr.mxu0 0.0
    %7140 = vmatpush1.msra.mxu0 %v6368
    %7141 = vmatprep.subr.mxu0 0.0
    %7142 = vmatpush1.msra.mxu0 %v6369
    %7143 = vmatprep.subr.mxu0 0.0
    %7144 = vmatpush1.msra.mxu0 %v6370
    %7145 = vmatprep.subr.mxu0 0.0
    %7146 = vmatpush1.msra.mxu0 %v6371
    %7147 = vmatprep.subr.mxu0 0.0
    %7148 = vmatpush1.msra.mxu0 %v6372
    %7149 = vmatprep.subr.mxu0 0.0
    %7150 = vmatpush1.msra.mxu0 %v6373
    %7151 = vmatprep.subr.mxu0 0.0
    %7152 = vmatpush1.msra.mxu0 %v6374
    %7153 = vmatprep.subr.mxu0 0.0
    %7154 = vmatpush1.msra.mxu0 %v6375
    %7155 = vmatprep.subr.mxu0 0.0
    %7156 = vmatpush1.msra.mxu0 %v6376
    %7157 = vmatprep.subr.mxu0 0.0
    %7158 = vmatpush1.msra.mxu0 %v6377
    %7159 = vmatprep.subr.mxu0 0.0
    %7160 = vmatpush1.msra.mxu0 %v6378
    %7161 = vmatprep.subr.mxu0 0.0
    %7162 = vmatpush1.msra.mxu0 %v6379
    %7163 = vmatprep.subr.mxu0 0.0
    %7164 = vmatpush1.msra.mxu0 %v6380
    %7165 = vmatprep.subr.mxu0 0.0
    %7166 = vmatpush1.msra.mxu0 %v6381
    %7167 = vmatprep.subr.mxu0 0.0
    %7168 = vmatpush1.msra.mxu0 %v6382
    %7169 = vmatprep.subr.mxu0 0.0
    %7170 = vmatpush1.msra.mxu0 %v6383
    %7171 = vmatprep.subr.mxu0 0.0
    %7172 = vmatpush1.msra.mxu0 %v6384
    %7173 = vmatprep.subr.mxu0 0.0
    %7174 = vmatpush1.msra.mxu0 %v6385
    %7175 = vmatprep.subr.mxu0 0.0
    %7176 = vmatpush1.msra.mxu0 %v6386
    %7177 = vmatprep.mubr.f32.mxu0 %v7103
    %7178 = vmatmul.mubr.f32.gmra.mrb[0].mxu0 %v7102
    %v7179 = vpop.f32.mrb[0].mxu0
    %v7180 = vadd.f32 0.0, %v7179
    %v7181 = vpop.f32.mrb[0].mxu0
    %7182 = vdwg.mxu0
    %7183 = vmatprep.subr.mxu0 0.0
    %7184 = vmatpush1.msra.mxu0 %v6387
    %7185 = vmatprep.subr.mxu0 0.0
    %7186 = vmatpush1.msra.mxu0 %v6388
    %7187 = vmatprep.subr.mxu0 0.0
    %7188 = vmatpush1.msra.mxu0 %v6389
    %7189 = vmatprep.subr.mxu0 0.0
    %7190 = vmatpush1.msra.mxu0 %v6390
    %7191 = vmatprep.subr.mxu0 0.0
    %7192 = vmatpush1.msra.mxu0 %v6391
    %7193 = vmatprep.subr.mxu0 0.0
    %7194 = vmatpush1.msra.mxu0 %v6392
    %7195 = vmatprep.subr.mxu0 0.0
    %7196 = vmatpush1.msra.mxu0 %v6393
    %7197 = vmatprep.subr.mxu0 0.0
    %7198 = vmatpush1.msra.mxu0 %v6394
    %7199 = vmatprep.subr.mxu0 0.0
    %7200 = vmatpush1.msra.mxu0 %v6395
    %7201 = vmatprep.subr.mxu0 0.0
    %7202 = vmatpush1.msra.mxu0 %v6396
    %7203 = vmatprep.subr.mxu0 0.0
    %7204 = vmatpush1.msra.mxu0 %v6397
    %7205 = vmatprep.subr.mxu0 0.0
    %7206 = vmatpush1.msra.mxu0 %v6398
    %7207 = vmatprep.subr.mxu0 0.0
    %7208 = vmatpush1.msra.mxu0 %v6399
    %7209 = vmatprep.subr.mxu0 0.0
    %7210 = vmatpush1.msra.mxu0 %v6400
    %7211 = vmatprep.subr.mxu0 0.0
    %7212 = vmatpush1.msra.mxu0 %v6401
    %7213 = vmatprep.subr.mxu0 0.0
    %7214 = vmatpush1.msra.mxu0 %v6402
    %7215 = vmatprep.subr.mxu0 0.0
    %7216 = vmatpush1.msra.mxu0 %v6403
    %7217 = vmatprep.subr.mxu0 0.0
    %7218 = vmatpush1.msra.mxu0 %v6404
    %7219 = vmatprep.subr.mxu0 0.0
    %7220 = vmatpush1.msra.mxu0 %v6405
    %7221 = vmatprep.subr.mxu0 0.0
    %7222 = vmatpush1.msra.mxu0 %v6406
    %7223 = vmatprep.subr.mxu0 0.0
    %7224 = vmatpush1.msra.mxu0 %v6407
    %7225 = vmatprep.subr.mxu0 0.0
    %7226 = vmatpush1.msra.mxu0 %v6408
    %7227 = vmatprep.subr.mxu0 0.0
    %7228 = vmatpush1.msra.mxu0 %v6409
    %7229 = vmatprep.subr.mxu0 0.0
    %7230 = vmatpush1.msra.mxu0 %v6410
    %7231 = vmatprep.subr.mxu0 0.0
    %7232 = vmatpush1.msra.mxu0 %v6411
    %7233 = vmatprep.subr.mxu0 0.0
    %7234 = vmatpush1.msra.mxu0 %v6412
    %7235 = vmatprep.subr.mxu0 0.0
    %7236 = vmatpush1.msra.mxu0 %v6413
    %7237 = vmatprep.subr.mxu0 0.0
    %7238 = vmatpush1.msra.mxu0 %v6414
    %7239 = vmatprep.subr.mxu0 0.0
    %7240 = vmatpush1.msra.mxu0 %v6415
    %7241 = vmatprep.subr.mxu0 0.0
    %7242 = vmatpush1.msra.mxu0 %v6416
    %7243 = vmatprep.subr.mxu0 0.0
    %7244 = vmatpush1.msra.mxu0 %v6417
    %7245 = vmatprep.subr.mxu0 0.0
    %7246 = vmatpush1.msra.mxu0 %v6418
    %7247 = vmatprep.mubr.f32.mxu0 %v7105
    %7248 = vmatmul.mubr.f32.gmra.mrb[0].mxu0 %v7104
    %v7249 = vpop.f32.mrb[0].mxu0
    %v7250 = vadd.f32 %v7180, %v7249
    %v7251 = vpop.f32.mrb[0].mxu0
    %7252 = vdwg.mxu0
    %7253 = vmatprep.subr.mxu0 0.0
    %7254 = vmatpush1.msra.mxu0 %v6419
    %7255 = vmatprep.subr.mxu0 0.0
    %7256 = vmatpush1.msra.mxu0 %v6420
    %7257 = vmatprep.subr.mxu0 0.0
    %7258 = vmatpush1.msra.mxu0 %v6421
    %7259 = vmatprep.subr.mxu0 0.0
    %7260 = vmatpush1.msra.mxu0 %v6422
    %7261 = vmatprep.subr.mxu0 0.0
    %7262 = vmatpush1.msra.mxu0 %v6423
    %7263 = vmatprep.subr.mxu0 0.0
    %7264 = vmatpush1.msra.mxu0 %v6424
    %7265 = vmatprep.subr.mxu0 0.0
    %7266 = vmatpush1.msra.mxu0 %v6425
    %7267 = vmatprep.subr.mxu0 0.0
    %7268 = vmatpush1.msra.mxu0 %v6426
    %7269 = vmatprep.subr.mxu0 0.0
    %7270 = vmatpush1.msra.mxu0 %v6427
    %7271 = vmatprep.subr.mxu0 0.0
    %7272 = vmatpush1.msra.mxu0 %v6428
    %7273 = vmatprep.subr.mxu0 0.0
    %7274 = vmatpush1.msra.mxu0 %v6429
    %7275 = vmatprep.subr.mxu0 0.0
    %7276 = vmatpush1.msra.mxu0 %v6430
    %7277 = vmatprep.subr.mxu0 0.0
    %7278 = vmatpush1.msra.mxu0 %v6431
    %7279 = vmatprep.subr.mxu0 0.0
    %7280 = vmatpush1.msra.mxu0 %v6432
    %7281 = vmatprep.subr.mxu0 0.0
    %7282 = vmatpush1.msra.mxu0 %v6433
    %7283 = vmatprep.subr.mxu0 0.0
    %7284 = vmatpush1.msra.mxu0 %v6434
    %7285 = vmatprep.subr.mxu0 0.0
    %7286 = vmatpush1.msra.mxu0 %v6435
    %7287 = vmatprep.subr.mxu0 0.0
    %7288 = vmatpush1.msra.mxu0 %v6436
    %7289 = vmatprep.subr.mxu0 0.0
    %7290 = vmatpush1.msra.mxu0 %v6437
    %7291 = vmatprep.subr.mxu0 0.0
    %7292 = vmatpush1.msra.mxu0 %v6438
    %7293 = vmatprep.subr.mxu0 0.0
    %7294 = vmatpush1.msra.mxu0 %v6439
    %7295 = vmatprep.subr.mxu0 0.0
    %7296 = vmatpush1.msra.mxu0 %v6440
    %7297 = vmatprep.subr.mxu0 0.0
    %7298 = vmatpush1.msra.mxu0 %v6441
    %7299 = vmatprep.subr.mxu0 0.0
    %7300 = vmatpush1.msra.mxu0 %v6442
    %7301 = vmatprep.subr.mxu0 0.0
    %7302 = vmatpush1.msra.mxu0 %v6443
    %7303 = vmatprep.subr.mxu0 0.0
    %7304 = vmatpush1.msra.mxu0 %v6444
    %7305 = vmatprep.subr.mxu0 0.0
    %7306 = vmatpush1.msra.mxu0 %v6445
    %7307 = vmatprep.subr.mxu0 0.0
    %7308 = vmatpush1.msra.mxu0 %v6446
    %7309 = vmatprep.subr.mxu0 0.0
    %7310 = vmatpush1.msra.mxu0 %v6447
    %7311 = vmatprep.subr.mxu0 0.0
    %7312 = vmatpush1.msra.mxu0 %v6448
    %7313 = vmatprep.subr.mxu0 0.0
    %7314 = vmatpush1.msra.mxu0 %v6449
    %7315 = vmatprep.subr.mxu0 0.0
    %7316 = vmatpush1.msra.mxu0 %v6450
    %7317 = vmatprep.mubr.f32.mxu0 %v7107
    %7318 = vmatmul.mubr.f32.gmra.mrb[0].mxu0 %v7106
    %v7319 = vpop.f32.mrb[0].mxu0
    %v7320 = vadd.f32 %v7250, %v7319
    %v7321 = vpop.f32.mrb[0].mxu0
    %7322 = vdwg.mxu0
    %7323 = vmatprep.subr.mxu0 0.0
    %7324 = vmatpush1.msra.mxu0 %v6451
    %7325 = vmatprep.subr.mxu0 0.0
    %7326 = vmatpush1.msra.mxu0 %v6452
    %7327 = vmatprep.subr.mxu0 0.0
    %7328 = vmatpush1.msra.mxu0 %v6453
    %7329 = vmatprep.subr.mxu0 0.0
    %7330 = vmatpush1.msra.mxu0 %v6454
    %7331 = vmatprep.subr.mxu0 0.0
    %7332 = vmatpush1.msra.mxu0 %v6455
    %7333 = vmatprep.subr.mxu0 0.0
    %7334 = vmatpush1.msra.mxu0 %v6456
    %7335 = vmatprep.subr.mxu0 0.0
    %7336 = vmatpush1.msra.mxu0 %v6457
    %7337 = vmatprep.subr.mxu0 0.0
    %7338 = vmatpush1.msra.mxu0 %v6458
    %7339 = vmatprep.subr.mxu0 0.0
    %7340 = vmatpush1.msra.mxu0 %v6459
    %7341 = vmatprep.subr.mxu0 0.0
    %7342 = vmatpush1.msra.mxu0 %v6460
    %7343 = vmatprep.subr.mxu0 0.0
    %7344 = vmatpush1.msra.mxu0 %v6461
    %7345 = vmatprep.subr.mxu0 0.0
    %7346 = vmatpush1.msra.mxu0 %v6462
    %7347 = vmatprep.subr.mxu0 0.0
    %7348 = vmatpush1.msra.mxu0 %v6463
    %7349 = vmatprep.subr.mxu0 0.0
    %7350 = vmatpush1.msra.mxu0 %v6464
    %7351 = vmatprep.subr.mxu0 0.0
    %7352 = vmatpush1.msra.mxu0 %v6465
    %7353 = vmatprep.subr.mxu0 0.0
    %7354 = vmatpush1.msra.mxu0 %v6466
    %7355 = vmatprep.subr.mxu0 0.0
    %7356 = vmatpush1.msra.mxu0 %v6467
    %7357 = vmatprep.subr.mxu0 0.0
    %7358 = vmatpush1.msra.mxu0 %v6468
    %7359 = vmatprep.subr.mxu0 0.0
    %7360 = vmatpush1.msra.mxu0 %v6469
    %7361 = vmatprep.subr.mxu0 0.0
    %7362 = vmatpush1.msra.mxu0 %v6470
    %7363 = vmatprep.subr.mxu0 0.0
    %7364 = vmatpush1.msra.mxu0 %v6471
    %7365 = vmatprep.subr.mxu0 0.0
    %7366 = vmatpush1.msra.mxu0 %v6472
    %7367 = vmatprep.subr.mxu0 0.0
    %7368 = vmatpush1.msra.mxu0 %v6473
    %7369 = vmatprep.subr.mxu0 0.0
    %7370 = vmatpush1.msra.mxu0 %v6474
    %7371 = vmatprep.subr.mxu0 0.0
    %7372 = vmatpush1.msra.mxu0 %v6475
    %7373 = vmatprep.subr.mxu0 0.0
    %7374 = vmatpush1.msra.mxu0 0.0
    %7375 = vmatprep.subr.mxu0 0.0
    %7376 = vmatpush1.msra.mxu0 0.0
    %7377 = vmatprep.subr.mxu0 0.0
    %7378 = vmatpush1.msra.mxu0 0.0
    %7379 = vmatprep.subr.mxu0 0.0
    %7380 = vmatpush1.msra.mxu0 0.0
    %7381 = vmatprep.subr.mxu0 0.0
    %7382 = vmatpush1.msra.mxu0 0.0
    %7383 = vmatprep.subr.mxu0 0.0
    %7384 = vmatpush1.msra.mxu0 0.0
    %7385 = vmatprep.subr.mxu0 0.0
    %7386 = vmatpush1.msra.mxu0 0.0
    %7387 = vmatprep.mubr.f32.mxu0 %v7111
    %7388 = vmatmul.mubr.f32.gmra.mrb[0].mxu0 %v7108
    %v7389 = vpop.f32.mrb[0].mxu0
    %v7390 = vadd.f32 %v7320, %v7389
    %v7391 = vpop.f32.mrb[0].mxu0
    %7392 = vdwg.mxu0
    %v7393 = vsel %vm1798, %v7390, 0.0
    %v7394 = vrot.slane %v7393, 4
    %v7395 = vadd.f32 %v7393, %v7394
    %v7396 = vrot.slane %v7395, 2
    %v7397 = vadd.f32 %v7395, %v7396
    %v7398 = vrot.slane %v7397, 1
    %v7399 = vadd.f32 %v7397, %v7398
    %v7400 = vmul.f32 %v7399, 0.004132231
    %v7401 = vld [vmem:[#allocation24] sm:$0x1]
    %v7402 = vadd.f32 %v7400, 1e-10
    %v7403 = vrsqrt.pop %v7402
    %v7404 = vmul.f32 %v7401, %v7403
    %v7406 = vsel %vm1807, %v7404, 0
    %7408 = vmatprep.subr.mxu0 %v6477
    %7409 = vmatpush1.msra.mxu0 %v6476
    %7410 = vmatprep.subr.mxu0 0.0
    %7411 = vmatpush1.msra.mxu0 0.0
    %7412 = vmatprep.subr.mxu0 0.0
    %7413 = vmatpush1.msra.mxu0 0.0
    %7414 = vmatprep.subr.mxu0 0.0
    %7415 = vmatpush1.msra.mxu0 0.0
    %7416 = vmatprep.subr.mxu0 0.0
    %7417 = vmatpush1.msra.mxu0 0.0
    %7418 = vmatprep.subr.mxu0 0.0
    %7419 = vmatpush1.msra.mxu0 0.0
    %7420 = vmatprep.subr.mxu0 0.0
    %7421 = vmatpush1.msra.mxu0 0.0
    %7422 = vmatprep.subr.mxu0 0.0
    %7423 = vmatpush1.msra.mxu0 0.0
    %7424 = vmatprep.subr.mxu0 0.0
    %7425 = vmatpush1.msra.mxu0 0.0
    %7426 = vmatprep.subr.mxu0 0.0
    %7427 = vmatpush1.msra.mxu0 0.0
    %7428 = vmatprep.subr.mxu0 0.0
    %7429 = vmatpush1.msra.mxu0 0.0
    %7430 = vmatprep.subr.mxu0 0.0
    %7431 = vmatpush1.msra.mxu0 0.0
    %7432 = vmatprep.subr.mxu0 0.0
    %7433 = vmatpush1.msra.mxu0 0.0
    %7434 = vmatprep.subr.mxu0 0.0
    %7435 = vmatpush1.msra.mxu0 0.0
    %7436 = vmatprep.subr.mxu0 0.0
    %7437 = vmatpush1.msra.mxu0 0.0
    %7438 = vmatprep.subr.mxu0 0.0
    %7439 = vmatpush1.msra.mxu0 0.0
    %7440 = vmatprep.subr.mxu0 0.0
    %7441 = vmatpush1.msra.mxu0 0.0
    %7442 = vmatprep.subr.mxu0 0.0
    %7443 = vmatpush1.msra.mxu0 0.0
    %7444 = vmatprep.subr.mxu0 0.0
    %7445 = vmatpush1.msra.mxu0 0.0
    %7446 = vmatprep.subr.mxu0 0.0
    %7447 = vmatpush1.msra.mxu0 0.0
    %7448 = vmatprep.subr.mxu0 0.0
    %7449 = vmatpush1.msra.mxu0 0.0
    %7450 = vmatprep.subr.mxu0 0.0
    %7451 = vmatpush1.msra.mxu0 0.0
    %7452 = vmatprep.subr.mxu0 0.0
    %7453 = vmatpush1.msra.mxu0 0.0
    %7454 = vmatprep.subr.mxu0 0.0
    %7455 = vmatpush1.msra.mxu0 0.0
    %7456 = vmatprep.subr.mxu0 0.0
    %7457 = vmatpush1.msra.mxu0 0.0
    %7458 = vmatprep.subr.mxu0 0.0
    %7459 = vmatpush1.msra.mxu0 0.0
    %7460 = vmatprep.subr.mxu0 0.0
    %7461 = vmatpush1.msra.mxu0 0.0
    %7462 = vmatprep.subr.mxu0 0.0
    %7463 = vmatpush1.msra.mxu0 0.0
    %7464 = vmatprep.subr.mxu0 0.0
    %7465 = vmatpush1.msra.mxu0 0.0
    %7466 = vmatprep.subr.mxu0 0.0
    %7467 = vmatpush1.msra.mxu0 0.0
    %7468 = vmatprep.subr.mxu0 0.0
    %7469 = vmatpush1.msra.mxu0 0.0
    %7470 = vmatprep.subr.mxu0 0.0
    %7471 = vmatpush1.msra.mxu0 0.0
    %7472 = vmatprep.mubr.f32.mxu0 0.0
    %7473 = vmatmul.mubr.f32.gmra.mrb[0].mxu0 %v7406
    %v7474 = vpop.f32.mrb[0].mxu0
    %v7475 = vadd.f32 0.0, %v7474
    %v7476 = vpop.f32.mrb[0].mxu0
    %v7477 = vadd.f32 0.0, %v7476
    %7478 = vdwg.mxu0
    %7479 = vmatprep.subr.mxu0 %v6479
    %7480 = vmatpush1.msra.mxu0 %v6478
    %7481 = vmatprep.subr.mxu0 0.0
    %7482 = vmatpush1.msra.mxu0 0.0
    %7483 = vmatprep.subr.mxu0 0.0
    %7484 = vmatpush1.msra.mxu0 0.0
    %7485 = vmatprep.subr.mxu0 0.0
    %7486 = vmatpush1.msra.mxu0 0.0
    %7487 = vmatprep.subr.mxu0 0.0
    %7488 = vmatpush1.msra.mxu0 0.0
    %7489 = vmatprep.subr.mxu0 0.0
    %7490 = vmatpush1.msra.mxu0 0.0
    %7491 = vmatprep.subr.mxu0 0.0
    %7492 = vmatpush1.msra.mxu0 0.0
    %7493 = vmatprep.subr.mxu0 0.0
    %7494 = vmatpush1.msra.mxu0 0.0
    %7495 = vmatprep.subr.mxu0 0.0
    %7496 = vmatpush1.msra.mxu0 0.0
    %7497 = vmatprep.subr.mxu0 0.0
    %7498 = vmatpush1.msra.mxu0 0.0
    %7499 = vmatprep.subr.mxu0 0.0
    %7500 = vmatpush1.msra.mxu0 0.0
    %7501 = vmatprep.subr.mxu0 0.0
    %7502 = vmatpush1.msra.mxu0 0.0
    %7503 = vmatprep.subr.mxu0 0.0
    %7504 = vmatpush1.msra.mxu0 0.0
    %7505 = vmatprep.subr.mxu0 0.0
    %7506 = vmatpush1.msra.mxu0 0.0
    %7507 = vmatprep.subr.mxu0 0.0
    %7508 = vmatpush1.msra.mxu0 0.0
    %7509 = vmatprep.subr.mxu0 0.0
    %7510 = vmatpush1.msra.mxu0 0.0
    %7511 = vmatprep.subr.mxu0 0.0
    %7512 = vmatpush1.msra.mxu0 0.0
    %7513 = vmatprep.subr.mxu0 0.0
    %7514 = vmatpush1.msra.mxu0 0.0
    %7515 = vmatprep.subr.mxu0 0.0
    %7516 = vmatpush1.msra.mxu0 0.0
    %7517 = vmatprep.subr.mxu0 0.0
    %7518 = vmatpush1.msra.mxu0 0.0
    %7519 = vmatprep.subr.mxu0 0.0
    %7520 = vmatpush1.msra.mxu0 0.0
    %7521 = vmatprep.subr.mxu0 0.0
    %7522 = vmatpush1.msra.mxu0 0.0
    %7523 = vmatprep.subr.mxu0 0.0
    %7524 = vmatpush1.msra.mxu0 0.0
    %7525 = vmatprep.subr.mxu0 0.0
    %7526 = vmatpush1.msra.mxu0 0.0
    %7527 = vmatprep.subr.mxu0 0.0
    %7528 = vmatpush1.msra.mxu0 0.0
    %7529 = vmatprep.subr.mxu0 0.0
    %7530 = vmatpush1.msra.mxu0 0.0
    %7531 = vmatprep.subr.mxu0 0.0
    %7532 = vmatpush1.msra.mxu0 0.0
    %7533 = vmatprep.subr.mxu0 0.0
    %7534 = vmatpush1.msra.mxu0 0.0
    %7535 = vmatprep.subr.mxu0 0.0
    %7536 = vmatpush1.msra.mxu0 0.0
    %7537 = vmatprep.subr.mxu0 0.0
    %7538 = vmatpush1.msra.mxu0 0.0
    %7539 = vmatprep.subr.mxu0 0.0
    %7540 = vmatpush1.msra.mxu0 0.0
    %7541 = vmatprep.subr.mxu0 0.0
    %7542 = vmatpush1.msra.mxu0 0.0
    %7543 = vmatprep.mubr.f32.mxu0 0.0
    %7544 = vmatmul.mubr.f32.gmra.mrb[0].mxu0 %v7406
    %v7545 = vpop.f32.mrb[0].mxu0
    %v7546 = vadd.f32 0.0, %v7545
    %v7547 = vpop.f32.mrb[0].mxu0
    %v7548 = vadd.f32 0.0, %v7547
    %7549 = vdwg.mxu0
    %7550 = vmatprep.subr.mxu0 %v6481
    %7551 = vmatpush1.msra.mxu0 %v6480
    %7552 = vmatprep.subr.mxu0 0.0
    %7553 = vmatpush1.msra.mxu0 0.0
    %7554 = vmatprep.subr.mxu0 0.0
    %7555 = vmatpush1.msra.mxu0 0.0
    %7556 = vmatprep.subr.mxu0 0.0
    %7557 = vmatpush1.msra.mxu0 0.0
    %7558 = vmatprep.subr.mxu0 0.0
    %7559 = vmatpush1.msra.mxu0 0.0
    %7560 = vmatprep.subr.mxu0 0.0
    %7561 = vmatpush1.msra.mxu0 0.0
    %7562 = vmatprep.subr.mxu0 0.0
    %7563 = vmatpush1.msra.mxu0 0.0
    %7564 = vmatprep.subr.mxu0 0.0
    %7565 = vmatpush1.msra.mxu0 0.0
    %7566 = vmatprep.subr.mxu0 0.0
    %7567 = vmatpush1.msra.mxu0 0.0
    %7568 = vmatprep.subr.mxu0 0.0
    %7569 = vmatpush1.msra.mxu0 0.0
    %7570 = vmatprep.subr.mxu0 0.0
    %7571 = vmatpush1.msra.mxu0 0.0
    %7572 = vmatprep.subr.mxu0 0.0
    %7573 = vmatpush1.msra.mxu0 0.0
    %7574 = vmatprep.subr.mxu0 0.0
    %7575 = vmatpush1.msra.mxu0 0.0
    %7576 = vmatprep.subr.mxu0 0.0
    %7577 = vmatpush1.msra.mxu0 0.0
    %7578 = vmatprep.subr.mxu0 0.0
    %7579 = vmatpush1.msra.mxu0 0.0
    %7580 = vmatprep.subr.mxu0 0.0
    %7581 = vmatpush1.msra.mxu0 0.0
    %7582 = vmatprep.subr.mxu0 0.0
    %7583 = vmatpush1.msra.mxu0 0.0
    %7584 = vmatprep.subr.mxu0 0.0
    %7585 = vmatpush1.msra.mxu0 0.0
    %7586 = vmatprep.subr.mxu0 0.0
    %7587 = vmatpush1.msra.mxu0 0.0
    %7588 = vmatprep.subr.mxu0 0.0
    %7589 = vmatpush1.msra.mxu0 0.0
    %7590 = vmatprep.subr.mxu0 0.0
    %7591 = vmatpush1.msra.mxu0 0.0
    %7592 = vmatprep.subr.mxu0 0.0
    %7593 = vmatpush1.msra.mxu0 0.0
    %7594 = vmatprep.subr.mxu0 0.0
    %7595 = vmatpush1.msra.mxu0 0.0
    %7596 = vmatprep.subr.mxu0 0.0
    %7597 = vmatpush1.msra.mxu0 0.0
    %7598 = vmatprep.subr.mxu0 0.0
    %7599 = vmatpush1.msra.mxu0 0.0
    %7600 = vmatprep.subr.mxu0 0.0
    %7601 = vmatpush1.msra.mxu0 0.0
    %7602 = vmatprep.subr.mxu0 0.0
    %7603 = vmatpush1.msra.mxu0 0.0
    %7604 = vmatprep.subr.mxu0 0.0
    %7605 = vmatpush1.msra.mxu0 0.0
    %7606 = vmatprep.subr.mxu0 0.0
    %7607 = vmatpush1.msra.mxu0 0.0
    %7608 = vmatprep.subr.mxu0 0.0
    %7609 = vmatpush1.msra.mxu0 0.0
    %7610 = vmatprep.subr.mxu0 0.0
    %7611 = vmatpush1.msra.mxu0 0.0
    %7612 = vmatprep.subr.mxu0 0.0
    %7613 = vmatpush1.msra.mxu0 0.0
    %7614 = vmatprep.mubr.f32.mxu0 0.0
    %7615 = vmatmul.mubr.f32.gmra.mrb[0].mxu0 %v7406
    %v7616 = vpop.f32.mrb[0].mxu0
    %v7617 = vadd.f32 0.0, %v7616
    %v7618 = vpop.f32.mrb[0].mxu0
    %v7619 = vadd.f32 0.0, %v7618
    %7620 = vdwg.mxu0
    %7621 = vmatprep.subr.mxu0 %v6483
    %7622 = vmatpush1.msra.mxu0 %v6482
    %7623 = vmatprep.subr.mxu0 0.0
    %7624 = vmatpush1.msra.mxu0 0.0
    %7625 = vmatprep.subr.mxu0 0.0
    %7626 = vmatpush1.msra.mxu0 0.0
    %7627 = vmatprep.subr.mxu0 0.0
    %7628 = vmatpush1.msra.mxu0 0.0
    %7629 = vmatprep.subr.mxu0 0.0
    %7630 = vmatpush1.msra.mxu0 0.0
    %7631 = vmatprep.subr.mxu0 0.0
    %7632 = vmatpush1.msra.mxu0 0.0
    %7633 = vmatprep.subr.mxu0 0.0
    %7634 = vmatpush1.msra.mxu0 0.0
    %7635 = vmatprep.subr.mxu0 0.0
    %7636 = vmatpush1.msra.mxu0 0.0
    %7637 = vmatprep.subr.mxu0 0.0
    %7638 = vmatpush1.msra.mxu0 0.0
    %7639 = vmatprep.subr.mxu0 0.0
    %7640 = vmatpush1.msra.mxu0 0.0
    %7641 = vmatprep.subr.mxu0 0.0
    %7642 = vmatpush1.msra.mxu0 0.0
    %7643 = vmatprep.subr.mxu0 0.0
    %7644 = vmatpush1.msra.mxu0 0.0
    %7645 = vmatprep.subr.mxu0 0.0
    %7646 = vmatpush1.msra.mxu0 0.0
    %7647 = vmatprep.subr.mxu0 0.0
    %7648 = vmatpush1.msra.mxu0 0.0
    %7649 = vmatprep.subr.mxu0 0.0
    %7650 = vmatpush1.msra.mxu0 0.0
    %7651 = vmatprep.subr.mxu0 0.0
    %7652 = vmatpush1.msra.mxu0 0.0
    %7653 = vmatprep.subr.mxu0 0.0
    %7654 = vmatpush1.msra.mxu0 0.0
    %7655 = vmatprep.subr.mxu0 0.0
    %7656 = vmatpush1.msra.mxu0 0.0
    %7657 = vmatprep.subr.mxu0 0.0
    %7658 = vmatpush1.msra.mxu0 0.0
    %7659 = vmatprep.subr.mxu0 0.0
    %7660 = vmatpush1.msra.mxu0 0.0
    %7661 = vmatprep.subr.mxu0 0.0
    %7662 = vmatpush1.msra.mxu0 0.0
    %7663 = vmatprep.subr.mxu0 0.0
    %7664 = vmatpush1.msra.mxu0 0.0
    %7665 = vmatprep.subr.mxu0 0.0
    %7666 = vmatpush1.msra.mxu0 0.0
    %7667 = vmatprep.subr.mxu0 0.0
    %7668 = vmatpush1.msra.mxu0 0.0
    %7669 = vmatprep.subr.mxu0 0.0
    %7670 = vmatpush1.msra.mxu0 0.0
    %7671 = vmatprep.subr.mxu0 0.0
    %7672 = vmatpush1.msra.mxu0 0.0
    %7673 = vmatprep.subr.mxu0 0.0
    %7674 = vmatpush1.msra.mxu0 0.0
    %7675 = vmatprep.subr.mxu0 0.0
    %7676 = vmatpush1.msra.mxu0 0.0
    %7677 = vmatprep.subr.mxu0 0.0
    %7678 = vmatpush1.msra.mxu0 0.0
    %7679 = vmatprep.subr.mxu0 0.0
    %7680 = vmatpush1.msra.mxu0 0.0
    %7681 = vmatprep.subr.mxu0 0.0
    %7682 = vmatpush1.msra.mxu0 0.0
    %7683 = vmatprep.subr.mxu0 0.0
    %7684 = vmatpush1.msra.mxu0 0.0
    %7685 = vmatprep.mubr.f32.mxu0 0.0
    %7686 = vmatmul.mubr.f32.gmra.mrb[0].mxu0 %v7406
    %v7687 = vpop.f32.mrb[0].mxu0
    %v7688 = vadd.f32 0.0, %v7687
    %v7689 = vpop.f32.mrb[0].mxu0
    %v7690 = vadd.f32 0.0, %v7689
    %7691 = vdwg.mxu0
    %v7692 = vlaneseq
    %v7693 = vshrl.u32 %v7692, 7
    %v7694 = vsub.s32 0, %v7693
    %v7695 = vrot.slane %v7475, %v7694
    %v7696 = vlaneseq
    %v7697 = vshrl.u32 %v7696, 7
    %v7698 = vsub.s32 0, %v7697
    %v7699 = vrot.slane %v7477, %v7698
    %v7700 = vlaneseq
    %v7701 = vshrl.u32 %v7700, 7
    %v7702 = vsub.s32 0, %v7701
    %v7703 = vrot.slane %v7546, %v7702
    %v7704 = vlaneseq
    %v7705 = vshrl.u32 %v7704, 7
    %v7706 = vsub.s32 0, %v7705
    %v7707 = vrot.slane %v7548, %v7706
    %v7708 = vlaneseq
    %v7709 = vshrl.u32 %v7708, 7
    %v7710 = vsub.s32 0, %v7709
    %v7711 = vrot.slane %v7617, %v7710
    %v7712 = vlaneseq
    %v7713 = vshrl.u32 %v7712, 7
    %v7714 = vsub.s32 0, %v7713
    %v7715 = vrot.slane %v7619, %v7714
    %v7716 = vlaneseq
    %v7717 = vshrl.u32 %v7716, 7
    %v7718 = vsub.s32 0, %v7717
    %v7719 = vrot.slane %v7688, %v7718
    %v7720 = vlaneseq
    %v7721 = vshrl.u32 %v7720, 7
    %v7722 = vsub.s32 0, %v7721
    %v7723 = vrot.slane %v7690, %v7722
    %v7724 = vmul.f32 %v7094, %v7695
    %v7725 = vmul.f32 %v7095, %v7699
    %v7726 = vmul.f32 %v7096, %v7703
    %v7727 = vmul.f32 %v7097, %v7707
    %v7728 = vmul.f32 %v7098, %v7711
    %v7729 = vmul.f32 %v7099, %v7715
    %v7730 = vmul.f32 %v7100, %v7719
    %v7731 = vmul.f32 %v7101, %v7723
    %v7732 = vld [vmem:[#allocation25] sm:$0x1]
    %v7734 = vsel %vm1807, %v7732, 0
    %7736 = vmatprep.subr.mxu0 %v6477
    %7737 = vmatpush1.msra.mxu0 %v6476
    %7738 = vmatprep.subr.mxu0 0.0
    %7739 = vmatpush1.msra.mxu0 0.0
    %7740 = vmatprep.subr.mxu0 0.0
    %7741 = vmatpush1.msra.mxu0 0.0
    %7742 = vmatprep.subr.mxu0 0.0
    %7743 = vmatpush1.msra.mxu0 0.0
    %7744 = vmatprep.subr.mxu0 0.0
    %7745 = vmatpush1.msra.mxu0 0.0
    %7746 = vmatprep.subr.mxu0 0.0
    %7747 = vmatpush1.msra.mxu0 0.0
    %7748 = vmatprep.subr.mxu0 0.0
    %7749 = vmatpush1.msra.mxu0 0.0
    %7750 = vmatprep.subr.mxu0 0.0
    %7751 = vmatpush1.msra.mxu0 0.0
    %7752 = vmatprep.subr.mxu0 0.0
    %7753 = vmatpush1.msra.mxu0 0.0
    %7754 = vmatprep.subr.mxu0 0.0
    %7755 = vmatpush1.msra.mxu0 0.0
    %7756 = vmatprep.subr.mxu0 0.0
    %7757 = vmatpush1.msra.mxu0 0.0
    %7758 = vmatprep.subr.mxu0 0.0
    %7759 = vmatpush1.msra.mxu0 0.0
    %7760 = vmatprep.subr.mxu0 0.0
    %7761 = vmatpush1.msra.mxu0 0.0
    %7762 = vmatprep.subr.mxu0 0.0
    %7763 = vmatpush1.msra.mxu0 0.0
    %7764 = vmatprep.subr.mxu0 0.0
    %7765 = vmatpush1.msra.mxu0 0.0
    %7766 = vmatprep.subr.mxu0 0.0
    %7767 = vmatpush1.msra.mxu0 0.0
    %7768 = vmatprep.subr.mxu0 0.0
    %7769 = vmatpush1.msra.mxu0 0.0
    %7770 = vmatprep.subr.mxu0 0.0
    %7771 = vmatpush1.msra.mxu0 0.0
    %7772 = vmatprep.subr.mxu0 0.0
    %7773 = vmatpush1.msra.mxu0 0.0
    %7774 = vmatprep.subr.mxu0 0.0
    %7775 = vmatpush1.msra.mxu0 0.0
    %7776 = vmatprep.subr.mxu0 0.0
    %7777 = vmatpush1.msra.mxu0 0.0
    %7778 = vmatprep.subr.mxu0 0.0
    %7779 = vmatpush1.msra.mxu0 0.0
    %7780 = vmatprep.subr.mxu0 0.0
    %7781 = vmatpush1.msra.mxu0 0.0
    %7782 = vmatprep.subr.mxu0 0.0
    %7783 = vmatpush1.msra.mxu0 0.0
    %7784 = vmatprep.subr.mxu0 0.0
    %7785 = vmatpush1.msra.mxu0 0.0
    %7786 = vmatprep.subr.mxu0 0.0
    %7787 = vmatpush1.msra.mxu0 0.0
    %7788 = vmatprep.subr.mxu0 0.0
    %7789 = vmatpush1.msra.mxu0 0.0
    %7790 = vmatprep.subr.mxu0 0.0
    %7791 = vmatpush1.msra.mxu0 0.0
    %7792 = vmatprep.subr.mxu0 0.0
    %7793 = vmatpush1.msra.mxu0 0.0
    %7794 = vmatprep.subr.mxu0 0.0
    %7795 = vmatpush1.msra.mxu0 0.0
    %7796 = vmatprep.subr.mxu0 0.0
    %7797 = vmatpush1.msra.mxu0 0.0
    %7798 = vmatprep.subr.mxu0 0.0
    %7799 = vmatpush1.msra.mxu0 0.0
    %7800 = vmatprep.mubr.f32.mxu0 0.0
    %7801 = vmatmul.mubr.f32.gmra.mrb[0].mxu0 %v7734
    %v7802 = vpop.f32.mrb[0].mxu0
    %v7803 = vadd.f32 0.0, %v7802
    %v7804 = vpop.f32.mrb[0].mxu0
    %v7805 = vadd.f32 0.0, %v7804
    %7806 = vdwg.mxu0
    %7807 = vmatprep.subr.mxu0 %v6479
    %7808 = vmatpush1.msra.mxu0 %v6478
    %7809 = vmatprep.subr.mxu0 0.0
    %7810 = vmatpush1.msra.mxu0 0.0
    %7811 = vmatprep.subr.mxu0 0.0
    %7812 = vmatpush1.msra.mxu0 0.0
    %7813 = vmatprep.subr.mxu0 0.0
    %7814 = vmatpush1.msra.mxu0 0.0
    %7815 = vmatprep.subr.mxu0 0.0
    %7816 = vmatpush1.msra.mxu0 0.0
    %7817 = vmatprep.subr.mxu0 0.0
    %7818 = vmatpush1.msra.mxu0 0.0
    %7819 = vmatprep.subr.mxu0 0.0
    %7820 = vmatpush1.msra.mxu0 0.0
    %7821 = vmatprep.subr.mxu0 0.0
    %7822 = vmatpush1.msra.mxu0 0.0
    %7823 = vmatprep.subr.mxu0 0.0
    %7824 = vmatpush1.msra.mxu0 0.0
    %7825 = vmatprep.subr.mxu0 0.0
    %7826 = vmatpush1.msra.mxu0 0.0
    %7827 = vmatprep.subr.mxu0 0.0
    %7828 = vmatpush1.msra.mxu0 0.0
    %7829 = vmatprep.subr.mxu0 0.0
    %7830 = vmatpush1.msra.mxu0 0.0
    %7831 = vmatprep.subr.mxu0 0.0
    %7832 = vmatpush1.msra.mxu0 0.0
    %7833 = vmatprep.subr.mxu0 0.0
    %7834 = vmatpush1.msra.mxu0 0.0
    %7835 = vmatprep.subr.mxu0 0.0
    %7836 = vmatpush1.msra.mxu0 0.0
    %7837 = vmatprep.subr.mxu0 0.0
    %7838 = vmatpush1.msra.mxu0 0.0
    %7839 = vmatprep.subr.mxu0 0.0
    %7840 = vmatpush1.msra.mxu0 0.0
    %7841 = vmatprep.subr.mxu0 0.0
    %7842 = vmatpush1.msra.mxu0 0.0
    %7843 = vmatprep.subr.mxu0 0.0
    %7844 = vmatpush1.msra.mxu0 0.0
    %7845 = vmatprep.subr.mxu0 0.0
    %7846 = vmatpush1.msra.mxu0 0.0
    %7847 = vmatprep.subr.mxu0 0.0
    %7848 = vmatpush1.msra.mxu0 0.0
    %7849 = vmatprep.subr.mxu0 0.0
    %7850 = vmatpush1.msra.mxu0 0.0
    %7851 = vmatprep.subr.mxu0 0.0
    %7852 = vmatpush1.msra.mxu0 0.0
    %7853 = vmatprep.subr.mxu0 0.0
    %7854 = vmatpush1.msra.mxu0 0.0
    %7855 = vmatprep.subr.mxu0 0.0
    %7856 = vmatpush1.msra.mxu0 0.0
    %7857 = vmatprep.subr.mxu0 0.0
    %7858 = vmatpush1.msra.mxu0 0.0
    %7859 = vmatprep.subr.mxu0 0.0
    %7860 = vmatpush1.msra.mxu0 0.0
    %7861 = vmatprep.subr.mxu0 0.0
    %7862 = vmatpush1.msra.mxu0 0.0
    %7863 = vmatprep.subr.mxu0 0.0
    %7864 = vmatpush1.msra.mxu0 0.0
    %7865 = vmatprep.subr.mxu0 0.0
    %7866 = vmatpush1.msra.mxu0 0.0
    %7867 = vmatprep.subr.mxu0 0.0
    %7868 = vmatpush1.msra.mxu0 0.0
    %7869 = vmatprep.subr.mxu0 0.0
    %7870 = vmatpush1.msra.mxu0 0.0
    %7871 = vmatprep.mubr.f32.mxu0 0.0
    %7872 = vmatmul.mubr.f32.gmra.mrb[0].mxu0 %v7734
    %v7873 = vpop.f32.mrb[0].mxu0
    %v7874 = vadd.f32 0.0, %v7873
    %v7875 = vpop.f32.mrb[0].mxu0
    %v7876 = vadd.f32 0.0, %v7875
    %7877 = vdwg.mxu0
    %7878 = vmatprep.subr.mxu0 %v6481
    %7879 = vmatpush1.msra.mxu0 %v6480
    %7880 = vmatprep.subr.mxu0 0.0
    %7881 = vmatpush1.msra.mxu0 0.0
    %7882 = vmatprep.subr.mxu0 0.0
    %7883 = vmatpush1.msra.mxu0 0.0
    %7884 = vmatprep.subr.mxu0 0.0
    %7885 = vmatpush1.msra.mxu0 0.0
    %7886 = vmatprep.subr.mxu0 0.0
    %7887 = vmatpush1.msra.mxu0 0.0
    %7888 = vmatprep.subr.mxu0 0.0
    %7889 = vmatpush1.msra.mxu0 0.0
    %7890 = vmatprep.subr.mxu0 0.0
    %7891 = vmatpush1.msra.mxu0 0.0
    %7892 = vmatprep.subr.mxu0 0.0
    %7893 = vmatpush1.msra.mxu0 0.0
    %7894 = vmatprep.subr.mxu0 0.0
    %7895 = vmatpush1.msra.mxu0 0.0
    %7896 = vmatprep.subr.mxu0 0.0
    %7897 = vmatpush1.msra.mxu0 0.0
    %7898 = vmatprep.subr.mxu0 0.0
    %7899 = vmatpush1.msra.mxu0 0.0
    %7900 = vmatprep.subr.mxu0 0.0
    %7901 = vmatpush1.msra.mxu0 0.0
    %7902 = vmatprep.subr.mxu0 0.0
    %7903 = vmatpush1.msra.mxu0 0.0
    %7904 = vmatprep.subr.mxu0 0.0
    %7905 = vmatpush1.msra.mxu0 0.0
    %7906 = vmatprep.subr.mxu0 0.0
    %7907 = vmatpush1.msra.mxu0 0.0
    %7908 = vmatprep.subr.mxu0 0.0
    %7909 = vmatpush1.msra.mxu0 0.0
    %7910 = vmatprep.subr.mxu0 0.0
    %7911 = vmatpush1.msra.mxu0 0.0
    %7912 = vmatprep.subr.mxu0 0.0
    %7913 = vmatpush1.msra.mxu0 0.0
    %7914 = vmatprep.subr.mxu0 0.0
    %7915 = vmatpush1.msra.mxu0 0.0
    %7916 = vmatprep.subr.mxu0 0.0
    %7917 = vmatpush1.msra.mxu0 0.0
    %7918 = vmatprep.subr.mxu0 0.0
    %7919 = vmatpush1.msra.mxu0 0.0
    %7920 = vmatprep.subr.mxu0 0.0
    %7921 = vmatpush1.msra.mxu0 0.0
    %7922 = vmatprep.subr.mxu0 0.0
    %7923 = vmatpush1.msra.mxu0 0.0
    %7924 = vmatprep.subr.mxu0 0.0
    %7925 = vmatpush1.msra.mxu0 0.0
    %7926 = vmatprep.subr.mxu0 0.0
    %7927 = vmatpush1.msra.mxu0 0.0
    %7928 = vmatprep.subr.mxu0 0.0
    %7929 = vmatpush1.msra.mxu0 0.0
    %7930 = vmatprep.subr.mxu0 0.0
    %7931 = vmatpush1.msra.mxu0 0.0
    %7932 = vmatprep.subr.mxu0 0.0
    %7933 = vmatpush1.msra.mxu0 0.0
    %7934 = vmatprep.subr.mxu0 0.0
    %7935 = vmatpush1.msra.mxu0 0.0
    %7936 = vmatprep.subr.mxu0 0.0
    %7937 = vmatpush1.msra.mxu0 0.0
    %7938 = vmatprep.subr.mxu0 0.0
    %7939 = vmatpush1.msra.mxu0 0.0
    %7940 = vmatprep.subr.mxu0 0.0
    %7941 = vmatpush1.msra.mxu0 0.0
    %7942 = vmatprep.mubr.f32.mxu0 0.0
    %7943 = vmatmul.mubr.f32.gmra.mrb[0].mxu0 %v7734
    %v7944 = vpop.f32.mrb[0].mxu0
    %v7945 = vadd.f32 0.0, %v7944
    %v7946 = vpop.f32.mrb[0].mxu0
    %v7947 = vadd.f32 0.0, %v7946
    %7948 = vdwg.mxu0
    %7949 = vmatprep.subr.mxu0 %v6483
    %7950 = vmatpush1.msra.mxu0 %v6482
    %7951 = vmatprep.subr.mxu0 0.0
    %7952 = vmatpush1.msra.mxu0 0.0
    %7953 = vmatprep.subr.mxu0 0.0
    %7954 = vmatpush1.msra.mxu0 0.0
    %7955 = vmatprep.subr.mxu0 0.0
    %7956 = vmatpush1.msra.mxu0 0.0
    %7957 = vmatprep.subr.mxu0 0.0
    %7958 = vmatpush1.msra.mxu0 0.0
    %7959 = vmatprep.subr.mxu0 0.0
    %7960 = vmatpush1.msra.mxu0 0.0
    %7961 = vmatprep.subr.mxu0 0.0
    %7962 = vmatpush1.msra.mxu0 0.0
    %7963 = vmatprep.subr.mxu0 0.0
    %7964 = vmatpush1.msra.mxu0 0.0
    %7965 = vmatprep.subr.mxu0 0.0
    %7966 = vmatpush1.msra.mxu0 0.0
    %7967 = vmatprep.subr.mxu0 0.0
    %7968 = vmatpush1.msra.mxu0 0.0
    %7969 = vmatprep.subr.mxu0 0.0
    %7970 = vmatpush1.msra.mxu0 0.0
    %7971 = vmatprep.subr.mxu0 0.0
    %7972 = vmatpush1.msra.mxu0 0.0
    %7973 = vmatprep.subr.mxu0 0.0
    %7974 = vmatpush1.msra.mxu0 0.0
    %7975 = vmatprep.subr.mxu0 0.0
    %7976 = vmatpush1.msra.mxu0 0.0
    %7977 = vmatprep.subr.mxu0 0.0
    %7978 = vmatpush1.msra.mxu0 0.0
    %7979 = vmatprep.subr.mxu0 0.0
    %7980 = vmatpush1.msra.mxu0 0.0
    %7981 = vmatprep.subr.mxu0 0.0
    %7982 = vmatpush1.msra.mxu0 0.0
    %7983 = vmatprep.subr.mxu0 0.0
    %7984 = vmatpush1.msra.mxu0 0.0
    %7985 = vmatprep.subr.mxu0 0.0
    %7986 = vmatpush1.msra.mxu0 0.0
    %7987 = vmatprep.subr.mxu0 0.0
    %7988 = vmatpush1.msra.mxu0 0.0
    %7989 = vmatprep.subr.mxu0 0.0
    %7990 = vmatpush1.msra.mxu0 0.0
    %7991 = vmatprep.subr.mxu0 0.0
    %7992 = vmatpush1.msra.mxu0 0.0
    %7993 = vmatprep.subr.mxu0 0.0
    %7994 = vmatpush1.msra.mxu0 0.0
    %7995 = vmatprep.subr.mxu0 0.0
    %7996 = vmatpush1.msra.mxu0 0.0
    %7997 = vmatprep.subr.mxu0 0.0
    %7998 = vmatpush1.msra.mxu0 0.0
    %7999 = vmatprep.subr.mxu0 0.0
    %8000 = vmatpush1.msra.mxu0 0.0
    %8001 = vmatprep.subr.mxu0 0.0
    %8002 = vmatpush1.msra.mxu0 0.0
    %8003 = vmatprep.subr.mxu0 0.0
    %8004 = vmatpush1.msra.mxu0 0.0
    %8005 = vmatprep.subr.mxu0 0.0
    %8006 = vmatpush1.msra.mxu0 0.0
    %8007 = vmatprep.subr.mxu0 0.0
    %8008 = vmatpush1.msra.mxu0 0.0
    %8009 = vmatprep.subr.mxu0 0.0
    %8010 = vmatpush1.msra.mxu0 0.0
    %8011 = vmatprep.subr.mxu0 0.0
    %8012 = vmatpush1.msra.mxu0 0.0
    %8013 = vmatprep.mubr.f32.mxu0 0.0
    %8014 = vmatmul.mubr.f32.gmra.mrb[0].mxu0 %v7734
    %v8015 = vpop.f32.mrb[0].mxu0
    %v8016 = vadd.f32 0.0, %v8015
    %v8017 = vpop.f32.mrb[0].mxu0
    %v8018 = vadd.f32 0.0, %v8017
    %8019 = vdwg.mxu0
    %v8020 = vlaneseq
    %v8021 = vshrl.u32 %v8020, 7
    %v8022 = vsub.s32 0, %v8021
    %v8023 = vrot.slane %v7803, %v8022
    %v8024 = vlaneseq
    %v8025 = vshrl.u32 %v8024, 7
    %v8026 = vsub.s32 0, %v8025
    %v8027 = vrot.slane %v7805, %v8026
    %v8028 = vlaneseq
    %v8029 = vshrl.u32 %v8028, 7
    %v8030 = vsub.s32 0, %v8029
    %v8031 = vrot.slane %v7874, %v8030
    %v8032 = vlaneseq
    %v8033 = vshrl.u32 %v8032, 7
    %v8034 = vsub.s32 0, %v8033
    %v8035 = vrot.slane %v7876, %v8034
    %v8036 = vlaneseq
    %v8037 = vshrl.u32 %v8036, 7
    %v8038 = vsub.s32 0, %v8037
    %v8039 = vrot.slane %v7945, %v8038
    %v8040 = vlaneseq
    %v8041 = vshrl.u32 %v8040, 7
    %v8042 = vsub.s32 0, %v8041
    %v8043 = vrot.slane %v7947, %v8042
    %v8044 = vlaneseq
    %v8045 = vshrl.u32 %v8044, 7
    %v8046 = vsub.s32 0, %v8045
    %v8047 = vrot.slane %v8016, %v8046
    %v8048 = vlaneseq
    %v8049 = vshrl.u32 %v8048, 7
    %v8050 = vsub.s32 0, %v8049
    %v8051 = vrot.slane %v8018, %v8050
    %v8052 = vadd.f32 %v7724, %v8023
    %v8053 = vadd.f32 %v7725, %v8027
    %v8054 = vadd.f32 %v7726, %v8031
    %v8055 = vadd.f32 %v7727, %v8035
    %v8056 = vadd.f32 %v7728, %v8039
    %v8057 = vadd.f32 %v7729, %v8043
    %v8058 = vadd.f32 %v7730, %v8047
    %v8059 = vadd.f32 %v7731, %v8051
    %v8060 = vmax.f32 %v8052, 0.0
    %v8061 = vmax.f32 %v8053, 0.0
    %v8062 = vmax.f32 %v8054, 0.0
    %v8063 = vmax.f32 %v8055, 0.0
    %v8064 = vmax.f32 %v8056, 0.0
    %v8065 = vmax.f32 %v8057, 0.0
    %v8066 = vmax.f32 %v8058, 0.0
    %v8067 = vmax.f32 %v8059, 0.0
    %v8068 = vpack.c.bf16 %v8060, %v8060
    %v8069 = vpack.c.bf16 %v8061, %v8061
    %v8070 = vpack.c.bf16 %v8062, %v8062
    %v8071 = vpack.c.bf16 %v8063, %v8063
    %v8072 = vpack.c.bf16 %v8064, %v8064
    %v8073 = vpack.c.bf16 %v8065, %v8065
    %v8074 = vpack.c.bf16 %v8066, %v8066
    %v8075 = vpack.c.bf16 %v8067, %v8067
    %v8076 = vld [vmem:[%s51] sm:$0xff]
    %v8077 = vld [vmem:[%s51 + $0x8] sm:$0xf]
    %v8078 = vld [vmem:[%s51 + $0xc] sm:$0xff]
    %v8079 = vld [vmem:[%s51 + $0x14] sm:$0xf]
    %v8080 = vld [vmem:[%s51 + $0x18] sm:$0xff]
    %v8081 = vld [vmem:[%s51 + $0x20] sm:$0xf]
    %v8082 = vld [vmem:[%s51 + $0x24] sm:$0xff]
    %v8083 = vld [vmem:[%s51 + $0x2c] sm:$0xf]
    %v8084 = vld [vmem:[%s51 + $0x30] sm:$0xff]
    %v8085 = vld [vmem:[%s51 + $0x38] sm:$0xf]
    %v8086 = vld [vmem:[%s51 + $0x3c] sm:$0xff]
    %v8087 = vld [vmem:[%s51 + $0x44] sm:$0xf]
    %v8088 = vld [vmem:[%s51 + $0x48] sm:$0xff]
    %v8089 = vld [vmem:[%s51 + $0x50] sm:$0xf]
    %v8090 = vld [vmem:[%s51 + $0x54] sm:$0xff]
    %v8091 = vld [vmem:[%s51 + $0x5c] sm:$0xf]
    %v8092 = vld [vmem:[%s51 + $0x60] sm:$0xff]
    %v8093 = vld [vmem:[%s51 + $0x68] sm:$0xf]
    %v8094 = vld [vmem:[%s51 + $0x6c] sm:$0xff]
    %v8095 = vld [vmem:[%s51 + $0x74] sm:$0xf]
    %v8096 = vld [vmem:[%s51 + $0x78] sm:$0xff]
    %v8097 = vld [vmem:[%s51 + $0x80] sm:$0xf]
    %v8098 = vld [vmem:[%s51 + $0x84] sm:$0xff]
    %v8099 = vld [vmem:[%s51 + $0x8c] sm:$0xf]
    %v8100 = vld [vmem:[%s51 + $0x90] sm:$0xff]
    %v8101 = vld [vmem:[%s51 + $0x98] sm:$0xf]
    %v8102 = vld [vmem:[%s51 + $0x9c] sm:$0xff]
    %v8103 = vld [vmem:[%s51 + $0xa4] sm:$0xf]
    %v8104 = vld [vmem:[%s51 + $0xa8] sm:$0xff]
    %v8105 = vld [vmem:[%s51 + $0xb0] sm:$0xf]
    %v8106 = vld [vmem:[%s51 + $0xb4] sm:$0xff]
    %v8107 = vld [vmem:[%s51 + $0xbc] sm:$0xf]
    %v8108 = vld [vmem:[%s51 + $0xc0] sm:$0xff]
    %v8109 = vld [vmem:[%s51 + $0xc8] sm:$0xf]
    %v8110 = vld [vmem:[%s51 + $0xcc] sm:$0xff]
    %v8111 = vld [vmem:[%s51 + $0xd4] sm:$0xf]
    %v8112 = vld [vmem:[%s51 + $0xd8] sm:$0xff]
    %v8113 = vld [vmem:[%s51 + $0xe0] sm:$0xf]
    %v8114 = vld [vmem:[%s51 + $0xe4] sm:$0xff]
    %v8115 = vld [vmem:[%s51 + $0xec] sm:$0xf]
    %v8116 = vld [vmem:[%s51 + $0xf0] sm:$0xff]
    %v8117 = vld [vmem:[%s51 + $0xf8] sm:$0xf]
    %v8118 = vld [vmem:[%s51 + $0xfc] sm:$0xff]
    %v8119 = vld [vmem:[%s51 + $0x104] sm:$0xf]
    %v8120 = vld [vmem:[%s51 + $0x108] sm:$0xff]
    %v8121 = vld [vmem:[%s51 + $0x110] sm:$0xf]
    %v8122 = vld [vmem:[%s51 + $0x114] sm:$0xff]
    %v8123 = vld [vmem:[%s51 + $0x11c] sm:$0xf]
    %v8124 = vld [vmem:[%s51 + $0x120] sm:$0xff]
    %v8125 = vld [vmem:[%s51 + $0x128] sm:$0xf]
    %v8126 = vld [vmem:[%s51 + $0x12c] sm:$0xff]
    %v8127 = vld [vmem:[%s51 + $0x134] sm:$0xf]
    %v8128 = vld [vmem:[%s51 + $0x138] sm:$0xff]
    %v8129 = vld [vmem:[%s51 + $0x140] sm:$0xf]
    %v8130 = vld [vmem:[%s51 + $0x144] sm:$0xff]
    %v8131 = vld [vmem:[%s51 + $0x14c] sm:$0xf]
    %v8132 = vld [vmem:[%s51 + $0x150] sm:$0xff]
    %v8133 = vld [vmem:[%s51 + $0x158] sm:$0xf]
    %v8134 = vld [vmem:[%s51 + $0x15c] sm:$0xff]
    %v8135 = vld [vmem:[%s51 + $0x164] sm:$0xf]
    %v8136 = vld [vmem:[%s51 + $0x168] sm:$0xff]
    %v8137 = vld [vmem:[%s51 + $0x170] sm:$0xf]
    %v8138 = vld [vmem:[%s51 + $0x174] sm:$0xff]
    %v8139 = vld [vmem:[%s51 + $0x17c] sm:$0xf]
    %v8140 = vld [vmem:[%s51 + $0x180] sm:$0xff]
    %v8141 = vld [vmem:[%s51 + $0x188] sm:$0xf]
    %v8142 = vld [vmem:[%s51 + $0x18c] sm:$0xff]
    %v8143 = vld [vmem:[%s51 + $0x194] sm:$0xf]
    %v8144 = vld [vmem:[%s51 + $0x198] sm:$0xff]
    %v8145 = vld [vmem:[%s51 + $0x1a0] sm:$0xf]
    %v8146 = vld [vmem:[%s51 + $0x1a4] sm:$0xff]
    %v8147 = vld [vmem:[%s51 + $0x1ac] sm:$0xf]
    %v8148 = vld [vmem:[%s51 + $0x1b0] sm:$0xff]
    %v8149 = vld [vmem:[%s51 + $0x1b8] sm:$0xf]
    %v8150 = vld [vmem:[%s51 + $0x1bc] sm:$0xff]
    %v8151 = vld [vmem:[%s51 + $0x1c4] sm:$0xf]
    %v8152 = vld [vmem:[%s51 + $0x1c8] sm:$0xff]
    %v8153 = vld [vmem:[%s51 + $0x1d0] sm:$0xf]
    %v8154 = vld [vmem:[%s51 + $0x1d4] sm:$0xff]
    %v8155 = vld [vmem:[%s51 + $0x1dc] sm:$0xf]
    %v8156 = vld [vmem:[%s51 + $0x1e0] sm:$0xff]
    %v8157 = vld [vmem:[%s51 + $0x1e8] sm:$0xf]
    %v8158 = vld [vmem:[%s51 + $0x1ec] sm:$0xff]
    %v8159 = vld [vmem:[%s51 + $0x1f4] sm:$0xf]
    %v8160 = vld [vmem:[%s51 + $0x1f8] sm:$0xff]
    %v8161 = vld [vmem:[%s51 + $0x200] sm:$0xf]
    %v8162 = vld [vmem:[%s51 + $0x204] sm:$0xff]
    %v8163 = vld [vmem:[%s51 + $0x20c] sm:$0xf]
    %v8164 = vld [vmem:[%s51 + $0x210] sm:$0xff]
    %v8165 = vld [vmem:[%s51 + $0x218] sm:$0xf]
    %v8166 = vld [vmem:[%s51 + $0x21c] sm:$0xff]
    %v8167 = vld [vmem:[%s51 + $0x224] sm:$0xf]
    %v8168 = vld [vmem:[%s51 + $0x228] sm:$0xff]
    %v8169 = vld [vmem:[%s51 + $0x230] sm:$0xf]
    %v8170 = vld [vmem:[%s51 + $0x234] sm:$0xff]
    %v8171 = vld [vmem:[%s51 + $0x23c] sm:$0xf]
    %v8172 = vld [vmem:[%s51 + $0x240] sm:$0xff]
    %v8173 = vld [vmem:[%s51 + $0x248] sm:$0xf]
    %v8174 = vld [vmem:[%s51 + $0x24c] sm:$0xff]
    %v8175 = vld [vmem:[%s51 + $0x254] sm:$0xf]
    %v8176 = vld [vmem:[%s51 + $0x258] sm:$0xff]
    %v8177 = vld [vmem:[%s51 + $0x260] sm:$0xf]
    %v8178 = vld [vmem:[%s51 + $0x264] sm:$0xff]
    %v8179 = vld [vmem:[%s51 + $0x26c] sm:$0xf]
    %v8180 = vld [vmem:[%s51 + $0x270] sm:$0xff]
    %v8181 = vld [vmem:[%s51 + $0x278] sm:$0xf]
    %v8182 = vld [vmem:[%s51 + $0x27c] sm:$0xff]
    %v8183 = vld [vmem:[%s51 + $0x284] sm:$0xf]
    %v8184 = vld [vmem:[%s51 + $0x288] sm:$0xff]
    %v8185 = vld [vmem:[%s51 + $0x290] sm:$0xf]
    %v8186 = vld [vmem:[%s51 + $0x294] sm:$0xff]
    %v8187 = vld [vmem:[%s51 + $0x29c] sm:$0xf]
    %v8188 = vld [vmem:[%s51 + $0x2a0] sm:$0xff]
    %v8189 = vld [vmem:[%s51 + $0x2a8] sm:$0xf]
    %v8190 = vld [vmem:[%s51 + $0x2ac] sm:$0xff]
    %v8191 = vld [vmem:[%s51 + $0x2b4] sm:$0xf]
    %v8192 = vld [vmem:[%s51 + $0x2b8] sm:$0xff]
    %v8193 = vld [vmem:[%s51 + $0x2c0] sm:$0xf]
    %v8194 = vld [vmem:[%s51 + $0x2c4] sm:$0xff]
    %v8195 = vld [vmem:[%s51 + $0x2cc] sm:$0xf]
    %v8196 = vld [vmem:[%s51 + $0x2d0] sm:$0xff]
    %v8197 = vld [vmem:[%s51 + $0x2d8] sm:$0xf]
    %v8198 = vld [vmem:[%s51 + $0x2dc] sm:$0xff]
    %v8199 = vld [vmem:[%s51 + $0x2e4] sm:$0xf]
    %v8200 = vld [vmem:[%s51 + $0x2e8] sm:$0xff]
    %v8201 = vld [vmem:[%s51 + $0x2f0] sm:$0xf]
    %v8202 = vld [vmem:[%s51 + $0x2f4] sm:$0xff]
    %v8203 = vld [vmem:[%s51 + $0x2fc] sm:$0xf]
    %v8204 = vld [vmem:[%s51 + $0x300] sm:$0xff]
    %v8205 = vld [vmem:[%s51 + $0x308] sm:$0xf]
    %v8206 = vld [vmem:[%s51 + $0x30c] sm:$0xff]
    %v8207 = vld [vmem:[%s51 + $0x314] sm:$0xf]
    %v8208 = vld [vmem:[%s51 + $0x318] sm:$0xff]
    %v8209 = vld [vmem:[%s51 + $0x320] sm:$0xf]
    %v8210 = vld [vmem:[%s51 + $0x324] sm:$0xff]
    %v8211 = vld [vmem:[%s51 + $0x32c] sm:$0xf]
    %v8212 = vld [vmem:[%s51 + $0x330] sm:$0xff]
    %v8213 = vld [vmem:[%s51 + $0x338] sm:$0xf]
    %v8214 = vld [vmem:[%s51 + $0x33c] sm:$0xff]
    %v8215 = vld [vmem:[%s51 + $0x344] sm:$0xf]
    %v8216 = vld [vmem:[%s51 + $0x348] sm:$0xff]
    %v8217 = vld [vmem:[%s51 + $0x350] sm:$0xf]
    %v8218 = vld [vmem:[%s51 + $0x354] sm:$0xff]
    %v8219 = vld [vmem:[%s51 + $0x35c] sm:$0xf]
    %v8220 = vld [vmem:[%s51 + $0x360] sm:$0xff]
    %v8221 = vld [vmem:[%s51 + $0x368] sm:$0xf]
    %v8222 = vld [vmem:[%s51 + $0x36c] sm:$0xff]
    %v8223 = vld [vmem:[%s51 + $0x374] sm:$0xf]
    %v8224 = vld [vmem:[%s51 + $0x378] sm:$0xff]
    %v8225 = vld [vmem:[%s51 + $0x380] sm:$0xf]
    %v8226 = vld [vmem:[%s51 + $0x384] sm:$0xff]
    %v8227 = vld [vmem:[%s51 + $0x38c] sm:$0xf]
    %v8228 = vld [vmem:[%s51 + $0x390] sm:$0xff]
    %v8229 = vld [vmem:[%s51 + $0x398] sm:$0xf]
    %v8230 = vld [vmem:[%s51 + $0x39c] sm:$0xff]
    %v8231 = vld [vmem:[%s51 + $0x3a4] sm:$0xf]
    %v8232 = vld [vmem:[%s51 + $0x3a8] sm:$0xff]
    %v8233 = vld [vmem:[%s51 + $0x3b0] sm:$0xf]
    %v8234 = vld [vmem:[%s51 + $0x3b4] sm:$0xff]
    %v8235 = vld [vmem:[%s51 + $0x3bc] sm:$0xf]
    %v8236 = vld [vmem:[%s51 + $0x3c0] sm:$0xff]
    %v8237 = vld [vmem:[%s51 + $0x3c8] sm:$0xf]
    %v8238 = vld [vmem:[%s51 + $0x3cc] sm:$0xff]
    %v8239 = vld [vmem:[%s51 + $0x3d4] sm:$0xf]
    %v8240 = vld [vmem:[%s51 + $0x3d8] sm:$0xff]
    %v8241 = vld [vmem:[%s51 + $0x3e0] sm:$0xf]
    %v8242 = vld [vmem:[%s51 + $0x3e4] sm:$0xff]
    %v8243 = vld [vmem:[%s51 + $0x3ec] sm:$0xf]
    %v8244 = vld [vmem:[%s51 + $0x3f0] sm:$0xff]
    %v8245 = vld [vmem:[%s51 + $0x3f8] sm:$0xf]
    %v8246 = vld [vmem:[%s51 + $0x3fc] sm:$0xff]
    %v8247 = vld [vmem:[%s51 + $0x404] sm:$0xf]
    %v8248 = vld [vmem:[%s51 + $0x408] sm:$0xff]
    %v8249 = vld [vmem:[%s51 + $0x410] sm:$0xf]
    %v8250 = vld [vmem:[%s51 + $0x414] sm:$0xff]
    %v8251 = vld [vmem:[%s51 + $0x41c] sm:$0xf]
    %v8252 = vld [vmem:[%s51 + $0x420] sm:$0xff]
    %v8253 = vld [vmem:[%s51 + $0x428] sm:$0xf]
    %v8254 = vld [vmem:[%s51 + $0x42c] sm:$0xff]
    %v8255 = vld [vmem:[%s51 + $0x434] sm:$0xf]
    %v8256 = vld [vmem:[%s51 + $0x438] sm:$0xff]
    %v8257 = vld [vmem:[%s51 + $0x440] sm:$0xf]
    %v8258 = vld [vmem:[%s51 + $0x444] sm:$0xff]
    %v8259 = vld [vmem:[%s51 + $0x44c] sm:$0xf]
    %v8260 = vld [vmem:[%s51 + $0x450] sm:$0xff]
    %v8261 = vld [vmem:[%s51 + $0x458] sm:$0xf]
    %v8262 = vld [vmem:[%s51 + $0x45c] sm:$0xff]
    %v8263 = vld [vmem:[%s51 + $0x464] sm:$0xf]
    %v8264 = vld [vmem:[%s51 + $0x468] sm:$0xff]
    %v8265 = vld [vmem:[%s51 + $0x470] sm:$0xf]
    %v8266 = vld [vmem:[%s51 + $0x474] sm:$0xff]
    %v8267 = vld [vmem:[%s51 + $0x47c] sm:$0xf]
    %v8268 = vld [vmem:[%s51 + $0x480] sm:$0xff]
    %v8269 = vld [vmem:[%s51 + $0x488] sm:$0xf]
    %v8270 = vld [vmem:[%s51 + $0x48c] sm:$0xff]
    %v8271 = vld [vmem:[%s51 + $0x494] sm:$0xf]
    %v8272 = vld [vmem:[%s51 + $0x498] sm:$0xff]
    %v8273 = vld [vmem:[%s51 + $0x4a0] sm:$0xf]
    %v8274 = vld [vmem:[%s51 + $0x4a4] sm:$0xff]
    %v8275 = vld [vmem:[%s51 + $0x4ac] sm:$0xf]
    %v8276 = vld [vmem:[%s51 + $0x4b0] sm:$0xff]
    %v8277 = vld [vmem:[%s51 + $0x4b8] sm:$0xf]
    %v8278 = vld [vmem:[%s51 + $0x4bc] sm:$0xff]
    %v8279 = vld [vmem:[%s51 + $0x4c4] sm:$0xf]
    %v8280 = vld [vmem:[%s51 + $0x4c8] sm:$0xff]
    %v8281 = vld [vmem:[%s51 + $0x4d0] sm:$0xf]
    %v8282 = vld [vmem:[%s51 + $0x4d4] sm:$0xff]
    %v8283 = vld [vmem:[%s51 + $0x4dc] sm:$0xf]
    %v8284 = vld [vmem:[%s51 + $0x4e0] sm:$0xff]
    %v8285 = vld [vmem:[%s51 + $0x4e8] sm:$0xf]
    %v8286 = vld [vmem:[%s51 + $0x4ec] sm:$0xff]
    %v8287 = vld [vmem:[%s51 + $0x4f4] sm:$0xf]
    %v8288 = vld [vmem:[%s51 + $0x4f8] sm:$0xff]
    %v8289 = vld [vmem:[%s51 + $0x500] sm:$0xf]
    %v8290 = vld [vmem:[%s51 + $0x504] sm:$0xff]
    %v8291 = vld [vmem:[%s51 + $0x50c] sm:$0xf]
    %v8292 = vld [vmem:[%s51 + $0x510] sm:$0xff]
    %v8293 = vld [vmem:[%s51 + $0x518] sm:$0xf]
    %v8294 = vld [vmem:[%s51 + $0x51c] sm:$0xff]
    %v8295 = vld [vmem:[%s51 + $0x524] sm:$0xf]
    %v8296 = vld [vmem:[%s51 + $0x528] sm:$0xff]
    %v8297 = vld [vmem:[%s51 + $0x530] sm:$0xf]
    %v8298 = vld [vmem:[%s51 + $0x534] sm:$0xff]
    %v8299 = vld [vmem:[%s51 + $0x53c] sm:$0xf]
    %v8300 = vld [vmem:[%s51 + $0x540] sm:$0xff]
    %v8301 = vld [vmem:[%s51 + $0x548] sm:$0xf]
    %v8302 = vld [vmem:[%s51 + $0x54c] sm:$0xff]
    %v8303 = vld [vmem:[%s51 + $0x554] sm:$0xf]
    %v8304 = vld [vmem:[%s51 + $0x558] sm:$0xff]
    %v8305 = vld [vmem:[%s51 + $0x560] sm:$0xf]
    %v8306 = vld [vmem:[%s51 + $0x564] sm:$0xff]
    %v8307 = vld [vmem:[%s51 + $0x56c] sm:$0xf]
    %v8308 = vld [vmem:[%s51 + $0x570] sm:$0xff]
    %v8309 = vld [vmem:[%s51 + $0x578] sm:$0xf]
    %v8310 = vld [vmem:[%s51 + $0x57c] sm:$0xff]
    %v8311 = vld [vmem:[%s51 + $0x584] sm:$0xf]
    %v8312 = vld [vmem:[%s51 + $0x588] sm:$0xff]
    %v8313 = vld [vmem:[%s51 + $0x590] sm:$0xf]
    %v8314 = vld [vmem:[%s51 + $0x594] sm:$0xff]
    %v8315 = vld [vmem:[%s51 + $0x59c] sm:$0xf]
    %v8316 = vld [vmem:[%s51 + $0x5a0] sm:$0xff]
    %v8317 = vld [vmem:[%s51 + $0x5a8] sm:$0xf]
    %v8560 = vunpack.c.l.b16 %v8076
    %v8561 = vunpack.c.h.b16 %v8076
    %v8562 = vunpack.c.l.b16 %v8077
    %v8563 = vunpack.c.l.b16 %v8078
    %v8564 = vunpack.c.h.b16 %v8078
    %v8565 = vunpack.c.l.b16 %v8079
    %v8566 = vunpack.c.l.b16 %v8080
    %v8567 = vunpack.c.h.b16 %v8080
    %v8568 = vunpack.c.l.b16 %v8081
    %v8569 = vunpack.c.l.b16 %v8082
    %v8570 = vunpack.c.h.b16 %v8082
    %v8571 = vunpack.c.l.b16 %v8083
    %v8572 = vunpack.c.l.b16 %v8084
    %v8573 = vunpack.c.h.b16 %v8084
    %v8574 = vunpack.c.l.b16 %v8085
    %v8575 = vunpack.c.l.b16 %v8086
    %v8576 = vunpack.c.h.b16 %v8086
    %v8577 = vunpack.c.l.b16 %v8087
    %v8578 = vunpack.c.l.b16 %v8088
    %v8579 = vunpack.c.h.b16 %v8088
    %v8580 = vunpack.c.l.b16 %v8089
    %v8581 = vunpack.c.l.b16 %v8090
    %v8582 = vunpack.c.h.b16 %v8090
    %v8583 = vunpack.c.l.b16 %v8091
    %v8584 = vunpack.c.l.b16 %v8092
    %v8585 = vunpack.c.h.b16 %v8092
    %v8586 = vunpack.c.l.b16 %v8093
    %v8587 = vunpack.c.l.b16 %v8094
    %v8588 = vunpack.c.h.b16 %v8094
    %v8589 = vunpack.c.l.b16 %v8095
    %v8590 = vunpack.c.l.b16 %v8096
    %v8591 = vunpack.c.h.b16 %v8096
    %v8592 = vunpack.c.l.b16 %v8097
    %v8593 = vunpack.c.l.b16 %v8098
    %v8594 = vunpack.c.h.b16 %v8098
    %v8595 = vunpack.c.l.b16 %v8099
    %v8596 = vunpack.c.l.b16 %v8100
    %v8597 = vunpack.c.h.b16 %v8100
    %v8598 = vunpack.c.l.b16 %v8101
    %v8599 = vunpack.c.l.b16 %v8102
    %v8600 = vunpack.c.h.b16 %v8102
    %v8601 = vunpack.c.l.b16 %v8103
    %v8602 = vunpack.c.l.b16 %v8104
    %v8603 = vunpack.c.h.b16 %v8104
    %v8604 = vunpack.c.l.b16 %v8105
    %v8605 = vunpack.c.l.b16 %v8106
    %v8606 = vunpack.c.h.b16 %v8106
    %v8607 = vunpack.c.l.b16 %v8107
    %v8608 = vunpack.c.l.b16 %v8108
    %v8609 = vunpack.c.h.b16 %v8108
    %v8610 = vunpack.c.l.b16 %v8109
    %v8611 = vunpack.c.l.b16 %v8110
    %v8612 = vunpack.c.h.b16 %v8110
    %v8613 = vunpack.c.l.b16 %v8111
    %v8614 = vunpack.c.l.b16 %v8112
    %v8615 = vunpack.c.h.b16 %v8112
    %v8616 = vunpack.c.l.b16 %v8113
    %v8617 = vunpack.c.l.b16 %v8114
    %v8618 = vunpack.c.h.b16 %v8114
    %v8619 = vunpack.c.l.b16 %v8115
    %v8620 = vunpack.c.l.b16 %v8116
    %v8621 = vunpack.c.h.b16 %v8116
    %v8622 = vunpack.c.l.b16 %v8117
    %v8623 = vunpack.c.l.b16 %v8118
    %v8624 = vunpack.c.h.b16 %v8118
    %v8625 = vunpack.c.l.b16 %v8119
    %v8626 = vunpack.c.l.b16 %v8120
    %v8627 = vunpack.c.h.b16 %v8120
    %v8628 = vunpack.c.l.b16 %v8121
    %v8629 = vunpack.c.l.b16 %v8122
    %v8630 = vunpack.c.h.b16 %v8122
    %v8631 = vunpack.c.l.b16 %v8123
    %v8632 = vunpack.c.l.b16 %v8124
    %v8633 = vunpack.c.h.b16 %v8124
    %v8634 = vunpack.c.l.b16 %v8125
    %v8635 = vunpack.c.l.b16 %v8126
    %v8636 = vunpack.c.h.b16 %v8126
    %v8637 = vunpack.c.l.b16 %v8127
    %v8638 = vunpack.c.l.b16 %v8128
    %v8639 = vunpack.c.h.b16 %v8128
    %v8640 = vunpack.c.l.b16 %v8129
    %v8641 = vunpack.c.l.b16 %v8130
    %v8642 = vunpack.c.h.b16 %v8130
    %v8643 = vunpack.c.l.b16 %v8131
    %v8644 = vunpack.c.l.b16 %v8132
    %v8645 = vunpack.c.h.b16 %v8132
    %v8646 = vunpack.c.l.b16 %v8133
    %v8647 = vunpack.c.l.b16 %v8134
    %v8648 = vunpack.c.h.b16 %v8134
    %v8649 = vunpack.c.l.b16 %v8135
    %v8650 = vunpack.c.l.b16 %v8136
    %v8651 = vunpack.c.h.b16 %v8136
    %v8652 = vunpack.c.l.b16 %v8137
    %v8653 = vunpack.c.l.b16 %v8138
    %v8654 = vunpack.c.h.b16 %v8138
    %v8655 = vunpack.c.l.b16 %v8139
    %v8656 = vunpack.c.l.b16 %v8140
    %v8657 = vunpack.c.h.b16 %v8140
    %v8658 = vunpack.c.l.b16 %v8141
    %v8659 = vunpack.c.l.b16 %v8142
    %v8660 = vunpack.c.h.b16 %v8142
    %v8661 = vunpack.c.l.b16 %v8143
    %v8662 = vunpack.c.l.b16 %v8144
    %v8663 = vunpack.c.h.b16 %v8144
    %v8664 = vunpack.c.l.b16 %v8145
    %v8665 = vunpack.c.l.b16 %v8146
    %v8666 = vunpack.c.h.b16 %v8146
    %v8667 = vunpack.c.l.b16 %v8147
    %v8668 = vunpack.c.l.b16 %v8148
    %v8669 = vunpack.c.h.b16 %v8148
    %v8670 = vunpack.c.l.b16 %v8149
    %v8671 = vunpack.c.l.b16 %v8150
    %v8672 = vunpack.c.h.b16 %v8150
    %v8673 = vunpack.c.l.b16 %v8151
    %v8674 = vunpack.c.l.b16 %v8152
    %v8675 = vunpack.c.h.b16 %v8152
    %v8676 = vunpack.c.l.b16 %v8153
    %v8677 = vunpack.c.l.b16 %v8154
    %v8678 = vunpack.c.h.b16 %v8154
    %v8679 = vunpack.c.l.b16 %v8155
    %v8680 = vunpack.c.l.b16 %v8156
    %v8681 = vunpack.c.h.b16 %v8156
    %v8682 = vunpack.c.l.b16 %v8157
    %v8683 = vunpack.c.l.b16 %v8158
    %v8684 = vunpack.c.h.b16 %v8158
    %v8685 = vunpack.c.l.b16 %v8159
    %v8686 = vunpack.c.l.b16 %v8160
    %v8687 = vunpack.c.h.b16 %v8160
    %v8688 = vunpack.c.l.b16 %v8161
    %v8689 = vunpack.c.l.b16 %v8162
    %v8690 = vunpack.c.h.b16 %v8162
    %v8691 = vunpack.c.l.b16 %v8163
    %v8692 = vunpack.c.l.b16 %v8164
    %v8693 = vunpack.c.h.b16 %v8164
    %v8694 = vunpack.c.l.b16 %v8165
    %v8695 = vunpack.c.l.b16 %v8166
    %v8696 = vunpack.c.h.b16 %v8166
    %v8697 = vunpack.c.l.b16 %v8167
    %v8698 = vunpack.c.l.b16 %v8168
    %v8699 = vunpack.c.h.b16 %v8168
    %v8700 = vunpack.c.l.b16 %v8169
    %v8701 = vunpack.c.l.b16 %v8170
    %v8702 = vunpack.c.h.b16 %v8170
    %v8703 = vunpack.c.l.b16 %v8171
    %v8704 = vunpack.c.l.b16 %v8172
    %v8705 = vunpack.c.h.b16 %v8172
    %v8706 = vunpack.c.l.b16 %v8173
    %v8707 = vunpack.c.l.b16 %v8174
    %v8708 = vunpack.c.h.b16 %v8174
    %v8709 = vunpack.c.l.b16 %v8175
    %v8710 = vunpack.c.l.b16 %v8176
    %v8711 = vunpack.c.h.b16 %v8176
    %v8712 = vunpack.c.l.b16 %v8177
    %v8713 = vunpack.c.l.b16 %v8178
    %v8714 = vunpack.c.h.b16 %v8178
    %v8715 = vunpack.c.l.b16 %v8179
    %v8716 = vunpack.c.l.b16 %v8180
    %v8717 = vunpack.c.h.b16 %v8180
    %v8718 = vunpack.c.l.b16 %v8181
    %v8719 = vunpack.c.l.b16 %v8182
    %v8720 = vunpack.c.h.b16 %v8182
    %v8721 = vunpack.c.l.b16 %v8183
    %v8722 = vunpack.c.l.b16 %v8184
    %v8723 = vunpack.c.h.b16 %v8184
    %v8724 = vunpack.c.l.b16 %v8185
    %v8725 = vunpack.c.l.b16 %v8186
    %v8726 = vunpack.c.h.b16 %v8186
    %v8727 = vunpack.c.l.b16 %v8187
    %v8728 = vunpack.c.l.b16 %v8188
    %v8729 = vunpack.c.h.b16 %v8188
    %v8730 = vunpack.c.l.b16 %v8189
    %v8731 = vunpack.c.l.b16 %v8190
    %v8732 = vunpack.c.h.b16 %v8190
    %v8733 = vunpack.c.l.b16 %v8191
    %v8734 = vunpack.c.l.b16 %v8192
    %v8735 = vunpack.c.h.b16 %v8192
    %v8736 = vunpack.c.l.b16 %v8193
    %v8737 = vunpack.c.l.b16 %v8194
    %v8738 = vunpack.c.h.b16 %v8194
    %v8739 = vunpack.c.l.b16 %v8195
    %v8740 = vunpack.c.l.b16 %v8196
    %v8741 = vunpack.c.h.b16 %v8196
    %v8742 = vunpack.c.l.b16 %v8197
    %v8743 = vunpack.c.l.b16 %v8198
    %v8744 = vunpack.c.h.b16 %v8198
    %v8745 = vunpack.c.l.b16 %v8199
    %v8746 = vunpack.c.l.b16 %v8200
    %v8747 = vunpack.c.h.b16 %v8200
    %v8748 = vunpack.c.l.b16 %v8201
    %v8749 = vunpack.c.l.b16 %v8202
    %v8750 = vunpack.c.h.b16 %v8202
    %v8751 = vunpack.c.l.b16 %v8203
    %v8752 = vunpack.c.l.b16 %v8204
    %v8753 = vunpack.c.h.b16 %v8204
    %v8754 = vunpack.c.l.b16 %v8205
    %v8755 = vunpack.c.l.b16 %v8206
    %v8756 = vunpack.c.h.b16 %v8206
    %v8757 = vunpack.c.l.b16 %v8207
    %v8758 = vunpack.c.l.b16 %v8208
    %v8759 = vunpack.c.h.b16 %v8208
    %v8760 = vunpack.c.l.b16 %v8209
    %v8761 = vunpack.c.l.b16 %v8210
    %v8762 = vunpack.c.h.b16 %v8210
    %v8763 = vunpack.c.l.b16 %v8211
    %v8764 = vunpack.c.l.b16 %v8212
    %v8765 = vunpack.c.h.b16 %v8212
    %v8766 = vunpack.c.l.b16 %v8213
    %v8767 = vunpack.c.l.b16 %v8214
    %v8768 = vunpack.c.h.b16 %v8214
    %v8769 = vunpack.c.l.b16 %v8215
    %v8770 = vunpack.c.l.b16 %v8216
    %v8771 = vunpack.c.h.b16 %v8216
    %v8772 = vunpack.c.l.b16 %v8217
    %v8773 = vunpack.c.l.b16 %v8218
    %v8774 = vunpack.c.h.b16 %v8218
    %v8775 = vunpack.c.l.b16 %v8219
    %v8776 = vunpack.c.l.b16 %v8220
    %v8777 = vunpack.c.h.b16 %v8220
    %v8778 = vunpack.c.l.b16 %v8221
    %v8779 = vunpack.c.l.b16 %v8222
    %v8780 = vunpack.c.h.b16 %v8222
    %v8781 = vunpack.c.l.b16 %v8223
    %v8782 = vunpack.c.l.b16 %v8224
    %v8783 = vunpack.c.h.b16 %v8224
    %v8784 = vunpack.c.l.b16 %v8225
    %v8785 = vunpack.c.l.b16 %v8226
    %v8786 = vunpack.c.h.b16 %v8226
    %v8787 = vunpack.c.l.b16 %v8227
    %v8788 = vunpack.c.l.b16 %v8228
    %v8789 = vunpack.c.h.b16 %v8228
    %v8790 = vunpack.c.l.b16 %v8229
    %v8791 = vunpack.c.l.b16 %v8230
    %v8792 = vunpack.c.h.b16 %v8230
    %v8793 = vunpack.c.l.b16 %v8231
    %v8794 = vunpack.c.l.b16 %v8232
    %v8795 = vunpack.c.h.b16 %v8232
    %v8796 = vunpack.c.l.b16 %v8233
    %v8797 = vunpack.c.l.b16 %v8234
    %v8798 = vunpack.c.h.b16 %v8234
    %v8799 = vunpack.c.l.b16 %v8235
    %v8800 = vunpack.c.l.b16 %v8236
    %v8801 = vunpack.c.h.b16 %v8236
    %v8802 = vunpack.c.l.b16 %v8237
    %v8803 = vunpack.c.l.b16 %v8238
    %v8804 = vunpack.c.h.b16 %v8238
    %v8805 = vunpack.c.l.b16 %v8239
    %v8806 = vunpack.c.l.b16 %v8240
    %v8807 = vunpack.c.h.b16 %v8240
    %v8808 = vunpack.c.l.b16 %v8241
    %v8809 = vunpack.c.l.b16 %v8242
    %v8810 = vunpack.c.h.b16 %v8242
    %v8811 = vunpack.c.l.b16 %v8243
    %v8812 = vunpack.c.l.b16 %v8244
    %v8813 = vunpack.c.h.b16 %v8244
    %v8814 = vunpack.c.l.b16 %v8245
    %v8815 = vunpack.c.l.b16 %v8246
    %v8816 = vunpack.c.h.b16 %v8246
    %v8817 = vunpack.c.l.b16 %v8247
    %v8818 = vunpack.c.l.b16 %v8248
    %v8819 = vunpack.c.h.b16 %v8248
    %v8820 = vunpack.c.l.b16 %v8249
    %v8821 = vunpack.c.l.b16 %v8250
    %v8822 = vunpack.c.h.b16 %v8250
    %v8823 = vunpack.c.l.b16 %v8251
    %v8824 = vunpack.c.l.b16 %v8252
    %v8825 = vunpack.c.h.b16 %v8252
    %v8826 = vunpack.c.l.b16 %v8253
    %v8827 = vunpack.c.l.b16 %v8254
    %v8828 = vunpack.c.h.b16 %v8254
    %v8829 = vunpack.c.l.b16 %v8255
    %v8830 = vunpack.c.l.b16 %v8256
    %v8831 = vunpack.c.h.b16 %v8256
    %v8832 = vunpack.c.l.b16 %v8257
    %v8833 = vunpack.c.l.b16 %v8258
    %v8834 = vunpack.c.h.b16 %v8258
    %v8835 = vunpack.c.l.b16 %v8259
    %v8836 = vunpack.c.l.b16 %v8260
    %v8837 = vunpack.c.h.b16 %v8260
    %v8838 = vunpack.c.l.b16 %v8261
    %v8839 = vunpack.c.l.b16 %v8262
    %v8840 = vunpack.c.h.b16 %v8262
    %v8841 = vunpack.c.l.b16 %v8263
    %v8842 = vunpack.c.l.b16 %v8264
    %v8843 = vunpack.c.h.b16 %v8264
    %v8844 = vunpack.c.l.b16 %v8265
    %v8845 = vunpack.c.l.b16 %v8266
    %v8846 = vunpack.c.h.b16 %v8266
    %v8847 = vunpack.c.l.b16 %v8267
    %v8848 = vunpack.c.l.b16 %v8268
    %v8849 = vunpack.c.h.b16 %v8268
    %v8850 = vunpack.c.l.b16 %v8269
    %v8851 = vunpack.c.l.b16 %v8270
    %v8852 = vunpack.c.h.b16 %v8270
    %v8853 = vunpack.c.l.b16 %v8271
    %v8854 = vunpack.c.l.b16 %v8272
    %v8855 = vunpack.c.h.b16 %v8272
    %v8856 = vunpack.c.l.b16 %v8273
    %v8857 = vunpack.c.l.b16 %v8274
    %v8858 = vunpack.c.h.b16 %v8274
    %v8859 = vunpack.c.l.b16 %v8275
    %v8860 = vunpack.c.l.b16 %v8276
    %v8861 = vunpack.c.h.b16 %v8276
    %v8862 = vunpack.c.l.b16 %v8277
    %v8863 = vunpack.c.l.b16 %v8278
    %v8864 = vunpack.c.h.b16 %v8278
    %v8865 = vunpack.c.l.b16 %v8279
    %v8866 = vunpack.c.l.b16 %v8280
    %v8867 = vunpack.c.h.b16 %v8280
    %v8868 = vunpack.c.l.b16 %v8281
    %v8869 = vunpack.c.l.b16 %v8282
    %v8870 = vunpack.c.h.b16 %v8282
    %v8871 = vunpack.c.l.b16 %v8283
    %v8872 = vunpack.c.l.b16 %v8284
    %v8873 = vunpack.c.h.b16 %v8284
    %v8874 = vunpack.c.l.b16 %v8285
    %v8875 = vunpack.c.l.b16 %v8286
    %v8876 = vunpack.c.h.b16 %v8286
    %v8877 = vunpack.c.l.b16 %v8287
    %v8878 = vunpack.c.l.b16 %v8288
    %v8879 = vunpack.c.h.b16 %v8288
    %v8880 = vunpack.c.l.b16 %v8289
    %v8881 = vunpack.c.l.b16 %v8290
    %v8882 = vunpack.c.h.b16 %v8290
    %v8883 = vunpack.c.l.b16 %v8291
    %v8884 = vunpack.c.l.b16 %v8292
    %v8885 = vunpack.c.h.b16 %v8292
    %v8886 = vunpack.c.l.b16 %v8293
    %v8887 = vunpack.c.l.b16 %v8294
    %v8888 = vunpack.c.h.b16 %v8294
    %v8889 = vunpack.c.l.b16 %v8295
    %v8890 = vunpack.c.l.b16 %v8296
    %v8891 = vunpack.c.h.b16 %v8296
    %v8892 = vunpack.c.l.b16 %v8297
    %v8893 = vunpack.c.l.b16 %v8298
    %v8894 = vunpack.c.h.b16 %v8298
    %v8895 = vunpack.c.l.b16 %v8299
    %v8896 = vunpack.c.l.b16 %v8300
    %v8897 = vunpack.c.h.b16 %v8300
    %v8898 = vunpack.c.l.b16 %v8301
    %v8899 = vunpack.c.l.b16 %v8302
    %v8900 = vunpack.c.h.b16 %v8302
    %v8901 = vunpack.c.l.b16 %v8303
    %v8902 = vunpack.c.l.b16 %v8304
    %v8903 = vunpack.c.h.b16 %v8304
    %v8904 = vunpack.c.l.b16 %v8305
    %v8905 = vunpack.c.l.b16 %v8306
    %v8906 = vunpack.c.h.b16 %v8306
    %v8907 = vunpack.c.l.b16 %v8307
    %v8908 = vunpack.c.l.b16 %v8308
    %v8909 = vunpack.c.h.b16 %v8308
    %v8910 = vunpack.c.l.b16 %v8309
    %v8911 = vunpack.c.l.b16 %v8310
    %v8912 = vunpack.c.h.b16 %v8310
    %v8913 = vunpack.c.l.b16 %v8311
    %v8914 = vunpack.c.l.b16 %v8312
    %v8915 = vunpack.c.h.b16 %v8312
    %v8916 = vunpack.c.l.b16 %v8313
    %v8917 = vunpack.c.l.b16 %v8314
    %v8918 = vunpack.c.h.b16 %v8314
    %v8919 = vunpack.c.l.b16 %v8315
    %v8920 = vunpack.c.l.b16 %v8316
    %v8921 = vunpack.c.h.b16 %v8316
    %v8922 = vunpack.c.l.b16 %v8317
    %v8923 = vpack.c.b16 %v8563, %v8560
    %v8924 = vpack.c.b16 %v8564, %v8561
    %v8925 = vpack.c.b16 %v8565, %v8562
    %v8926 = vpack.c.b16 %v8569, %v8566
    %v8927 = vpack.c.b16 %v8570, %v8567
    %v8928 = vpack.c.b16 %v8571, %v8568
    %v8929 = vpack.c.b16 %v8575, %v8572
    %v8930 = vpack.c.b16 %v8576, %v8573
    %v8931 = vpack.c.b16 %v8577, %v8574
    %v8932 = vpack.c.b16 %v8581, %v8578
    %v8933 = vpack.c.b16 %v8582, %v8579
    %v8934 = vpack.c.b16 %v8583, %v8580
    %v8935 = vpack.c.b16 %v8587, %v8584
    %v8936 = vpack.c.b16 %v8588, %v8585
    %v8937 = vpack.c.b16 %v8589, %v8586
    %v8938 = vpack.c.b16 %v8593, %v8590
    %v8939 = vpack.c.b16 %v8594, %v8591
    %v8940 = vpack.c.b16 %v8595, %v8592
    %v8941 = vpack.c.b16 %v8599, %v8596
    %v8942 = vpack.c.b16 %v8600, %v8597
    %v8943 = vpack.c.b16 %v8601, %v8598
    %v8944 = vpack.c.b16 %v8605, %v8602
    %v8945 = vpack.c.b16 %v8606, %v8603
    %v8946 = vpack.c.b16 %v8607, %v8604
    %v8947 = vpack.c.b16 %v8611, %v8608
    %v8948 = vpack.c.b16 %v8612, %v8609
    %v8949 = vpack.c.b16 %v8613, %v8610
    %v8950 = vpack.c.b16 %v8617, %v8614
    %v8951 = vpack.c.b16 %v8618, %v8615
    %v8952 = vpack.c.b16 %v8619, %v8616
    %v8953 = vpack.c.b16 %v8623, %v8620
    %v8954 = vpack.c.b16 %v8624, %v8621
    %v8955 = vpack.c.b16 %v8625, %v8622
    %v8956 = vpack.c.b16 %v8629, %v8626
    %v8957 = vpack.c.b16 %v8630, %v8627
    %v8958 = vpack.c.b16 %v8631, %v8628
    %v8959 = vpack.c.b16 %v8635, %v8632
    %v8960 = vpack.c.b16 %v8636, %v8633
    %v8961 = vpack.c.b16 %v8637, %v8634
    %v8962 = vpack.c.b16 %v8641, %v8638
    %v8963 = vpack.c.b16 %v8642, %v8639
    %v8964 = vpack.c.b16 %v8643, %v8640
    %v8965 = vpack.c.b16 %v8647, %v8644
    %v8966 = vpack.c.b16 %v8648, %v8645
    %v8967 = vpack.c.b16 %v8649, %v8646
    %v8968 = vpack.c.b16 %v8653, %v8650
    %v8969 = vpack.c.b16 %v8654, %v8651
    %v8970 = vpack.c.b16 %v8655, %v8652
    %v8971 = vpack.c.b16 %v8659, %v8656
    %v8972 = vpack.c.b16 %v8660, %v8657
    %v8973 = vpack.c.b16 %v8661, %v8658
    %v8974 = vpack.c.b16 %v8665, %v8662
    %v8975 = vpack.c.b16 %v8666, %v8663
    %v8976 = vpack.c.b16 %v8667, %v8664
    %v8977 = vpack.c.b16 %v8671, %v8668
    %v8978 = vpack.c.b16 %v8672, %v8669
    %v8979 = vpack.c.b16 %v8673, %v8670
    %v8980 = vpack.c.b16 %v8677, %v8674
    %v8981 = vpack.c.b16 %v8678, %v8675
    %v8982 = vpack.c.b16 %v8679, %v8676
    %v8983 = vpack.c.b16 %v8683, %v8680
    %v8984 = vpack.c.b16 %v8684, %v8681
    %v8985 = vpack.c.b16 %v8685, %v8682
    %v8986 = vpack.c.b16 %v8689, %v8686
    %v8987 = vpack.c.b16 %v8690, %v8687
    %v8988 = vpack.c.b16 %v8691, %v8688
    %v8989 = vpack.c.b16 %v8695, %v8692
    %v8990 = vpack.c.b16 %v8696, %v8693
    %v8991 = vpack.c.b16 %v8697, %v8694
    %v8992 = vpack.c.b16 %v8701, %v8698
    %v8993 = vpack.c.b16 %v8702, %v8699
    %v8994 = vpack.c.b16 %v8703, %v8700
    %v8995 = vpack.c.b16 %v8707, %v8704
    %v8996 = vpack.c.b16 %v8708, %v8705
    %v8997 = vpack.c.b16 %v8709, %v8706
    %v8998 = vpack.c.b16 %v8713, %v8710
    %v8999 = vpack.c.b16 %v8714, %v8711
    %v9000 = vpack.c.b16 %v8715, %v8712
    %v9001 = vpack.c.b16 %v8719, %v8716
    %v9002 = vpack.c.b16 %v8720, %v8717
    %v9003 = vpack.c.b16 %v8721, %v8718
    %v9004 = vpack.c.b16 %v8725, %v8722
    %v9005 = vpack.c.b16 %v8726, %v8723
    %v9006 = vpack.c.b16 %v8727, %v8724
    %v9007 = vpack.c.b16 %v8731, %v8728
    %v9008 = vpack.c.b16 %v8732, %v8729
    %v9009 = vpack.c.b16 %v8733, %v8730
    %v9010 = vpack.c.b16 %v8737, %v8734
    %v9011 = vpack.c.b16 %v8738, %v8735
    %v9012 = vpack.c.b16 %v8739, %v8736
    %v9013 = vpack.c.b16 %v8743, %v8740
    %v9014 = vpack.c.b16 %v8744, %v8741
    %v9015 = vpack.c.b16 %v8745, %v8742
    %v9016 = vpack.c.b16 %v8749, %v8746
    %v9017 = vpack.c.b16 %v8750, %v8747
    %v9018 = vpack.c.b16 %v8751, %v8748
    %v9019 = vpack.c.b16 %v8755, %v8752
    %v9020 = vpack.c.b16 %v8756, %v8753
    %v9021 = vpack.c.b16 %v8757, %v8754
    %v9022 = vpack.c.b16 %v8761, %v8758
    %v9023 = vpack.c.b16 %v8762, %v8759
    %v9024 = vpack.c.b16 %v8763, %v8760
    %v9025 = vpack.c.b16 %v8767, %v8764
    %v9026 = vpack.c.b16 %v8768, %v8765
    %v9027 = vpack.c.b16 %v8769, %v8766
    %v9028 = vpack.c.b16 %v8773, %v8770
    %v9029 = vpack.c.b16 %v8774, %v8771
    %v9030 = vpack.c.b16 %v8775, %v8772
    %v9031 = vpack.c.b16 %v8779, %v8776
    %v9032 = vpack.c.b16 %v8780, %v8777
    %v9033 = vpack.c.b16 %v8781, %v8778
    %v9034 = vpack.c.b16 %v8785, %v8782
    %v9035 = vpack.c.b16 %v8786, %v8783
    %v9036 = vpack.c.b16 %v8787, %v8784
    %v9037 = vpack.c.b16 %v8791, %v8788
    %v9038 = vpack.c.b16 %v8792, %v8789
    %v9039 = vpack.c.b16 %v8793, %v8790
    %v9040 = vpack.c.b16 %v8797, %v8794
    %v9041 = vpack.c.b16 %v8798, %v8795
    %v9042 = vpack.c.b16 %v8799, %v8796
    %v9043 = vpack.c.b16 %v8803, %v8800
    %v9044 = vpack.c.b16 %v8804, %v8801
    %v9045 = vpack.c.b16 %v8805, %v8802
    %v9046 = vpack.c.b16 %v8809, %v8806
    %v9047 = vpack.c.b16 %v8810, %v8807
    %v9048 = vpack.c.b16 %v8811, %v8808
    %v9049 = vpack.c.b16 %v8815, %v8812
    %v9050 = vpack.c.b16 %v8816, %v8813
    %v9051 = vpack.c.b16 %v8817, %v8814
    %v9052 = vpack.c.b16 %v8821, %v8818
    %v9053 = vpack.c.b16 %v8822, %v8819
    %v9054 = vpack.c.b16 %v8823, %v8820
    %v9055 = vpack.c.b16 %v8827, %v8824
    %v9056 = vpack.c.b16 %v8828, %v8825
    %v9057 = vpack.c.b16 %v8829, %v8826
    %v9058 = vpack.c.b16 %v8833, %v8830
    %v9059 = vpack.c.b16 %v8834, %v8831
    %v9060 = vpack.c.b16 %v8835, %v8832
    %v9061 = vpack.c.b16 %v8839, %v8836
    %v9062 = vpack.c.b16 %v8840, %v8837
    %v9063 = vpack.c.b16 %v8841, %v8838
    %v9064 = vpack.c.b16 %v8845, %v8842
    %v9065 = vpack.c.b16 %v8846, %v8843
    %v9066 = vpack.c.b16 %v8847, %v8844
    %v9067 = vpack.c.b16 %v8851, %v8848
    %v9068 = vpack.c.b16 %v8852, %v8849
    %v9069 = vpack.c.b16 %v8853, %v8850
    %v9070 = vpack.c.b16 %v8857, %v8854
    %v9071 = vpack.c.b16 %v8858, %v8855
    %v9072 = vpack.c.b16 %v8859, %v8856
    %v9073 = vpack.c.b16 %v8863, %v8860
    %v9074 = vpack.c.b16 %v8864, %v8861
    %v9075 = vpack.c.b16 %v8865, %v8862
    %v9076 = vpack.c.b16 %v8869, %v8866
    %v9077 = vpack.c.b16 %v8870, %v8867
    %v9078 = vpack.c.b16 %v8871, %v8868
    %v9079 = vpack.c.b16 %v8875, %v8872
    %v9080 = vpack.c.b16 %v8876, %v8873
    %v9081 = vpack.c.b16 %v8877, %v8874
    %v9082 = vpack.c.b16 %v8881, %v8878
    %v9083 = vpack.c.b16 %v8882, %v8879
    %v9084 = vpack.c.b16 %v8883, %v8880
    %v9085 = vpack.c.b16 %v8887, %v8884
    %v9086 = vpack.c.b16 %v8888, %v8885
    %v9087 = vpack.c.b16 %v8889, %v8886
    %v9088 = vpack.c.b16 %v8893, %v8890
    %v9089 = vpack.c.b16 %v8894, %v8891
    %v9090 = vpack.c.b16 %v8895, %v8892
    %v9091 = vpack.c.b16 %v8899, %v8896
    %v9092 = vpack.c.b16 %v8900, %v8897
    %v9093 = vpack.c.b16 %v8901, %v8898
    %v9094 = vpack.c.b16 %v8905, %v8902
    %v9095 = vpack.c.b16 %v8906, %v8903
    %v9096 = vpack.c.b16 %v8907, %v8904
    %v9097 = vpack.c.b16 %v8911, %v8908
    %v9098 = vpack.c.b16 %v8912, %v8909
    %v9099 = vpack.c.b16 %v8913, %v8910
    %v9100 = vpack.c.b16 %v8917, %v8914
    %v9101 = vpack.c.b16 %v8918, %v8915
    %v9102 = vpack.c.b16 %v8919, %v8916
    %v9103 = vpack.c.b16 %v8920, %v8920
    %v9104 = vpack.c.b16 %v8921, %v8921
    %v9105 = vpack.c.b16 %v8922, %v8922
    %v9287 = vsel %vm1724, %v8075, 0
    %v9290 = vsel %vm352, %v9103, 0
    %v9293 = vsel %vm352, %v9104, 0
    %v9296 = vsel %vm352, %v9105, 0
    %9298 = vmatprep.subr.bf16.mxu0 %v8924
    %9299 = vmatpush1.bf16.msra.mxu0 %v8923
    %9300 = vmatprep.subr.bf16.mxu0 %v8927
    %9301 = vmatpush1.bf16.msra.mxu0 %v8926
    %9302 = vmatprep.subr.bf16.mxu0 %v8930
    %9303 = vmatpush1.bf16.msra.mxu0 %v8929
    %9304 = vmatprep.subr.bf16.mxu0 %v8933
    %9305 = vmatpush1.bf16.msra.mxu0 %v8932
    %9306 = vmatprep.subr.bf16.mxu0 %v8936
    %9307 = vmatpush1.bf16.msra.mxu0 %v8935
    %9308 = vmatprep.subr.bf16.mxu0 %v8939
    %9309 = vmatpush1.bf16.msra.mxu0 %v8938
    %9310 = vmatprep.subr.bf16.mxu0 %v8942
    %9311 = vmatpush1.bf16.msra.mxu0 %v8941
    %9312 = vmatprep.subr.bf16.mxu0 %v8945
    %9313 = vmatpush1.bf16.msra.mxu0 %v8944
    %9314 = vmatprep.subr.bf16.mxu0 %v8948
    %9315 = vmatpush1.bf16.msra.mxu0 %v8947
    %9316 = vmatprep.subr.bf16.mxu0 %v8951
    %9317 = vmatpush1.bf16.msra.mxu0 %v8950
    %9318 = vmatprep.subr.bf16.mxu0 %v8954
    %9319 = vmatpush1.bf16.msra.mxu0 %v8953
    %9320 = vmatprep.subr.bf16.mxu0 %v8957
    %9321 = vmatpush1.bf16.msra.mxu0 %v8956
    %9322 = vmatprep.subr.bf16.mxu0 %v8960
    %9323 = vmatpush1.bf16.msra.mxu0 %v8959
    %9324 = vmatprep.subr.bf16.mxu0 %v8963
    %9325 = vmatpush1.bf16.msra.mxu0 %v8962
    %9326 = vmatprep.subr.bf16.mxu0 %v8966
    %9327 = vmatpush1.bf16.msra.mxu0 %v8965
    %9328 = vmatprep.subr.bf16.mxu0 %v8969
    %9329 = vmatpush1.bf16.msra.mxu0 %v8968
    %9330 = vmatprep.mubr.bf16.mxu0 %v8069
    %9331 = vmatmul.mubr.bf16.gmra.mrb[0].mxu0 %v8068
    %v9332 = vpop.f32.mrb[0].mxu0
    %v9333 = vadd.f32 0.0, %v9332
    %v9334 = vpop.f32.mrb[0].mxu0
    %v9335 = vadd.f32 0.0, %v9334
    %v9336 = vpop.f32.mrb[0].mxu0
    %v9337 = vpop.f32.mrb[0].mxu0
    %9338 = vdwg.mxu0
    %9339 = vmatprep.subr.bf16.mxu0 %v8972
    %9340 = vmatpush1.bf16.msra.mxu0 %v8971
    %9341 = vmatprep.subr.bf16.mxu0 %v8975
    %9342 = vmatpush1.bf16.msra.mxu0 %v8974
    %9343 = vmatprep.subr.bf16.mxu0 %v8978
    %9344 = vmatpush1.bf16.msra.mxu0 %v8977
    %9345 = vmatprep.subr.bf16.mxu0 %v8981
    %9346 = vmatpush1.bf16.msra.mxu0 %v8980
    %9347 = vmatprep.subr.bf16.mxu0 %v8984
    %9348 = vmatpush1.bf16.msra.mxu0 %v8983
    %9349 = vmatprep.subr.bf16.mxu0 %v8987
    %9350 = vmatpush1.bf16.msra.mxu0 %v8986
    %9351 = vmatprep.subr.bf16.mxu0 %v8990
    %9352 = vmatpush1.bf16.msra.mxu0 %v8989
    %9353 = vmatprep.subr.bf16.mxu0 %v8993
    %9354 = vmatpush1.bf16.msra.mxu0 %v8992
    %9355 = vmatprep.subr.bf16.mxu0 %v8996
    %9356 = vmatpush1.bf16.msra.mxu0 %v8995
    %9357 = vmatprep.subr.bf16.mxu0 %v8999
    %9358 = vmatpush1.bf16.msra.mxu0 %v8998
    %9359 = vmatprep.subr.bf16.mxu0 %v9002
    %9360 = vmatpush1.bf16.msra.mxu0 %v9001
    %9361 = vmatprep.subr.bf16.mxu0 %v9005
    %9362 = vmatpush1.bf16.msra.mxu0 %v9004
    %9363 = vmatprep.subr.bf16.mxu0 %v9008
    %9364 = vmatpush1.bf16.msra.mxu0 %v9007
    %9365 = vmatprep.subr.bf16.mxu0 %v9011
    %9366 = vmatpush1.bf16.msra.mxu0 %v9010
    %9367 = vmatprep.subr.bf16.mxu0 %v9014
    %9368 = vmatpush1.bf16.msra.mxu0 %v9013
    %9369 = vmatprep.subr.bf16.mxu0 %v9017
    %9370 = vmatpush1.bf16.msra.mxu0 %v9016
    %9371 = vmatprep.mubr.bf16.mxu0 %v8071
    %9372 = vmatmul.mubr.bf16.gmra.mrb[0].mxu0 %v8070
    %v9373 = vpop.f32.mrb[0].mxu0
    %v9374 = vadd.f32 %v9333, %v9373
    %v9375 = vpop.f32.mrb[0].mxu0
    %v9376 = vadd.f32 %v9335, %v9375
    %v9377 = vpop.f32.mrb[0].mxu0
    %v9378 = vpop.f32.mrb[0].mxu0
    %9379 = vdwg.mxu0
    %9380 = vmatprep.subr.bf16.mxu0 %v9020
    %9381 = vmatpush1.bf16.msra.mxu0 %v9019
    %9382 = vmatprep.subr.bf16.mxu0 %v9023
    %9383 = vmatpush1.bf16.msra.mxu0 %v9022
    %9384 = vmatprep.subr.bf16.mxu0 %v9026
    %9385 = vmatpush1.bf16.msra.mxu0 %v9025
    %9386 = vmatprep.subr.bf16.mxu0 %v9029
    %9387 = vmatpush1.bf16.msra.mxu0 %v9028
    %9388 = vmatprep.subr.bf16.mxu0 %v9032
    %9389 = vmatpush1.bf16.msra.mxu0 %v9031
    %9390 = vmatprep.subr.bf16.mxu0 %v9035
    %9391 = vmatpush1.bf16.msra.mxu0 %v9034
    %9392 = vmatprep.subr.bf16.mxu0 %v9038
    %9393 = vmatpush1.bf16.msra.mxu0 %v9037
    %9394 = vmatprep.subr.bf16.mxu0 %v9041
    %9395 = vmatpush1.bf16.msra.mxu0 %v9040
    %9396 = vmatprep.subr.bf16.mxu0 %v9044
    %9397 = vmatpush1.bf16.msra.mxu0 %v9043
    %9398 = vmatprep.subr.bf16.mxu0 %v9047
    %9399 = vmatpush1.bf16.msra.mxu0 %v9046
    %9400 = vmatprep.subr.bf16.mxu0 %v9050
    %9401 = vmatpush1.bf16.msra.mxu0 %v9049
    %9402 = vmatprep.subr.bf16.mxu0 %v9053
    %9403 = vmatpush1.bf16.msra.mxu0 %v9052
    %9404 = vmatprep.subr.bf16.mxu0 %v9056
    %9405 = vmatpush1.bf16.msra.mxu0 %v9055
    %9406 = vmatprep.subr.bf16.mxu0 %v9059
    %9407 = vmatpush1.bf16.msra.mxu0 %v9058
    %9408 = vmatprep.subr.bf16.mxu0 %v9062
    %9409 = vmatpush1.bf16.msra.mxu0 %v9061
    %9410 = vmatprep.subr.bf16.mxu0 %v9065
    %9411 = vmatpush1.bf16.msra.mxu0 %v9064
    %9412 = vmatprep.mubr.bf16.mxu0 %v8073
    %9413 = vmatmul.mubr.bf16.gmra.mrb[0].mxu0 %v8072
    %v9414 = vpop.f32.mrb[0].mxu0
    %v9415 = vadd.f32 %v9374, %v9414
    %v9416 = vpop.f32.mrb[0].mxu0
    %v9417 = vadd.f32 %v9376, %v9416
    %v9418 = vpop.f32.mrb[0].mxu0
    %v9419 = vpop.f32.mrb[0].mxu0
    %9420 = vdwg.mxu0
    %9421 = vmatprep.subr.bf16.mxu0 %v9068
    %9422 = vmatpush1.bf16.msra.mxu0 %v9067
    %9423 = vmatprep.subr.bf16.mxu0 %v9071
    %9424 = vmatpush1.bf16.msra.mxu0 %v9070
    %9425 = vmatprep.subr.bf16.mxu0 %v9074
    %9426 = vmatpush1.bf16.msra.mxu0 %v9073
    %9427 = vmatprep.subr.bf16.mxu0 %v9077
    %9428 = vmatpush1.bf16.msra.mxu0 %v9076
    %9429 = vmatprep.subr.bf16.mxu0 %v9080
    %9430 = vmatpush1.bf16.msra.mxu0 %v9079
    %9431 = vmatprep.subr.bf16.mxu0 %v9083
    %9432 = vmatpush1.bf16.msra.mxu0 %v9082
    %9433 = vmatprep.subr.bf16.mxu0 %v9086
    %9434 = vmatpush1.bf16.msra.mxu0 %v9085
    %9435 = vmatprep.subr.bf16.mxu0 %v9089
    %9436 = vmatpush1.bf16.msra.mxu0 %v9088
    %9437 = vmatprep.subr.bf16.mxu0 %v9092
    %9438 = vmatpush1.bf16.msra.mxu0 %v9091
    %9439 = vmatprep.subr.bf16.mxu0 %v9095
    %9440 = vmatpush1.bf16.msra.mxu0 %v9094
    %9441 = vmatprep.subr.bf16.mxu0 %v9098
    %9442 = vmatpush1.bf16.msra.mxu0 %v9097
    %9443 = vmatprep.subr.bf16.mxu0 %v9101
    %9444 = vmatpush1.bf16.msra.mxu0 %v9100
    %9445 = vmatprep.subr.bf16.mxu0 %v9293
    %9446 = vmatpush1.bf16.msra.mxu0 %v9290
    %9447 = vmatprep.subr.bf16.mxu0 0
    %9448 = vmatpush1.bf16.msra.mxu0 0
    %9449 = vmatprep.subr.bf16.mxu0 0
    %9450 = vmatpush1.bf16.msra.mxu0 0
    %9451 = vmatprep.subr.bf16.mxu0 0
    %9452 = vmatpush1.bf16.msra.mxu0 0
    %9453 = vmatprep.mubr.bf16.mxu0 %v9287
    %9454 = vmatmul.mubr.bf16.gmra.mrb[0].mxu0 %v8074
    %v9455 = vpop.f32.mrb[0].mxu0
    %v9456 = vadd.f32 %v9415, %v9455
    %v9457 = vpop.f32.mrb[0].mxu0
    %v9458 = vadd.f32 %v9417, %v9457
    %v9459 = vpop.f32.mrb[0].mxu0
    %v9460 = vpop.f32.mrb[0].mxu0
    %9461 = vdwg.mxu0
    %9462 = vmatprep.subr.bf16.mxu0 0
    %9463 = vmatpush1.bf16.msra.mxu0 %v8925
    %9464 = vmatprep.subr.bf16.mxu0 0
    %9465 = vmatpush1.bf16.msra.mxu0 %v8928
    %9466 = vmatprep.subr.bf16.mxu0 0
    %9467 = vmatpush1.bf16.msra.mxu0 %v8931
    %9468 = vmatprep.subr.bf16.mxu0 0
    %9469 = vmatpush1.bf16.msra.mxu0 %v8934
    %9470 = vmatprep.subr.bf16.mxu0 0
    %9471 = vmatpush1.bf16.msra.mxu0 %v8937
    %9472 = vmatprep.subr.bf16.mxu0 0
    %9473 = vmatpush1.bf16.msra.mxu0 %v8940
    %9474 = vmatprep.subr.bf16.mxu0 0
    %9475 = vmatpush1.bf16.msra.mxu0 %v8943
    %9476 = vmatprep.subr.bf16.mxu0 0
    %9477 = vmatpush1.bf16.msra.mxu0 %v8946
    %9478 = vmatprep.subr.bf16.mxu0 0
    %9479 = vmatpush1.bf16.msra.mxu0 %v8949
    %9480 = vmatprep.subr.bf16.mxu0 0
    %9481 = vmatpush1.bf16.msra.mxu0 %v8952
    %9482 = vmatprep.subr.bf16.mxu0 0
    %9483 = vmatpush1.bf16.msra.mxu0 %v8955
    %9484 = vmatprep.subr.bf16.mxu0 0
    %9485 = vmatpush1.bf16.msra.mxu0 %v8958
    %9486 = vmatprep.subr.bf16.mxu0 0
    %9487 = vmatpush1.bf16.msra.mxu0 %v8961
    %9488 = vmatprep.subr.bf16.mxu0 0
    %9489 = vmatpush1.bf16.msra.mxu0 %v8964
    %9490 = vmatprep.subr.bf16.mxu0 0
    %9491 = vmatpush1.bf16.msra.mxu0 %v8967
    %9492 = vmatprep.subr.bf16.mxu0 0
    %9493 = vmatpush1.bf16.msra.mxu0 %v8970
    %9494 = vmatprep.mubr.bf16.mxu0 %v8069
    %9495 = vmatmul.mubr.bf16.gmra.mrb[0].mxu0 %v8068
    %v9496 = vpop.f32.mrb[0].mxu0
    %v9497 = vadd.f32 0.0, %v9496
    %v9498 = vpop.f32.mrb[0].mxu0
    %v9499 = vpop.f32.mrb[0].mxu0
    %v9500 = vpop.f32.mrb[0].mxu0
    %9501 = vdwg.mxu0
    %9502 = vmatprep.subr.bf16.mxu0 0
    %9503 = vmatpush1.bf16.msra.mxu0 %v8973
    %9504 = vmatprep.subr.bf16.mxu0 0
    %9505 = vmatpush1.bf16.msra.mxu0 %v8976
    %9506 = vmatprep.subr.bf16.mxu0 0
    %9507 = vmatpush1.bf16.msra.mxu0 %v8979
    %9508 = vmatprep.subr.bf16.mxu0 0
    %9509 = vmatpush1.bf16.msra.mxu0 %v8982
    %9510 = vmatprep.subr.bf16.mxu0 0
    %9511 = vmatpush1.bf16.msra.mxu0 %v8985
    %9512 = vmatprep.subr.bf16.mxu0 0
    %9513 = vmatpush1.bf16.msra.mxu0 %v8988
    %9514 = vmatprep.subr.bf16.mxu0 0
    %9515 = vmatpush1.bf16.msra.mxu0 %v8991
    %9516 = vmatprep.subr.bf16.mxu0 0
    %9517 = vmatpush1.bf16.msra.mxu0 %v8994
    %9518 = vmatprep.subr.bf16.mxu0 0
    %9519 = vmatpush1.bf16.msra.mxu0 %v8997
    %9520 = vmatprep.subr.bf16.mxu0 0
    %9521 = vmatpush1.bf16.msra.mxu0 %v9000
    %9522 = vmatprep.subr.bf16.mxu0 0
    %9523 = vmatpush1.bf16.msra.mxu0 %v9003
    %9524 = vmatprep.subr.bf16.mxu0 0
    %9525 = vmatpush1.bf16.msra.mxu0 %v9006
    %9526 = vmatprep.subr.bf16.mxu0 0
    %9527 = vmatpush1.bf16.msra.mxu0 %v9009
    %9528 = vmatprep.subr.bf16.mxu0 0
    %9529 = vmatpush1.bf16.msra.mxu0 %v9012
    %9530 = vmatprep.subr.bf16.mxu0 0
    %9531 = vmatpush1.bf16.msra.mxu0 %v9015
    %9532 = vmatprep.subr.bf16.mxu0 0
    %9533 = vmatpush1.bf16.msra.mxu0 %v9018
    %9534 = vmatprep.mubr.bf16.mxu0 %v8071
    %9535 = vmatmul.mubr.bf16.gmra.mrb[0].mxu0 %v8070
    %v9536 = vpop.f32.mrb[0].mxu0
    %v9537 = vadd.f32 %v9497, %v9536
    %v9538 = vpop.f32.mrb[0].mxu0
    %v9539 = vpop.f32.mrb[0].mxu0
    %v9540 = vpop.f32.mrb[0].mxu0
    %9541 = vdwg.mxu0
    %9542 = vmatprep.subr.bf16.mxu0 0
    %9543 = vmatpush1.bf16.msra.mxu0 %v9021
    %9544 = vmatprep.subr.bf16.mxu0 0
    %9545 = vmatpush1.bf16.msra.mxu0 %v9024
    %9546 = vmatprep.subr.bf16.mxu0 0
    %9547 = vmatpush1.bf16.msra.mxu0 %v9027
    %9548 = vmatprep.subr.bf16.mxu0 0
    %9549 = vmatpush1.bf16.msra.mxu0 %v9030
    %9550 = vmatprep.subr.bf16.mxu0 0
    %9551 = vmatpush1.bf16.msra.mxu0 %v9033
    %9552 = vmatprep.subr.bf16.mxu0 0
    %9553 = vmatpush1.bf16.msra.mxu0 %v9036
    %9554 = vmatprep.subr.bf16.mxu0 0
    %9555 = vmatpush1.bf16.msra.mxu0 %v9039
    %9556 = vmatprep.subr.bf16.mxu0 0
    %9557 = vmatpush1.bf16.msra.mxu0 %v9042
    %9558 = vmatprep.subr.bf16.mxu0 0
    %9559 = vmatpush1.bf16.msra.mxu0 %v9045
    %9560 = vmatprep.subr.bf16.mxu0 0
    %9561 = vmatpush1.bf16.msra.mxu0 %v9048
    %9562 = vmatprep.subr.bf16.mxu0 0
    %9563 = vmatpush1.bf16.msra.mxu0 %v9051
    %9564 = vmatprep.subr.bf16.mxu0 0
    %9565 = vmatpush1.bf16.msra.mxu0 %v9054
    %9566 = vmatprep.subr.bf16.mxu0 0
    %9567 = vmatpush1.bf16.msra.mxu0 %v9057
    %9568 = vmatprep.subr.bf16.mxu0 0
    %9569 = vmatpush1.bf16.msra.mxu0 %v9060
    %9570 = vmatprep.subr.bf16.mxu0 0
    %9571 = vmatpush1.bf16.msra.mxu0 %v9063
    %9572 = vmatprep.subr.bf16.mxu0 0
    %9573 = vmatpush1.bf16.msra.mxu0 %v9066
    %9574 = vmatprep.mubr.bf16.mxu0 %v8073
    %9575 = vmatmul.mubr.bf16.gmra.mrb[0].mxu0 %v8072
    %v9576 = vpop.f32.mrb[0].mxu0
    %v9577 = vadd.f32 %v9537, %v9576
    %v9578 = vpop.f32.mrb[0].mxu0
    %v9579 = vpop.f32.mrb[0].mxu0
    %v9580 = vpop.f32.mrb[0].mxu0
    %9581 = vdwg.mxu0
    %9582 = vmatprep.subr.bf16.mxu0 0
    %9583 = vmatpush1.bf16.msra.mxu0 %v9069
    %9584 = vmatprep.subr.bf16.mxu0 0
    %9585 = vmatpush1.bf16.msra.mxu0 %v9072
    %9586 = vmatprep.subr.bf16.mxu0 0
    %9587 = vmatpush1.bf16.msra.mxu0 %v9075
    %9588 = vmatprep.subr.bf16.mxu0 0
    %9589 = vmatpush1.bf16.msra.mxu0 %v9078
    %9590 = vmatprep.subr.bf16.mxu0 0
    %9591 = vmatpush1.bf16.msra.mxu0 %v9081
    %9592 = vmatprep.subr.bf16.mxu0 0
    %9593 = vmatpush1.bf16.msra.mxu0 %v9084
    %9594 = vmatprep.subr.bf16.mxu0 0
    %9595 = vmatpush1.bf16.msra.mxu0 %v9087
    %9596 = vmatprep.subr.bf16.mxu0 0
    %9597 = vmatpush1.bf16.msra.mxu0 %v9090
    %9598 = vmatprep.subr.bf16.mxu0 0
    %9599 = vmatpush1.bf16.msra.mxu0 %v9093
    %9600 = vmatprep.subr.bf16.mxu0 0
    %9601 = vmatpush1.bf16.msra.mxu0 %v9096
    %9602 = vmatprep.subr.bf16.mxu0 0
    %9603 = vmatpush1.bf16.msra.mxu0 %v9099
    %9604 = vmatprep.subr.bf16.mxu0 0
    %9605 = vmatpush1.bf16.msra.mxu0 %v9102
    %9606 = vmatprep.subr.bf16.mxu0 0
    %9607 = vmatpush1.bf16.msra.mxu0 %v9296
    %9608 = vmatprep.subr.bf16.mxu0 0
    %9609 = vmatpush1.bf16.msra.mxu0 0
    %9610 = vmatprep.subr.bf16.mxu0 0
    %9611 = vmatpush1.bf16.msra.mxu0 0
    %9612 = vmatprep.subr.bf16.mxu0 0
    %9613 = vmatpush1.bf16.msra.mxu0 0
    %9614 = vmatprep.mubr.bf16.mxu0 %v9287
    %9615 = vmatmul.mubr.bf16.gmra.mrb[0].mxu0 %v8074
    %v9616 = vpop.f32.mrb[0].mxu0
    %v9617 = vadd.f32 %v9577, %v9616
    %v9618 = vpop.f32.mrb[0].mxu0
    %v9619 = vpop.f32.mrb[0].mxu0
    %v9620 = vpop.f32.mrb[0].mxu0
    %9621 = vdwg.mxu0
    %v9622 = vtanh.pop %v9456
    %v9623 = vtanh.pop %v9458
    %v9624 = vtanh.pop %v9617
    %v9628 = vcombine.low %v9622, %v9623
    %v9630 = vunpack.c.l.s4 1983009808
    %v9631 = vunpack.c.0.s8 %v9630
    %v9632 = vlaneseq
    %v9633 = vshrl.u32 %v9632, 7
    %v9634 = vsub.s32 %v9631, %v9633
    %v9635 = vrot.slane %v9628, %v9634
    %v9637 = vunpack.c.l.s4 1983009808
    %v9638 = vunpack.c.0.s8 %v9637
    %v9639 = vlaneseq
    %v9640 = vshrl.u32 %v9639, 7
    %v9641 = vsub.s32 %v9638, %v9640
    %v9642 = vrot.slane %v9624, %v9641
    %v9643 = vcombine.low %v9635, %v9642
    %vm9645 = vcmask 1041408
    %vm9646 = vcmask 1043458
    %vm9647 = vmor %vm9646, %vm9645
    %vm9648 = vcmask 873476
    %vm9649 = vmor %vm9648, %vm9647
    %9650 = vst.msk [vmem:[%s65] sm:$0x3f] %vm9649, %v9643
    // Predicated region
    $region198: #{forward.1} parent=1 // pred_check
      _
    $region199: #{forward.1} parent=1 // pred_check_branch
      %9652 = sbr.rel (0) target = $region201
    $region200: #{forward.1} parent=1 // pred_region
      _
    $region201: #{forward.1} parent=1 // pred_fallthru
      _
    // Predicated region
    $region202: #{forward.1} parent=1 // pred_check
      _
    $region203: #{forward.1} parent=1 // pred_check_branch
      %9654 = sbr.rel (0) target = $region205
    $region204: #{forward.1} parent=1 // pred_region
      _
    $region205: #{forward.1} parent=1 // pred_fallthru
      _
    %9655 = vsyncpa [#allocation3], 1
    %9656 = vsyncpa [#allocation5], 1
    %9657 = vsyncpa [#allocation8], 1
    %9658 = vsyncpa [#allocation11], 1
    %9659 = vsyncpa [#allocation14], 1
    %9660 = vsyncpa [#allocation17], 1
    %9661 = vsyncpa [#allocation20], 1
    %9662 = vsyncpa [#allocation23], 1
    %9663 = vsyncpa [#allocation26], 1

</llo_original>
